<compile_context>
chip_gen: v7x
topology: tpu7x:2x2x1
jax: 0.10.0
libtpu: 0.0.40
codegen_flags: <defaults>
</compile_context>

<pallas_src>
import jax
import jax.numpy as jnp
from jax.experimental import pallas as pl
from jax.experimental.pallas import tpu as pltpu

EMB = 768            # BERT hidden / LSTM input size
HIDDEN = 384         # LSTM hidden size per direction
G3 = 3 * HIDDEN      # (i, g, o) gates per direction, f-gate stripped -> 1152
NUM_CLASSES = 2
CLS_PAD = 128        # lane-dense padded classifier width


def _cell_igo(g):
    """LSTM cell with h0 = c0 = 0, gates in (i, g, o) order. g: [B, 3*HIDDEN] float32."""
    i = jax.nn.sigmoid(g[:, 0 * HIDDEN:1 * HIDDEN])
    gg = jnp.tanh(g[:, 1 * HIDDEN:2 * HIDDEN])
    o = jax.nn.sigmoid(g[:, 2 * HIDDEN:3 * HIDDEN])
    c = i * gg                      # f * c0 == 0 (dropped)
    return o * jnp.tanh(c)


def _bilstm_layer(h, w_ref, b_ref):
    """Fused fwd|bwd single-step bidirectional LSTM layer. h: [B, 768] f32 -> [B, 768] f32."""
    g = jnp.dot(h.astype(jnp.bfloat16), w_ref[...],
                preferred_element_type=jnp.float32) + b_ref[...]          # [B, 2*1152]
    hf = _cell_igo(g[:, :G3])
    hb = _cell_igo(g[:, G3:])
    return jnp.concatenate([hf, hb], axis=-1)                             # [B, 768]


def net_kernel(x_ref,
               w0_ref, b0_ref,
               w1_ref, b1_ref,
               att_ref, cls_w_ref, cls_b_ref,
               out_ref):
    x = x_ref[...]                                                        # [B, 768] f32

    # ---- LSTM layer 0 + layer 1 (bidirectional; seq_len == 1; h0=c0=0 so W_hh is dead,
    #      b_hh is folded into the bias; inter-layer dropout is an inference no-op).
    h1 = _bilstm_layer(x, w0_ref, b0_ref)                                 # [B, 768]
    h2 = _bilstm_layer(h1, w1_ref, b1_ref)                                # [B, 768]

    # ---- Attention: score = (x_in @ w[768,1]).squeeze() -> [B];
    # F.softmax with no dim on a 1-D tensor => softmax over the batch dimension.
    score = jnp.sum(h2 * att_ref[...], axis=-1, keepdims=True)            # [B, 1]
    score = score - jnp.max(score)
    p = jnp.exp(score)
    denom = jnp.sum(p, axis=0, keepdims=True)                             # [1, 1]
    p = p * pl.reciprocal(denom, approx=True)                             # softmax over batch (EUP divide)
    cond = h2 * p                                                         # sum over length-1 dim is a no-op

    # ---- Classifier: Linear(768 -> 2), padded to 128 output lanes (sliced in the wrapper).
    out_ref[...] = (jnp.dot(cond.astype(jnp.bfloat16), cls_w_ref[...],
                            preferred_element_type=jnp.float32)
                    + cls_b_ref[...])                                     # [B, 128]


def net_forward(x, params):
    B = x.shape[0]
    args = (x,
            params['w0'], params['b0'],
            params['w1'], params['b1'],
            params['att'], params['cls_w'], params['cls_b'])

    flops = 2 * B * EMB * (2 * G3) * 2 + 2 * B * EMB * CLS_PAD
    transcendentals = 2 * B * 2 * 4 * HIDDEN + 2 * B        # sigmoids/tanhs + exp/reciprocal
    bytes_accessed = sum(int(a.size) * a.dtype.itemsize for a in args) + B * CLS_PAD * 4

    out_padded = pl.pallas_call(
        net_kernel,
        out_shape=jax.ShapeDtypeStruct((B, CLS_PAD), jnp.float32),
        in_specs=[pl.BlockSpec(memory_space=pltpu.MemorySpace.VMEM) for _ in args],
        out_specs=pl.BlockSpec(memory_space=pltpu.MemorySpace.VMEM),
        compiler_params=pltpu.CompilerParams(vmem_limit_bytes=32 << 20),
        cost_estimate=pl.CostEstimate(flops=flops,
                                      transcendentals=transcendentals,
                                      bytes_accessed=bytes_accessed),
    )(*args)
    return out_padded[:, :NUM_CLASSES]


def init_params(key):
    """Deterministic synthetic parameters matching the module's shapes.

    LSTM per layer/direction: W_ih [4H, in], W_hh [4H, H], b_ih + b_hh [4H].
    Here: h0 == 0 kills W_hh, c0 == 0 kills the f-gate, so per direction we keep
    only the (i, g, o) columns of W_ih^T -> [in, 3H], bias = b_ih + b_hh (i,g,o slice).
    The two directions are concatenated along the output axis -> [in, 2*3H].
    Matmul weights stored in bfloat16; biases / attention kept in float32.
    """
    ks = jax.random.split(key, 12)
    s = 0.02

    def w(k, shape, dtype=jnp.float32):
        return (s * jax.random.normal(k, shape, dtype=jnp.float32)).astype(dtype)

    cls_w = jnp.zeros((EMB, CLS_PAD), jnp.float32)
    cls_w = cls_w.at[:, :NUM_CLASSES].set(s * jax.random.normal(ks[8], (EMB, NUM_CLASSES)))
    cls_b = jnp.zeros((1, CLS_PAD), jnp.float32)
    cls_b = cls_b.at[:, :NUM_CLASSES].set(s * jax.random.normal(ks[9], (1, NUM_CLASSES)))

    return {
        # layer 0: fused fwd|bwd (i,g,o) gate matrices [768, 2*1152], bias [1, 2*1152]
        'w0': w(ks[0], (EMB, 2 * G3), jnp.bfloat16),
        'b0': w(ks[1], (1, 2 * G3)),
        # layer 1: input 768 = 2*384 -> fused fwd|bwd gates
        'w1': w(ks[2], (EMB, 2 * G3), jnp.bfloat16),
        'b1': w(ks[3], (1, 2 * G3)),
        # Attention(768): parameter [768, 1] stored as [1, 768]
        'att': w(ks[4], (1, EMB)),
        # Linear(768, 2): weight [2, 768] stored transposed + lane-padded to [768, 128]
        'cls_w': cls_w.astype(jnp.bfloat16),
        'cls_b': cls_b,
    }


def net_forward_ref(x, params):
    """Pure-JAX reference with identical semantics (and identical bf16 operand handling)."""
    def cell(g):
        i = jax.nn.sigmoid(g[:, :HIDDEN])
        gg = jnp.tanh(g[:, HIDDEN:2 * HIDDEN])
        o = jax.nn.sigmoid(g[:, 2 * HIDDEN:])
        return o * jnp.tanh(i * gg)

    def layer(h, w, b):
        g = jnp.dot(h.astype(jnp.bfloat16), w, preferred_element_type=jnp.float32) + b
        return jnp.concatenate([cell(g[:, :G3]), cell(g[:, G3:])], axis=-1)

    h1 = layer(x, params['w0'], params['b0'])
    h2 = layer(h1, params['w1'], params['b1'])
    score = jnp.sum(h2 * params['att'], axis=-1, keepdims=True)
    p = jax.nn.softmax(score, axis=0)                 # softmax over the batch dim (PyTorch quirk)
    cond = h2 * p
    out = jnp.dot(cond.astype(jnp.bfloat16), params['cls_w'],
                  preferred_element_type=jnp.float32) + params['cls_b']
    return out[:, :NUM_CLASSES]


if __name__ == "__main__":
    key = jax.random.PRNGKey(0)
    k_x, k_p = jax.random.split(key)

    B = 8
    # stand-in for the pooled BERT output ([B, 768] float32)
    x = jax.random.normal(k_x, (B, EMB), dtype=jnp.float32)
    params = init_params(k_p)

    out = net_forward(x, params)
    out = jax.block_until_ready(out)

    ref = net_forward_ref(x, params)
    assert out.shape == (B, NUM_CLASSES)
    assert jnp.allclose(out, ref, atol=5e-3, rtol=5e-3), "mismatch vs JAX reference"

    print("KERNEL_OK")
</pallas_src>

<mosaic_0001>
module attributes {stable_mosaic.version = 11 : i64} {
  func.func @net_kernel(%arg0: memref<8x768xf32, #tpu.memory_space<vmem>>, %arg1: memref<768x2304xbf16, #tpu.memory_space<vmem>>, %arg2: memref<1x2304xf32, #tpu.memory_space<vmem>>, %arg3: memref<768x2304xbf16, #tpu.memory_space<vmem>>, %arg4: memref<1x2304xf32, #tpu.memory_space<vmem>>, %arg5: memref<1x768xf32, #tpu.memory_space<vmem>>, %arg6: memref<768x128xbf16, #tpu.memory_space<vmem>>, %arg7: memref<1x128xf32, #tpu.memory_space<vmem>>, %arg8: memref<8x128xf32, #tpu.memory_space<vmem>>) attributes {dimension_semantics = [], scalar_prefetch = 0 : i64, scratch_operands = 0 : i64, tpu.core_type = #tpu.core_type<tc>} {
    %c0 = arith.constant 0 : index
    %c0_0 = arith.constant 0 : index
    %0 = vector.load %arg0[%c0, %c0_0] : memref<8x768xf32, #tpu.memory_space<vmem>>, vector<8x768xf32>
    %1 = arith.truncf %0 : vector<8x768xf32> to vector<8x768xbf16>
    %c0_1 = arith.constant 0 : index
    %c0_2 = arith.constant 0 : index
    %2 = vector.load %arg1[%c0_1, %c0_2] : memref<768x2304xbf16, #tpu.memory_space<vmem>>, vector<768x2304xbf16>
    %cst = arith.constant dense<0.000000e+00> : vector<8x2304xf32>
    %3 = tpu.matmul %1, %2, %cst {dimension_numbers = #tpu.dot_dimension_numbers<[1], [0], [0], [1], [0, 0, 1, 1], [], []>} : vector<8x768xbf16>, vector<768x2304xbf16>, vector<8x2304xf32> -> vector<8x2304xf32>
    %c0_3 = arith.constant 0 : index
    %c0_4 = arith.constant 0 : index
    %4 = vector.load %arg2[%c0_3, %c0_4] : memref<1x2304xf32, #tpu.memory_space<vmem>>, vector<1x2304xf32>
    %5 = vector.broadcast %4 : vector<1x2304xf32> to vector<8x2304xf32>
    %6 = arith.addf %3, %5 : vector<8x2304xf32>
    %7 = vector.extract_strided_slice %6 {offsets = [0, 0], sizes = [8, 1152], strides = [1, 1]} : vector<8x2304xf32> to vector<8x1152xf32>
    %8 = vector.extract_strided_slice %7 {offsets = [0, 0], sizes = [8, 384], strides = [1, 1]} : vector<8x1152xf32> to vector<8x384xf32>
    %9 = arith.negf %8 : vector<8x384xf32>
    %10 = math.exp %9 : vector<8x384xf32>
    %cst_5 = arith.constant 1.000000e+00 : f32
    %11 = vector.broadcast %cst_5 : f32 to vector<8x384xf32>
    %12 = arith.addf %11, %10 : vector<8x384xf32>
    %13 = arith.divf %11, %12 : vector<8x384xf32>
    %14 = vector.extract_strided_slice %7 {offsets = [0, 384], sizes = [8, 384], strides = [1, 1]} : vector<8x1152xf32> to vector<8x384xf32>
    %15 = math.tanh %14 : vector<8x384xf32>
    %16 = vector.extract_strided_slice %7 {offsets = [0, 768], sizes = [8, 384], strides = [1, 1]} : vector<8x1152xf32> to vector<8x384xf32>
    %17 = arith.negf %16 : vector<8x384xf32>
    %18 = math.exp %17 : vector<8x384xf32>
    %cst_6 = arith.constant 1.000000e+00 : f32
    %19 = vector.broadcast %cst_6 : f32 to vector<8x384xf32>
    %20 = arith.addf %19, %18 : vector<8x384xf32>
    %21 = arith.divf %19, %20 : vector<8x384xf32>
    %22 = arith.mulf %13, %15 : vector<8x384xf32>
    %23 = math.tanh %22 : vector<8x384xf32>
    %24 = arith.mulf %21, %23 : vector<8x384xf32>
    %25 = vector.extract_strided_slice %6 {offsets = [0, 1152], sizes = [8, 1152], strides = [1, 1]} : vector<8x2304xf32> to vector<8x1152xf32>
    %26 = vector.extract_strided_slice %25 {offsets = [0, 0], sizes = [8, 384], strides = [1, 1]} : vector<8x1152xf32> to vector<8x384xf32>
    %27 = arith.negf %26 : vector<8x384xf32>
    %28 = math.exp %27 : vector<8x384xf32>
    %cst_7 = arith.constant 1.000000e+00 : f32
    %29 = vector.broadcast %cst_7 : f32 to vector<8x384xf32>
    %30 = arith.addf %29, %28 : vector<8x384xf32>
    %31 = arith.divf %29, %30 : vector<8x384xf32>
    %32 = vector.extract_strided_slice %25 {offsets = [0, 384], sizes = [8, 384], strides = [1, 1]} : vector<8x1152xf32> to vector<8x384xf32>
    %33 = math.tanh %32 : vector<8x384xf32>
    %34 = vector.extract_strided_slice %25 {offsets = [0, 768], sizes = [8, 384], strides = [1, 1]} : vector<8x1152xf32> to vector<8x384xf32>
    %35 = arith.negf %34 : vector<8x384xf32>
    %36 = math.exp %35 : vector<8x384xf32>
    %cst_8 = arith.constant 1.000000e+00 : f32
    %37 = vector.broadcast %cst_8 : f32 to vector<8x384xf32>
    %38 = arith.addf %37, %36 : vector<8x384xf32>
    %39 = arith.divf %37, %38 : vector<8x384xf32>
    %40 = arith.mulf %31, %33 : vector<8x384xf32>
    %41 = math.tanh %40 : vector<8x384xf32>
    %42 = arith.mulf %39, %41 : vector<8x384xf32>
    %43 = tpu.concatenate %24, %42 in 1 : vector<8x384xf32>, vector<8x384xf32> -> vector<8x768xf32>
    %44 = arith.truncf %43 : vector<8x768xf32> to vector<8x768xbf16>
    %c0_9 = arith.constant 0 : index
    %c0_10 = arith.constant 0 : index
    %45 = vector.load %arg3[%c0_9, %c0_10] : memref<768x2304xbf16, #tpu.memory_space<vmem>>, vector<768x2304xbf16>
    %cst_11 = arith.constant dense<0.000000e+00> : vector<8x2304xf32>
    %46 = tpu.matmul %44, %45, %cst_11 {dimension_numbers = #tpu.dot_dimension_numbers<[1], [0], [0], [1], [0, 0, 1, 1], [], []>} : vector<8x768xbf16>, vector<768x2304xbf16>, vector<8x2304xf32> -> vector<8x2304xf32>
    %c0_12 = arith.constant 0 : index
    %c0_13 = arith.constant 0 : index
    %47 = vector.load %arg4[%c0_12, %c0_13] : memref<1x2304xf32, #tpu.memory_space<vmem>>, vector<1x2304xf32>
    %48 = vector.broadcast %47 : vector<1x2304xf32> to vector<8x2304xf32>
    %49 = arith.addf %46, %48 : vector<8x2304xf32>
    %50 = vector.extract_strided_slice %49 {offsets = [0, 0], sizes = [8, 1152], strides = [1, 1]} : vector<8x2304xf32> to vector<8x1152xf32>
    %51 = vector.extract_strided_slice %50 {offsets = [0, 0], sizes = [8, 384], strides = [1, 1]} : vector<8x1152xf32> to vector<8x384xf32>
    %52 = arith.negf %51 : vector<8x384xf32>
    %53 = math.exp %52 : vector<8x384xf32>
    %cst_14 = arith.constant 1.000000e+00 : f32
    %54 = vector.broadcast %cst_14 : f32 to vector<8x384xf32>
    %55 = arith.addf %54, %53 : vector<8x384xf32>
    %56 = arith.divf %54, %55 : vector<8x384xf32>
    %57 = vector.extract_strided_slice %50 {offsets = [0, 384], sizes = [8, 384], strides = [1, 1]} : vector<8x1152xf32> to vector<8x384xf32>
    %58 = math.tanh %57 : vector<8x384xf32>
    %59 = vector.extract_strided_slice %50 {offsets = [0, 768], sizes = [8, 384], strides = [1, 1]} : vector<8x1152xf32> to vector<8x384xf32>
    %60 = arith.negf %59 : vector<8x384xf32>
    %61 = math.exp %60 : vector<8x384xf32>
    %cst_15 = arith.constant 1.000000e+00 : f32
    %62 = vector.broadcast %cst_15 : f32 to vector<8x384xf32>
    %63 = arith.addf %62, %61 : vector<8x384xf32>
    %64 = arith.divf %62, %63 : vector<8x384xf32>
    %65 = arith.mulf %56, %58 : vector<8x384xf32>
    %66 = math.tanh %65 : vector<8x384xf32>
    %67 = arith.mulf %64, %66 : vector<8x384xf32>
    %68 = vector.extract_strided_slice %49 {offsets = [0, 1152], sizes = [8, 1152], strides = [1, 1]} : vector<8x2304xf32> to vector<8x1152xf32>
    %69 = vector.extract_strided_slice %68 {offsets = [0, 0], sizes = [8, 384], strides = [1, 1]} : vector<8x1152xf32> to vector<8x384xf32>
    %70 = arith.negf %69 : vector<8x384xf32>
    %71 = math.exp %70 : vector<8x384xf32>
    %cst_16 = arith.constant 1.000000e+00 : f32
    %72 = vector.broadcast %cst_16 : f32 to vector<8x384xf32>
    %73 = arith.addf %72, %71 : vector<8x384xf32>
    %74 = arith.divf %72, %73 : vector<8x384xf32>
    %75 = vector.extract_strided_slice %68 {offsets = [0, 384], sizes = [8, 384], strides = [1, 1]} : vector<8x1152xf32> to vector<8x384xf32>
    %76 = math.tanh %75 : vector<8x384xf32>
    %77 = vector.extract_strided_slice %68 {offsets = [0, 768], sizes = [8, 384], strides = [1, 1]} : vector<8x1152xf32> to vector<8x384xf32>
    %78 = arith.negf %77 : vector<8x384xf32>
    %79 = math.exp %78 : vector<8x384xf32>
    %cst_17 = arith.constant 1.000000e+00 : f32
    %80 = vector.broadcast %cst_17 : f32 to vector<8x384xf32>
    %81 = arith.addf %80, %79 : vector<8x384xf32>
    %82 = arith.divf %80, %81 : vector<8x384xf32>
    %83 = arith.mulf %74, %76 : vector<8x384xf32>
    %84 = math.tanh %83 : vector<8x384xf32>
    %85 = arith.mulf %82, %84 : vector<8x384xf32>
    %86 = tpu.concatenate %67, %85 in 1 : vector<8x384xf32>, vector<8x384xf32> -> vector<8x768xf32>
    %c0_18 = arith.constant 0 : index
    %c0_19 = arith.constant 0 : index
    %87 = vector.load %arg5[%c0_18, %c0_19] : memref<1x768xf32, #tpu.memory_space<vmem>>, vector<1x768xf32>
    %88 = vector.broadcast %87 : vector<1x768xf32> to vector<8x768xf32>
    %89 = arith.mulf %86, %88 : vector<8x768xf32>
    %cst_20 = arith.constant dense<0.000000e+00> : vector<8xf32>
    %90 = vector.multi_reduction <add>, %89, %cst_20 [1] : vector<8x768xf32> to vector<8xf32>
    %91 = vector.shape_cast %90 : vector<8xf32> to vector<8x1xf32>
    %92 = vector.shape_cast %91 : vector<8x1xf32> to vector<1x8x1xf32>
    %cst_21 = arith.constant dense<0xFF800000> : vector<1xf32>
    %93 = vector.multi_reduction <maximumf>, %92, %cst_21 [1, 2] : vector<1x8x1xf32> to vector<1xf32>
    %94 = vector.shape_cast %93 : vector<1xf32> to vector<1x1x1xf32>
    %95 = vector.extract %94[0, 0, 0] : f32 from vector<1x1x1xf32>
    %96 = vector.broadcast %95 : f32 to vector<8x1xf32>
    %97 = arith.subf %91, %96 : vector<8x1xf32>
    %98 = math.exp %97 : vector<8x1xf32>
    %cst_22 = arith.constant dense<0.000000e+00> : vector<1xf32>
    %99 = vector.multi_reduction <add>, %98, %cst_22 [0] : vector<8x1xf32> to vector<1xf32>
    %100 = vector.shape_cast %99 : vector<1xf32> to vector<1x1xf32>
    %101 = tpu.reciprocal %100 {approx = true} : vector<1x1xf32> -> vector<1x1xf32>
    %102 = vector.broadcast %101 : vector<1x1xf32> to vector<8x1xf32>
    %103 = arith.mulf %98, %102 : vector<8x1xf32>
    %104 = vector.broadcast %103 : vector<8x1xf32> to vector<8x768xf32>
    %105 = arith.mulf %86, %104 : vector<8x768xf32>
    %106 = arith.truncf %105 : vector<8x768xf32> to vector<8x768xbf16>
    %c0_23 = arith.constant 0 : index
    %c0_24 = arith.constant 0 : index
    %107 = vector.load %arg6[%c0_23, %c0_24] : memref<768x128xbf16, #tpu.memory_space<vmem>>, vector<768x128xbf16>
    %cst_25 = arith.constant dense<0.000000e+00> : vector<8x128xf32>
    %108 = tpu.matmul %106, %107, %cst_25 {dimension_numbers = #tpu.dot_dimension_numbers<[1], [0], [0], [1], [0, 0, 1, 1], [], []>} : vector<8x768xbf16>, vector<768x128xbf16>, vector<8x128xf32> -> vector<8x128xf32>
    %c0_26 = arith.constant 0 : index
    %c0_27 = arith.constant 0 : index
    %109 = vector.load %arg7[%c0_26, %c0_27] : memref<1x128xf32, #tpu.memory_space<vmem>>, vector<1x128xf32>
    %110 = vector.broadcast %109 : vector<1x128xf32> to vector<8x128xf32>
    %111 = arith.addf %108, %110 : vector<8x128xf32>
    %c0_28 = arith.constant 0 : index
    %c0_29 = arith.constant 0 : index
    %112 = vector.load %arg8[%c0_28, %c0_29] : memref<8x128xf32, #tpu.memory_space<vmem>>, vector<8x128xf32>
    tpu.vector_store %arg8[%c0_28, %c0_29], %111 {strides = array<i32>} : memref<8x128xf32, #tpu.memory_space<vmem>>, vector<8x128xf32>,
    return
  }
}

</mosaic_0001>

<llo_original>
// kernel: tpu_custom_call.1
$region0: #{tpu_custom_call.1}
  #allocation0 [shape = 'u32[]', space=smem, size = 0x4, offset = 0x4, fixed_abs, tag = 'smem constant byte address 0x4 - core index']
  #allocation1 [shape = 'u32[144,128]{1,0:T(1,128)}', space=vmem, size = 0x12000, scoped, tag = 'internal scratch']
  %s0 = inlined_call_operand.hbm [shape: f32[8,768], index: 0, kind: input, shape index: {}]
  %s1 = inlined_call_operand.hbm [shape: bf16[768,2304], index: 1, kind: input, shape index: {}]
  %s2 = inlined_call_operand.hbm [shape: f32[1,2304], index: 2, kind: input, shape index: {}]
  %s3 = inlined_call_operand.hbm [shape: bf16[768,2304], index: 3, kind: input, shape index: {}]
  %s4 = inlined_call_operand.hbm [shape: f32[1,2304], index: 4, kind: input, shape index: {}]
  %s5 = inlined_call_operand.hbm [shape: f32[1,768], index: 5, kind: input, shape index: {}]
  %s6 = inlined_call_operand.hbm [shape: bf16[768,128], index: 6, kind: input, shape index: {}]
  %s7 = inlined_call_operand.hbm [shape: f32[1,128], index: 7, kind: input, shape index: {}]
  %s8 = inlined_call_operand.hbm [shape: f32[8,128], index: 8, kind: output, shape index: {}]
  %s9 = sld [smem:[#allocation0]]
  $region74: #{tpu_custom_call.1} parent=0
    _
  %s11 = ssub.s32 1, %s9
  %s12 = scalar_select 0, %s11, %s9
  $region1: #{tpu_custom_call.1} parent=0
    #allocation2 [shape = 'u8[24576]{0}', space=vmem, size = 0x6000, scoped, tag = 'input window, operand 0, single buffered']
    #allocation3 [shape = 's32[1]{0}', space=sflag, size = 0x4, scoped, tag = 'scoped memory for tpu_custom_call.1']
    #allocation4 [shape = 's32[1]{0}', space=sflag, size = 0x4, scoped, tag = 'scoped memory for tpu_custom_call.1']
    #allocation5 [shape = 'u8[3538944]{0}', space=vmem, size = 0x360000, scoped, tag = 'input window, operand 1, single buffered']
    #allocation6 [shape = 's32[1]{0}', space=sflag, size = 0x4, scoped, tag = 'scoped memory for tpu_custom_call.1']
    #allocation7 [shape = 'u8[9216]{0}', space=vmem, size = 0x2400, scoped, tag = 'input window, operand 2, single buffered']
    #allocation8 [shape = 'u8[3538944]{0}', space=vmem, size = 0x360000, scoped, tag = 'input window, operand 3, single buffered']
    #allocation9 [shape = 's32[1]{0}', space=sflag, size = 0x4, scoped, tag = 'scoped memory for tpu_custom_call.1']
    #allocation10 [shape = 'u8[9216]{0}', space=vmem, size = 0x2400, scoped, tag = 'input window, operand 4, single buffered']
    #allocation11 [shape = 'u8[3072]{0}', space=vmem, size = 0xc00, scoped, tag = 'input window, operand 5, single buffered']
    #allocation12 [shape = 's32[1]{0}', space=sflag, size = 0x4, scoped, tag = 'scoped memory for tpu_custom_call.1']
    #allocation13 [shape = 'u8[196608]{0}', space=vmem, size = 0x30000, scoped, tag = 'input window, operand 6, single buffered']
    #allocation14 [shape = 'u8[512]{0}', space=vmem, size = 0x400, scoped, tag = 'input window, operand 7, single buffered']
    #allocation15 [shape = 's32[1]{0}', space=sflag, size = 0x4, scoped, tag = 'scoped memory for tpu_custom_call.1']
    #allocation16 [shape = 'u8[4096]{0}', space=vmem, size = 0x1000, scoped, tag = 'output window, operand 0, single buffered']
    %13 = vsyncpa [#allocation3], 0
    %14 = vsyncpa [#allocation6], 0
    %15 = vsyncpa [#allocation9], 0
    %16 = vsyncpa [#allocation12], 0
    %17 = vsyncpa [#allocation15], 0
    %18 = vsyncpa [#allocation4], 0
    // Predicated region
    $region2: #{tpu_custom_call.1} parent=1 // pred_check
      _
    $region3: #{tpu_custom_call.1} parent=1 // pred_check_branch
      %20 = sbr.rel (0) target = $region5
    $region4: #{tpu_custom_call.1} parent=1 // pred_region
      %s22 = ssub.s32 768, 768
      %23 = vsyncadd [#allocation3], %s22
      %s25 = sshll.u32 [#allocation2], 4
      %s26 = int_to_ptr.vmem [resolvable:$true] %s25
      %28 = dma.hbm_to_vmem [thread:$0]  %s0, 768, %s26, [#allocation3]
    $region5: #{tpu_custom_call.1} parent=1 // pred_fallthru
      _
    // Predicated region
    $region6: #{tpu_custom_call.1} parent=1 // pred_check
      _
    $region7: #{tpu_custom_call.1} parent=1 // pred_check_branch
      %30 = sbr.rel (0) target = $region9
    $region8: #{tpu_custom_call.1} parent=1 // pred_region
      %s32 = ssub.s32 110592, 110592
      %33 = vsyncadd [#allocation6], %s32
      %s34 = sshll.u32 [#allocation5], 4
      %s35 = int_to_ptr.vmem [resolvable:$true] %s34
      %40 = dma.hbm_to_vmem [thread:$0]  %s1, 110592, %s35, [#allocation6], 1152, 1152, 72
    $region9: #{tpu_custom_call.1} parent=1 // pred_fallthru
      _
    // Predicated region
    $region10: #{tpu_custom_call.1} parent=1 // pred_check
      _
    $region11: #{tpu_custom_call.1} parent=1 // pred_check_branch
      %42 = sbr.rel (0) target = $region13
    $region12: #{tpu_custom_call.1} parent=1 // pred_region
      %s44 = ssub.s32 288, 288
      %45 = vsyncadd [#allocation6], %s44
      %s47 = sshll.u32 [#allocation7], 4
      %s48 = int_to_ptr.vmem [resolvable:$true] %s47
      %50 = dma.hbm_to_vmem [thread:$0]  %s2, 288, %s48, [#allocation6]
    $region13: #{tpu_custom_call.1} parent=1 // pred_fallthru
      _
    // Predicated region
    $region14: #{tpu_custom_call.1} parent=1 // pred_check
      _
    $region15: #{tpu_custom_call.1} parent=1 // pred_check_branch
      %52 = sbr.rel (0) target = $region17
    $region16: #{tpu_custom_call.1} parent=1 // pred_region
      %s54 = ssub.s32 110592, 110592
      %55 = vsyncadd [#allocation9], %s54
      %s56 = sshll.u32 [#allocation8], 4
      %s57 = int_to_ptr.vmem [resolvable:$true] %s56
      %62 = dma.hbm_to_vmem [thread:$0]  %s3, 110592, %s57, [#allocation9], 1152, 1152, 72
    $region17: #{tpu_custom_call.1} parent=1 // pred_fallthru
      _
    // Predicated region
    $region18: #{tpu_custom_call.1} parent=1 // pred_check
      _
    $region19: #{tpu_custom_call.1} parent=1 // pred_check_branch
      %64 = sbr.rel (0) target = $region21
    $region20: #{tpu_custom_call.1} parent=1 // pred_region
      %s66 = ssub.s32 288, 288
      %67 = vsyncadd [#allocation9], %s66
      %s69 = sshll.u32 [#allocation10], 4
      %s70 = int_to_ptr.vmem [resolvable:$true] %s69
      %72 = dma.hbm_to_vmem [thread:$0]  %s4, 288, %s70, [#allocation9]
    $region21: #{tpu_custom_call.1} parent=1 // pred_fallthru
      _
    // Predicated region
    $region22: #{tpu_custom_call.1} parent=1 // pred_check
      _
    $region23: #{tpu_custom_call.1} parent=1 // pred_check_branch
      %74 = sbr.rel (0) target = $region25
    $region24: #{tpu_custom_call.1} parent=1 // pred_region
      %s76 = ssub.s32 96, 96
      %77 = vsyncadd [#allocation12], %s76
      %s79 = sshll.u32 [#allocation11], 4
      %s80 = int_to_ptr.vmem [resolvable:$true] %s79
      %82 = dma.hbm_to_vmem [thread:$0]  %s5, 96, %s80, [#allocation12]
    $region25: #{tpu_custom_call.1} parent=1 // pred_fallthru
      _
    // Predicated region
    $region26: #{tpu_custom_call.1} parent=1 // pred_check
      _
    $region27: #{tpu_custom_call.1} parent=1 // pred_check_branch
      %84 = sbr.rel (0) target = $region29
    $region28: #{tpu_custom_call.1} parent=1 // pred_region
      %s86 = ssub.s32 6144, 6144
      %87 = vsyncadd [#allocation12], %s86
      %s88 = sshll.u32 [#allocation13], 4
      %s89 = int_to_ptr.vmem [resolvable:$true] %s88
      %94 = dma.hbm_to_vmem [thread:$0]  %s6, 6144, %s89, [#allocation12], 64, 64, 4
    $region29: #{tpu_custom_call.1} parent=1 // pred_fallthru
      _
    // Predicated region
    $region30: #{tpu_custom_call.1} parent=1 // pred_check
      _
    $region31: #{tpu_custom_call.1} parent=1 // pred_check_branch
      %96 = sbr.rel (0) target = $region33
    $region32: #{tpu_custom_call.1} parent=1 // pred_region
      %s98 = ssub.s32 16, 16
      %99 = vsyncadd [#allocation15], %s98
      %s101 = sshll.u32 [#allocation14], 4
      %s102 = int_to_ptr.vmem [resolvable:$true] %s101
      %104 = dma.hbm_to_vmem [thread:$0]  %s7, 16, %s102, [#allocation15]
    $region33: #{tpu_custom_call.1} parent=1 // pred_fallthru
      _
    // Predicated region
    $region34: #{tpu_custom_call.1} parent=1 // pred_check
      _
    $region35: #{tpu_custom_call.1} parent=1 // pred_check_branch
      %106 = sbr.rel (0) target = $region37
    $region36: #{tpu_custom_call.1} parent=1 // pred_region
      %107 = dma.done [#allocation3], 768
    $region37: #{tpu_custom_call.1} parent=1 // pred_fallthru
      _
    // Predicated region
    $region38: #{tpu_custom_call.1} parent=1 // pred_check
      _
    $region39: #{tpu_custom_call.1} parent=1 // pred_check_branch
      %109 = sbr.rel (0) target = $region41
    $region40: #{tpu_custom_call.1} parent=1 // pred_region
      %110 = dma.done [#allocation6], 110592
    $region41: #{tpu_custom_call.1} parent=1 // pred_fallthru
      _
    // Predicated region
    $region42: #{tpu_custom_call.1} parent=1 // pred_check
      _
    $region43: #{tpu_custom_call.1} parent=1 // pred_check_branch
      %112 = sbr.rel (0) target = $region45
    $region44: #{tpu_custom_call.1} parent=1 // pred_region
      %113 = dma.done [#allocation6], 288
    $region45: #{tpu_custom_call.1} parent=1 // pred_fallthru
      _
    // Predicated region
    $region46: #{tpu_custom_call.1} parent=1 // pred_check
      _
    $region47: #{tpu_custom_call.1} parent=1 // pred_check_branch
      %115 = sbr.rel (0) target = $region49
    $region48: #{tpu_custom_call.1} parent=1 // pred_region
      %116 = dma.done [#allocation9], 110592
    $region49: #{tpu_custom_call.1} parent=1 // pred_fallthru
      _
    // Predicated region
    $region50: #{tpu_custom_call.1} parent=1 // pred_check
      _
    $region51: #{tpu_custom_call.1} parent=1 // pred_check_branch
      %118 = sbr.rel (0) target = $region53
    $region52: #{tpu_custom_call.1} parent=1 // pred_region
      %119 = dma.done [#allocation9], 288
    $region53: #{tpu_custom_call.1} parent=1 // pred_fallthru
      _
    // Predicated region
    $region54: #{tpu_custom_call.1} parent=1 // pred_check
      _
    $region55: #{tpu_custom_call.1} parent=1 // pred_check_branch
      %121 = sbr.rel (0) target = $region57
    $region56: #{tpu_custom_call.1} parent=1 // pred_region
      %122 = dma.done [#allocation12], 96
    $region57: #{tpu_custom_call.1} parent=1 // pred_fallthru
      _
    // Predicated region
    $region58: #{tpu_custom_call.1} parent=1 // pred_check
      _
    $region59: #{tpu_custom_call.1} parent=1 // pred_check_branch
      %124 = sbr.rel (0) target = $region61
    $region60: #{tpu_custom_call.1} parent=1 // pred_region
      %125 = dma.done [#allocation12], 6144
    $region61: #{tpu_custom_call.1} parent=1 // pred_fallthru
      _
    // Predicated region
    $region62: #{tpu_custom_call.1} parent=1 // pred_check
      _
    $region63: #{tpu_custom_call.1} parent=1 // pred_check_branch
      %127 = sbr.rel (0) target = $region65
    $region64: #{tpu_custom_call.1} parent=1 // pred_region
      %128 = dma.done [#allocation15], 16
    $region65: #{tpu_custom_call.1} parent=1 // pred_fallthru
      _
    %v130 = vld [vmem:[#allocation2] sm:$0xff]
    %v131 = vld [vmem:[#allocation2 + $0x8] sm:$0xff]
    %v132 = vld [vmem:[#allocation2 + $0x10] sm:$0xff]
    %v133 = vld [vmem:[#allocation2 + $0x18] sm:$0xff]
    %v134 = vld [vmem:[#allocation2 + $0x20] sm:$0xff]
    %v135 = vld [vmem:[#allocation2 + $0x28] sm:$0xff]
    %v136 = vpack.c.bf16 %v130, %v130
    %v137 = vpack.c.bf16 %v131, %v131
    %v138 = vpack.c.bf16 %v132, %v132
    %v139 = vpack.c.bf16 %v133, %v133
    %v140 = vpack.c.bf16 %v134, %v134
    %v141 = vpack.c.bf16 %v135, %v135
    %v142 = vld [vmem:[#allocation5] sm:$0xff]
    %v143 = vld [vmem:[#allocation5 + $0x8] sm:$0xff]
    %v144 = vld [vmem:[#allocation5 + $0x10] sm:$0xff]
    %v145 = vld [vmem:[#allocation5 + $0x18] sm:$0xff]
    %v146 = vld [vmem:[#allocation5 + $0x20] sm:$0xff]
    %v147 = vld [vmem:[#allocation5 + $0x28] sm:$0xff]
    %v148 = vld [vmem:[#allocation5 + $0x30] sm:$0xff]
    %v149 = vld [vmem:[#allocation5 + $0x38] sm:$0xff]
    %v150 = vld [vmem:[#allocation5 + $0x40] sm:$0xff]
    %v151 = vld [vmem:[#allocation5 + $0x48] sm:$0xff]
    %v152 = vld [vmem:[#allocation5 + $0x50] sm:$0xff]
    %v153 = vld [vmem:[#allocation5 + $0x58] sm:$0xff]
    %v154 = vld [vmem:[#allocation5 + $0x60] sm:$0xff]
    %v155 = vld [vmem:[#allocation5 + $0x68] sm:$0xff]
    %v156 = vld [vmem:[#allocation5 + $0x70] sm:$0xff]
    %v157 = vld [vmem:[#allocation5 + $0x78] sm:$0xff]
    %v158 = vld [vmem:[#allocation5 + $0x80] sm:$0xff]
    %v159 = vld [vmem:[#allocation5 + $0x88] sm:$0xff]
    %v160 = vld [vmem:[#allocation5 + $0x90] sm:$0xff]
    %v161 = vld [vmem:[#allocation5 + $0x98] sm:$0xff]
    %v162 = vld [vmem:[#allocation5 + $0xa0] sm:$0xff]
    %v163 = vld [vmem:[#allocation5 + $0xa8] sm:$0xff]
    %v164 = vld [vmem:[#allocation5 + $0xb0] sm:$0xff]
    %v165 = vld [vmem:[#allocation5 + $0xb8] sm:$0xff]
    %v166 = vld [vmem:[#allocation5 + $0xc0] sm:$0xff]
    %v167 = vld [vmem:[#allocation5 + $0xc8] sm:$0xff]
    %v168 = vld [vmem:[#allocation5 + $0xd0] sm:$0xff]
    %v169 = vld [vmem:[#allocation5 + $0xd8] sm:$0xff]
    %v170 = vld [vmem:[#allocation5 + $0xe0] sm:$0xff]
    %v171 = vld [vmem:[#allocation5 + $0xe8] sm:$0xff]
    %v172 = vld [vmem:[#allocation5 + $0xf0] sm:$0xff]
    %v173 = vld [vmem:[#allocation5 + $0xf8] sm:$0xff]
    %v174 = vld [vmem:[#allocation5 + $0x100] sm:$0xff]
    %v175 = vld [vmem:[#allocation5 + $0x108] sm:$0xff]
    %v176 = vld [vmem:[#allocation5 + $0x110] sm:$0xff]
    %v177 = vld [vmem:[#allocation5 + $0x118] sm:$0xff]
    %v178 = vld [vmem:[#allocation5 + $0x120] sm:$0xff]
    %v179 = vld [vmem:[#allocation5 + $0x128] sm:$0xff]
    %v180 = vld [vmem:[#allocation5 + $0x130] sm:$0xff]
    %v181 = vld [vmem:[#allocation5 + $0x138] sm:$0xff]
    %v182 = vld [vmem:[#allocation5 + $0x140] sm:$0xff]
    %v183 = vld [vmem:[#allocation5 + $0x148] sm:$0xff]
    %v184 = vld [vmem:[#allocation5 + $0x150] sm:$0xff]
    %v185 = vld [vmem:[#allocation5 + $0x158] sm:$0xff]
    %v186 = vld [vmem:[#allocation5 + $0x160] sm:$0xff]
    %v187 = vld [vmem:[#allocation5 + $0x168] sm:$0xff]
    %v188 = vld [vmem:[#allocation5 + $0x170] sm:$0xff]
    %v189 = vld [vmem:[#allocation5 + $0x178] sm:$0xff]
    %v190 = vld [vmem:[#allocation5 + $0x180] sm:$0xff]
    %v191 = vld [vmem:[#allocation5 + $0x188] sm:$0xff]
    %v192 = vld [vmem:[#allocation5 + $0x190] sm:$0xff]
    %v193 = vld [vmem:[#allocation5 + $0x198] sm:$0xff]
    %v194 = vld [vmem:[#allocation5 + $0x1a0] sm:$0xff]
    %v195 = vld [vmem:[#allocation5 + $0x1a8] sm:$0xff]
    %v196 = vld [vmem:[#allocation5 + $0x1b0] sm:$0xff]
    %v197 = vld [vmem:[#allocation5 + $0x1b8] sm:$0xff]
    %v198 = vld [vmem:[#allocation5 + $0x1c0] sm:$0xff]
    %v199 = vld [vmem:[#allocation5 + $0x1c8] sm:$0xff]
    %v200 = vld [vmem:[#allocation5 + $0x1d0] sm:$0xff]
    %v201 = vld [vmem:[#allocation5 + $0x1d8] sm:$0xff]
    %v202 = vld [vmem:[#allocation5 + $0x1e0] sm:$0xff]
    %v203 = vld [vmem:[#allocation5 + $0x1e8] sm:$0xff]
    %v204 = vld [vmem:[#allocation5 + $0x1f0] sm:$0xff]
    %v205 = vld [vmem:[#allocation5 + $0x1f8] sm:$0xff]
    %v206 = vld [vmem:[#allocation5 + $0x200] sm:$0xff]
    %v207 = vld [vmem:[#allocation5 + $0x208] sm:$0xff]
    %v208 = vld [vmem:[#allocation5 + $0x210] sm:$0xff]
    %v209 = vld [vmem:[#allocation5 + $0x218] sm:$0xff]
    %v210 = vld [vmem:[#allocation5 + $0x220] sm:$0xff]
    %v211 = vld [vmem:[#allocation5 + $0x228] sm:$0xff]
    %v212 = vld [vmem:[#allocation5 + $0x230] sm:$0xff]
    %v213 = vld [vmem:[#allocation5 + $0x238] sm:$0xff]
    %v214 = vld [vmem:[#allocation5 + $0x240] sm:$0xff]
    %v215 = vld [vmem:[#allocation5 + $0x248] sm:$0xff]
    %v216 = vld [vmem:[#allocation5 + $0x250] sm:$0xff]
    %v217 = vld [vmem:[#allocation5 + $0x258] sm:$0xff]
    %v218 = vld [vmem:[#allocation5 + $0x260] sm:$0xff]
    %v219 = vld [vmem:[#allocation5 + $0x268] sm:$0xff]
    %v220 = vld [vmem:[#allocation5 + $0x270] sm:$0xff]
    %v221 = vld [vmem:[#allocation5 + $0x278] sm:$0xff]
    %v222 = vld [vmem:[#allocation5 + $0x280] sm:$0xff]
    %v223 = vld [vmem:[#allocation5 + $0x288] sm:$0xff]
    %v224 = vld [vmem:[#allocation5 + $0x290] sm:$0xff]
    %v225 = vld [vmem:[#allocation5 + $0x298] sm:$0xff]
    %v226 = vld [vmem:[#allocation5 + $0x2a0] sm:$0xff]
    %v227 = vld [vmem:[#allocation5 + $0x2a8] sm:$0xff]
    %v228 = vld [vmem:[#allocation5 + $0x2b0] sm:$0xff]
    %v229 = vld [vmem:[#allocation5 + $0x2b8] sm:$0xff]
    %v230 = vld [vmem:[#allocation5 + $0x2c0] sm:$0xff]
    %v231 = vld [vmem:[#allocation5 + $0x2c8] sm:$0xff]
    %v232 = vld [vmem:[#allocation5 + $0x2d0] sm:$0xff]
    %v233 = vld [vmem:[#allocation5 + $0x2d8] sm:$0xff]
    %v234 = vld [vmem:[#allocation5 + $0x2e0] sm:$0xff]
    %v235 = vld [vmem:[#allocation5 + $0x2e8] sm:$0xff]
    %v236 = vld [vmem:[#allocation5 + $0x2f0] sm:$0xff]
    %v237 = vld [vmem:[#allocation5 + $0x2f8] sm:$0xff]
    %v238 = vld [vmem:[#allocation5 + $0x300] sm:$0xff]
    %v239 = vld [vmem:[#allocation5 + $0x308] sm:$0xff]
    %v240 = vld [vmem:[#allocation5 + $0x310] sm:$0xff]
    %v241 = vld [vmem:[#allocation5 + $0x318] sm:$0xff]
    %v242 = vld [vmem:[#allocation5 + $0x320] sm:$0xff]
    %v243 = vld [vmem:[#allocation5 + $0x328] sm:$0xff]
    %v244 = vld [vmem:[#allocation5 + $0x330] sm:$0xff]
    %v245 = vld [vmem:[#allocation5 + $0x338] sm:$0xff]
    %v246 = vld [vmem:[#allocation5 + $0x340] sm:$0xff]
    %v247 = vld [vmem:[#allocation5 + $0x348] sm:$0xff]
    %v248 = vld [vmem:[#allocation5 + $0x350] sm:$0xff]
    %v249 = vld [vmem:[#allocation5 + $0x358] sm:$0xff]
    %v250 = vld [vmem:[#allocation5 + $0x360] sm:$0xff]
    %v251 = vld [vmem:[#allocation5 + $0x368] sm:$0xff]
    %v252 = vld [vmem:[#allocation5 + $0x370] sm:$0xff]
    %v253 = vld [vmem:[#allocation5 + $0x378] sm:$0xff]
    %v254 = vld [vmem:[#allocation5 + $0x380] sm:$0xff]
    %v255 = vld [vmem:[#allocation5 + $0x388] sm:$0xff]
    %v256 = vld [vmem:[#allocation5 + $0x390] sm:$0xff]
    %v257 = vld [vmem:[#allocation5 + $0x398] sm:$0xff]
    %v258 = vld [vmem:[#allocation5 + $0x3a0] sm:$0xff]
    %v259 = vld [vmem:[#allocation5 + $0x3a8] sm:$0xff]
    %v260 = vld [vmem:[#allocation5 + $0x3b0] sm:$0xff]
    %v261 = vld [vmem:[#allocation5 + $0x3b8] sm:$0xff]
    %v262 = vld [vmem:[#allocation5 + $0x3c0] sm:$0xff]
    %v263 = vld [vmem:[#allocation5 + $0x3c8] sm:$0xff]
    %v264 = vld [vmem:[#allocation5 + $0x3d0] sm:$0xff]
    %v265 = vld [vmem:[#allocation5 + $0x3d8] sm:$0xff]
    %v266 = vld [vmem:[#allocation5 + $0x3e0] sm:$0xff]
    %v267 = vld [vmem:[#allocation5 + $0x3e8] sm:$0xff]
    %v268 = vld [vmem:[#allocation5 + $0x3f0] sm:$0xff]
    %v269 = vld [vmem:[#allocation5 + $0x3f8] sm:$0xff]
    %v270 = vld [vmem:[#allocation5 + $0x400] sm:$0xff]
    %v271 = vld [vmem:[#allocation5 + $0x408] sm:$0xff]
    %v272 = vld [vmem:[#allocation5 + $0x410] sm:$0xff]
    %v273 = vld [vmem:[#allocation5 + $0x418] sm:$0xff]
    %v274 = vld [vmem:[#allocation5 + $0x420] sm:$0xff]
    %v275 = vld [vmem:[#allocation5 + $0x428] sm:$0xff]
    %v276 = vld [vmem:[#allocation5 + $0x430] sm:$0xff]
    %v277 = vld [vmem:[#allocation5 + $0x438] sm:$0xff]
    %v278 = vld [vmem:[#allocation5 + $0x440] sm:$0xff]
    %v279 = vld [vmem:[#allocation5 + $0x448] sm:$0xff]
    %v280 = vld [vmem:[#allocation5 + $0x450] sm:$0xff]
    %v281 = vld [vmem:[#allocation5 + $0x458] sm:$0xff]
    %v282 = vld [vmem:[#allocation5 + $0x460] sm:$0xff]
    %v283 = vld [vmem:[#allocation5 + $0x468] sm:$0xff]
    %v284 = vld [vmem:[#allocation5 + $0x470] sm:$0xff]
    %v285 = vld [vmem:[#allocation5 + $0x478] sm:$0xff]
    %v286 = vld [vmem:[#allocation5 + $0x480] sm:$0xff]
    %v287 = vld [vmem:[#allocation5 + $0x488] sm:$0xff]
    %v288 = vld [vmem:[#allocation5 + $0x490] sm:$0xff]
    %v289 = vld [vmem:[#allocation5 + $0x498] sm:$0xff]
    %v290 = vld [vmem:[#allocation5 + $0x4a0] sm:$0xff]
    %v291 = vld [vmem:[#allocation5 + $0x4a8] sm:$0xff]
    %v292 = vld [vmem:[#allocation5 + $0x4b0] sm:$0xff]
    %v293 = vld [vmem:[#allocation5 + $0x4b8] sm:$0xff]
    %v294 = vld [vmem:[#allocation5 + $0x4c0] sm:$0xff]
    %v295 = vld [vmem:[#allocation5 + $0x4c8] sm:$0xff]
    %v296 = vld [vmem:[#allocation5 + $0x4d0] sm:$0xff]
    %v297 = vld [vmem:[#allocation5 + $0x4d8] sm:$0xff]
    %v298 = vld [vmem:[#allocation5 + $0x4e0] sm:$0xff]
    %v299 = vld [vmem:[#allocation5 + $0x4e8] sm:$0xff]
    %v300 = vld [vmem:[#allocation5 + $0x4f0] sm:$0xff]
    %v301 = vld [vmem:[#allocation5 + $0x4f8] sm:$0xff]
    %v302 = vld [vmem:[#allocation5 + $0x500] sm:$0xff]
    %v303 = vld [vmem:[#allocation5 + $0x508] sm:$0xff]
    %v304 = vld [vmem:[#allocation5 + $0x510] sm:$0xff]
    %v305 = vld [vmem:[#allocation5 + $0x518] sm:$0xff]
    %v306 = vld [vmem:[#allocation5 + $0x520] sm:$0xff]
    %v307 = vld [vmem:[#allocation5 + $0x528] sm:$0xff]
    %v308 = vld [vmem:[#allocation5 + $0x530] sm:$0xff]
    %v309 = vld [vmem:[#allocation5 + $0x538] sm:$0xff]
    %v310 = vld [vmem:[#allocation5 + $0x540] sm:$0xff]
    %v311 = vld [vmem:[#allocation5 + $0x548] sm:$0xff]
    %v312 = vld [vmem:[#allocation5 + $0x550] sm:$0xff]
    %v313 = vld [vmem:[#allocation5 + $0x558] sm:$0xff]
    %v314 = vld [vmem:[#allocation5 + $0x560] sm:$0xff]
    %v315 = vld [vmem:[#allocation5 + $0x568] sm:$0xff]
    %v316 = vld [vmem:[#allocation5 + $0x570] sm:$0xff]
    %v317 = vld [vmem:[#allocation5 + $0x578] sm:$0xff]
    %v318 = vld [vmem:[#allocation5 + $0x580] sm:$0xff]
    %v319 = vld [vmem:[#allocation5 + $0x588] sm:$0xff]
    %v320 = vld [vmem:[#allocation5 + $0x590] sm:$0xff]
    %v321 = vld [vmem:[#allocation5 + $0x598] sm:$0xff]
    %v322 = vld [vmem:[#allocation5 + $0x5a0] sm:$0xff]
    %v323 = vld [vmem:[#allocation5 + $0x5a8] sm:$0xff]
    %v324 = vld [vmem:[#allocation5 + $0x5b0] sm:$0xff]
    %v325 = vld [vmem:[#allocation5 + $0x5b8] sm:$0xff]
    %v326 = vld [vmem:[#allocation5 + $0x5c0] sm:$0xff]
    %v327 = vld [vmem:[#allocation5 + $0x5c8] sm:$0xff]
    %v328 = vld [vmem:[#allocation5 + $0x5d0] sm:$0xff]
    %v329 = vld [vmem:[#allocation5 + $0x5d8] sm:$0xff]
    %v330 = vld [vmem:[#allocation5 + $0x5e0] sm:$0xff]
    %v331 = vld [vmem:[#allocation5 + $0x5e8] sm:$0xff]
    %v332 = vld [vmem:[#allocation5 + $0x5f0] sm:$0xff]
    %v333 = vld [vmem:[#allocation5 + $0x5f8] sm:$0xff]
    %v334 = vld [vmem:[#allocation5 + $0x600] sm:$0xff]
    %v335 = vld [vmem:[#allocation5 + $0x608] sm:$0xff]
    %v336 = vld [vmem:[#allocation5 + $0x610] sm:$0xff]
    %v337 = vld [vmem:[#allocation5 + $0x618] sm:$0xff]
    %v338 = vld [vmem:[#allocation5 + $0x620] sm:$0xff]
    %v339 = vld [vmem:[#allocation5 + $0x628] sm:$0xff]
    %v340 = vld [vmem:[#allocation5 + $0x630] sm:$0xff]
    %v341 = vld [vmem:[#allocation5 + $0x638] sm:$0xff]
    %v342 = vld [vmem:[#allocation5 + $0x640] sm:$0xff]
    %v343 = vld [vmem:[#allocation5 + $0x648] sm:$0xff]
    %v344 = vld [vmem:[#allocation5 + $0x650] sm:$0xff]
    %v345 = vld [vmem:[#allocation5 + $0x658] sm:$0xff]
    %v346 = vld [vmem:[#allocation5 + $0x660] sm:$0xff]
    %v347 = vld [vmem:[#allocation5 + $0x668] sm:$0xff]
    %v348 = vld [vmem:[#allocation5 + $0x670] sm:$0xff]
    %v349 = vld [vmem:[#allocation5 + $0x678] sm:$0xff]
    %v350 = vld [vmem:[#allocation5 + $0x680] sm:$0xff]
    %v351 = vld [vmem:[#allocation5 + $0x688] sm:$0xff]
    %v352 = vld [vmem:[#allocation5 + $0x690] sm:$0xff]
    %v353 = vld [vmem:[#allocation5 + $0x698] sm:$0xff]
    %v354 = vld [vmem:[#allocation5 + $0x6a0] sm:$0xff]
    %v355 = vld [vmem:[#allocation5 + $0x6a8] sm:$0xff]
    %v356 = vld [vmem:[#allocation5 + $0x6b0] sm:$0xff]
    %v357 = vld [vmem:[#allocation5 + $0x6b8] sm:$0xff]
    %v358 = vld [vmem:[#allocation5 + $0x6c0] sm:$0xff]
    %v359 = vld [vmem:[#allocation5 + $0x6c8] sm:$0xff]
    %v360 = vld [vmem:[#allocation5 + $0x6d0] sm:$0xff]
    %v361 = vld [vmem:[#allocation5 + $0x6d8] sm:$0xff]
    %v362 = vld [vmem:[#allocation5 + $0x6e0] sm:$0xff]
    %v363 = vld [vmem:[#allocation5 + $0x6e8] sm:$0xff]
    %v364 = vld [vmem:[#allocation5 + $0x6f0] sm:$0xff]
    %v365 = vld [vmem:[#allocation5 + $0x6f8] sm:$0xff]
    %v366 = vld [vmem:[#allocation5 + $0x700] sm:$0xff]
    %v367 = vld [vmem:[#allocation5 + $0x708] sm:$0xff]
    %v368 = vld [vmem:[#allocation5 + $0x710] sm:$0xff]
    %v369 = vld [vmem:[#allocation5 + $0x718] sm:$0xff]
    %v370 = vld [vmem:[#allocation5 + $0x720] sm:$0xff]
    %v371 = vld [vmem:[#allocation5 + $0x728] sm:$0xff]
    %v372 = vld [vmem:[#allocation5 + $0x730] sm:$0xff]
    %v373 = vld [vmem:[#allocation5 + $0x738] sm:$0xff]
    %v374 = vld [vmem:[#allocation5 + $0x740] sm:$0xff]
    %v375 = vld [vmem:[#allocation5 + $0x748] sm:$0xff]
    %v376 = vld [vmem:[#allocation5 + $0x750] sm:$0xff]
    %v377 = vld [vmem:[#allocation5 + $0x758] sm:$0xff]
    %v378 = vld [vmem:[#allocation5 + $0x760] sm:$0xff]
    %v379 = vld [vmem:[#allocation5 + $0x768] sm:$0xff]
    %v380 = vld [vmem:[#allocation5 + $0x770] sm:$0xff]
    %v381 = vld [vmem:[#allocation5 + $0x778] sm:$0xff]
    %v382 = vld [vmem:[#allocation5 + $0x780] sm:$0xff]
    %v383 = vld [vmem:[#allocation5 + $0x788] sm:$0xff]
    %v384 = vld [vmem:[#allocation5 + $0x790] sm:$0xff]
    %v385 = vld [vmem:[#allocation5 + $0x798] sm:$0xff]
    %v386 = vld [vmem:[#allocation5 + $0x7a0] sm:$0xff]
    %v387 = vld [vmem:[#allocation5 + $0x7a8] sm:$0xff]
    %v388 = vld [vmem:[#allocation5 + $0x7b0] sm:$0xff]
    %v389 = vld [vmem:[#allocation5 + $0x7b8] sm:$0xff]
    %v390 = vld [vmem:[#allocation5 + $0x7c0] sm:$0xff]
    %v391 = vld [vmem:[#allocation5 + $0x7c8] sm:$0xff]
    %v392 = vld [vmem:[#allocation5 + $0x7d0] sm:$0xff]
    %v393 = vld [vmem:[#allocation5 + $0x7d8] sm:$0xff]
    %v394 = vld [vmem:[#allocation5 + $0x7e0] sm:$0xff]
    %v395 = vld [vmem:[#allocation5 + $0x7e8] sm:$0xff]
    %v396 = vld [vmem:[#allocation5 + $0x7f0] sm:$0xff]
    %v397 = vld [vmem:[#allocation5 + $0x7f8] sm:$0xff]
    %v398 = vld [vmem:[#allocation5 + $0x800] sm:$0xff]
    %v399 = vld [vmem:[#allocation5 + $0x808] sm:$0xff]
    %v400 = vld [vmem:[#allocation5 + $0x810] sm:$0xff]
    %v401 = vld [vmem:[#allocation5 + $0x818] sm:$0xff]
    %v402 = vld [vmem:[#allocation5 + $0x820] sm:$0xff]
    %v403 = vld [vmem:[#allocation5 + $0x828] sm:$0xff]
    %v404 = vld [vmem:[#allocation5 + $0x830] sm:$0xff]
    %v405 = vld [vmem:[#allocation5 + $0x838] sm:$0xff]
    %v406 = vld [vmem:[#allocation5 + $0x840] sm:$0xff]
    %v407 = vld [vmem:[#allocation5 + $0x848] sm:$0xff]
    %v408 = vld [vmem:[#allocation5 + $0x850] sm:$0xff]
    %v409 = vld [vmem:[#allocation5 + $0x858] sm:$0xff]
    %v410 = vld [vmem:[#allocation5 + $0x860] sm:$0xff]
    %v411 = vld [vmem:[#allocation5 + $0x868] sm:$0xff]
    %v412 = vld [vmem:[#allocation5 + $0x870] sm:$0xff]
    %v413 = vld [vmem:[#allocation5 + $0x878] sm:$0xff]
    %v414 = vld [vmem:[#allocation5 + $0x880] sm:$0xff]
    %v415 = vld [vmem:[#allocation5 + $0x888] sm:$0xff]
    %v416 = vld [vmem:[#allocation5 + $0x890] sm:$0xff]
    %v417 = vld [vmem:[#allocation5 + $0x898] sm:$0xff]
    %v418 = vld [vmem:[#allocation5 + $0x8a0] sm:$0xff]
    %v419 = vld [vmem:[#allocation5 + $0x8a8] sm:$0xff]
    %v420 = vld [vmem:[#allocation5 + $0x8b0] sm:$0xff]
    %v421 = vld [vmem:[#allocation5 + $0x8b8] sm:$0xff]
    %v422 = vld [vmem:[#allocation5 + $0x8c0] sm:$0xff]
    %v423 = vld [vmem:[#allocation5 + $0x8c8] sm:$0xff]
    %v424 = vld [vmem:[#allocation5 + $0x8d0] sm:$0xff]
    %v425 = vld [vmem:[#allocation5 + $0x8d8] sm:$0xff]
    %v426 = vld [vmem:[#allocation5 + $0x8e0] sm:$0xff]
    %v427 = vld [vmem:[#allocation5 + $0x8e8] sm:$0xff]
    %v428 = vld [vmem:[#allocation5 + $0x8f0] sm:$0xff]
    %v429 = vld [vmem:[#allocation5 + $0x8f8] sm:$0xff]
    %v430 = vld [vmem:[#allocation5 + $0x900] sm:$0xff]
    %v431 = vld [vmem:[#allocation5 + $0x908] sm:$0xff]
    %v432 = vld [vmem:[#allocation5 + $0x910] sm:$0xff]
    %v433 = vld [vmem:[#allocation5 + $0x918] sm:$0xff]
    %v434 = vld [vmem:[#allocation5 + $0x920] sm:$0xff]
    %v435 = vld [vmem:[#allocation5 + $0x928] sm:$0xff]
    %v436 = vld [vmem:[#allocation5 + $0x930] sm:$0xff]
    %v437 = vld [vmem:[#allocation5 + $0x938] sm:$0xff]
    %v438 = vld [vmem:[#allocation5 + $0x940] sm:$0xff]
    %v439 = vld [vmem:[#allocation5 + $0x948] sm:$0xff]
    %v440 = vld [vmem:[#allocation5 + $0x950] sm:$0xff]
    %v441 = vld [vmem:[#allocation5 + $0x958] sm:$0xff]
    %v442 = vld [vmem:[#allocation5 + $0x960] sm:$0xff]
    %v443 = vld [vmem:[#allocation5 + $0x968] sm:$0xff]
    %v444 = vld [vmem:[#allocation5 + $0x970] sm:$0xff]
    %v445 = vld [vmem:[#allocation5 + $0x978] sm:$0xff]
    %v446 = vld [vmem:[#allocation5 + $0x980] sm:$0xff]
    %v447 = vld [vmem:[#allocation5 + $0x988] sm:$0xff]
    %v448 = vld [vmem:[#allocation5 + $0x990] sm:$0xff]
    %v449 = vld [vmem:[#allocation5 + $0x998] sm:$0xff]
    %v450 = vld [vmem:[#allocation5 + $0x9a0] sm:$0xff]
    %v451 = vld [vmem:[#allocation5 + $0x9a8] sm:$0xff]
    %v452 = vld [vmem:[#allocation5 + $0x9b0] sm:$0xff]
    %v453 = vld [vmem:[#allocation5 + $0x9b8] sm:$0xff]
    %v454 = vld [vmem:[#allocation5 + $0x9c0] sm:$0xff]
    %v455 = vld [vmem:[#allocation5 + $0x9c8] sm:$0xff]
    %v456 = vld [vmem:[#allocation5 + $0x9d0] sm:$0xff]
    %v457 = vld [vmem:[#allocation5 + $0x9d8] sm:$0xff]
    %v458 = vld [vmem:[#allocation5 + $0x9e0] sm:$0xff]
    %v459 = vld [vmem:[#allocation5 + $0x9e8] sm:$0xff]
    %v460 = vld [vmem:[#allocation5 + $0x9f0] sm:$0xff]
    %v461 = vld [vmem:[#allocation5 + $0x9f8] sm:$0xff]
    %v462 = vld [vmem:[#allocation5 + $0xa00] sm:$0xff]
    %v463 = vld [vmem:[#allocation5 + $0xa08] sm:$0xff]
    %v464 = vld [vmem:[#allocation5 + $0xa10] sm:$0xff]
    %v465 = vld [vmem:[#allocation5 + $0xa18] sm:$0xff]
    %v466 = vld [vmem:[#allocation5 + $0xa20] sm:$0xff]
    %v467 = vld [vmem:[#allocation5 + $0xa28] sm:$0xff]
    %v468 = vld [vmem:[#allocation5 + $0xa30] sm:$0xff]
    %v469 = vld [vmem:[#allocation5 + $0xa38] sm:$0xff]
    %v470 = vld [vmem:[#allocation5 + $0xa40] sm:$0xff]
    %v471 = vld [vmem:[#allocation5 + $0xa48] sm:$0xff]
    %v472 = vld [vmem:[#allocation5 + $0xa50] sm:$0xff]
    %v473 = vld [vmem:[#allocation5 + $0xa58] sm:$0xff]
    %v474 = vld [vmem:[#allocation5 + $0xa60] sm:$0xff]
    %v475 = vld [vmem:[#allocation5 + $0xa68] sm:$0xff]
    %v476 = vld [vmem:[#allocation5 + $0xa70] sm:$0xff]
    %v477 = vld [vmem:[#allocation5 + $0xa78] sm:$0xff]
    %v478 = vld [vmem:[#allocation5 + $0xa80] sm:$0xff]
    %v479 = vld [vmem:[#allocation5 + $0xa88] sm:$0xff]
    %v480 = vld [vmem:[#allocation5 + $0xa90] sm:$0xff]
    %v481 = vld [vmem:[#allocation5 + $0xa98] sm:$0xff]
    %v482 = vld [vmem:[#allocation5 + $0xaa0] sm:$0xff]
    %v483 = vld [vmem:[#allocation5 + $0xaa8] sm:$0xff]
    %v484 = vld [vmem:[#allocation5 + $0xab0] sm:$0xff]
    %v485 = vld [vmem:[#allocation5 + $0xab8] sm:$0xff]
    %v486 = vld [vmem:[#allocation5 + $0xac0] sm:$0xff]
    %v487 = vld [vmem:[#allocation5 + $0xac8] sm:$0xff]
    %v488 = vld [vmem:[#allocation5 + $0xad0] sm:$0xff]
    %v489 = vld [vmem:[#allocation5 + $0xad8] sm:$0xff]
    %v490 = vld [vmem:[#allocation5 + $0xae0] sm:$0xff]
    %v491 = vld [vmem:[#allocation5 + $0xae8] sm:$0xff]
    %v492 = vld [vmem:[#allocation5 + $0xaf0] sm:$0xff]
    %v493 = vld [vmem:[#allocation5 + $0xaf8] sm:$0xff]
    %v494 = vld [vmem:[#allocation5 + $0xb00] sm:$0xff]
    %v495 = vld [vmem:[#allocation5 + $0xb08] sm:$0xff]
    %v496 = vld [vmem:[#allocation5 + $0xb10] sm:$0xff]
    %v497 = vld [vmem:[#allocation5 + $0xb18] sm:$0xff]
    %v498 = vld [vmem:[#allocation5 + $0xb20] sm:$0xff]
    %v499 = vld [vmem:[#allocation5 + $0xb28] sm:$0xff]
    %v500 = vld [vmem:[#allocation5 + $0xb30] sm:$0xff]
    %v501 = vld [vmem:[#allocation5 + $0xb38] sm:$0xff]
    %v502 = vld [vmem:[#allocation5 + $0xb40] sm:$0xff]
    %v503 = vld [vmem:[#allocation5 + $0xb48] sm:$0xff]
    %v504 = vld [vmem:[#allocation5 + $0xb50] sm:$0xff]
    %v505 = vld [vmem:[#allocation5 + $0xb58] sm:$0xff]
    %v506 = vld [vmem:[#allocation5 + $0xb60] sm:$0xff]
    %v507 = vld [vmem:[#allocation5 + $0xb68] sm:$0xff]
    %v508 = vld [vmem:[#allocation5 + $0xb70] sm:$0xff]
    %v509 = vld [vmem:[#allocation5 + $0xb78] sm:$0xff]
    %v510 = vld [vmem:[#allocation5 + $0xb80] sm:$0xff]
    %v511 = vld [vmem:[#allocation5 + $0xb88] sm:$0xff]
    %v512 = vld [vmem:[#allocation5 + $0xb90] sm:$0xff]
    %v513 = vld [vmem:[#allocation5 + $0xb98] sm:$0xff]
    %v514 = vld [vmem:[#allocation5 + $0xba0] sm:$0xff]
    %v515 = vld [vmem:[#allocation5 + $0xba8] sm:$0xff]
    %v516 = vld [vmem:[#allocation5 + $0xbb0] sm:$0xff]
    %v517 = vld [vmem:[#allocation5 + $0xbb8] sm:$0xff]
    %v518 = vld [vmem:[#allocation5 + $0xbc0] sm:$0xff]
    %v519 = vld [vmem:[#allocation5 + $0xbc8] sm:$0xff]
    %v520 = vld [vmem:[#allocation5 + $0xbd0] sm:$0xff]
    %v521 = vld [vmem:[#allocation5 + $0xbd8] sm:$0xff]
    %v522 = vld [vmem:[#allocation5 + $0xbe0] sm:$0xff]
    %v523 = vld [vmem:[#allocation5 + $0xbe8] sm:$0xff]
    %v524 = vld [vmem:[#allocation5 + $0xbf0] sm:$0xff]
    %v525 = vld [vmem:[#allocation5 + $0xbf8] sm:$0xff]
    %v526 = vld [vmem:[#allocation5 + $0xc00] sm:$0xff]
    %v527 = vld [vmem:[#allocation5 + $0xc08] sm:$0xff]
    %v528 = vld [vmem:[#allocation5 + $0xc10] sm:$0xff]
    %v529 = vld [vmem:[#allocation5 + $0xc18] sm:$0xff]
    %v530 = vld [vmem:[#allocation5 + $0xc20] sm:$0xff]
    %v531 = vld [vmem:[#allocation5 + $0xc28] sm:$0xff]
    %v532 = vld [vmem:[#allocation5 + $0xc30] sm:$0xff]
    %v533 = vld [vmem:[#allocation5 + $0xc38] sm:$0xff]
    %v534 = vld [vmem:[#allocation5 + $0xc40] sm:$0xff]
    %v535 = vld [vmem:[#allocation5 + $0xc48] sm:$0xff]
    %v536 = vld [vmem:[#allocation5 + $0xc50] sm:$0xff]
    %v537 = vld [vmem:[#allocation5 + $0xc58] sm:$0xff]
    %v538 = vld [vmem:[#allocation5 + $0xc60] sm:$0xff]
    %v539 = vld [vmem:[#allocation5 + $0xc68] sm:$0xff]
    %v540 = vld [vmem:[#allocation5 + $0xc70] sm:$0xff]
    %v541 = vld [vmem:[#allocation5 + $0xc78] sm:$0xff]
    %v542 = vld [vmem:[#allocation5 + $0xc80] sm:$0xff]
    %v543 = vld [vmem:[#allocation5 + $0xc88] sm:$0xff]
    %v544 = vld [vmem:[#allocation5 + $0xc90] sm:$0xff]
    %v545 = vld [vmem:[#allocation5 + $0xc98] sm:$0xff]
    %v546 = vld [vmem:[#allocation5 + $0xca0] sm:$0xff]
    %v547 = vld [vmem:[#allocation5 + $0xca8] sm:$0xff]
    %v548 = vld [vmem:[#allocation5 + $0xcb0] sm:$0xff]
    %v549 = vld [vmem:[#allocation5 + $0xcb8] sm:$0xff]
    %v550 = vld [vmem:[#allocation5 + $0xcc0] sm:$0xff]
    %v551 = vld [vmem:[#allocation5 + $0xcc8] sm:$0xff]
    %v552 = vld [vmem:[#allocation5 + $0xcd0] sm:$0xff]
    %v553 = vld [vmem:[#allocation5 + $0xcd8] sm:$0xff]
    %v554 = vld [vmem:[#allocation5 + $0xce0] sm:$0xff]
    %v555 = vld [vmem:[#allocation5 + $0xce8] sm:$0xff]
    %v556 = vld [vmem:[#allocation5 + $0xcf0] sm:$0xff]
    %v557 = vld [vmem:[#allocation5 + $0xcf8] sm:$0xff]
    %v558 = vld [vmem:[#allocation5 + $0xd00] sm:$0xff]
    %v559 = vld [vmem:[#allocation5 + $0xd08] sm:$0xff]
    %v560 = vld [vmem:[#allocation5 + $0xd10] sm:$0xff]
    %v561 = vld [vmem:[#allocation5 + $0xd18] sm:$0xff]
    %v562 = vld [vmem:[#allocation5 + $0xd20] sm:$0xff]
    %v563 = vld [vmem:[#allocation5 + $0xd28] sm:$0xff]
    %v564 = vld [vmem:[#allocation5 + $0xd30] sm:$0xff]
    %v565 = vld [vmem:[#allocation5 + $0xd38] sm:$0xff]
    %v566 = vld [vmem:[#allocation5 + $0xd40] sm:$0xff]
    %v567 = vld [vmem:[#allocation5 + $0xd48] sm:$0xff]
    %v568 = vld [vmem:[#allocation5 + $0xd50] sm:$0xff]
    %v569 = vld [vmem:[#allocation5 + $0xd58] sm:$0xff]
    %v570 = vld [vmem:[#allocation5 + $0xd60] sm:$0xff]
    %v571 = vld [vmem:[#allocation5 + $0xd68] sm:$0xff]
    %v572 = vld [vmem:[#allocation5 + $0xd70] sm:$0xff]
    %v573 = vld [vmem:[#allocation5 + $0xd78] sm:$0xff]
    %v574 = vld [vmem:[#allocation5 + $0xd80] sm:$0xff]
    %v575 = vld [vmem:[#allocation5 + $0xd88] sm:$0xff]
    %v576 = vld [vmem:[#allocation5 + $0xd90] sm:$0xff]
    %v577 = vld [vmem:[#allocation5 + $0xd98] sm:$0xff]
    %v578 = vld [vmem:[#allocation5 + $0xda0] sm:$0xff]
    %v579 = vld [vmem:[#allocation5 + $0xda8] sm:$0xff]
    %v580 = vld [vmem:[#allocation5 + $0xdb0] sm:$0xff]
    %v581 = vld [vmem:[#allocation5 + $0xdb8] sm:$0xff]
    %v582 = vld [vmem:[#allocation5 + $0xdc0] sm:$0xff]
    %v583 = vld [vmem:[#allocation5 + $0xdc8] sm:$0xff]
    %v584 = vld [vmem:[#allocation5 + $0xdd0] sm:$0xff]
    %v585 = vld [vmem:[#allocation5 + $0xdd8] sm:$0xff]
    %v586 = vld [vmem:[#allocation5 + $0xde0] sm:$0xff]
    %v587 = vld [vmem:[#allocation5 + $0xde8] sm:$0xff]
    %v588 = vld [vmem:[#allocation5 + $0xdf0] sm:$0xff]
    %v589 = vld [vmem:[#allocation5 + $0xdf8] sm:$0xff]
    %v590 = vld [vmem:[#allocation5 + $0xe00] sm:$0xff]
    %v591 = vld [vmem:[#allocation5 + $0xe08] sm:$0xff]
    %v592 = vld [vmem:[#allocation5 + $0xe10] sm:$0xff]
    %v593 = vld [vmem:[#allocation5 + $0xe18] sm:$0xff]
    %v594 = vld [vmem:[#allocation5 + $0xe20] sm:$0xff]
    %v595 = vld [vmem:[#allocation5 + $0xe28] sm:$0xff]
    %v596 = vld [vmem:[#allocation5 + $0xe30] sm:$0xff]
    %v597 = vld [vmem:[#allocation5 + $0xe38] sm:$0xff]
    %v598 = vld [vmem:[#allocation5 + $0xe40] sm:$0xff]
    %v599 = vld [vmem:[#allocation5 + $0xe48] sm:$0xff]
    %v600 = vld [vmem:[#allocation5 + $0xe50] sm:$0xff]
    %v601 = vld [vmem:[#allocation5 + $0xe58] sm:$0xff]
    %v602 = vld [vmem:[#allocation5 + $0xe60] sm:$0xff]
    %v603 = vld [vmem:[#allocation5 + $0xe68] sm:$0xff]
    %v604 = vld [vmem:[#allocation5 + $0xe70] sm:$0xff]
    %v605 = vld [vmem:[#allocation5 + $0xe78] sm:$0xff]
    %v606 = vld [vmem:[#allocation5 + $0xe80] sm:$0xff]
    %v607 = vld [vmem:[#allocation5 + $0xe88] sm:$0xff]
    %v608 = vld [vmem:[#allocation5 + $0xe90] sm:$0xff]
    %v609 = vld [vmem:[#allocation5 + $0xe98] sm:$0xff]
    %v610 = vld [vmem:[#allocation5 + $0xea0] sm:$0xff]
    %v611 = vld [vmem:[#allocation5 + $0xea8] sm:$0xff]
    %v612 = vld [vmem:[#allocation5 + $0xeb0] sm:$0xff]
    %v613 = vld [vmem:[#allocation5 + $0xeb8] sm:$0xff]
    %v614 = vld [vmem:[#allocation5 + $0xec0] sm:$0xff]
    %v615 = vld [vmem:[#allocation5 + $0xec8] sm:$0xff]
    %v616 = vld [vmem:[#allocation5 + $0xed0] sm:$0xff]
    %v617 = vld [vmem:[#allocation5 + $0xed8] sm:$0xff]
    %v618 = vld [vmem:[#allocation5 + $0xee0] sm:$0xff]
    %v619 = vld [vmem:[#allocation5 + $0xee8] sm:$0xff]
    %v620 = vld [vmem:[#allocation5 + $0xef0] sm:$0xff]
    %v621 = vld [vmem:[#allocation5 + $0xef8] sm:$0xff]
    %v622 = vld [vmem:[#allocation5 + $0xf00] sm:$0xff]
    %v623 = vld [vmem:[#allocation5 + $0xf08] sm:$0xff]
    %v624 = vld [vmem:[#allocation5 + $0xf10] sm:$0xff]
    %v625 = vld [vmem:[#allocation5 + $0xf18] sm:$0xff]
    %v626 = vld [vmem:[#allocation5 + $0xf20] sm:$0xff]
    %v627 = vld [vmem:[#allocation5 + $0xf28] sm:$0xff]
    %v628 = vld [vmem:[#allocation5 + $0xf30] sm:$0xff]
    %v629 = vld [vmem:[#allocation5 + $0xf38] sm:$0xff]
    %v630 = vld [vmem:[#allocation5 + $0xf40] sm:$0xff]
    %v631 = vld [vmem:[#allocation5 + $0xf48] sm:$0xff]
    %v632 = vld [vmem:[#allocation5 + $0xf50] sm:$0xff]
    %v633 = vld [vmem:[#allocation5 + $0xf58] sm:$0xff]
    %v634 = vld [vmem:[#allocation5 + $0xf60] sm:$0xff]
    %v635 = vld [vmem:[#allocation5 + $0xf68] sm:$0xff]
    %v636 = vld [vmem:[#allocation5 + $0xf70] sm:$0xff]
    %v637 = vld [vmem:[#allocation5 + $0xf78] sm:$0xff]
    %v638 = vld [vmem:[#allocation5 + $0xf80] sm:$0xff]
    %v639 = vld [vmem:[#allocation5 + $0xf88] sm:$0xff]
    %v640 = vld [vmem:[#allocation5 + $0xf90] sm:$0xff]
    %v641 = vld [vmem:[#allocation5 + $0xf98] sm:$0xff]
    %v642 = vld [vmem:[#allocation5 + $0xfa0] sm:$0xff]
    %v643 = vld [vmem:[#allocation5 + $0xfa8] sm:$0xff]
    %v644 = vld [vmem:[#allocation5 + $0xfb0] sm:$0xff]
    %v645 = vld [vmem:[#allocation5 + $0xfb8] sm:$0xff]
    %v646 = vld [vmem:[#allocation5 + $0xfc0] sm:$0xff]
    %v647 = vld [vmem:[#allocation5 + $0xfc8] sm:$0xff]
    %v648 = vld [vmem:[#allocation5 + $0xfd0] sm:$0xff]
    %v649 = vld [vmem:[#allocation5 + $0xfd8] sm:$0xff]
    %v650 = vld [vmem:[#allocation5 + $0xfe0] sm:$0xff]
    %v651 = vld [vmem:[#allocation5 + $0xfe8] sm:$0xff]
    %v652 = vld [vmem:[#allocation5 + $0xff0] sm:$0xff]
    %v653 = vld [vmem:[#allocation5 + $0xff8] sm:$0xff]
    %v654 = vld [vmem:[#allocation5 + $0x1000] sm:$0xff]
    %v655 = vld [vmem:[#allocation5 + $0x1008] sm:$0xff]
    %v656 = vld [vmem:[#allocation5 + $0x1010] sm:$0xff]
    %v657 = vld [vmem:[#allocation5 + $0x1018] sm:$0xff]
    %v658 = vld [vmem:[#allocation5 + $0x1020] sm:$0xff]
    %v659 = vld [vmem:[#allocation5 + $0x1028] sm:$0xff]
    %v660 = vld [vmem:[#allocation5 + $0x1030] sm:$0xff]
    %v661 = vld [vmem:[#allocation5 + $0x1038] sm:$0xff]
    %v662 = vld [vmem:[#allocation5 + $0x1040] sm:$0xff]
    %v663 = vld [vmem:[#allocation5 + $0x1048] sm:$0xff]
    %v664 = vld [vmem:[#allocation5 + $0x1050] sm:$0xff]
    %v665 = vld [vmem:[#allocation5 + $0x1058] sm:$0xff]
    %v666 = vld [vmem:[#allocation5 + $0x1060] sm:$0xff]
    %v667 = vld [vmem:[#allocation5 + $0x1068] sm:$0xff]
    %v668 = vld [vmem:[#allocation5 + $0x1070] sm:$0xff]
    %v669 = vld [vmem:[#allocation5 + $0x1078] sm:$0xff]
    %v670 = vld [vmem:[#allocation5 + $0x1080] sm:$0xff]
    %v671 = vld [vmem:[#allocation5 + $0x1088] sm:$0xff]
    %v672 = vld [vmem:[#allocation5 + $0x1090] sm:$0xff]
    %v673 = vld [vmem:[#allocation5 + $0x1098] sm:$0xff]
    %v674 = vld [vmem:[#allocation5 + $0x10a0] sm:$0xff]
    %v675 = vld [vmem:[#allocation5 + $0x10a8] sm:$0xff]
    %v676 = vld [vmem:[#allocation5 + $0x10b0] sm:$0xff]
    %v677 = vld [vmem:[#allocation5 + $0x10b8] sm:$0xff]
    %v678 = vld [vmem:[#allocation5 + $0x10c0] sm:$0xff]
    %v679 = vld [vmem:[#allocation5 + $0x10c8] sm:$0xff]
    %v680 = vld [vmem:[#allocation5 + $0x10d0] sm:$0xff]
    %v681 = vld [vmem:[#allocation5 + $0x10d8] sm:$0xff]
    %v682 = vld [vmem:[#allocation5 + $0x10e0] sm:$0xff]
    %v683 = vld [vmem:[#allocation5 + $0x10e8] sm:$0xff]
    %v684 = vld [vmem:[#allocation5 + $0x10f0] sm:$0xff]
    %v685 = vld [vmem:[#allocation5 + $0x10f8] sm:$0xff]
    %v686 = vld [vmem:[#allocation5 + $0x1100] sm:$0xff]
    %v687 = vld [vmem:[#allocation5 + $0x1108] sm:$0xff]
    %v688 = vld [vmem:[#allocation5 + $0x1110] sm:$0xff]
    %v689 = vld [vmem:[#allocation5 + $0x1118] sm:$0xff]
    %v690 = vld [vmem:[#allocation5 + $0x1120] sm:$0xff]
    %v691 = vld [vmem:[#allocation5 + $0x1128] sm:$0xff]
    %v692 = vld [vmem:[#allocation5 + $0x1130] sm:$0xff]
    %v693 = vld [vmem:[#allocation5 + $0x1138] sm:$0xff]
    %v694 = vld [vmem:[#allocation5 + $0x1140] sm:$0xff]
    %v695 = vld [vmem:[#allocation5 + $0x1148] sm:$0xff]
    %v696 = vld [vmem:[#allocation5 + $0x1150] sm:$0xff]
    %v697 = vld [vmem:[#allocation5 + $0x1158] sm:$0xff]
    %v698 = vld [vmem:[#allocation5 + $0x1160] sm:$0xff]
    %v699 = vld [vmem:[#allocation5 + $0x1168] sm:$0xff]
    %v700 = vld [vmem:[#allocation5 + $0x1170] sm:$0xff]
    %v701 = vld [vmem:[#allocation5 + $0x1178] sm:$0xff]
    %v702 = vld [vmem:[#allocation5 + $0x1180] sm:$0xff]
    %v703 = vld [vmem:[#allocation5 + $0x1188] sm:$0xff]
    %v704 = vld [vmem:[#allocation5 + $0x1190] sm:$0xff]
    %v705 = vld [vmem:[#allocation5 + $0x1198] sm:$0xff]
    %v706 = vld [vmem:[#allocation5 + $0x11a0] sm:$0xff]
    %v707 = vld [vmem:[#allocation5 + $0x11a8] sm:$0xff]
    %v708 = vld [vmem:[#allocation5 + $0x11b0] sm:$0xff]
    %v709 = vld [vmem:[#allocation5 + $0x11b8] sm:$0xff]
    %v710 = vld [vmem:[#allocation5 + $0x11c0] sm:$0xff]
    %v711 = vld [vmem:[#allocation5 + $0x11c8] sm:$0xff]
    %v712 = vld [vmem:[#allocation5 + $0x11d0] sm:$0xff]
    %v713 = vld [vmem:[#allocation5 + $0x11d8] sm:$0xff]
    %v714 = vld [vmem:[#allocation5 + $0x11e0] sm:$0xff]
    %v715 = vld [vmem:[#allocation5 + $0x11e8] sm:$0xff]
    %v716 = vld [vmem:[#allocation5 + $0x11f0] sm:$0xff]
    %v717 = vld [vmem:[#allocation5 + $0x11f8] sm:$0xff]
    %v718 = vld [vmem:[#allocation5 + $0x1200] sm:$0xff]
    %v719 = vld [vmem:[#allocation5 + $0x1208] sm:$0xff]
    %v720 = vld [vmem:[#allocation5 + $0x1210] sm:$0xff]
    %v721 = vld [vmem:[#allocation5 + $0x1218] sm:$0xff]
    %v722 = vld [vmem:[#allocation5 + $0x1220] sm:$0xff]
    %v723 = vld [vmem:[#allocation5 + $0x1228] sm:$0xff]
    %v724 = vld [vmem:[#allocation5 + $0x1230] sm:$0xff]
    %v725 = vld [vmem:[#allocation5 + $0x1238] sm:$0xff]
    %v726 = vld [vmem:[#allocation5 + $0x1240] sm:$0xff]
    %v727 = vld [vmem:[#allocation5 + $0x1248] sm:$0xff]
    %v728 = vld [vmem:[#allocation5 + $0x1250] sm:$0xff]
    %v729 = vld [vmem:[#allocation5 + $0x1258] sm:$0xff]
    %v730 = vld [vmem:[#allocation5 + $0x1260] sm:$0xff]
    %v731 = vld [vmem:[#allocation5 + $0x1268] sm:$0xff]
    %v732 = vld [vmem:[#allocation5 + $0x1270] sm:$0xff]
    %v733 = vld [vmem:[#allocation5 + $0x1278] sm:$0xff]
    %v734 = vld [vmem:[#allocation5 + $0x1280] sm:$0xff]
    %v735 = vld [vmem:[#allocation5 + $0x1288] sm:$0xff]
    %v736 = vld [vmem:[#allocation5 + $0x1290] sm:$0xff]
    %v737 = vld [vmem:[#allocation5 + $0x1298] sm:$0xff]
    %v738 = vld [vmem:[#allocation5 + $0x12a0] sm:$0xff]
    %v739 = vld [vmem:[#allocation5 + $0x12a8] sm:$0xff]
    %v740 = vld [vmem:[#allocation5 + $0x12b0] sm:$0xff]
    %v741 = vld [vmem:[#allocation5 + $0x12b8] sm:$0xff]
    %v742 = vld [vmem:[#allocation5 + $0x12c0] sm:$0xff]
    %v743 = vld [vmem:[#allocation5 + $0x12c8] sm:$0xff]
    %v744 = vld [vmem:[#allocation5 + $0x12d0] sm:$0xff]
    %v745 = vld [vmem:[#allocation5 + $0x12d8] sm:$0xff]
    %v746 = vld [vmem:[#allocation5 + $0x12e0] sm:$0xff]
    %v747 = vld [vmem:[#allocation5 + $0x12e8] sm:$0xff]
    %v748 = vld [vmem:[#allocation5 + $0x12f0] sm:$0xff]
    %v749 = vld [vmem:[#allocation5 + $0x12f8] sm:$0xff]
    %v750 = vld [vmem:[#allocation5 + $0x1300] sm:$0xff]
    %v751 = vld [vmem:[#allocation5 + $0x1308] sm:$0xff]
    %v752 = vld [vmem:[#allocation5 + $0x1310] sm:$0xff]
    %v753 = vld [vmem:[#allocation5 + $0x1318] sm:$0xff]
    %v754 = vld [vmem:[#allocation5 + $0x1320] sm:$0xff]
    %v755 = vld [vmem:[#allocation5 + $0x1328] sm:$0xff]
    %v756 = vld [vmem:[#allocation5 + $0x1330] sm:$0xff]
    %v757 = vld [vmem:[#allocation5 + $0x1338] sm:$0xff]
    %v758 = vld [vmem:[#allocation5 + $0x1340] sm:$0xff]
    %v759 = vld [vmem:[#allocation5 + $0x1348] sm:$0xff]
    %v760 = vld [vmem:[#allocation5 + $0x1350] sm:$0xff]
    %v761 = vld [vmem:[#allocation5 + $0x1358] sm:$0xff]
    %v762 = vld [vmem:[#allocation5 + $0x1360] sm:$0xff]
    %v763 = vld [vmem:[#allocation5 + $0x1368] sm:$0xff]
    %v764 = vld [vmem:[#allocation5 + $0x1370] sm:$0xff]
    %v765 = vld [vmem:[#allocation5 + $0x1378] sm:$0xff]
    %v766 = vld [vmem:[#allocation5 + $0x1380] sm:$0xff]
    %v767 = vld [vmem:[#allocation5 + $0x1388] sm:$0xff]
    %v768 = vld [vmem:[#allocation5 + $0x1390] sm:$0xff]
    %v769 = vld [vmem:[#allocation5 + $0x1398] sm:$0xff]
    %v770 = vld [vmem:[#allocation5 + $0x13a0] sm:$0xff]
    %v771 = vld [vmem:[#allocation5 + $0x13a8] sm:$0xff]
    %v772 = vld [vmem:[#allocation5 + $0x13b0] sm:$0xff]
    %v773 = vld [vmem:[#allocation5 + $0x13b8] sm:$0xff]
    %v774 = vld [vmem:[#allocation5 + $0x13c0] sm:$0xff]
    %v775 = vld [vmem:[#allocation5 + $0x13c8] sm:$0xff]
    %v776 = vld [vmem:[#allocation5 + $0x13d0] sm:$0xff]
    %v777 = vld [vmem:[#allocation5 + $0x13d8] sm:$0xff]
    %v778 = vld [vmem:[#allocation5 + $0x13e0] sm:$0xff]
    %v779 = vld [vmem:[#allocation5 + $0x13e8] sm:$0xff]
    %v780 = vld [vmem:[#allocation5 + $0x13f0] sm:$0xff]
    %v781 = vld [vmem:[#allocation5 + $0x13f8] sm:$0xff]
    %v782 = vld [vmem:[#allocation5 + $0x1400] sm:$0xff]
    %v783 = vld [vmem:[#allocation5 + $0x1408] sm:$0xff]
    %v784 = vld [vmem:[#allocation5 + $0x1410] sm:$0xff]
    %v785 = vld [vmem:[#allocation5 + $0x1418] sm:$0xff]
    %v786 = vld [vmem:[#allocation5 + $0x1420] sm:$0xff]
    %v787 = vld [vmem:[#allocation5 + $0x1428] sm:$0xff]
    %v788 = vld [vmem:[#allocation5 + $0x1430] sm:$0xff]
    %v789 = vld [vmem:[#allocation5 + $0x1438] sm:$0xff]
    %v790 = vld [vmem:[#allocation5 + $0x1440] sm:$0xff]
    %v791 = vld [vmem:[#allocation5 + $0x1448] sm:$0xff]
    %v792 = vld [vmem:[#allocation5 + $0x1450] sm:$0xff]
    %v793 = vld [vmem:[#allocation5 + $0x1458] sm:$0xff]
    %v794 = vld [vmem:[#allocation5 + $0x1460] sm:$0xff]
    %v795 = vld [vmem:[#allocation5 + $0x1468] sm:$0xff]
    %v796 = vld [vmem:[#allocation5 + $0x1470] sm:$0xff]
    %v797 = vld [vmem:[#allocation5 + $0x1478] sm:$0xff]
    %v798 = vld [vmem:[#allocation5 + $0x1480] sm:$0xff]
    %v799 = vld [vmem:[#allocation5 + $0x1488] sm:$0xff]
    %v800 = vld [vmem:[#allocation5 + $0x1490] sm:$0xff]
    %v801 = vld [vmem:[#allocation5 + $0x1498] sm:$0xff]
    %v802 = vld [vmem:[#allocation5 + $0x14a0] sm:$0xff]
    %v803 = vld [vmem:[#allocation5 + $0x14a8] sm:$0xff]
    %v804 = vld [vmem:[#allocation5 + $0x14b0] sm:$0xff]
    %v805 = vld [vmem:[#allocation5 + $0x14b8] sm:$0xff]
    %v806 = vld [vmem:[#allocation5 + $0x14c0] sm:$0xff]
    %v807 = vld [vmem:[#allocation5 + $0x14c8] sm:$0xff]
    %v808 = vld [vmem:[#allocation5 + $0x14d0] sm:$0xff]
    %v809 = vld [vmem:[#allocation5 + $0x14d8] sm:$0xff]
    %v810 = vld [vmem:[#allocation5 + $0x14e0] sm:$0xff]
    %v811 = vld [vmem:[#allocation5 + $0x14e8] sm:$0xff]
    %v812 = vld [vmem:[#allocation5 + $0x14f0] sm:$0xff]
    %v813 = vld [vmem:[#allocation5 + $0x14f8] sm:$0xff]
    %v814 = vld [vmem:[#allocation5 + $0x1500] sm:$0xff]
    %v815 = vld [vmem:[#allocation5 + $0x1508] sm:$0xff]
    %v816 = vld [vmem:[#allocation5 + $0x1510] sm:$0xff]
    %v817 = vld [vmem:[#allocation5 + $0x1518] sm:$0xff]
    %v818 = vld [vmem:[#allocation5 + $0x1520] sm:$0xff]
    %v819 = vld [vmem:[#allocation5 + $0x1528] sm:$0xff]
    %v820 = vld [vmem:[#allocation5 + $0x1530] sm:$0xff]
    %v821 = vld [vmem:[#allocation5 + $0x1538] sm:$0xff]
    %v822 = vld [vmem:[#allocation5 + $0x1540] sm:$0xff]
    %v823 = vld [vmem:[#allocation5 + $0x1548] sm:$0xff]
    %v824 = vld [vmem:[#allocation5 + $0x1550] sm:$0xff]
    %v825 = vld [vmem:[#allocation5 + $0x1558] sm:$0xff]
    %v826 = vld [vmem:[#allocation5 + $0x1560] sm:$0xff]
    %v827 = vld [vmem:[#allocation5 + $0x1568] sm:$0xff]
    %v828 = vld [vmem:[#allocation5 + $0x1570] sm:$0xff]
    %v829 = vld [vmem:[#allocation5 + $0x1578] sm:$0xff]
    %v830 = vld [vmem:[#allocation5 + $0x1580] sm:$0xff]
    %v831 = vld [vmem:[#allocation5 + $0x1588] sm:$0xff]
    %v832 = vld [vmem:[#allocation5 + $0x1590] sm:$0xff]
    %v833 = vld [vmem:[#allocation5 + $0x1598] sm:$0xff]
    %v834 = vld [vmem:[#allocation5 + $0x15a0] sm:$0xff]
    %v835 = vld [vmem:[#allocation5 + $0x15a8] sm:$0xff]
    %v836 = vld [vmem:[#allocation5 + $0x15b0] sm:$0xff]
    %v837 = vld [vmem:[#allocation5 + $0x15b8] sm:$0xff]
    %v838 = vld [vmem:[#allocation5 + $0x15c0] sm:$0xff]
    %v839 = vld [vmem:[#allocation5 + $0x15c8] sm:$0xff]
    %v840 = vld [vmem:[#allocation5 + $0x15d0] sm:$0xff]
    %v841 = vld [vmem:[#allocation5 + $0x15d8] sm:$0xff]
    %v842 = vld [vmem:[#allocation5 + $0x15e0] sm:$0xff]
    %v843 = vld [vmem:[#allocation5 + $0x15e8] sm:$0xff]
    %v844 = vld [vmem:[#allocation5 + $0x15f0] sm:$0xff]
    %v845 = vld [vmem:[#allocation5 + $0x15f8] sm:$0xff]
    %v846 = vld [vmem:[#allocation5 + $0x1600] sm:$0xff]
    %v847 = vld [vmem:[#allocation5 + $0x1608] sm:$0xff]
    %v848 = vld [vmem:[#allocation5 + $0x1610] sm:$0xff]
    %v849 = vld [vmem:[#allocation5 + $0x1618] sm:$0xff]
    %v850 = vld [vmem:[#allocation5 + $0x1620] sm:$0xff]
    %v851 = vld [vmem:[#allocation5 + $0x1628] sm:$0xff]
    %v852 = vld [vmem:[#allocation5 + $0x1630] sm:$0xff]
    %v853 = vld [vmem:[#allocation5 + $0x1638] sm:$0xff]
    %v854 = vld [vmem:[#allocation5 + $0x1640] sm:$0xff]
    %v855 = vld [vmem:[#allocation5 + $0x1648] sm:$0xff]
    %v856 = vld [vmem:[#allocation5 + $0x1650] sm:$0xff]
    %v857 = vld [vmem:[#allocation5 + $0x1658] sm:$0xff]
    %v858 = vld [vmem:[#allocation5 + $0x1660] sm:$0xff]
    %v859 = vld [vmem:[#allocation5 + $0x1668] sm:$0xff]
    %v860 = vld [vmem:[#allocation5 + $0x1670] sm:$0xff]
    %v861 = vld [vmem:[#allocation5 + $0x1678] sm:$0xff]
    %v862 = vld [vmem:[#allocation5 + $0x1680] sm:$0xff]
    %v863 = vld [vmem:[#allocation5 + $0x1688] sm:$0xff]
    %v864 = vld [vmem:[#allocation5 + $0x1690] sm:$0xff]
    %v865 = vld [vmem:[#allocation5 + $0x1698] sm:$0xff]
    %v866 = vld [vmem:[#allocation5 + $0x16a0] sm:$0xff]
    %v867 = vld [vmem:[#allocation5 + $0x16a8] sm:$0xff]
    %v868 = vld [vmem:[#allocation5 + $0x16b0] sm:$0xff]
    %v869 = vld [vmem:[#allocation5 + $0x16b8] sm:$0xff]
    %v870 = vld [vmem:[#allocation5 + $0x16c0] sm:$0xff]
    %v871 = vld [vmem:[#allocation5 + $0x16c8] sm:$0xff]
    %v872 = vld [vmem:[#allocation5 + $0x16d0] sm:$0xff]
    %v873 = vld [vmem:[#allocation5 + $0x16d8] sm:$0xff]
    %v874 = vld [vmem:[#allocation5 + $0x16e0] sm:$0xff]
    %v875 = vld [vmem:[#allocation5 + $0x16e8] sm:$0xff]
    %v876 = vld [vmem:[#allocation5 + $0x16f0] sm:$0xff]
    %v877 = vld [vmem:[#allocation5 + $0x16f8] sm:$0xff]
    %v878 = vld [vmem:[#allocation5 + $0x1700] sm:$0xff]
    %v879 = vld [vmem:[#allocation5 + $0x1708] sm:$0xff]
    %v880 = vld [vmem:[#allocation5 + $0x1710] sm:$0xff]
    %v881 = vld [vmem:[#allocation5 + $0x1718] sm:$0xff]
    %v882 = vld [vmem:[#allocation5 + $0x1720] sm:$0xff]
    %v883 = vld [vmem:[#allocation5 + $0x1728] sm:$0xff]
    %v884 = vld [vmem:[#allocation5 + $0x1730] sm:$0xff]
    %v885 = vld [vmem:[#allocation5 + $0x1738] sm:$0xff]
    %v886 = vld [vmem:[#allocation5 + $0x1740] sm:$0xff]
    %v887 = vld [vmem:[#allocation5 + $0x1748] sm:$0xff]
    %v888 = vld [vmem:[#allocation5 + $0x1750] sm:$0xff]
    %v889 = vld [vmem:[#allocation5 + $0x1758] sm:$0xff]
    %v890 = vld [vmem:[#allocation5 + $0x1760] sm:$0xff]
    %v891 = vld [vmem:[#allocation5 + $0x1768] sm:$0xff]
    %v892 = vld [vmem:[#allocation5 + $0x1770] sm:$0xff]
    %v893 = vld [vmem:[#allocation5 + $0x1778] sm:$0xff]
    %v894 = vld [vmem:[#allocation5 + $0x1780] sm:$0xff]
    %v895 = vld [vmem:[#allocation5 + $0x1788] sm:$0xff]
    %v896 = vld [vmem:[#allocation5 + $0x1790] sm:$0xff]
    %v897 = vld [vmem:[#allocation5 + $0x1798] sm:$0xff]
    %v898 = vld [vmem:[#allocation5 + $0x17a0] sm:$0xff]
    %v899 = vld [vmem:[#allocation5 + $0x17a8] sm:$0xff]
    %v900 = vld [vmem:[#allocation5 + $0x17b0] sm:$0xff]
    %v901 = vld [vmem:[#allocation5 + $0x17b8] sm:$0xff]
    %v902 = vld [vmem:[#allocation5 + $0x17c0] sm:$0xff]
    %v903 = vld [vmem:[#allocation5 + $0x17c8] sm:$0xff]
    %v904 = vld [vmem:[#allocation5 + $0x17d0] sm:$0xff]
    %v905 = vld [vmem:[#allocation5 + $0x17d8] sm:$0xff]
    %v906 = vld [vmem:[#allocation5 + $0x17e0] sm:$0xff]
    %v907 = vld [vmem:[#allocation5 + $0x17e8] sm:$0xff]
    %v908 = vld [vmem:[#allocation5 + $0x17f0] sm:$0xff]
    %v909 = vld [vmem:[#allocation5 + $0x17f8] sm:$0xff]
    %v910 = vld [vmem:[#allocation5 + $0x1800] sm:$0xff]
    %v911 = vld [vmem:[#allocation5 + $0x1808] sm:$0xff]
    %v912 = vld [vmem:[#allocation5 + $0x1810] sm:$0xff]
    %v913 = vld [vmem:[#allocation5 + $0x1818] sm:$0xff]
    %v914 = vld [vmem:[#allocation5 + $0x1820] sm:$0xff]
    %v915 = vld [vmem:[#allocation5 + $0x1828] sm:$0xff]
    %v916 = vld [vmem:[#allocation5 + $0x1830] sm:$0xff]
    %v917 = vld [vmem:[#allocation5 + $0x1838] sm:$0xff]
    %v918 = vld [vmem:[#allocation5 + $0x1840] sm:$0xff]
    %v919 = vld [vmem:[#allocation5 + $0x1848] sm:$0xff]
    %v920 = vld [vmem:[#allocation5 + $0x1850] sm:$0xff]
    %v921 = vld [vmem:[#allocation5 + $0x1858] sm:$0xff]
    %v922 = vld [vmem:[#allocation5 + $0x1860] sm:$0xff]
    %v923 = vld [vmem:[#allocation5 + $0x1868] sm:$0xff]
    %v924 = vld [vmem:[#allocation5 + $0x1870] sm:$0xff]
    %v925 = vld [vmem:[#allocation5 + $0x1878] sm:$0xff]
    %v926 = vld [vmem:[#allocation5 + $0x1880] sm:$0xff]
    %v927 = vld [vmem:[#allocation5 + $0x1888] sm:$0xff]
    %v928 = vld [vmem:[#allocation5 + $0x1890] sm:$0xff]
    %v929 = vld [vmem:[#allocation5 + $0x1898] sm:$0xff]
    %v930 = vld [vmem:[#allocation5 + $0x18a0] sm:$0xff]
    %v931 = vld [vmem:[#allocation5 + $0x18a8] sm:$0xff]
    %v932 = vld [vmem:[#allocation5 + $0x18b0] sm:$0xff]
    %v933 = vld [vmem:[#allocation5 + $0x18b8] sm:$0xff]
    %v934 = vld [vmem:[#allocation5 + $0x18c0] sm:$0xff]
    %v935 = vld [vmem:[#allocation5 + $0x18c8] sm:$0xff]
    %v936 = vld [vmem:[#allocation5 + $0x18d0] sm:$0xff]
    %v937 = vld [vmem:[#allocation5 + $0x18d8] sm:$0xff]
    %v938 = vld [vmem:[#allocation5 + $0x18e0] sm:$0xff]
    %v939 = vld [vmem:[#allocation5 + $0x18e8] sm:$0xff]
    %v940 = vld [vmem:[#allocation5 + $0x18f0] sm:$0xff]
    %v941 = vld [vmem:[#allocation5 + $0x18f8] sm:$0xff]
    %v942 = vld [vmem:[#allocation5 + $0x1900] sm:$0xff]
    %v943 = vld [vmem:[#allocation5 + $0x1908] sm:$0xff]
    %v944 = vld [vmem:[#allocation5 + $0x1910] sm:$0xff]
    %v945 = vld [vmem:[#allocation5 + $0x1918] sm:$0xff]
    %v946 = vld [vmem:[#allocation5 + $0x1920] sm:$0xff]
    %v947 = vld [vmem:[#allocation5 + $0x1928] sm:$0xff]
    %v948 = vld [vmem:[#allocation5 + $0x1930] sm:$0xff]
    %v949 = vld [vmem:[#allocation5 + $0x1938] sm:$0xff]
    %v950 = vld [vmem:[#allocation5 + $0x1940] sm:$0xff]
    %v951 = vld [vmem:[#allocation5 + $0x1948] sm:$0xff]
    %v952 = vld [vmem:[#allocation5 + $0x1950] sm:$0xff]
    %v953 = vld [vmem:[#allocation5 + $0x1958] sm:$0xff]
    %v954 = vld [vmem:[#allocation5 + $0x1960] sm:$0xff]
    %v955 = vld [vmem:[#allocation5 + $0x1968] sm:$0xff]
    %v956 = vld [vmem:[#allocation5 + $0x1970] sm:$0xff]
    %v957 = vld [vmem:[#allocation5 + $0x1978] sm:$0xff]
    %v958 = vld [vmem:[#allocation5 + $0x1980] sm:$0xff]
    %v959 = vld [vmem:[#allocation5 + $0x1988] sm:$0xff]
    %v960 = vld [vmem:[#allocation5 + $0x1990] sm:$0xff]
    %v961 = vld [vmem:[#allocation5 + $0x1998] sm:$0xff]
    %v962 = vld [vmem:[#allocation5 + $0x19a0] sm:$0xff]
    %v963 = vld [vmem:[#allocation5 + $0x19a8] sm:$0xff]
    %v964 = vld [vmem:[#allocation5 + $0x19b0] sm:$0xff]
    %v965 = vld [vmem:[#allocation5 + $0x19b8] sm:$0xff]
    %v966 = vld [vmem:[#allocation5 + $0x19c0] sm:$0xff]
    %v967 = vld [vmem:[#allocation5 + $0x19c8] sm:$0xff]
    %v968 = vld [vmem:[#allocation5 + $0x19d0] sm:$0xff]
    %v969 = vld [vmem:[#allocation5 + $0x19d8] sm:$0xff]
    %v970 = vld [vmem:[#allocation5 + $0x19e0] sm:$0xff]
    %v971 = vld [vmem:[#allocation5 + $0x19e8] sm:$0xff]
    %v972 = vld [vmem:[#allocation5 + $0x19f0] sm:$0xff]
    %v973 = vld [vmem:[#allocation5 + $0x19f8] sm:$0xff]
    %v974 = vld [vmem:[#allocation5 + $0x1a00] sm:$0xff]
    %v975 = vld [vmem:[#allocation5 + $0x1a08] sm:$0xff]
    %v976 = vld [vmem:[#allocation5 + $0x1a10] sm:$0xff]
    %v977 = vld [vmem:[#allocation5 + $0x1a18] sm:$0xff]
    %v978 = vld [vmem:[#allocation5 + $0x1a20] sm:$0xff]
    %v979 = vld [vmem:[#allocation5 + $0x1a28] sm:$0xff]
    %v980 = vld [vmem:[#allocation5 + $0x1a30] sm:$0xff]
    %v981 = vld [vmem:[#allocation5 + $0x1a38] sm:$0xff]
    %v982 = vld [vmem:[#allocation5 + $0x1a40] sm:$0xff]
    %v983 = vld [vmem:[#allocation5 + $0x1a48] sm:$0xff]
    %v984 = vld [vmem:[#allocation5 + $0x1a50] sm:$0xff]
    %v985 = vld [vmem:[#allocation5 + $0x1a58] sm:$0xff]
    %v986 = vld [vmem:[#allocation5 + $0x1a60] sm:$0xff]
    %v987 = vld [vmem:[#allocation5 + $0x1a68] sm:$0xff]
    %v988 = vld [vmem:[#allocation5 + $0x1a70] sm:$0xff]
    %v989 = vld [vmem:[#allocation5 + $0x1a78] sm:$0xff]
    %v990 = vld [vmem:[#allocation5 + $0x1a80] sm:$0xff]
    %v991 = vld [vmem:[#allocation5 + $0x1a88] sm:$0xff]
    %v992 = vld [vmem:[#allocation5 + $0x1a90] sm:$0xff]
    %v993 = vld [vmem:[#allocation5 + $0x1a98] sm:$0xff]
    %v994 = vld [vmem:[#allocation5 + $0x1aa0] sm:$0xff]
    %v995 = vld [vmem:[#allocation5 + $0x1aa8] sm:$0xff]
    %v996 = vld [vmem:[#allocation5 + $0x1ab0] sm:$0xff]
    %v997 = vld [vmem:[#allocation5 + $0x1ab8] sm:$0xff]
    %v998 = vld [vmem:[#allocation5 + $0x1ac0] sm:$0xff]
    %v999 = vld [vmem:[#allocation5 + $0x1ac8] sm:$0xff]
    %v1000 = vld [vmem:[#allocation5 + $0x1ad0] sm:$0xff]
    %v1001 = vld [vmem:[#allocation5 + $0x1ad8] sm:$0xff]
    %v1002 = vld [vmem:[#allocation5 + $0x1ae0] sm:$0xff]
    %v1003 = vld [vmem:[#allocation5 + $0x1ae8] sm:$0xff]
    %v1004 = vld [vmem:[#allocation5 + $0x1af0] sm:$0xff]
    %v1005 = vld [vmem:[#allocation5 + $0x1af8] sm:$0xff]
    %v1006 = vld [vmem:[#allocation7] sm:$0xff]
    %v1007 = vld [vmem:[#allocation7 + $0x8] sm:$0xff]
    %v1008 = vld [vmem:[#allocation7 + $0x10] sm:$0x3]
    %v1012 = vlaneseq
    %v1013 = vshrl.u32 %v1012, 7
    %v1014 = vsub.s32 0, %v1013
    %v1015 = vrot.slane %v1006, %v1014
    %v1016 = vlaneseq
    %v1017 = vshrl.u32 %v1016, 7
    %v1018 = vsub.s32 1, %v1017
    %v1019 = vrot.slane %v1006, %v1018
    %v1020 = vlaneseq
    %v1021 = vshrl.u32 %v1020, 7
    %v1022 = vsub.s32 2, %v1021
    %v1023 = vrot.slane %v1006, %v1022
    %v1024 = vlaneseq
    %v1025 = vshrl.u32 %v1024, 7
    %v1026 = vsub.s32 3, %v1025
    %v1027 = vrot.slane %v1006, %v1026
    %v1028 = vlaneseq
    %v1029 = vshrl.u32 %v1028, 7
    %v1030 = vsub.s32 4, %v1029
    %v1031 = vrot.slane %v1006, %v1030
    %v1032 = vlaneseq
    %v1033 = vshrl.u32 %v1032, 7
    %v1034 = vsub.s32 5, %v1033
    %v1035 = vrot.slane %v1006, %v1034
    %v1036 = vlaneseq
    %v1037 = vshrl.u32 %v1036, 7
    %v1038 = vsub.s32 6, %v1037
    %v1039 = vrot.slane %v1006, %v1038
    %v1040 = vlaneseq
    %v1041 = vshrl.u32 %v1040, 7
    %v1042 = vsub.s32 7, %v1041
    %v1043 = vrot.slane %v1006, %v1042
    %v1044 = vlaneseq
    %v1045 = vshrl.u32 %v1044, 7
    %v1046 = vsub.s32 0, %v1045
    %v1047 = vrot.slane %v1007, %v1046
    %v1048 = vlaneseq
    %v1049 = vshrl.u32 %v1048, 7
    %v1050 = vsub.s32 1, %v1049
    %v1051 = vrot.slane %v1007, %v1050
    %v1052 = vlaneseq
    %v1053 = vshrl.u32 %v1052, 7
    %v1054 = vsub.s32 2, %v1053
    %v1055 = vrot.slane %v1007, %v1054
    %v1056 = vlaneseq
    %v1057 = vshrl.u32 %v1056, 7
    %v1058 = vsub.s32 3, %v1057
    %v1059 = vrot.slane %v1007, %v1058
    %v1060 = vlaneseq
    %v1061 = vshrl.u32 %v1060, 7
    %v1062 = vsub.s32 4, %v1061
    %v1063 = vrot.slane %v1007, %v1062
    %v1064 = vlaneseq
    %v1065 = vshrl.u32 %v1064, 7
    %v1066 = vsub.s32 5, %v1065
    %v1067 = vrot.slane %v1007, %v1066
    %v1068 = vlaneseq
    %v1069 = vshrl.u32 %v1068, 7
    %v1070 = vsub.s32 6, %v1069
    %v1071 = vrot.slane %v1007, %v1070
    %v1072 = vlaneseq
    %v1073 = vshrl.u32 %v1072, 7
    %v1074 = vsub.s32 7, %v1073
    %v1075 = vrot.slane %v1007, %v1074
    %v1076 = vlaneseq
    %v1077 = vshrl.u32 %v1076, 7
    %v1078 = vsub.s32 0, %v1077
    %v1079 = vrot.slane %v1008, %v1078
    %v1080 = vlaneseq
    %v1081 = vshrl.u32 %v1080, 7
    %v1082 = vsub.s32 1, %v1081
    %v1083 = vrot.slane %v1008, %v1082
    %v1966 = vunpack.c.l.b16 %v142
    %v1967 = vunpack.c.h.b16 %v142
    %v1968 = vunpack.c.l.b16 %v143
    %v1969 = vunpack.c.h.b16 %v143
    %v1970 = vunpack.c.l.b16 %v144
    %v1971 = vunpack.c.h.b16 %v144
    %v1972 = vunpack.c.l.b16 %v145
    %v1973 = vunpack.c.h.b16 %v145
    %v1974 = vunpack.c.l.b16 %v146
    %v1975 = vunpack.c.h.b16 %v146
    %v1976 = vunpack.c.l.b16 %v147
    %v1977 = vunpack.c.h.b16 %v147
    %v1978 = vunpack.c.l.b16 %v148
    %v1979 = vunpack.c.h.b16 %v148
    %v1980 = vunpack.c.l.b16 %v149
    %v1981 = vunpack.c.h.b16 %v149
    %v1982 = vunpack.c.l.b16 %v150
    %v1983 = vunpack.c.h.b16 %v150
    %v1984 = vunpack.c.l.b16 %v151
    %v1985 = vunpack.c.h.b16 %v151
    %v1986 = vunpack.c.l.b16 %v152
    %v1987 = vunpack.c.h.b16 %v152
    %v1988 = vunpack.c.l.b16 %v153
    %v1989 = vunpack.c.h.b16 %v153
    %v1990 = vunpack.c.l.b16 %v154
    %v1991 = vunpack.c.h.b16 %v154
    %v1992 = vunpack.c.l.b16 %v155
    %v1993 = vunpack.c.h.b16 %v155
    %v1994 = vunpack.c.l.b16 %v156
    %v1995 = vunpack.c.h.b16 %v156
    %v1996 = vunpack.c.l.b16 %v157
    %v1997 = vunpack.c.h.b16 %v157
    %v1998 = vunpack.c.l.b16 %v158
    %v1999 = vunpack.c.h.b16 %v158
    %v2000 = vunpack.c.l.b16 %v159
    %v2001 = vunpack.c.h.b16 %v159
    %v2002 = vunpack.c.l.b16 %v160
    %v2003 = vunpack.c.h.b16 %v160
    %v2004 = vunpack.c.l.b16 %v161
    %v2005 = vunpack.c.h.b16 %v161
    %v2006 = vunpack.c.l.b16 %v162
    %v2007 = vunpack.c.h.b16 %v162
    %v2008 = vunpack.c.l.b16 %v163
    %v2009 = vunpack.c.h.b16 %v163
    %v2010 = vunpack.c.l.b16 %v164
    %v2011 = vunpack.c.h.b16 %v164
    %v2012 = vunpack.c.l.b16 %v165
    %v2013 = vunpack.c.h.b16 %v165
    %v2014 = vunpack.c.l.b16 %v166
    %v2015 = vunpack.c.h.b16 %v166
    %v2016 = vunpack.c.l.b16 %v167
    %v2017 = vunpack.c.h.b16 %v167
    %v2018 = vunpack.c.l.b16 %v168
    %v2019 = vunpack.c.h.b16 %v168
    %v2020 = vunpack.c.l.b16 %v169
    %v2021 = vunpack.c.h.b16 %v169
    %v2022 = vunpack.c.l.b16 %v170
    %v2023 = vunpack.c.h.b16 %v170
    %v2024 = vunpack.c.l.b16 %v171
    %v2025 = vunpack.c.h.b16 %v171
    %v2026 = vunpack.c.l.b16 %v172
    %v2027 = vunpack.c.h.b16 %v172
    %v2028 = vunpack.c.l.b16 %v173
    %v2029 = vunpack.c.h.b16 %v173
    %v2030 = vunpack.c.l.b16 %v174
    %v2031 = vunpack.c.h.b16 %v174
    %v2032 = vunpack.c.l.b16 %v175
    %v2033 = vunpack.c.h.b16 %v175
    %v2034 = vunpack.c.l.b16 %v176
    %v2035 = vunpack.c.h.b16 %v176
    %v2036 = vunpack.c.l.b16 %v177
    %v2037 = vunpack.c.h.b16 %v177
    %v2038 = vunpack.c.l.b16 %v178
    %v2039 = vunpack.c.h.b16 %v178
    %v2040 = vunpack.c.l.b16 %v179
    %v2041 = vunpack.c.h.b16 %v179
    %v2042 = vunpack.c.l.b16 %v180
    %v2043 = vunpack.c.h.b16 %v180
    %v2044 = vunpack.c.l.b16 %v181
    %v2045 = vunpack.c.h.b16 %v181
    %v2046 = vunpack.c.l.b16 %v182
    %v2047 = vunpack.c.h.b16 %v182
    %v2048 = vunpack.c.l.b16 %v183
    %v2049 = vunpack.c.h.b16 %v183
    %v2050 = vunpack.c.l.b16 %v184
    %v2051 = vunpack.c.h.b16 %v184
    %v2052 = vunpack.c.l.b16 %v185
    %v2053 = vunpack.c.h.b16 %v185
    %v2054 = vunpack.c.l.b16 %v186
    %v2055 = vunpack.c.h.b16 %v186
    %v2056 = vunpack.c.l.b16 %v187
    %v2057 = vunpack.c.h.b16 %v187
    %v2058 = vunpack.c.l.b16 %v188
    %v2059 = vunpack.c.h.b16 %v188
    %v2060 = vunpack.c.l.b16 %v189
    %v2061 = vunpack.c.h.b16 %v189
    %v2062 = vunpack.c.l.b16 %v190
    %v2063 = vunpack.c.h.b16 %v190
    %v2064 = vunpack.c.l.b16 %v191
    %v2065 = vunpack.c.h.b16 %v191
    %v2066 = vunpack.c.l.b16 %v192
    %v2067 = vunpack.c.h.b16 %v192
    %v2068 = vunpack.c.l.b16 %v193
    %v2069 = vunpack.c.h.b16 %v193
    %v2070 = vunpack.c.l.b16 %v194
    %v2071 = vunpack.c.h.b16 %v194
    %v2072 = vunpack.c.l.b16 %v195
    %v2073 = vunpack.c.h.b16 %v195
    %v2074 = vunpack.c.l.b16 %v196
    %v2075 = vunpack.c.h.b16 %v196
    %v2076 = vunpack.c.l.b16 %v197
    %v2077 = vunpack.c.h.b16 %v197
    %v2078 = vunpack.c.l.b16 %v198
    %v2079 = vunpack.c.h.b16 %v198
    %v2080 = vunpack.c.l.b16 %v199
    %v2081 = vunpack.c.h.b16 %v199
    %v2082 = vunpack.c.l.b16 %v200
    %v2083 = vunpack.c.h.b16 %v200
    %v2084 = vunpack.c.l.b16 %v201
    %v2085 = vunpack.c.h.b16 %v201
    %v2086 = vunpack.c.l.b16 %v202
    %v2087 = vunpack.c.h.b16 %v202
    %v2088 = vunpack.c.l.b16 %v203
    %v2089 = vunpack.c.h.b16 %v203
    %v2090 = vunpack.c.l.b16 %v204
    %v2091 = vunpack.c.h.b16 %v204
    %v2092 = vunpack.c.l.b16 %v205
    %v2093 = vunpack.c.h.b16 %v205
    %v2094 = vunpack.c.l.b16 %v206
    %v2095 = vunpack.c.h.b16 %v206
    %v2096 = vunpack.c.l.b16 %v207
    %v2097 = vunpack.c.h.b16 %v207
    %v2098 = vunpack.c.l.b16 %v208
    %v2099 = vunpack.c.h.b16 %v208
    %v2100 = vunpack.c.l.b16 %v209
    %v2101 = vunpack.c.h.b16 %v209
    %v2102 = vunpack.c.l.b16 %v210
    %v2103 = vunpack.c.h.b16 %v210
    %v2104 = vunpack.c.l.b16 %v211
    %v2105 = vunpack.c.h.b16 %v211
    %v2106 = vunpack.c.l.b16 %v212
    %v2107 = vunpack.c.h.b16 %v212
    %v2108 = vunpack.c.l.b16 %v213
    %v2109 = vunpack.c.h.b16 %v213
    %v2110 = vunpack.c.l.b16 %v214
    %v2111 = vunpack.c.h.b16 %v214
    %v2112 = vunpack.c.l.b16 %v215
    %v2113 = vunpack.c.h.b16 %v215
    %v2114 = vunpack.c.l.b16 %v216
    %v2115 = vunpack.c.h.b16 %v216
    %v2116 = vunpack.c.l.b16 %v217
    %v2117 = vunpack.c.h.b16 %v217
    %v2118 = vunpack.c.l.b16 %v218
    %v2119 = vunpack.c.h.b16 %v218
    %v2120 = vunpack.c.l.b16 %v219
    %v2121 = vunpack.c.h.b16 %v219
    %v2122 = vunpack.c.l.b16 %v220
    %v2123 = vunpack.c.h.b16 %v220
    %v2124 = vunpack.c.l.b16 %v221
    %v2125 = vunpack.c.h.b16 %v221
    %v2126 = vunpack.c.l.b16 %v222
    %v2127 = vunpack.c.h.b16 %v222
    %v2128 = vunpack.c.l.b16 %v223
    %v2129 = vunpack.c.h.b16 %v223
    %v2130 = vunpack.c.l.b16 %v224
    %v2131 = vunpack.c.h.b16 %v224
    %v2132 = vunpack.c.l.b16 %v225
    %v2133 = vunpack.c.h.b16 %v225
    %v2134 = vunpack.c.l.b16 %v226
    %v2135 = vunpack.c.h.b16 %v226
    %v2136 = vunpack.c.l.b16 %v227
    %v2137 = vunpack.c.h.b16 %v227
    %v2138 = vunpack.c.l.b16 %v228
    %v2139 = vunpack.c.h.b16 %v228
    %v2140 = vunpack.c.l.b16 %v229
    %v2141 = vunpack.c.h.b16 %v229
    %v2142 = vunpack.c.l.b16 %v230
    %v2143 = vunpack.c.h.b16 %v230
    %v2144 = vunpack.c.l.b16 %v231
    %v2145 = vunpack.c.h.b16 %v231
    %v2146 = vunpack.c.l.b16 %v232
    %v2147 = vunpack.c.h.b16 %v232
    %v2148 = vunpack.c.l.b16 %v233
    %v2149 = vunpack.c.h.b16 %v233
    %v2150 = vunpack.c.l.b16 %v234
    %v2151 = vunpack.c.h.b16 %v234
    %v2152 = vunpack.c.l.b16 %v235
    %v2153 = vunpack.c.h.b16 %v235
    %v2154 = vunpack.c.l.b16 %v236
    %v2155 = vunpack.c.h.b16 %v236
    %v2156 = vunpack.c.l.b16 %v237
    %v2157 = vunpack.c.h.b16 %v237
    %v2158 = vunpack.c.l.b16 %v238
    %v2159 = vunpack.c.h.b16 %v238
    %v2160 = vunpack.c.l.b16 %v239
    %v2161 = vunpack.c.h.b16 %v239
    %v2162 = vunpack.c.l.b16 %v240
    %v2163 = vunpack.c.h.b16 %v240
    %v2164 = vunpack.c.l.b16 %v241
    %v2165 = vunpack.c.h.b16 %v241
    %v2166 = vunpack.c.l.b16 %v242
    %v2167 = vunpack.c.h.b16 %v242
    %v2168 = vunpack.c.l.b16 %v243
    %v2169 = vunpack.c.h.b16 %v243
    %v2170 = vunpack.c.l.b16 %v244
    %v2171 = vunpack.c.h.b16 %v244
    %v2172 = vunpack.c.l.b16 %v245
    %v2173 = vunpack.c.h.b16 %v245
    %v2174 = vunpack.c.l.b16 %v246
    %v2175 = vunpack.c.h.b16 %v246
    %v2176 = vunpack.c.l.b16 %v247
    %v2177 = vunpack.c.h.b16 %v247
    %v2178 = vunpack.c.l.b16 %v248
    %v2179 = vunpack.c.h.b16 %v248
    %v2180 = vunpack.c.l.b16 %v249
    %v2181 = vunpack.c.h.b16 %v249
    %v2182 = vunpack.c.l.b16 %v250
    %v2183 = vunpack.c.h.b16 %v250
    %v2184 = vunpack.c.l.b16 %v251
    %v2185 = vunpack.c.h.b16 %v251
    %v2186 = vunpack.c.l.b16 %v252
    %v2187 = vunpack.c.h.b16 %v252
    %v2188 = vunpack.c.l.b16 %v253
    %v2189 = vunpack.c.h.b16 %v253
    %v2190 = vunpack.c.l.b16 %v254
    %v2191 = vunpack.c.h.b16 %v254
    %v2192 = vunpack.c.l.b16 %v255
    %v2193 = vunpack.c.h.b16 %v255
    %v2194 = vunpack.c.l.b16 %v256
    %v2195 = vunpack.c.h.b16 %v256
    %v2196 = vunpack.c.l.b16 %v257
    %v2197 = vunpack.c.h.b16 %v257
    %v2198 = vunpack.c.l.b16 %v258
    %v2199 = vunpack.c.h.b16 %v258
    %v2200 = vunpack.c.l.b16 %v259
    %v2201 = vunpack.c.h.b16 %v259
    %v2202 = vunpack.c.l.b16 %v260
    %v2203 = vunpack.c.h.b16 %v260
    %v2204 = vunpack.c.l.b16 %v261
    %v2205 = vunpack.c.h.b16 %v261
    %v2206 = vunpack.c.l.b16 %v262
    %v2207 = vunpack.c.h.b16 %v262
    %v2208 = vunpack.c.l.b16 %v263
    %v2209 = vunpack.c.h.b16 %v263
    %v2210 = vunpack.c.l.b16 %v264
    %v2211 = vunpack.c.h.b16 %v264
    %v2212 = vunpack.c.l.b16 %v265
    %v2213 = vunpack.c.h.b16 %v265
    %v2214 = vunpack.c.l.b16 %v266
    %v2215 = vunpack.c.h.b16 %v266
    %v2216 = vunpack.c.l.b16 %v267
    %v2217 = vunpack.c.h.b16 %v267
    %v2218 = vunpack.c.l.b16 %v268
    %v2219 = vunpack.c.h.b16 %v268
    %v2220 = vunpack.c.l.b16 %v269
    %v2221 = vunpack.c.h.b16 %v269
    %v2222 = vunpack.c.l.b16 %v270
    %v2223 = vunpack.c.h.b16 %v270
    %v2224 = vunpack.c.l.b16 %v271
    %v2225 = vunpack.c.h.b16 %v271
    %v2226 = vunpack.c.l.b16 %v272
    %v2227 = vunpack.c.h.b16 %v272
    %v2228 = vunpack.c.l.b16 %v273
    %v2229 = vunpack.c.h.b16 %v273
    %v2230 = vunpack.c.l.b16 %v274
    %v2231 = vunpack.c.h.b16 %v274
    %v2232 = vunpack.c.l.b16 %v275
    %v2233 = vunpack.c.h.b16 %v275
    %v2234 = vunpack.c.l.b16 %v276
    %v2235 = vunpack.c.h.b16 %v276
    %v2236 = vunpack.c.l.b16 %v277
    %v2237 = vunpack.c.h.b16 %v277
    %v2238 = vunpack.c.l.b16 %v278
    %v2239 = vunpack.c.h.b16 %v278
    %v2240 = vunpack.c.l.b16 %v279
    %v2241 = vunpack.c.h.b16 %v279
    %v2242 = vunpack.c.l.b16 %v280
    %v2243 = vunpack.c.h.b16 %v280
    %v2244 = vunpack.c.l.b16 %v281
    %v2245 = vunpack.c.h.b16 %v281
    %v2246 = vunpack.c.l.b16 %v282
    %v2247 = vunpack.c.h.b16 %v282
    %v2248 = vunpack.c.l.b16 %v283
    %v2249 = vunpack.c.h.b16 %v283
    %v2250 = vunpack.c.l.b16 %v284
    %v2251 = vunpack.c.h.b16 %v284
    %v2252 = vunpack.c.l.b16 %v285
    %v2253 = vunpack.c.h.b16 %v285
    %v2254 = vunpack.c.l.b16 %v286
    %v2255 = vunpack.c.h.b16 %v286
    %v2256 = vunpack.c.l.b16 %v287
    %v2257 = vunpack.c.h.b16 %v287
    %v2258 = vunpack.c.l.b16 %v288
    %v2259 = vunpack.c.h.b16 %v288
    %v2260 = vunpack.c.l.b16 %v289
    %v2261 = vunpack.c.h.b16 %v289
    %v2262 = vunpack.c.l.b16 %v290
    %v2263 = vunpack.c.h.b16 %v290
    %v2264 = vunpack.c.l.b16 %v291
    %v2265 = vunpack.c.h.b16 %v291
    %v2266 = vunpack.c.l.b16 %v292
    %v2267 = vunpack.c.h.b16 %v292
    %v2268 = vunpack.c.l.b16 %v293
    %v2269 = vunpack.c.h.b16 %v293
    %v2270 = vunpack.c.l.b16 %v294
    %v2271 = vunpack.c.h.b16 %v294
    %v2272 = vunpack.c.l.b16 %v295
    %v2273 = vunpack.c.h.b16 %v295
    %v2274 = vunpack.c.l.b16 %v296
    %v2275 = vunpack.c.h.b16 %v296
    %v2276 = vunpack.c.l.b16 %v297
    %v2277 = vunpack.c.h.b16 %v297
    %v2278 = vunpack.c.l.b16 %v298
    %v2279 = vunpack.c.h.b16 %v298
    %v2280 = vunpack.c.l.b16 %v299
    %v2281 = vunpack.c.h.b16 %v299
    %v2282 = vunpack.c.l.b16 %v300
    %v2283 = vunpack.c.h.b16 %v300
    %v2284 = vunpack.c.l.b16 %v301
    %v2285 = vunpack.c.h.b16 %v301
    %v2286 = vunpack.c.l.b16 %v302
    %v2287 = vunpack.c.h.b16 %v302
    %v2288 = vunpack.c.l.b16 %v303
    %v2289 = vunpack.c.h.b16 %v303
    %v2290 = vunpack.c.l.b16 %v304
    %v2291 = vunpack.c.h.b16 %v304
    %v2292 = vunpack.c.l.b16 %v305
    %v2293 = vunpack.c.h.b16 %v305
    %v2294 = vunpack.c.l.b16 %v306
    %v2295 = vunpack.c.h.b16 %v306
    %v2296 = vunpack.c.l.b16 %v307
    %v2297 = vunpack.c.h.b16 %v307
    %v2298 = vunpack.c.l.b16 %v308
    %v2299 = vunpack.c.h.b16 %v308
    %v2300 = vunpack.c.l.b16 %v309
    %v2301 = vunpack.c.h.b16 %v309
    %v2302 = vunpack.c.l.b16 %v310
    %v2303 = vunpack.c.h.b16 %v310
    %v2304 = vunpack.c.l.b16 %v311
    %v2305 = vunpack.c.h.b16 %v311
    %v2306 = vunpack.c.l.b16 %v312
    %v2307 = vunpack.c.h.b16 %v312
    %v2308 = vunpack.c.l.b16 %v313
    %v2309 = vunpack.c.h.b16 %v313
    %v2310 = vunpack.c.l.b16 %v314
    %v2311 = vunpack.c.h.b16 %v314
    %v2312 = vunpack.c.l.b16 %v315
    %v2313 = vunpack.c.h.b16 %v315
    %v2314 = vunpack.c.l.b16 %v316
    %v2315 = vunpack.c.h.b16 %v316
    %v2316 = vunpack.c.l.b16 %v317
    %v2317 = vunpack.c.h.b16 %v317
    %v2318 = vunpack.c.l.b16 %v318
    %v2319 = vunpack.c.h.b16 %v318
    %v2320 = vunpack.c.l.b16 %v319
    %v2321 = vunpack.c.h.b16 %v319
    %v2322 = vunpack.c.l.b16 %v320
    %v2323 = vunpack.c.h.b16 %v320
    %v2324 = vunpack.c.l.b16 %v321
    %v2325 = vunpack.c.h.b16 %v321
    %v2326 = vunpack.c.l.b16 %v322
    %v2327 = vunpack.c.h.b16 %v322
    %v2328 = vunpack.c.l.b16 %v323
    %v2329 = vunpack.c.h.b16 %v323
    %v2330 = vunpack.c.l.b16 %v324
    %v2331 = vunpack.c.h.b16 %v324
    %v2332 = vunpack.c.l.b16 %v325
    %v2333 = vunpack.c.h.b16 %v325
    %v2334 = vunpack.c.l.b16 %v326
    %v2335 = vunpack.c.h.b16 %v326
    %v2336 = vunpack.c.l.b16 %v327
    %v2337 = vunpack.c.h.b16 %v327
    %v2338 = vunpack.c.l.b16 %v328
    %v2339 = vunpack.c.h.b16 %v328
    %v2340 = vunpack.c.l.b16 %v329
    %v2341 = vunpack.c.h.b16 %v329
    %v2342 = vunpack.c.l.b16 %v330
    %v2343 = vunpack.c.h.b16 %v330
    %v2344 = vunpack.c.l.b16 %v331
    %v2345 = vunpack.c.h.b16 %v331
    %v2346 = vunpack.c.l.b16 %v332
    %v2347 = vunpack.c.h.b16 %v332
    %v2348 = vunpack.c.l.b16 %v333
    %v2349 = vunpack.c.h.b16 %v333
    %v2350 = vunpack.c.l.b16 %v334
    %v2351 = vunpack.c.h.b16 %v334
    %v2352 = vunpack.c.l.b16 %v335
    %v2353 = vunpack.c.h.b16 %v335
    %v2354 = vunpack.c.l.b16 %v336
    %v2355 = vunpack.c.h.b16 %v336
    %v2356 = vunpack.c.l.b16 %v337
    %v2357 = vunpack.c.h.b16 %v337
    %v2358 = vunpack.c.l.b16 %v338
    %v2359 = vunpack.c.h.b16 %v338
    %v2360 = vunpack.c.l.b16 %v339
    %v2361 = vunpack.c.h.b16 %v339
    %v2362 = vunpack.c.l.b16 %v340
    %v2363 = vunpack.c.h.b16 %v340
    %v2364 = vunpack.c.l.b16 %v341
    %v2365 = vunpack.c.h.b16 %v341
    %v2366 = vunpack.c.l.b16 %v342
    %v2367 = vunpack.c.h.b16 %v342
    %v2368 = vunpack.c.l.b16 %v343
    %v2369 = vunpack.c.h.b16 %v343
    %v2370 = vunpack.c.l.b16 %v344
    %v2371 = vunpack.c.h.b16 %v344
    %v2372 = vunpack.c.l.b16 %v345
    %v2373 = vunpack.c.h.b16 %v345
    %v2374 = vunpack.c.l.b16 %v346
    %v2375 = vunpack.c.h.b16 %v346
    %v2376 = vunpack.c.l.b16 %v347
    %v2377 = vunpack.c.h.b16 %v347
    %v2378 = vunpack.c.l.b16 %v348
    %v2379 = vunpack.c.h.b16 %v348
    %v2380 = vunpack.c.l.b16 %v349
    %v2381 = vunpack.c.h.b16 %v349
    %v2382 = vunpack.c.l.b16 %v350
    %v2383 = vunpack.c.h.b16 %v350
    %v2384 = vunpack.c.l.b16 %v351
    %v2385 = vunpack.c.h.b16 %v351
    %v2386 = vunpack.c.l.b16 %v352
    %v2387 = vunpack.c.h.b16 %v352
    %v2388 = vunpack.c.l.b16 %v353
    %v2389 = vunpack.c.h.b16 %v353
    %v2390 = vunpack.c.l.b16 %v354
    %v2391 = vunpack.c.h.b16 %v354
    %v2392 = vunpack.c.l.b16 %v355
    %v2393 = vunpack.c.h.b16 %v355
    %v2394 = vunpack.c.l.b16 %v356
    %v2395 = vunpack.c.h.b16 %v356
    %v2396 = vunpack.c.l.b16 %v357
    %v2397 = vunpack.c.h.b16 %v357
    %v2398 = vunpack.c.l.b16 %v358
    %v2399 = vunpack.c.h.b16 %v358
    %v2400 = vunpack.c.l.b16 %v359
    %v2401 = vunpack.c.h.b16 %v359
    %v2402 = vunpack.c.l.b16 %v360
    %v2403 = vunpack.c.h.b16 %v360
    %v2404 = vunpack.c.l.b16 %v361
    %v2405 = vunpack.c.h.b16 %v361
    %v2406 = vunpack.c.l.b16 %v362
    %v2407 = vunpack.c.h.b16 %v362
    %v2408 = vunpack.c.l.b16 %v363
    %v2409 = vunpack.c.h.b16 %v363
    %v2410 = vunpack.c.l.b16 %v364
    %v2411 = vunpack.c.h.b16 %v364
    %v2412 = vunpack.c.l.b16 %v365
    %v2413 = vunpack.c.h.b16 %v365
    %v2414 = vunpack.c.l.b16 %v366
    %v2415 = vunpack.c.h.b16 %v366
    %v2416 = vunpack.c.l.b16 %v367
    %v2417 = vunpack.c.h.b16 %v367
    %v2418 = vunpack.c.l.b16 %v368
    %v2419 = vunpack.c.h.b16 %v368
    %v2420 = vunpack.c.l.b16 %v369
    %v2421 = vunpack.c.h.b16 %v369
    %v2422 = vunpack.c.l.b16 %v370
    %v2423 = vunpack.c.h.b16 %v370
    %v2424 = vunpack.c.l.b16 %v371
    %v2425 = vunpack.c.h.b16 %v371
    %v2426 = vunpack.c.l.b16 %v372
    %v2427 = vunpack.c.h.b16 %v372
    %v2428 = vunpack.c.l.b16 %v373
    %v2429 = vunpack.c.h.b16 %v373
    %v2430 = vunpack.c.l.b16 %v374
    %v2431 = vunpack.c.h.b16 %v374
    %v2432 = vunpack.c.l.b16 %v375
    %v2433 = vunpack.c.h.b16 %v375
    %v2434 = vunpack.c.l.b16 %v376
    %v2435 = vunpack.c.h.b16 %v376
    %v2436 = vunpack.c.l.b16 %v377
    %v2437 = vunpack.c.h.b16 %v377
    %v2438 = vunpack.c.l.b16 %v378
    %v2439 = vunpack.c.h.b16 %v378
    %v2440 = vunpack.c.l.b16 %v379
    %v2441 = vunpack.c.h.b16 %v379
    %v2442 = vunpack.c.l.b16 %v380
    %v2443 = vunpack.c.h.b16 %v380
    %v2444 = vunpack.c.l.b16 %v381
    %v2445 = vunpack.c.h.b16 %v381
    %v2446 = vunpack.c.l.b16 %v382
    %v2447 = vunpack.c.h.b16 %v382
    %v2448 = vunpack.c.l.b16 %v383
    %v2449 = vunpack.c.h.b16 %v383
    %v2450 = vunpack.c.l.b16 %v384
    %v2451 = vunpack.c.h.b16 %v384
    %v2452 = vunpack.c.l.b16 %v385
    %v2453 = vunpack.c.h.b16 %v385
    %v2454 = vunpack.c.l.b16 %v386
    %v2455 = vunpack.c.h.b16 %v386
    %v2456 = vunpack.c.l.b16 %v387
    %v2457 = vunpack.c.h.b16 %v387
    %v2458 = vunpack.c.l.b16 %v388
    %v2459 = vunpack.c.h.b16 %v388
    %v2460 = vunpack.c.l.b16 %v389
    %v2461 = vunpack.c.h.b16 %v389
    %v2462 = vunpack.c.l.b16 %v390
    %v2463 = vunpack.c.h.b16 %v390
    %v2464 = vunpack.c.l.b16 %v391
    %v2465 = vunpack.c.h.b16 %v391
    %v2466 = vunpack.c.l.b16 %v392
    %v2467 = vunpack.c.h.b16 %v392
    %v2468 = vunpack.c.l.b16 %v393
    %v2469 = vunpack.c.h.b16 %v393
    %v2470 = vunpack.c.l.b16 %v394
    %v2471 = vunpack.c.h.b16 %v394
    %v2472 = vunpack.c.l.b16 %v395
    %v2473 = vunpack.c.h.b16 %v395
    %v2474 = vunpack.c.l.b16 %v396
    %v2475 = vunpack.c.h.b16 %v396
    %v2476 = vunpack.c.l.b16 %v397
    %v2477 = vunpack.c.h.b16 %v397
    %v2478 = vunpack.c.l.b16 %v398
    %v2479 = vunpack.c.h.b16 %v398
    %v2480 = vunpack.c.l.b16 %v399
    %v2481 = vunpack.c.h.b16 %v399
    %v2482 = vunpack.c.l.b16 %v400
    %v2483 = vunpack.c.h.b16 %v400
    %v2484 = vunpack.c.l.b16 %v401
    %v2485 = vunpack.c.h.b16 %v401
    %v2486 = vunpack.c.l.b16 %v402
    %v2487 = vunpack.c.h.b16 %v402
    %v2488 = vunpack.c.l.b16 %v403
    %v2489 = vunpack.c.h.b16 %v403
    %v2490 = vunpack.c.l.b16 %v404
    %v2491 = vunpack.c.h.b16 %v404
    %v2492 = vunpack.c.l.b16 %v405
    %v2493 = vunpack.c.h.b16 %v405
    %v2494 = vunpack.c.l.b16 %v406
    %v2495 = vunpack.c.h.b16 %v406
    %v2496 = vunpack.c.l.b16 %v407
    %v2497 = vunpack.c.h.b16 %v407
    %v2498 = vunpack.c.l.b16 %v408
    %v2499 = vunpack.c.h.b16 %v408
    %v2500 = vunpack.c.l.b16 %v409
    %v2501 = vunpack.c.h.b16 %v409
    %v2502 = vunpack.c.l.b16 %v410
    %v2503 = vunpack.c.h.b16 %v410
    %v2504 = vunpack.c.l.b16 %v411
    %v2505 = vunpack.c.h.b16 %v411
    %v2506 = vunpack.c.l.b16 %v412
    %v2507 = vunpack.c.h.b16 %v412
    %v2508 = vunpack.c.l.b16 %v413
    %v2509 = vunpack.c.h.b16 %v413
    %v2510 = vunpack.c.l.b16 %v414
    %v2511 = vunpack.c.h.b16 %v414
    %v2512 = vunpack.c.l.b16 %v415
    %v2513 = vunpack.c.h.b16 %v415
    %v2514 = vunpack.c.l.b16 %v416
    %v2515 = vunpack.c.h.b16 %v416
    %v2516 = vunpack.c.l.b16 %v417
    %v2517 = vunpack.c.h.b16 %v417
    %v2518 = vunpack.c.l.b16 %v418
    %v2519 = vunpack.c.h.b16 %v418
    %v2520 = vunpack.c.l.b16 %v419
    %v2521 = vunpack.c.h.b16 %v419
    %v2522 = vunpack.c.l.b16 %v420
    %v2523 = vunpack.c.h.b16 %v420
    %v2524 = vunpack.c.l.b16 %v421
    %v2525 = vunpack.c.h.b16 %v421
    %v2526 = vunpack.c.l.b16 %v422
    %v2527 = vunpack.c.h.b16 %v422
    %v2528 = vunpack.c.l.b16 %v423
    %v2529 = vunpack.c.h.b16 %v423
    %v2530 = vunpack.c.l.b16 %v424
    %v2531 = vunpack.c.h.b16 %v424
    %v2532 = vunpack.c.l.b16 %v425
    %v2533 = vunpack.c.h.b16 %v425
    %v2534 = vunpack.c.l.b16 %v426
    %v2535 = vunpack.c.h.b16 %v426
    %v2536 = vunpack.c.l.b16 %v427
    %v2537 = vunpack.c.h.b16 %v427
    %v2538 = vunpack.c.l.b16 %v428
    %v2539 = vunpack.c.h.b16 %v428
    %v2540 = vunpack.c.l.b16 %v429
    %v2541 = vunpack.c.h.b16 %v429
    %v2542 = vunpack.c.l.b16 %v430
    %v2543 = vunpack.c.h.b16 %v430
    %v2544 = vunpack.c.l.b16 %v431
    %v2545 = vunpack.c.h.b16 %v431
    %v2546 = vunpack.c.l.b16 %v432
    %v2547 = vunpack.c.h.b16 %v432
    %v2548 = vunpack.c.l.b16 %v433
    %v2549 = vunpack.c.h.b16 %v433
    %v2550 = vunpack.c.l.b16 %v434
    %v2551 = vunpack.c.h.b16 %v434
    %v2552 = vunpack.c.l.b16 %v435
    %v2553 = vunpack.c.h.b16 %v435
    %v2554 = vunpack.c.l.b16 %v436
    %v2555 = vunpack.c.h.b16 %v436
    %v2556 = vunpack.c.l.b16 %v437
    %v2557 = vunpack.c.h.b16 %v437
    %v2558 = vunpack.c.l.b16 %v438
    %v2559 = vunpack.c.h.b16 %v438
    %v2560 = vunpack.c.l.b16 %v439
    %v2561 = vunpack.c.h.b16 %v439
    %v2562 = vunpack.c.l.b16 %v440
    %v2563 = vunpack.c.h.b16 %v440
    %v2564 = vunpack.c.l.b16 %v441
    %v2565 = vunpack.c.h.b16 %v441
    %v2566 = vunpack.c.l.b16 %v442
    %v2567 = vunpack.c.h.b16 %v442
    %v2568 = vunpack.c.l.b16 %v443
    %v2569 = vunpack.c.h.b16 %v443
    %v2570 = vunpack.c.l.b16 %v444
    %v2571 = vunpack.c.h.b16 %v444
    %v2572 = vunpack.c.l.b16 %v445
    %v2573 = vunpack.c.h.b16 %v445
    %v2574 = vunpack.c.l.b16 %v446
    %v2575 = vunpack.c.h.b16 %v446
    %v2576 = vunpack.c.l.b16 %v447
    %v2577 = vunpack.c.h.b16 %v447
    %v2578 = vunpack.c.l.b16 %v448
    %v2579 = vunpack.c.h.b16 %v448
    %v2580 = vunpack.c.l.b16 %v449
    %v2581 = vunpack.c.h.b16 %v449
    %v2582 = vunpack.c.l.b16 %v450
    %v2583 = vunpack.c.h.b16 %v450
    %v2584 = vunpack.c.l.b16 %v451
    %v2585 = vunpack.c.h.b16 %v451
    %v2586 = vunpack.c.l.b16 %v452
    %v2587 = vunpack.c.h.b16 %v452
    %v2588 = vunpack.c.l.b16 %v453
    %v2589 = vunpack.c.h.b16 %v453
    %v2590 = vunpack.c.l.b16 %v454
    %v2591 = vunpack.c.h.b16 %v454
    %v2592 = vunpack.c.l.b16 %v455
    %v2593 = vunpack.c.h.b16 %v455
    %v2594 = vunpack.c.l.b16 %v456
    %v2595 = vunpack.c.h.b16 %v456
    %v2596 = vunpack.c.l.b16 %v457
    %v2597 = vunpack.c.h.b16 %v457
    %v2598 = vunpack.c.l.b16 %v458
    %v2599 = vunpack.c.h.b16 %v458
    %v2600 = vunpack.c.l.b16 %v459
    %v2601 = vunpack.c.h.b16 %v459
    %v2602 = vunpack.c.l.b16 %v460
    %v2603 = vunpack.c.h.b16 %v460
    %v2604 = vunpack.c.l.b16 %v461
    %v2605 = vunpack.c.h.b16 %v461
    %v2606 = vunpack.c.l.b16 %v462
    %v2607 = vunpack.c.h.b16 %v462
    %v2608 = vunpack.c.l.b16 %v463
    %v2609 = vunpack.c.h.b16 %v463
    %v2610 = vunpack.c.l.b16 %v464
    %v2611 = vunpack.c.h.b16 %v464
    %v2612 = vunpack.c.l.b16 %v465
    %v2613 = vunpack.c.h.b16 %v465
    %v2614 = vunpack.c.l.b16 %v466
    %v2615 = vunpack.c.h.b16 %v466
    %v2616 = vunpack.c.l.b16 %v467
    %v2617 = vunpack.c.h.b16 %v467
    %v2618 = vunpack.c.l.b16 %v468
    %v2619 = vunpack.c.h.b16 %v468
    %v2620 = vunpack.c.l.b16 %v469
    %v2621 = vunpack.c.h.b16 %v469
    %v2622 = vunpack.c.l.b16 %v470
    %v2623 = vunpack.c.h.b16 %v470
    %v2624 = vunpack.c.l.b16 %v471
    %v2625 = vunpack.c.h.b16 %v471
    %v2626 = vunpack.c.l.b16 %v472
    %v2627 = vunpack.c.h.b16 %v472
    %v2628 = vunpack.c.l.b16 %v473
    %v2629 = vunpack.c.h.b16 %v473
    %v2630 = vunpack.c.l.b16 %v474
    %v2631 = vunpack.c.h.b16 %v474
    %v2632 = vunpack.c.l.b16 %v475
    %v2633 = vunpack.c.h.b16 %v475
    %v2634 = vunpack.c.l.b16 %v476
    %v2635 = vunpack.c.h.b16 %v476
    %v2636 = vunpack.c.l.b16 %v477
    %v2637 = vunpack.c.h.b16 %v477
    %v2638 = vunpack.c.l.b16 %v478
    %v2639 = vunpack.c.h.b16 %v478
    %v2640 = vunpack.c.l.b16 %v479
    %v2641 = vunpack.c.h.b16 %v479
    %v2642 = vunpack.c.l.b16 %v480
    %v2643 = vunpack.c.h.b16 %v480
    %v2644 = vunpack.c.l.b16 %v481
    %v2645 = vunpack.c.h.b16 %v481
    %v2646 = vunpack.c.l.b16 %v482
    %v2647 = vunpack.c.h.b16 %v482
    %v2648 = vunpack.c.l.b16 %v483
    %v2649 = vunpack.c.h.b16 %v483
    %v2650 = vunpack.c.l.b16 %v484
    %v2651 = vunpack.c.h.b16 %v484
    %v2652 = vunpack.c.l.b16 %v485
    %v2653 = vunpack.c.h.b16 %v485
    %v2654 = vunpack.c.l.b16 %v486
    %v2655 = vunpack.c.h.b16 %v486
    %v2656 = vunpack.c.l.b16 %v487
    %v2657 = vunpack.c.h.b16 %v487
    %v2658 = vunpack.c.l.b16 %v488
    %v2659 = vunpack.c.h.b16 %v488
    %v2660 = vunpack.c.l.b16 %v489
    %v2661 = vunpack.c.h.b16 %v489
    %v2662 = vunpack.c.l.b16 %v490
    %v2663 = vunpack.c.h.b16 %v490
    %v2664 = vunpack.c.l.b16 %v491
    %v2665 = vunpack.c.h.b16 %v491
    %v2666 = vunpack.c.l.b16 %v492
    %v2667 = vunpack.c.h.b16 %v492
    %v2668 = vunpack.c.l.b16 %v493
    %v2669 = vunpack.c.h.b16 %v493
    %v2670 = vunpack.c.l.b16 %v494
    %v2671 = vunpack.c.h.b16 %v494
    %v2672 = vunpack.c.l.b16 %v495
    %v2673 = vunpack.c.h.b16 %v495
    %v2674 = vunpack.c.l.b16 %v496
    %v2675 = vunpack.c.h.b16 %v496
    %v2676 = vunpack.c.l.b16 %v497
    %v2677 = vunpack.c.h.b16 %v497
    %v2678 = vunpack.c.l.b16 %v498
    %v2679 = vunpack.c.h.b16 %v498
    %v2680 = vunpack.c.l.b16 %v499
    %v2681 = vunpack.c.h.b16 %v499
    %v2682 = vunpack.c.l.b16 %v500
    %v2683 = vunpack.c.h.b16 %v500
    %v2684 = vunpack.c.l.b16 %v501
    %v2685 = vunpack.c.h.b16 %v501
    %v2686 = vunpack.c.l.b16 %v502
    %v2687 = vunpack.c.h.b16 %v502
    %v2688 = vunpack.c.l.b16 %v503
    %v2689 = vunpack.c.h.b16 %v503
    %v2690 = vunpack.c.l.b16 %v504
    %v2691 = vunpack.c.h.b16 %v504
    %v2692 = vunpack.c.l.b16 %v505
    %v2693 = vunpack.c.h.b16 %v505
    %v2694 = vunpack.c.l.b16 %v506
    %v2695 = vunpack.c.h.b16 %v506
    %v2696 = vunpack.c.l.b16 %v507
    %v2697 = vunpack.c.h.b16 %v507
    %v2698 = vunpack.c.l.b16 %v508
    %v2699 = vunpack.c.h.b16 %v508
    %v2700 = vunpack.c.l.b16 %v509
    %v2701 = vunpack.c.h.b16 %v509
    %v2702 = vunpack.c.l.b16 %v510
    %v2703 = vunpack.c.h.b16 %v510
    %v2704 = vunpack.c.l.b16 %v511
    %v2705 = vunpack.c.h.b16 %v511
    %v2706 = vunpack.c.l.b16 %v512
    %v2707 = vunpack.c.h.b16 %v512
    %v2708 = vunpack.c.l.b16 %v513
    %v2709 = vunpack.c.h.b16 %v513
    %v2710 = vunpack.c.l.b16 %v514
    %v2711 = vunpack.c.h.b16 %v514
    %v2712 = vunpack.c.l.b16 %v515
    %v2713 = vunpack.c.h.b16 %v515
    %v2714 = vunpack.c.l.b16 %v516
    %v2715 = vunpack.c.h.b16 %v516
    %v2716 = vunpack.c.l.b16 %v517
    %v2717 = vunpack.c.h.b16 %v517
    %v2718 = vunpack.c.l.b16 %v518
    %v2719 = vunpack.c.h.b16 %v518
    %v2720 = vunpack.c.l.b16 %v519
    %v2721 = vunpack.c.h.b16 %v519
    %v2722 = vunpack.c.l.b16 %v520
    %v2723 = vunpack.c.h.b16 %v520
    %v2724 = vunpack.c.l.b16 %v521
    %v2725 = vunpack.c.h.b16 %v521
    %v2726 = vunpack.c.l.b16 %v522
    %v2727 = vunpack.c.h.b16 %v522
    %v2728 = vunpack.c.l.b16 %v523
    %v2729 = vunpack.c.h.b16 %v523
    %v2730 = vunpack.c.l.b16 %v524
    %v2731 = vunpack.c.h.b16 %v524
    %v2732 = vunpack.c.l.b16 %v525
    %v2733 = vunpack.c.h.b16 %v525
    %v2734 = vunpack.c.l.b16 %v526
    %v2735 = vunpack.c.h.b16 %v526
    %v2736 = vunpack.c.l.b16 %v527
    %v2737 = vunpack.c.h.b16 %v527
    %v2738 = vunpack.c.l.b16 %v528
    %v2739 = vunpack.c.h.b16 %v528
    %v2740 = vunpack.c.l.b16 %v529
    %v2741 = vunpack.c.h.b16 %v529
    %v2742 = vunpack.c.l.b16 %v530
    %v2743 = vunpack.c.h.b16 %v530
    %v2744 = vunpack.c.l.b16 %v531
    %v2745 = vunpack.c.h.b16 %v531
    %v2746 = vunpack.c.l.b16 %v532
    %v2747 = vunpack.c.h.b16 %v532
    %v2748 = vunpack.c.l.b16 %v533
    %v2749 = vunpack.c.h.b16 %v533
    %v2750 = vunpack.c.l.b16 %v534
    %v2751 = vunpack.c.h.b16 %v534
    %v2752 = vunpack.c.l.b16 %v535
    %v2753 = vunpack.c.h.b16 %v535
    %v2754 = vunpack.c.l.b16 %v536
    %v2755 = vunpack.c.h.b16 %v536
    %v2756 = vunpack.c.l.b16 %v537
    %v2757 = vunpack.c.h.b16 %v537
    %v2758 = vunpack.c.l.b16 %v538
    %v2759 = vunpack.c.h.b16 %v538
    %v2760 = vunpack.c.l.b16 %v539
    %v2761 = vunpack.c.h.b16 %v539
    %v2762 = vunpack.c.l.b16 %v540
    %v2763 = vunpack.c.h.b16 %v540
    %v2764 = vunpack.c.l.b16 %v541
    %v2765 = vunpack.c.h.b16 %v541
    %v2766 = vunpack.c.l.b16 %v542
    %v2767 = vunpack.c.h.b16 %v542
    %v2768 = vunpack.c.l.b16 %v543
    %v2769 = vunpack.c.h.b16 %v543
    %v2770 = vunpack.c.l.b16 %v544
    %v2771 = vunpack.c.h.b16 %v544
    %v2772 = vunpack.c.l.b16 %v545
    %v2773 = vunpack.c.h.b16 %v545
    %v2774 = vunpack.c.l.b16 %v546
    %v2775 = vunpack.c.h.b16 %v546
    %v2776 = vunpack.c.l.b16 %v547
    %v2777 = vunpack.c.h.b16 %v547
    %v2778 = vunpack.c.l.b16 %v548
    %v2779 = vunpack.c.h.b16 %v548
    %v2780 = vunpack.c.l.b16 %v549
    %v2781 = vunpack.c.h.b16 %v549
    %v2782 = vunpack.c.l.b16 %v550
    %v2783 = vunpack.c.h.b16 %v550
    %v2784 = vunpack.c.l.b16 %v551
    %v2785 = vunpack.c.h.b16 %v551
    %v2786 = vunpack.c.l.b16 %v552
    %v2787 = vunpack.c.h.b16 %v552
    %v2788 = vunpack.c.l.b16 %v553
    %v2789 = vunpack.c.h.b16 %v553
    %v2790 = vunpack.c.l.b16 %v554
    %v2791 = vunpack.c.h.b16 %v554
    %v2792 = vunpack.c.l.b16 %v555
    %v2793 = vunpack.c.h.b16 %v555
    %v2794 = vunpack.c.l.b16 %v556
    %v2795 = vunpack.c.h.b16 %v556
    %v2796 = vunpack.c.l.b16 %v557
    %v2797 = vunpack.c.h.b16 %v557
    %v2798 = vunpack.c.l.b16 %v558
    %v2799 = vunpack.c.h.b16 %v558
    %v2800 = vunpack.c.l.b16 %v559
    %v2801 = vunpack.c.h.b16 %v559
    %v2802 = vunpack.c.l.b16 %v560
    %v2803 = vunpack.c.h.b16 %v560
    %v2804 = vunpack.c.l.b16 %v561
    %v2805 = vunpack.c.h.b16 %v561
    %v2806 = vunpack.c.l.b16 %v562
    %v2807 = vunpack.c.h.b16 %v562
    %v2808 = vunpack.c.l.b16 %v563
    %v2809 = vunpack.c.h.b16 %v563
    %v2810 = vunpack.c.l.b16 %v564
    %v2811 = vunpack.c.h.b16 %v564
    %v2812 = vunpack.c.l.b16 %v565
    %v2813 = vunpack.c.h.b16 %v565
    %v2814 = vunpack.c.l.b16 %v566
    %v2815 = vunpack.c.h.b16 %v566
    %v2816 = vunpack.c.l.b16 %v567
    %v2817 = vunpack.c.h.b16 %v567
    %v2818 = vunpack.c.l.b16 %v568
    %v2819 = vunpack.c.h.b16 %v568
    %v2820 = vunpack.c.l.b16 %v569
    %v2821 = vunpack.c.h.b16 %v569
    %v2822 = vunpack.c.l.b16 %v570
    %v2823 = vunpack.c.h.b16 %v570
    %v2824 = vunpack.c.l.b16 %v571
    %v2825 = vunpack.c.h.b16 %v571
    %v2826 = vunpack.c.l.b16 %v572
    %v2827 = vunpack.c.h.b16 %v572
    %v2828 = vunpack.c.l.b16 %v573
    %v2829 = vunpack.c.h.b16 %v573
    %v2830 = vunpack.c.l.b16 %v574
    %v2831 = vunpack.c.h.b16 %v574
    %v2832 = vunpack.c.l.b16 %v575
    %v2833 = vunpack.c.h.b16 %v575
    %v2834 = vunpack.c.l.b16 %v576
    %v2835 = vunpack.c.h.b16 %v576
    %v2836 = vunpack.c.l.b16 %v577
    %v2837 = vunpack.c.h.b16 %v577
    %v2838 = vunpack.c.l.b16 %v578
    %v2839 = vunpack.c.h.b16 %v578
    %v2840 = vunpack.c.l.b16 %v579
    %v2841 = vunpack.c.h.b16 %v579
    %v2842 = vunpack.c.l.b16 %v580
    %v2843 = vunpack.c.h.b16 %v580
    %v2844 = vunpack.c.l.b16 %v581
    %v2845 = vunpack.c.h.b16 %v581
    %v2846 = vunpack.c.l.b16 %v582
    %v2847 = vunpack.c.h.b16 %v582
    %v2848 = vunpack.c.l.b16 %v583
    %v2849 = vunpack.c.h.b16 %v583
    %v2850 = vunpack.c.l.b16 %v584
    %v2851 = vunpack.c.h.b16 %v584
    %v2852 = vunpack.c.l.b16 %v585
    %v2853 = vunpack.c.h.b16 %v585
    %v2854 = vunpack.c.l.b16 %v586
    %v2855 = vunpack.c.h.b16 %v586
    %v2856 = vunpack.c.l.b16 %v587
    %v2857 = vunpack.c.h.b16 %v587
    %v2858 = vunpack.c.l.b16 %v588
    %v2859 = vunpack.c.h.b16 %v588
    %v2860 = vunpack.c.l.b16 %v589
    %v2861 = vunpack.c.h.b16 %v589
    %v2862 = vunpack.c.l.b16 %v590
    %v2863 = vunpack.c.h.b16 %v590
    %v2864 = vunpack.c.l.b16 %v591
    %v2865 = vunpack.c.h.b16 %v591
    %v2866 = vunpack.c.l.b16 %v592
    %v2867 = vunpack.c.h.b16 %v592
    %v2868 = vunpack.c.l.b16 %v593
    %v2869 = vunpack.c.h.b16 %v593
    %v2870 = vunpack.c.l.b16 %v594
    %v2871 = vunpack.c.h.b16 %v594
    %v2872 = vunpack.c.l.b16 %v595
    %v2873 = vunpack.c.h.b16 %v595
    %v2874 = vunpack.c.l.b16 %v596
    %v2875 = vunpack.c.h.b16 %v596
    %v2876 = vunpack.c.l.b16 %v597
    %v2877 = vunpack.c.h.b16 %v597
    %v2878 = vunpack.c.l.b16 %v598
    %v2879 = vunpack.c.h.b16 %v598
    %v2880 = vunpack.c.l.b16 %v599
    %v2881 = vunpack.c.h.b16 %v599
    %v2882 = vunpack.c.l.b16 %v600
    %v2883 = vunpack.c.h.b16 %v600
    %v2884 = vunpack.c.l.b16 %v601
    %v2885 = vunpack.c.h.b16 %v601
    %v2886 = vunpack.c.l.b16 %v602
    %v2887 = vunpack.c.h.b16 %v602
    %v2888 = vunpack.c.l.b16 %v603
    %v2889 = vunpack.c.h.b16 %v603
    %v2890 = vunpack.c.l.b16 %v604
    %v2891 = vunpack.c.h.b16 %v604
    %v2892 = vunpack.c.l.b16 %v605
    %v2893 = vunpack.c.h.b16 %v605
    %v2894 = vunpack.c.l.b16 %v606
    %v2895 = vunpack.c.h.b16 %v606
    %v2896 = vunpack.c.l.b16 %v607
    %v2897 = vunpack.c.h.b16 %v607
    %v2898 = vunpack.c.l.b16 %v608
    %v2899 = vunpack.c.h.b16 %v608
    %v2900 = vunpack.c.l.b16 %v609
    %v2901 = vunpack.c.h.b16 %v609
    %v2902 = vunpack.c.l.b16 %v610
    %v2903 = vunpack.c.h.b16 %v610
    %v2904 = vunpack.c.l.b16 %v611
    %v2905 = vunpack.c.h.b16 %v611
    %v2906 = vunpack.c.l.b16 %v612
    %v2907 = vunpack.c.h.b16 %v612
    %v2908 = vunpack.c.l.b16 %v613
    %v2909 = vunpack.c.h.b16 %v613
    %v2910 = vunpack.c.l.b16 %v614
    %v2911 = vunpack.c.h.b16 %v614
    %v2912 = vunpack.c.l.b16 %v615
    %v2913 = vunpack.c.h.b16 %v615
    %v2914 = vunpack.c.l.b16 %v616
    %v2915 = vunpack.c.h.b16 %v616
    %v2916 = vunpack.c.l.b16 %v617
    %v2917 = vunpack.c.h.b16 %v617
    %v2918 = vunpack.c.l.b16 %v618
    %v2919 = vunpack.c.h.b16 %v618
    %v2920 = vunpack.c.l.b16 %v619
    %v2921 = vunpack.c.h.b16 %v619
    %v2922 = vunpack.c.l.b16 %v620
    %v2923 = vunpack.c.h.b16 %v620
    %v2924 = vunpack.c.l.b16 %v621
    %v2925 = vunpack.c.h.b16 %v621
    %v2926 = vunpack.c.l.b16 %v622
    %v2927 = vunpack.c.h.b16 %v622
    %v2928 = vunpack.c.l.b16 %v623
    %v2929 = vunpack.c.h.b16 %v623
    %v2930 = vunpack.c.l.b16 %v624
    %v2931 = vunpack.c.h.b16 %v624
    %v2932 = vunpack.c.l.b16 %v625
    %v2933 = vunpack.c.h.b16 %v625
    %v2934 = vunpack.c.l.b16 %v626
    %v2935 = vunpack.c.h.b16 %v626
    %v2936 = vunpack.c.l.b16 %v627
    %v2937 = vunpack.c.h.b16 %v627
    %v2938 = vunpack.c.l.b16 %v628
    %v2939 = vunpack.c.h.b16 %v628
    %v2940 = vunpack.c.l.b16 %v629
    %v2941 = vunpack.c.h.b16 %v629
    %v2942 = vunpack.c.l.b16 %v630
    %v2943 = vunpack.c.h.b16 %v630
    %v2944 = vunpack.c.l.b16 %v631
    %v2945 = vunpack.c.h.b16 %v631
    %v2946 = vunpack.c.l.b16 %v632
    %v2947 = vunpack.c.h.b16 %v632
    %v2948 = vunpack.c.l.b16 %v633
    %v2949 = vunpack.c.h.b16 %v633
    %v2950 = vunpack.c.l.b16 %v634
    %v2951 = vunpack.c.h.b16 %v634
    %v2952 = vunpack.c.l.b16 %v635
    %v2953 = vunpack.c.h.b16 %v635
    %v2954 = vunpack.c.l.b16 %v636
    %v2955 = vunpack.c.h.b16 %v636
    %v2956 = vunpack.c.l.b16 %v637
    %v2957 = vunpack.c.h.b16 %v637
    %v2958 = vunpack.c.l.b16 %v638
    %v2959 = vunpack.c.h.b16 %v638
    %v2960 = vunpack.c.l.b16 %v639
    %v2961 = vunpack.c.h.b16 %v639
    %v2962 = vunpack.c.l.b16 %v640
    %v2963 = vunpack.c.h.b16 %v640
    %v2964 = vunpack.c.l.b16 %v641
    %v2965 = vunpack.c.h.b16 %v641
    %v2966 = vunpack.c.l.b16 %v642
    %v2967 = vunpack.c.h.b16 %v642
    %v2968 = vunpack.c.l.b16 %v643
    %v2969 = vunpack.c.h.b16 %v643
    %v2970 = vunpack.c.l.b16 %v644
    %v2971 = vunpack.c.h.b16 %v644
    %v2972 = vunpack.c.l.b16 %v645
    %v2973 = vunpack.c.h.b16 %v645
    %v2974 = vunpack.c.l.b16 %v646
    %v2975 = vunpack.c.h.b16 %v646
    %v2976 = vunpack.c.l.b16 %v647
    %v2977 = vunpack.c.h.b16 %v647
    %v2978 = vunpack.c.l.b16 %v648
    %v2979 = vunpack.c.h.b16 %v648
    %v2980 = vunpack.c.l.b16 %v649
    %v2981 = vunpack.c.h.b16 %v649
    %v2982 = vunpack.c.l.b16 %v650
    %v2983 = vunpack.c.h.b16 %v650
    %v2984 = vunpack.c.l.b16 %v651
    %v2985 = vunpack.c.h.b16 %v651
    %v2986 = vunpack.c.l.b16 %v652
    %v2987 = vunpack.c.h.b16 %v652
    %v2988 = vunpack.c.l.b16 %v653
    %v2989 = vunpack.c.h.b16 %v653
    %v2990 = vunpack.c.l.b16 %v654
    %v2991 = vunpack.c.h.b16 %v654
    %v2992 = vunpack.c.l.b16 %v655
    %v2993 = vunpack.c.h.b16 %v655
    %v2994 = vunpack.c.l.b16 %v656
    %v2995 = vunpack.c.h.b16 %v656
    %v2996 = vunpack.c.l.b16 %v657
    %v2997 = vunpack.c.h.b16 %v657
    %v2998 = vunpack.c.l.b16 %v658
    %v2999 = vunpack.c.h.b16 %v658
    %v3000 = vunpack.c.l.b16 %v659
    %v3001 = vunpack.c.h.b16 %v659
    %v3002 = vunpack.c.l.b16 %v660
    %v3003 = vunpack.c.h.b16 %v660
    %v3004 = vunpack.c.l.b16 %v661
    %v3005 = vunpack.c.h.b16 %v661
    %v3006 = vunpack.c.l.b16 %v662
    %v3007 = vunpack.c.h.b16 %v662
    %v3008 = vunpack.c.l.b16 %v663
    %v3009 = vunpack.c.h.b16 %v663
    %v3010 = vunpack.c.l.b16 %v664
    %v3011 = vunpack.c.h.b16 %v664
    %v3012 = vunpack.c.l.b16 %v665
    %v3013 = vunpack.c.h.b16 %v665
    %v3014 = vunpack.c.l.b16 %v666
    %v3015 = vunpack.c.h.b16 %v666
    %v3016 = vunpack.c.l.b16 %v667
    %v3017 = vunpack.c.h.b16 %v667
    %v3018 = vunpack.c.l.b16 %v668
    %v3019 = vunpack.c.h.b16 %v668
    %v3020 = vunpack.c.l.b16 %v669
    %v3021 = vunpack.c.h.b16 %v669
    %v3022 = vunpack.c.l.b16 %v670
    %v3023 = vunpack.c.h.b16 %v670
    %v3024 = vunpack.c.l.b16 %v671
    %v3025 = vunpack.c.h.b16 %v671
    %v3026 = vunpack.c.l.b16 %v672
    %v3027 = vunpack.c.h.b16 %v672
    %v3028 = vunpack.c.l.b16 %v673
    %v3029 = vunpack.c.h.b16 %v673
    %v3030 = vunpack.c.l.b16 %v674
    %v3031 = vunpack.c.h.b16 %v674
    %v3032 = vunpack.c.l.b16 %v675
    %v3033 = vunpack.c.h.b16 %v675
    %v3034 = vunpack.c.l.b16 %v676
    %v3035 = vunpack.c.h.b16 %v676
    %v3036 = vunpack.c.l.b16 %v677
    %v3037 = vunpack.c.h.b16 %v677
    %v3038 = vunpack.c.l.b16 %v678
    %v3039 = vunpack.c.h.b16 %v678
    %v3040 = vunpack.c.l.b16 %v679
    %v3041 = vunpack.c.h.b16 %v679
    %v3042 = vunpack.c.l.b16 %v680
    %v3043 = vunpack.c.h.b16 %v680
    %v3044 = vunpack.c.l.b16 %v681
    %v3045 = vunpack.c.h.b16 %v681
    %v3046 = vunpack.c.l.b16 %v682
    %v3047 = vunpack.c.h.b16 %v682
    %v3048 = vunpack.c.l.b16 %v683
    %v3049 = vunpack.c.h.b16 %v683
    %v3050 = vunpack.c.l.b16 %v684
    %v3051 = vunpack.c.h.b16 %v684
    %v3052 = vunpack.c.l.b16 %v685
    %v3053 = vunpack.c.h.b16 %v685
    %v3054 = vunpack.c.l.b16 %v686
    %v3055 = vunpack.c.h.b16 %v686
    %v3056 = vunpack.c.l.b16 %v687
    %v3057 = vunpack.c.h.b16 %v687
    %v3058 = vunpack.c.l.b16 %v688
    %v3059 = vunpack.c.h.b16 %v688
    %v3060 = vunpack.c.l.b16 %v689
    %v3061 = vunpack.c.h.b16 %v689
    %v3062 = vunpack.c.l.b16 %v690
    %v3063 = vunpack.c.h.b16 %v690
    %v3064 = vunpack.c.l.b16 %v691
    %v3065 = vunpack.c.h.b16 %v691
    %v3066 = vunpack.c.l.b16 %v692
    %v3067 = vunpack.c.h.b16 %v692
    %v3068 = vunpack.c.l.b16 %v693
    %v3069 = vunpack.c.h.b16 %v693
    %v3070 = vunpack.c.l.b16 %v694
    %v3071 = vunpack.c.h.b16 %v694
    %v3072 = vunpack.c.l.b16 %v695
    %v3073 = vunpack.c.h.b16 %v695
    %v3074 = vunpack.c.l.b16 %v696
    %v3075 = vunpack.c.h.b16 %v696
    %v3076 = vunpack.c.l.b16 %v697
    %v3077 = vunpack.c.h.b16 %v697
    %v3078 = vunpack.c.l.b16 %v698
    %v3079 = vunpack.c.h.b16 %v698
    %v3080 = vunpack.c.l.b16 %v699
    %v3081 = vunpack.c.h.b16 %v699
    %v3082 = vunpack.c.l.b16 %v700
    %v3083 = vunpack.c.h.b16 %v700
    %v3084 = vunpack.c.l.b16 %v701
    %v3085 = vunpack.c.h.b16 %v701
    %v3086 = vunpack.c.l.b16 %v702
    %v3087 = vunpack.c.h.b16 %v702
    %v3088 = vunpack.c.l.b16 %v703
    %v3089 = vunpack.c.h.b16 %v703
    %v3090 = vunpack.c.l.b16 %v704
    %v3091 = vunpack.c.h.b16 %v704
    %v3092 = vunpack.c.l.b16 %v705
    %v3093 = vunpack.c.h.b16 %v705
    %v3094 = vunpack.c.l.b16 %v706
    %v3095 = vunpack.c.h.b16 %v706
    %v3096 = vunpack.c.l.b16 %v707
    %v3097 = vunpack.c.h.b16 %v707
    %v3098 = vunpack.c.l.b16 %v708
    %v3099 = vunpack.c.h.b16 %v708
    %v3100 = vunpack.c.l.b16 %v709
    %v3101 = vunpack.c.h.b16 %v709
    %v3102 = vunpack.c.l.b16 %v710
    %v3103 = vunpack.c.h.b16 %v710
    %v3104 = vunpack.c.l.b16 %v711
    %v3105 = vunpack.c.h.b16 %v711
    %v3106 = vunpack.c.l.b16 %v712
    %v3107 = vunpack.c.h.b16 %v712
    %v3108 = vunpack.c.l.b16 %v713
    %v3109 = vunpack.c.h.b16 %v713
    %v3110 = vunpack.c.l.b16 %v714
    %v3111 = vunpack.c.h.b16 %v714
    %v3112 = vunpack.c.l.b16 %v715
    %v3113 = vunpack.c.h.b16 %v715
    %v3114 = vunpack.c.l.b16 %v716
    %v3115 = vunpack.c.h.b16 %v716
    %v3116 = vunpack.c.l.b16 %v717
    %v3117 = vunpack.c.h.b16 %v717
    %v3118 = vunpack.c.l.b16 %v718
    %v3119 = vunpack.c.h.b16 %v718
    %v3120 = vunpack.c.l.b16 %v719
    %v3121 = vunpack.c.h.b16 %v719
    %v3122 = vunpack.c.l.b16 %v720
    %v3123 = vunpack.c.h.b16 %v720
    %v3124 = vunpack.c.l.b16 %v721
    %v3125 = vunpack.c.h.b16 %v721
    %v3126 = vunpack.c.l.b16 %v722
    %v3127 = vunpack.c.h.b16 %v722
    %v3128 = vunpack.c.l.b16 %v723
    %v3129 = vunpack.c.h.b16 %v723
    %v3130 = vunpack.c.l.b16 %v724
    %v3131 = vunpack.c.h.b16 %v724
    %v3132 = vunpack.c.l.b16 %v725
    %v3133 = vunpack.c.h.b16 %v725
    %v3134 = vunpack.c.l.b16 %v726
    %v3135 = vunpack.c.h.b16 %v726
    %v3136 = vunpack.c.l.b16 %v727
    %v3137 = vunpack.c.h.b16 %v727
    %v3138 = vunpack.c.l.b16 %v728
    %v3139 = vunpack.c.h.b16 %v728
    %v3140 = vunpack.c.l.b16 %v729
    %v3141 = vunpack.c.h.b16 %v729
    %v3142 = vunpack.c.l.b16 %v730
    %v3143 = vunpack.c.h.b16 %v730
    %v3144 = vunpack.c.l.b16 %v731
    %v3145 = vunpack.c.h.b16 %v731
    %v3146 = vunpack.c.l.b16 %v732
    %v3147 = vunpack.c.h.b16 %v732
    %v3148 = vunpack.c.l.b16 %v733
    %v3149 = vunpack.c.h.b16 %v733
    %v3150 = vunpack.c.l.b16 %v734
    %v3151 = vunpack.c.h.b16 %v734
    %v3152 = vunpack.c.l.b16 %v735
    %v3153 = vunpack.c.h.b16 %v735
    %v3154 = vunpack.c.l.b16 %v736
    %v3155 = vunpack.c.h.b16 %v736
    %v3156 = vunpack.c.l.b16 %v737
    %v3157 = vunpack.c.h.b16 %v737
    %v3158 = vunpack.c.l.b16 %v738
    %v3159 = vunpack.c.h.b16 %v738
    %v3160 = vunpack.c.l.b16 %v739
    %v3161 = vunpack.c.h.b16 %v739
    %v3162 = vunpack.c.l.b16 %v740
    %v3163 = vunpack.c.h.b16 %v740
    %v3164 = vunpack.c.l.b16 %v741
    %v3165 = vunpack.c.h.b16 %v741
    %v3166 = vunpack.c.l.b16 %v742
    %v3167 = vunpack.c.h.b16 %v742
    %v3168 = vunpack.c.l.b16 %v743
    %v3169 = vunpack.c.h.b16 %v743
    %v3170 = vunpack.c.l.b16 %v744
    %v3171 = vunpack.c.h.b16 %v744
    %v3172 = vunpack.c.l.b16 %v745
    %v3173 = vunpack.c.h.b16 %v745
    %v3174 = vunpack.c.l.b16 %v746
    %v3175 = vunpack.c.h.b16 %v746
    %v3176 = vunpack.c.l.b16 %v747
    %v3177 = vunpack.c.h.b16 %v747
    %v3178 = vunpack.c.l.b16 %v748
    %v3179 = vunpack.c.h.b16 %v748
    %v3180 = vunpack.c.l.b16 %v749
    %v3181 = vunpack.c.h.b16 %v749
    %v3182 = vunpack.c.l.b16 %v750
    %v3183 = vunpack.c.h.b16 %v750
    %v3184 = vunpack.c.l.b16 %v751
    %v3185 = vunpack.c.h.b16 %v751
    %v3186 = vunpack.c.l.b16 %v752
    %v3187 = vunpack.c.h.b16 %v752
    %v3188 = vunpack.c.l.b16 %v753
    %v3189 = vunpack.c.h.b16 %v753
    %v3190 = vunpack.c.l.b16 %v754
    %v3191 = vunpack.c.h.b16 %v754
    %v3192 = vunpack.c.l.b16 %v755
    %v3193 = vunpack.c.h.b16 %v755
    %v3194 = vunpack.c.l.b16 %v756
    %v3195 = vunpack.c.h.b16 %v756
    %v3196 = vunpack.c.l.b16 %v757
    %v3197 = vunpack.c.h.b16 %v757
    %v3198 = vunpack.c.l.b16 %v758
    %v3199 = vunpack.c.h.b16 %v758
    %v3200 = vunpack.c.l.b16 %v759
    %v3201 = vunpack.c.h.b16 %v759
    %v3202 = vunpack.c.l.b16 %v760
    %v3203 = vunpack.c.h.b16 %v760
    %v3204 = vunpack.c.l.b16 %v761
    %v3205 = vunpack.c.h.b16 %v761
    %v3206 = vunpack.c.l.b16 %v762
    %v3207 = vunpack.c.h.b16 %v762
    %v3208 = vunpack.c.l.b16 %v763
    %v3209 = vunpack.c.h.b16 %v763
    %v3210 = vunpack.c.l.b16 %v764
    %v3211 = vunpack.c.h.b16 %v764
    %v3212 = vunpack.c.l.b16 %v765
    %v3213 = vunpack.c.h.b16 %v765
    %v3214 = vunpack.c.l.b16 %v766
    %v3215 = vunpack.c.h.b16 %v766
    %v3216 = vunpack.c.l.b16 %v767
    %v3217 = vunpack.c.h.b16 %v767
    %v3218 = vunpack.c.l.b16 %v768
    %v3219 = vunpack.c.h.b16 %v768
    %v3220 = vunpack.c.l.b16 %v769
    %v3221 = vunpack.c.h.b16 %v769
    %v3222 = vunpack.c.l.b16 %v770
    %v3223 = vunpack.c.h.b16 %v770
    %v3224 = vunpack.c.l.b16 %v771
    %v3225 = vunpack.c.h.b16 %v771
    %v3226 = vunpack.c.l.b16 %v772
    %v3227 = vunpack.c.h.b16 %v772
    %v3228 = vunpack.c.l.b16 %v773
    %v3229 = vunpack.c.h.b16 %v773
    %v3230 = vunpack.c.l.b16 %v774
    %v3231 = vunpack.c.h.b16 %v774
    %v3232 = vunpack.c.l.b16 %v775
    %v3233 = vunpack.c.h.b16 %v775
    %v3234 = vunpack.c.l.b16 %v776
    %v3235 = vunpack.c.h.b16 %v776
    %v3236 = vunpack.c.l.b16 %v777
    %v3237 = vunpack.c.h.b16 %v777
    %v3238 = vunpack.c.l.b16 %v778
    %v3239 = vunpack.c.h.b16 %v778
    %v3240 = vunpack.c.l.b16 %v779
    %v3241 = vunpack.c.h.b16 %v779
    %v3242 = vunpack.c.l.b16 %v780
    %v3243 = vunpack.c.h.b16 %v780
    %v3244 = vunpack.c.l.b16 %v781
    %v3245 = vunpack.c.h.b16 %v781
    %v3246 = vunpack.c.l.b16 %v782
    %v3247 = vunpack.c.h.b16 %v782
    %v3248 = vunpack.c.l.b16 %v783
    %v3249 = vunpack.c.h.b16 %v783
    %v3250 = vunpack.c.l.b16 %v784
    %v3251 = vunpack.c.h.b16 %v784
    %v3252 = vunpack.c.l.b16 %v785
    %v3253 = vunpack.c.h.b16 %v785
    %v3254 = vunpack.c.l.b16 %v786
    %v3255 = vunpack.c.h.b16 %v786
    %v3256 = vunpack.c.l.b16 %v787
    %v3257 = vunpack.c.h.b16 %v787
    %v3258 = vunpack.c.l.b16 %v788
    %v3259 = vunpack.c.h.b16 %v788
    %v3260 = vunpack.c.l.b16 %v789
    %v3261 = vunpack.c.h.b16 %v789
    %v3262 = vunpack.c.l.b16 %v790
    %v3263 = vunpack.c.h.b16 %v790
    %v3264 = vunpack.c.l.b16 %v791
    %v3265 = vunpack.c.h.b16 %v791
    %v3266 = vunpack.c.l.b16 %v792
    %v3267 = vunpack.c.h.b16 %v792
    %v3268 = vunpack.c.l.b16 %v793
    %v3269 = vunpack.c.h.b16 %v793
    %v3270 = vunpack.c.l.b16 %v794
    %v3271 = vunpack.c.h.b16 %v794
    %v3272 = vunpack.c.l.b16 %v795
    %v3273 = vunpack.c.h.b16 %v795
    %v3274 = vunpack.c.l.b16 %v796
    %v3275 = vunpack.c.h.b16 %v796
    %v3276 = vunpack.c.l.b16 %v797
    %v3277 = vunpack.c.h.b16 %v797
    %v3278 = vunpack.c.l.b16 %v798
    %v3279 = vunpack.c.h.b16 %v798
    %v3280 = vunpack.c.l.b16 %v799
    %v3281 = vunpack.c.h.b16 %v799
    %v3282 = vunpack.c.l.b16 %v800
    %v3283 = vunpack.c.h.b16 %v800
    %v3284 = vunpack.c.l.b16 %v801
    %v3285 = vunpack.c.h.b16 %v801
    %v3286 = vunpack.c.l.b16 %v802
    %v3287 = vunpack.c.h.b16 %v802
    %v3288 = vunpack.c.l.b16 %v803
    %v3289 = vunpack.c.h.b16 %v803
    %v3290 = vunpack.c.l.b16 %v804
    %v3291 = vunpack.c.h.b16 %v804
    %v3292 = vunpack.c.l.b16 %v805
    %v3293 = vunpack.c.h.b16 %v805
    %v3294 = vunpack.c.l.b16 %v806
    %v3295 = vunpack.c.h.b16 %v806
    %v3296 = vunpack.c.l.b16 %v807
    %v3297 = vunpack.c.h.b16 %v807
    %v3298 = vunpack.c.l.b16 %v808
    %v3299 = vunpack.c.h.b16 %v808
    %v3300 = vunpack.c.l.b16 %v809
    %v3301 = vunpack.c.h.b16 %v809
    %v3302 = vunpack.c.l.b16 %v810
    %v3303 = vunpack.c.h.b16 %v810
    %v3304 = vunpack.c.l.b16 %v811
    %v3305 = vunpack.c.h.b16 %v811
    %v3306 = vunpack.c.l.b16 %v812
    %v3307 = vunpack.c.h.b16 %v812
    %v3308 = vunpack.c.l.b16 %v813
    %v3309 = vunpack.c.h.b16 %v813
    %v3310 = vunpack.c.l.b16 %v814
    %v3311 = vunpack.c.h.b16 %v814
    %v3312 = vunpack.c.l.b16 %v815
    %v3313 = vunpack.c.h.b16 %v815
    %v3314 = vunpack.c.l.b16 %v816
    %v3315 = vunpack.c.h.b16 %v816
    %v3316 = vunpack.c.l.b16 %v817
    %v3317 = vunpack.c.h.b16 %v817
    %v3318 = vunpack.c.l.b16 %v818
    %v3319 = vunpack.c.h.b16 %v818
    %v3320 = vunpack.c.l.b16 %v819
    %v3321 = vunpack.c.h.b16 %v819
    %v3322 = vunpack.c.l.b16 %v820
    %v3323 = vunpack.c.h.b16 %v820
    %v3324 = vunpack.c.l.b16 %v821
    %v3325 = vunpack.c.h.b16 %v821
    %v3326 = vunpack.c.l.b16 %v822
    %v3327 = vunpack.c.h.b16 %v822
    %v3328 = vunpack.c.l.b16 %v823
    %v3329 = vunpack.c.h.b16 %v823
    %v3330 = vunpack.c.l.b16 %v824
    %v3331 = vunpack.c.h.b16 %v824
    %v3332 = vunpack.c.l.b16 %v825
    %v3333 = vunpack.c.h.b16 %v825
    %v3334 = vunpack.c.l.b16 %v826
    %v3335 = vunpack.c.h.b16 %v826
    %v3336 = vunpack.c.l.b16 %v827
    %v3337 = vunpack.c.h.b16 %v827
    %v3338 = vunpack.c.l.b16 %v828
    %v3339 = vunpack.c.h.b16 %v828
    %v3340 = vunpack.c.l.b16 %v829
    %v3341 = vunpack.c.h.b16 %v829
    %v3342 = vunpack.c.l.b16 %v830
    %v3343 = vunpack.c.h.b16 %v830
    %v3344 = vunpack.c.l.b16 %v831
    %v3345 = vunpack.c.h.b16 %v831
    %v3346 = vunpack.c.l.b16 %v832
    %v3347 = vunpack.c.h.b16 %v832
    %v3348 = vunpack.c.l.b16 %v833
    %v3349 = vunpack.c.h.b16 %v833
    %v3350 = vunpack.c.l.b16 %v834
    %v3351 = vunpack.c.h.b16 %v834
    %v3352 = vunpack.c.l.b16 %v835
    %v3353 = vunpack.c.h.b16 %v835
    %v3354 = vunpack.c.l.b16 %v836
    %v3355 = vunpack.c.h.b16 %v836
    %v3356 = vunpack.c.l.b16 %v837
    %v3357 = vunpack.c.h.b16 %v837
    %v3358 = vunpack.c.l.b16 %v838
    %v3359 = vunpack.c.h.b16 %v838
    %v3360 = vunpack.c.l.b16 %v839
    %v3361 = vunpack.c.h.b16 %v839
    %v3362 = vunpack.c.l.b16 %v840
    %v3363 = vunpack.c.h.b16 %v840
    %v3364 = vunpack.c.l.b16 %v841
    %v3365 = vunpack.c.h.b16 %v841
    %v3366 = vunpack.c.l.b16 %v842
    %v3367 = vunpack.c.h.b16 %v842
    %v3368 = vunpack.c.l.b16 %v843
    %v3369 = vunpack.c.h.b16 %v843
    %v3370 = vunpack.c.l.b16 %v844
    %v3371 = vunpack.c.h.b16 %v844
    %v3372 = vunpack.c.l.b16 %v845
    %v3373 = vunpack.c.h.b16 %v845
    %v3374 = vunpack.c.l.b16 %v846
    %v3375 = vunpack.c.h.b16 %v846
    %v3376 = vunpack.c.l.b16 %v847
    %v3377 = vunpack.c.h.b16 %v847
    %v3378 = vunpack.c.l.b16 %v848
    %v3379 = vunpack.c.h.b16 %v848
    %v3380 = vunpack.c.l.b16 %v849
    %v3381 = vunpack.c.h.b16 %v849
    %v3382 = vunpack.c.l.b16 %v850
    %v3383 = vunpack.c.h.b16 %v850
    %v3384 = vunpack.c.l.b16 %v851
    %v3385 = vunpack.c.h.b16 %v851
    %v3386 = vunpack.c.l.b16 %v852
    %v3387 = vunpack.c.h.b16 %v852
    %v3388 = vunpack.c.l.b16 %v853
    %v3389 = vunpack.c.h.b16 %v853
    %v3390 = vunpack.c.l.b16 %v854
    %v3391 = vunpack.c.h.b16 %v854
    %v3392 = vunpack.c.l.b16 %v855
    %v3393 = vunpack.c.h.b16 %v855
    %v3394 = vunpack.c.l.b16 %v856
    %v3395 = vunpack.c.h.b16 %v856
    %v3396 = vunpack.c.l.b16 %v857
    %v3397 = vunpack.c.h.b16 %v857
    %v3398 = vunpack.c.l.b16 %v858
    %v3399 = vunpack.c.h.b16 %v858
    %v3400 = vunpack.c.l.b16 %v859
    %v3401 = vunpack.c.h.b16 %v859
    %v3402 = vunpack.c.l.b16 %v860
    %v3403 = vunpack.c.h.b16 %v860
    %v3404 = vunpack.c.l.b16 %v861
    %v3405 = vunpack.c.h.b16 %v861
    %v3406 = vunpack.c.l.b16 %v862
    %v3407 = vunpack.c.h.b16 %v862
    %v3408 = vunpack.c.l.b16 %v863
    %v3409 = vunpack.c.h.b16 %v863
    %v3410 = vunpack.c.l.b16 %v864
    %v3411 = vunpack.c.h.b16 %v864
    %v3412 = vunpack.c.l.b16 %v865
    %v3413 = vunpack.c.h.b16 %v865
    %v3414 = vunpack.c.l.b16 %v866
    %v3415 = vunpack.c.h.b16 %v866
    %v3416 = vunpack.c.l.b16 %v867
    %v3417 = vunpack.c.h.b16 %v867
    %v3418 = vunpack.c.l.b16 %v868
    %v3419 = vunpack.c.h.b16 %v868
    %v3420 = vunpack.c.l.b16 %v869
    %v3421 = vunpack.c.h.b16 %v869
    %v3422 = vunpack.c.l.b16 %v870
    %v3423 = vunpack.c.h.b16 %v870
    %v3424 = vunpack.c.l.b16 %v871
    %v3425 = vunpack.c.h.b16 %v871
    %v3426 = vunpack.c.l.b16 %v872
    %v3427 = vunpack.c.h.b16 %v872
    %v3428 = vunpack.c.l.b16 %v873
    %v3429 = vunpack.c.h.b16 %v873
    %v3430 = vunpack.c.l.b16 %v874
    %v3431 = vunpack.c.h.b16 %v874
    %v3432 = vunpack.c.l.b16 %v875
    %v3433 = vunpack.c.h.b16 %v875
    %v3434 = vunpack.c.l.b16 %v876
    %v3435 = vunpack.c.h.b16 %v876
    %v3436 = vunpack.c.l.b16 %v877
    %v3437 = vunpack.c.h.b16 %v877
    %v3438 = vunpack.c.l.b16 %v878
    %v3439 = vunpack.c.h.b16 %v878
    %v3440 = vunpack.c.l.b16 %v879
    %v3441 = vunpack.c.h.b16 %v879
    %v3442 = vunpack.c.l.b16 %v880
    %v3443 = vunpack.c.h.b16 %v880
    %v3444 = vunpack.c.l.b16 %v881
    %v3445 = vunpack.c.h.b16 %v881
    %v3446 = vunpack.c.l.b16 %v882
    %v3447 = vunpack.c.h.b16 %v882
    %v3448 = vunpack.c.l.b16 %v883
    %v3449 = vunpack.c.h.b16 %v883
    %v3450 = vunpack.c.l.b16 %v884
    %v3451 = vunpack.c.h.b16 %v884
    %v3452 = vunpack.c.l.b16 %v885
    %v3453 = vunpack.c.h.b16 %v885
    %v3454 = vunpack.c.l.b16 %v886
    %v3455 = vunpack.c.h.b16 %v886
    %v3456 = vunpack.c.l.b16 %v887
    %v3457 = vunpack.c.h.b16 %v887
    %v3458 = vunpack.c.l.b16 %v888
    %v3459 = vunpack.c.h.b16 %v888
    %v3460 = vunpack.c.l.b16 %v889
    %v3461 = vunpack.c.h.b16 %v889
    %v3462 = vunpack.c.l.b16 %v890
    %v3463 = vunpack.c.h.b16 %v890
    %v3464 = vunpack.c.l.b16 %v891
    %v3465 = vunpack.c.h.b16 %v891
    %v3466 = vunpack.c.l.b16 %v892
    %v3467 = vunpack.c.h.b16 %v892
    %v3468 = vunpack.c.l.b16 %v893
    %v3469 = vunpack.c.h.b16 %v893
    %v3470 = vunpack.c.l.b16 %v894
    %v3471 = vunpack.c.h.b16 %v894
    %v3472 = vunpack.c.l.b16 %v895
    %v3473 = vunpack.c.h.b16 %v895
    %v3474 = vunpack.c.l.b16 %v896
    %v3475 = vunpack.c.h.b16 %v896
    %v3476 = vunpack.c.l.b16 %v897
    %v3477 = vunpack.c.h.b16 %v897
    %v3478 = vunpack.c.l.b16 %v898
    %v3479 = vunpack.c.h.b16 %v898
    %v3480 = vunpack.c.l.b16 %v899
    %v3481 = vunpack.c.h.b16 %v899
    %v3482 = vunpack.c.l.b16 %v900
    %v3483 = vunpack.c.h.b16 %v900
    %v3484 = vunpack.c.l.b16 %v901
    %v3485 = vunpack.c.h.b16 %v901
    %v3486 = vunpack.c.l.b16 %v902
    %v3487 = vunpack.c.h.b16 %v902
    %v3488 = vunpack.c.l.b16 %v903
    %v3489 = vunpack.c.h.b16 %v903
    %v3490 = vunpack.c.l.b16 %v904
    %v3491 = vunpack.c.h.b16 %v904
    %v3492 = vunpack.c.l.b16 %v905
    %v3493 = vunpack.c.h.b16 %v905
    %v3494 = vunpack.c.l.b16 %v906
    %v3495 = vunpack.c.h.b16 %v906
    %v3496 = vunpack.c.l.b16 %v907
    %v3497 = vunpack.c.h.b16 %v907
    %v3498 = vunpack.c.l.b16 %v908
    %v3499 = vunpack.c.h.b16 %v908
    %v3500 = vunpack.c.l.b16 %v909
    %v3501 = vunpack.c.h.b16 %v909
    %v3502 = vunpack.c.l.b16 %v910
    %v3503 = vunpack.c.h.b16 %v910
    %v3504 = vunpack.c.l.b16 %v911
    %v3505 = vunpack.c.h.b16 %v911
    %v3506 = vunpack.c.l.b16 %v912
    %v3507 = vunpack.c.h.b16 %v912
    %v3508 = vunpack.c.l.b16 %v913
    %v3509 = vunpack.c.h.b16 %v913
    %v3510 = vunpack.c.l.b16 %v914
    %v3511 = vunpack.c.h.b16 %v914
    %v3512 = vunpack.c.l.b16 %v915
    %v3513 = vunpack.c.h.b16 %v915
    %v3514 = vunpack.c.l.b16 %v916
    %v3515 = vunpack.c.h.b16 %v916
    %v3516 = vunpack.c.l.b16 %v917
    %v3517 = vunpack.c.h.b16 %v917
    %v3518 = vunpack.c.l.b16 %v918
    %v3519 = vunpack.c.h.b16 %v918
    %v3520 = vunpack.c.l.b16 %v919
    %v3521 = vunpack.c.h.b16 %v919
    %v3522 = vunpack.c.l.b16 %v920
    %v3523 = vunpack.c.h.b16 %v920
    %v3524 = vunpack.c.l.b16 %v921
    %v3525 = vunpack.c.h.b16 %v921
    %v3526 = vunpack.c.l.b16 %v922
    %v3527 = vunpack.c.h.b16 %v922
    %v3528 = vunpack.c.l.b16 %v923
    %v3529 = vunpack.c.h.b16 %v923
    %v3530 = vunpack.c.l.b16 %v924
    %v3531 = vunpack.c.h.b16 %v924
    %v3532 = vunpack.c.l.b16 %v925
    %v3533 = vunpack.c.h.b16 %v925
    %v3534 = vunpack.c.l.b16 %v926
    %v3535 = vunpack.c.h.b16 %v926
    %v3536 = vunpack.c.l.b16 %v927
    %v3537 = vunpack.c.h.b16 %v927
    %v3538 = vunpack.c.l.b16 %v928
    %v3539 = vunpack.c.h.b16 %v928
    %v3540 = vunpack.c.l.b16 %v929
    %v3541 = vunpack.c.h.b16 %v929
    %v3542 = vunpack.c.l.b16 %v930
    %v3543 = vunpack.c.h.b16 %v930
    %v3544 = vunpack.c.l.b16 %v931
    %v3545 = vunpack.c.h.b16 %v931
    %v3546 = vunpack.c.l.b16 %v932
    %v3547 = vunpack.c.h.b16 %v932
    %v3548 = vunpack.c.l.b16 %v933
    %v3549 = vunpack.c.h.b16 %v933
    %v3550 = vunpack.c.l.b16 %v934
    %v3551 = vunpack.c.h.b16 %v934
    %v3552 = vunpack.c.l.b16 %v935
    %v3553 = vunpack.c.h.b16 %v935
    %v3554 = vunpack.c.l.b16 %v936
    %v3555 = vunpack.c.h.b16 %v936
    %v3556 = vunpack.c.l.b16 %v937
    %v3557 = vunpack.c.h.b16 %v937
    %v3558 = vunpack.c.l.b16 %v938
    %v3559 = vunpack.c.h.b16 %v938
    %v3560 = vunpack.c.l.b16 %v939
    %v3561 = vunpack.c.h.b16 %v939
    %v3562 = vunpack.c.l.b16 %v940
    %v3563 = vunpack.c.h.b16 %v940
    %v3564 = vunpack.c.l.b16 %v941
    %v3565 = vunpack.c.h.b16 %v941
    %v3566 = vunpack.c.l.b16 %v942
    %v3567 = vunpack.c.h.b16 %v942
    %v3568 = vunpack.c.l.b16 %v943
    %v3569 = vunpack.c.h.b16 %v943
    %v3570 = vunpack.c.l.b16 %v944
    %v3571 = vunpack.c.h.b16 %v944
    %v3572 = vunpack.c.l.b16 %v945
    %v3573 = vunpack.c.h.b16 %v945
    %v3574 = vunpack.c.l.b16 %v946
    %v3575 = vunpack.c.h.b16 %v946
    %v3576 = vunpack.c.l.b16 %v947
    %v3577 = vunpack.c.h.b16 %v947
    %v3578 = vunpack.c.l.b16 %v948
    %v3579 = vunpack.c.h.b16 %v948
    %v3580 = vunpack.c.l.b16 %v949
    %v3581 = vunpack.c.h.b16 %v949
    %v3582 = vunpack.c.l.b16 %v950
    %v3583 = vunpack.c.h.b16 %v950
    %v3584 = vunpack.c.l.b16 %v951
    %v3585 = vunpack.c.h.b16 %v951
    %v3586 = vunpack.c.l.b16 %v952
    %v3587 = vunpack.c.h.b16 %v952
    %v3588 = vunpack.c.l.b16 %v953
    %v3589 = vunpack.c.h.b16 %v953
    %v3590 = vunpack.c.l.b16 %v954
    %v3591 = vunpack.c.h.b16 %v954
    %v3592 = vunpack.c.l.b16 %v955
    %v3593 = vunpack.c.h.b16 %v955
    %v3594 = vunpack.c.l.b16 %v956
    %v3595 = vunpack.c.h.b16 %v956
    %v3596 = vunpack.c.l.b16 %v957
    %v3597 = vunpack.c.h.b16 %v957
    %v3598 = vunpack.c.l.b16 %v958
    %v3599 = vunpack.c.h.b16 %v958
    %v3600 = vunpack.c.l.b16 %v959
    %v3601 = vunpack.c.h.b16 %v959
    %v3602 = vunpack.c.l.b16 %v960
    %v3603 = vunpack.c.h.b16 %v960
    %v3604 = vunpack.c.l.b16 %v961
    %v3605 = vunpack.c.h.b16 %v961
    %v3606 = vunpack.c.l.b16 %v962
    %v3607 = vunpack.c.h.b16 %v962
    %v3608 = vunpack.c.l.b16 %v963
    %v3609 = vunpack.c.h.b16 %v963
    %v3610 = vunpack.c.l.b16 %v964
    %v3611 = vunpack.c.h.b16 %v964
    %v3612 = vunpack.c.l.b16 %v965
    %v3613 = vunpack.c.h.b16 %v965
    %v3614 = vunpack.c.l.b16 %v966
    %v3615 = vunpack.c.h.b16 %v966
    %v3616 = vunpack.c.l.b16 %v967
    %v3617 = vunpack.c.h.b16 %v967
    %v3618 = vunpack.c.l.b16 %v968
    %v3619 = vunpack.c.h.b16 %v968
    %v3620 = vunpack.c.l.b16 %v969
    %v3621 = vunpack.c.h.b16 %v969
    %v3622 = vunpack.c.l.b16 %v970
    %v3623 = vunpack.c.h.b16 %v970
    %v3624 = vunpack.c.l.b16 %v971
    %v3625 = vunpack.c.h.b16 %v971
    %v3626 = vunpack.c.l.b16 %v972
    %v3627 = vunpack.c.h.b16 %v972
    %v3628 = vunpack.c.l.b16 %v973
    %v3629 = vunpack.c.h.b16 %v973
    %v3630 = vunpack.c.l.b16 %v974
    %v3631 = vunpack.c.h.b16 %v974
    %v3632 = vunpack.c.l.b16 %v975
    %v3633 = vunpack.c.h.b16 %v975
    %v3634 = vunpack.c.l.b16 %v976
    %v3635 = vunpack.c.h.b16 %v976
    %v3636 = vunpack.c.l.b16 %v977
    %v3637 = vunpack.c.h.b16 %v977
    %v3638 = vunpack.c.l.b16 %v978
    %v3639 = vunpack.c.h.b16 %v978
    %v3640 = vunpack.c.l.b16 %v979
    %v3641 = vunpack.c.h.b16 %v979
    %v3642 = vunpack.c.l.b16 %v980
    %v3643 = vunpack.c.h.b16 %v980
    %v3644 = vunpack.c.l.b16 %v981
    %v3645 = vunpack.c.h.b16 %v981
    %v3646 = vunpack.c.l.b16 %v982
    %v3647 = vunpack.c.h.b16 %v982
    %v3648 = vunpack.c.l.b16 %v983
    %v3649 = vunpack.c.h.b16 %v983
    %v3650 = vunpack.c.l.b16 %v984
    %v3651 = vunpack.c.h.b16 %v984
    %v3652 = vunpack.c.l.b16 %v985
    %v3653 = vunpack.c.h.b16 %v985
    %v3654 = vunpack.c.l.b16 %v986
    %v3655 = vunpack.c.h.b16 %v986
    %v3656 = vunpack.c.l.b16 %v987
    %v3657 = vunpack.c.h.b16 %v987
    %v3658 = vunpack.c.l.b16 %v988
    %v3659 = vunpack.c.h.b16 %v988
    %v3660 = vunpack.c.l.b16 %v989
    %v3661 = vunpack.c.h.b16 %v989
    %v3662 = vunpack.c.l.b16 %v990
    %v3663 = vunpack.c.h.b16 %v990
    %v3664 = vunpack.c.l.b16 %v991
    %v3665 = vunpack.c.h.b16 %v991
    %v3666 = vunpack.c.l.b16 %v992
    %v3667 = vunpack.c.h.b16 %v992
    %v3668 = vunpack.c.l.b16 %v993
    %v3669 = vunpack.c.h.b16 %v993
    %v3670 = vunpack.c.l.b16 %v994
    %v3671 = vunpack.c.h.b16 %v994
    %v3672 = vunpack.c.l.b16 %v995
    %v3673 = vunpack.c.h.b16 %v995
    %v3674 = vunpack.c.l.b16 %v996
    %v3675 = vunpack.c.h.b16 %v996
    %v3676 = vunpack.c.l.b16 %v997
    %v3677 = vunpack.c.h.b16 %v997
    %v3678 = vunpack.c.l.b16 %v998
    %v3679 = vunpack.c.h.b16 %v998
    %v3680 = vunpack.c.l.b16 %v999
    %v3681 = vunpack.c.h.b16 %v999
    %v3682 = vunpack.c.l.b16 %v1000
    %v3683 = vunpack.c.h.b16 %v1000
    %v3684 = vunpack.c.l.b16 %v1001
    %v3685 = vunpack.c.h.b16 %v1001
    %v3686 = vunpack.c.l.b16 %v1002
    %v3687 = vunpack.c.h.b16 %v1002
    %v3688 = vunpack.c.l.b16 %v1003
    %v3689 = vunpack.c.h.b16 %v1003
    %v3690 = vunpack.c.l.b16 %v1004
    %v3691 = vunpack.c.h.b16 %v1004
    %v3692 = vunpack.c.l.b16 %v1005
    %v3693 = vunpack.c.h.b16 %v1005
    %v3694 = vpack.c.b16 %v1984, %v1966
    %v3695 = vpack.c.b16 %v1985, %v1967
    %v3696 = vpack.c.b16 %v1986, %v1968
    %v3697 = vpack.c.b16 %v1987, %v1969
    %v3698 = vpack.c.b16 %v1988, %v1970
    %v3699 = vpack.c.b16 %v1989, %v1971
    %v3700 = vpack.c.b16 %v1990, %v1972
    %v3701 = vpack.c.b16 %v1991, %v1973
    %v3702 = vpack.c.b16 %v1992, %v1974
    %v3703 = vpack.c.b16 %v1993, %v1975
    %v3704 = vpack.c.b16 %v1994, %v1976
    %v3705 = vpack.c.b16 %v1995, %v1977
    %v3706 = vpack.c.b16 %v1996, %v1978
    %v3707 = vpack.c.b16 %v1997, %v1979
    %v3708 = vpack.c.b16 %v1998, %v1980
    %v3709 = vpack.c.b16 %v1999, %v1981
    %v3710 = vpack.c.b16 %v2000, %v1982
    %v3711 = vpack.c.b16 %v2001, %v1983
    %v3712 = vpack.c.b16 %v2020, %v2002
    %v3713 = vpack.c.b16 %v2021, %v2003
    %v3714 = vpack.c.b16 %v2022, %v2004
    %v3715 = vpack.c.b16 %v2023, %v2005
    %v3716 = vpack.c.b16 %v2024, %v2006
    %v3717 = vpack.c.b16 %v2025, %v2007
    %v3718 = vpack.c.b16 %v2026, %v2008
    %v3719 = vpack.c.b16 %v2027, %v2009
    %v3720 = vpack.c.b16 %v2028, %v2010
    %v3721 = vpack.c.b16 %v2029, %v2011
    %v3722 = vpack.c.b16 %v2030, %v2012
    %v3723 = vpack.c.b16 %v2031, %v2013
    %v3724 = vpack.c.b16 %v2032, %v2014
    %v3725 = vpack.c.b16 %v2033, %v2015
    %v3726 = vpack.c.b16 %v2034, %v2016
    %v3727 = vpack.c.b16 %v2035, %v2017
    %v3728 = vpack.c.b16 %v2036, %v2018
    %v3729 = vpack.c.b16 %v2037, %v2019
    %v3730 = vpack.c.b16 %v2056, %v2038
    %v3731 = vpack.c.b16 %v2057, %v2039
    %v3732 = vpack.c.b16 %v2058, %v2040
    %v3733 = vpack.c.b16 %v2059, %v2041
    %v3734 = vpack.c.b16 %v2060, %v2042
    %v3735 = vpack.c.b16 %v2061, %v2043
    %v3736 = vpack.c.b16 %v2062, %v2044
    %v3737 = vpack.c.b16 %v2063, %v2045
    %v3738 = vpack.c.b16 %v2064, %v2046
    %v3739 = vpack.c.b16 %v2065, %v2047
    %v3740 = vpack.c.b16 %v2066, %v2048
    %v3741 = vpack.c.b16 %v2067, %v2049
    %v3742 = vpack.c.b16 %v2068, %v2050
    %v3743 = vpack.c.b16 %v2069, %v2051
    %v3744 = vpack.c.b16 %v2070, %v2052
    %v3745 = vpack.c.b16 %v2071, %v2053
    %v3746 = vpack.c.b16 %v2072, %v2054
    %v3747 = vpack.c.b16 %v2073, %v2055
    %v3748 = vpack.c.b16 %v2092, %v2074
    %v3749 = vpack.c.b16 %v2093, %v2075
    %v3750 = vpack.c.b16 %v2094, %v2076
    %v3751 = vpack.c.b16 %v2095, %v2077
    %v3752 = vpack.c.b16 %v2096, %v2078
    %v3753 = vpack.c.b16 %v2097, %v2079
    %v3754 = vpack.c.b16 %v2098, %v2080
    %v3755 = vpack.c.b16 %v2099, %v2081
    %v3756 = vpack.c.b16 %v2100, %v2082
    %v3757 = vpack.c.b16 %v2101, %v2083
    %v3758 = vpack.c.b16 %v2102, %v2084
    %v3759 = vpack.c.b16 %v2103, %v2085
    %v3760 = vpack.c.b16 %v2104, %v2086
    %v3761 = vpack.c.b16 %v2105, %v2087
    %v3762 = vpack.c.b16 %v2106, %v2088
    %v3763 = vpack.c.b16 %v2107, %v2089
    %v3764 = vpack.c.b16 %v2108, %v2090
    %v3765 = vpack.c.b16 %v2109, %v2091
    %v3766 = vpack.c.b16 %v2128, %v2110
    %v3767 = vpack.c.b16 %v2129, %v2111
    %v3768 = vpack.c.b16 %v2130, %v2112
    %v3769 = vpack.c.b16 %v2131, %v2113
    %v3770 = vpack.c.b16 %v2132, %v2114
    %v3771 = vpack.c.b16 %v2133, %v2115
    %v3772 = vpack.c.b16 %v2134, %v2116
    %v3773 = vpack.c.b16 %v2135, %v2117
    %v3774 = vpack.c.b16 %v2136, %v2118
    %v3775 = vpack.c.b16 %v2137, %v2119
    %v3776 = vpack.c.b16 %v2138, %v2120
    %v3777 = vpack.c.b16 %v2139, %v2121
    %v3778 = vpack.c.b16 %v2140, %v2122
    %v3779 = vpack.c.b16 %v2141, %v2123
    %v3780 = vpack.c.b16 %v2142, %v2124
    %v3781 = vpack.c.b16 %v2143, %v2125
    %v3782 = vpack.c.b16 %v2144, %v2126
    %v3783 = vpack.c.b16 %v2145, %v2127
    %v3784 = vpack.c.b16 %v2164, %v2146
    %v3785 = vpack.c.b16 %v2165, %v2147
    %v3786 = vpack.c.b16 %v2166, %v2148
    %v3787 = vpack.c.b16 %v2167, %v2149
    %v3788 = vpack.c.b16 %v2168, %v2150
    %v3789 = vpack.c.b16 %v2169, %v2151
    %v3790 = vpack.c.b16 %v2170, %v2152
    %v3791 = vpack.c.b16 %v2171, %v2153
    %v3792 = vpack.c.b16 %v2172, %v2154
    %v3793 = vpack.c.b16 %v2173, %v2155
    %v3794 = vpack.c.b16 %v2174, %v2156
    %v3795 = vpack.c.b16 %v2175, %v2157
    %v3796 = vpack.c.b16 %v2176, %v2158
    %v3797 = vpack.c.b16 %v2177, %v2159
    %v3798 = vpack.c.b16 %v2178, %v2160
    %v3799 = vpack.c.b16 %v2179, %v2161
    %v3800 = vpack.c.b16 %v2180, %v2162
    %v3801 = vpack.c.b16 %v2181, %v2163
    %v3802 = vpack.c.b16 %v2200, %v2182
    %v3803 = vpack.c.b16 %v2201, %v2183
    %v3804 = vpack.c.b16 %v2202, %v2184
    %v3805 = vpack.c.b16 %v2203, %v2185
    %v3806 = vpack.c.b16 %v2204, %v2186
    %v3807 = vpack.c.b16 %v2205, %v2187
    %v3808 = vpack.c.b16 %v2206, %v2188
    %v3809 = vpack.c.b16 %v2207, %v2189
    %v3810 = vpack.c.b16 %v2208, %v2190
    %v3811 = vpack.c.b16 %v2209, %v2191
    %v3812 = vpack.c.b16 %v2210, %v2192
    %v3813 = vpack.c.b16 %v2211, %v2193
    %v3814 = vpack.c.b16 %v2212, %v2194
    %v3815 = vpack.c.b16 %v2213, %v2195
    %v3816 = vpack.c.b16 %v2214, %v2196
    %v3817 = vpack.c.b16 %v2215, %v2197
    %v3818 = vpack.c.b16 %v2216, %v2198
    %v3819 = vpack.c.b16 %v2217, %v2199
    %v3820 = vpack.c.b16 %v2236, %v2218
    %v3821 = vpack.c.b16 %v2237, %v2219
    %v3822 = vpack.c.b16 %v2238, %v2220
    %v3823 = vpack.c.b16 %v2239, %v2221
    %v3824 = vpack.c.b16 %v2240, %v2222
    %v3825 = vpack.c.b16 %v2241, %v2223
    %v3826 = vpack.c.b16 %v2242, %v2224
    %v3827 = vpack.c.b16 %v2243, %v2225
    %v3828 = vpack.c.b16 %v2244, %v2226
    %v3829 = vpack.c.b16 %v2245, %v2227
    %v3830 = vpack.c.b16 %v2246, %v2228
    %v3831 = vpack.c.b16 %v2247, %v2229
    %v3832 = vpack.c.b16 %v2248, %v2230
    %v3833 = vpack.c.b16 %v2249, %v2231
    %v3834 = vpack.c.b16 %v2250, %v2232
    %v3835 = vpack.c.b16 %v2251, %v2233
    %v3836 = vpack.c.b16 %v2252, %v2234
    %v3837 = vpack.c.b16 %v2253, %v2235
    %v3838 = vpack.c.b16 %v2272, %v2254
    %v3839 = vpack.c.b16 %v2273, %v2255
    %v3840 = vpack.c.b16 %v2274, %v2256
    %v3841 = vpack.c.b16 %v2275, %v2257
    %v3842 = vpack.c.b16 %v2276, %v2258
    %v3843 = vpack.c.b16 %v2277, %v2259
    %v3844 = vpack.c.b16 %v2278, %v2260
    %v3845 = vpack.c.b16 %v2279, %v2261
    %v3846 = vpack.c.b16 %v2280, %v2262
    %v3847 = vpack.c.b16 %v2281, %v2263
    %v3848 = vpack.c.b16 %v2282, %v2264
    %v3849 = vpack.c.b16 %v2283, %v2265
    %v3850 = vpack.c.b16 %v2284, %v2266
    %v3851 = vpack.c.b16 %v2285, %v2267
    %v3852 = vpack.c.b16 %v2286, %v2268
    %v3853 = vpack.c.b16 %v2287, %v2269
    %v3854 = vpack.c.b16 %v2288, %v2270
    %v3855 = vpack.c.b16 %v2289, %v2271
    %v3856 = vpack.c.b16 %v2308, %v2290
    %v3857 = vpack.c.b16 %v2309, %v2291
    %v3858 = vpack.c.b16 %v2310, %v2292
    %v3859 = vpack.c.b16 %v2311, %v2293
    %v3860 = vpack.c.b16 %v2312, %v2294
    %v3861 = vpack.c.b16 %v2313, %v2295
    %v3862 = vpack.c.b16 %v2314, %v2296
    %v3863 = vpack.c.b16 %v2315, %v2297
    %v3864 = vpack.c.b16 %v2316, %v2298
    %v3865 = vpack.c.b16 %v2317, %v2299
    %v3866 = vpack.c.b16 %v2318, %v2300
    %v3867 = vpack.c.b16 %v2319, %v2301
    %v3868 = vpack.c.b16 %v2320, %v2302
    %v3869 = vpack.c.b16 %v2321, %v2303
    %v3870 = vpack.c.b16 %v2322, %v2304
    %v3871 = vpack.c.b16 %v2323, %v2305
    %v3872 = vpack.c.b16 %v2324, %v2306
    %v3873 = vpack.c.b16 %v2325, %v2307
    %v3874 = vpack.c.b16 %v2344, %v2326
    %v3875 = vpack.c.b16 %v2345, %v2327
    %v3876 = vpack.c.b16 %v2346, %v2328
    %v3877 = vpack.c.b16 %v2347, %v2329
    %v3878 = vpack.c.b16 %v2348, %v2330
    %v3879 = vpack.c.b16 %v2349, %v2331
    %v3880 = vpack.c.b16 %v2350, %v2332
    %v3881 = vpack.c.b16 %v2351, %v2333
    %v3882 = vpack.c.b16 %v2352, %v2334
    %v3883 = vpack.c.b16 %v2353, %v2335
    %v3884 = vpack.c.b16 %v2354, %v2336
    %v3885 = vpack.c.b16 %v2355, %v2337
    %v3886 = vpack.c.b16 %v2356, %v2338
    %v3887 = vpack.c.b16 %v2357, %v2339
    %v3888 = vpack.c.b16 %v2358, %v2340
    %v3889 = vpack.c.b16 %v2359, %v2341
    %v3890 = vpack.c.b16 %v2360, %v2342
    %v3891 = vpack.c.b16 %v2361, %v2343
    %v3892 = vpack.c.b16 %v2380, %v2362
    %v3893 = vpack.c.b16 %v2381, %v2363
    %v3894 = vpack.c.b16 %v2382, %v2364
    %v3895 = vpack.c.b16 %v2383, %v2365
    %v3896 = vpack.c.b16 %v2384, %v2366
    %v3897 = vpack.c.b16 %v2385, %v2367
    %v3898 = vpack.c.b16 %v2386, %v2368
    %v3899 = vpack.c.b16 %v2387, %v2369
    %v3900 = vpack.c.b16 %v2388, %v2370
    %v3901 = vpack.c.b16 %v2389, %v2371
    %v3902 = vpack.c.b16 %v2390, %v2372
    %v3903 = vpack.c.b16 %v2391, %v2373
    %v3904 = vpack.c.b16 %v2392, %v2374
    %v3905 = vpack.c.b16 %v2393, %v2375
    %v3906 = vpack.c.b16 %v2394, %v2376
    %v3907 = vpack.c.b16 %v2395, %v2377
    %v3908 = vpack.c.b16 %v2396, %v2378
    %v3909 = vpack.c.b16 %v2397, %v2379
    %v3910 = vpack.c.b16 %v2416, %v2398
    %v3911 = vpack.c.b16 %v2417, %v2399
    %v3912 = vpack.c.b16 %v2418, %v2400
    %v3913 = vpack.c.b16 %v2419, %v2401
    %v3914 = vpack.c.b16 %v2420, %v2402
    %v3915 = vpack.c.b16 %v2421, %v2403
    %v3916 = vpack.c.b16 %v2422, %v2404
    %v3917 = vpack.c.b16 %v2423, %v2405
    %v3918 = vpack.c.b16 %v2424, %v2406
    %v3919 = vpack.c.b16 %v2425, %v2407
    %v3920 = vpack.c.b16 %v2426, %v2408
    %v3921 = vpack.c.b16 %v2427, %v2409
    %v3922 = vpack.c.b16 %v2428, %v2410
    %v3923 = vpack.c.b16 %v2429, %v2411
    %v3924 = vpack.c.b16 %v2430, %v2412
    %v3925 = vpack.c.b16 %v2431, %v2413
    %v3926 = vpack.c.b16 %v2432, %v2414
    %v3927 = vpack.c.b16 %v2433, %v2415
    %v3928 = vpack.c.b16 %v2452, %v2434
    %v3929 = vpack.c.b16 %v2453, %v2435
    %v3930 = vpack.c.b16 %v2454, %v2436
    %v3931 = vpack.c.b16 %v2455, %v2437
    %v3932 = vpack.c.b16 %v2456, %v2438
    %v3933 = vpack.c.b16 %v2457, %v2439
    %v3934 = vpack.c.b16 %v2458, %v2440
    %v3935 = vpack.c.b16 %v2459, %v2441
    %v3936 = vpack.c.b16 %v2460, %v2442
    %v3937 = vpack.c.b16 %v2461, %v2443
    %v3938 = vpack.c.b16 %v2462, %v2444
    %v3939 = vpack.c.b16 %v2463, %v2445
    %v3940 = vpack.c.b16 %v2464, %v2446
    %v3941 = vpack.c.b16 %v2465, %v2447
    %v3942 = vpack.c.b16 %v2466, %v2448
    %v3943 = vpack.c.b16 %v2467, %v2449
    %v3944 = vpack.c.b16 %v2468, %v2450
    %v3945 = vpack.c.b16 %v2469, %v2451
    %v3946 = vpack.c.b16 %v2488, %v2470
    %v3947 = vpack.c.b16 %v2489, %v2471
    %v3948 = vpack.c.b16 %v2490, %v2472
    %v3949 = vpack.c.b16 %v2491, %v2473
    %v3950 = vpack.c.b16 %v2492, %v2474
    %v3951 = vpack.c.b16 %v2493, %v2475
    %v3952 = vpack.c.b16 %v2494, %v2476
    %v3953 = vpack.c.b16 %v2495, %v2477
    %v3954 = vpack.c.b16 %v2496, %v2478
    %v3955 = vpack.c.b16 %v2497, %v2479
    %v3956 = vpack.c.b16 %v2498, %v2480
    %v3957 = vpack.c.b16 %v2499, %v2481
    %v3958 = vpack.c.b16 %v2500, %v2482
    %v3959 = vpack.c.b16 %v2501, %v2483
    %v3960 = vpack.c.b16 %v2502, %v2484
    %v3961 = vpack.c.b16 %v2503, %v2485
    %v3962 = vpack.c.b16 %v2504, %v2486
    %v3963 = vpack.c.b16 %v2505, %v2487
    %v3964 = vpack.c.b16 %v2524, %v2506
    %v3965 = vpack.c.b16 %v2525, %v2507
    %v3966 = vpack.c.b16 %v2526, %v2508
    %v3967 = vpack.c.b16 %v2527, %v2509
    %v3968 = vpack.c.b16 %v2528, %v2510
    %v3969 = vpack.c.b16 %v2529, %v2511
    %v3970 = vpack.c.b16 %v2530, %v2512
    %v3971 = vpack.c.b16 %v2531, %v2513
    %v3972 = vpack.c.b16 %v2532, %v2514
    %v3973 = vpack.c.b16 %v2533, %v2515
    %v3974 = vpack.c.b16 %v2534, %v2516
    %v3975 = vpack.c.b16 %v2535, %v2517
    %v3976 = vpack.c.b16 %v2536, %v2518
    %v3977 = vpack.c.b16 %v2537, %v2519
    %v3978 = vpack.c.b16 %v2538, %v2520
    %v3979 = vpack.c.b16 %v2539, %v2521
    %v3980 = vpack.c.b16 %v2540, %v2522
    %v3981 = vpack.c.b16 %v2541, %v2523
    %v3982 = vpack.c.b16 %v2560, %v2542
    %v3983 = vpack.c.b16 %v2561, %v2543
    %v3984 = vpack.c.b16 %v2562, %v2544
    %v3985 = vpack.c.b16 %v2563, %v2545
    %v3986 = vpack.c.b16 %v2564, %v2546
    %v3987 = vpack.c.b16 %v2565, %v2547
    %v3988 = vpack.c.b16 %v2566, %v2548
    %v3989 = vpack.c.b16 %v2567, %v2549
    %v3990 = vpack.c.b16 %v2568, %v2550
    %v3991 = vpack.c.b16 %v2569, %v2551
    %v3992 = vpack.c.b16 %v2570, %v2552
    %v3993 = vpack.c.b16 %v2571, %v2553
    %v3994 = vpack.c.b16 %v2572, %v2554
    %v3995 = vpack.c.b16 %v2573, %v2555
    %v3996 = vpack.c.b16 %v2574, %v2556
    %v3997 = vpack.c.b16 %v2575, %v2557
    %v3998 = vpack.c.b16 %v2576, %v2558
    %v3999 = vpack.c.b16 %v2577, %v2559
    %v4000 = vpack.c.b16 %v2596, %v2578
    %v4001 = vpack.c.b16 %v2597, %v2579
    %v4002 = vpack.c.b16 %v2598, %v2580
    %v4003 = vpack.c.b16 %v2599, %v2581
    %v4004 = vpack.c.b16 %v2600, %v2582
    %v4005 = vpack.c.b16 %v2601, %v2583
    %v4006 = vpack.c.b16 %v2602, %v2584
    %v4007 = vpack.c.b16 %v2603, %v2585
    %v4008 = vpack.c.b16 %v2604, %v2586
    %v4009 = vpack.c.b16 %v2605, %v2587
    %v4010 = vpack.c.b16 %v2606, %v2588
    %v4011 = vpack.c.b16 %v2607, %v2589
    %v4012 = vpack.c.b16 %v2608, %v2590
    %v4013 = vpack.c.b16 %v2609, %v2591
    %v4014 = vpack.c.b16 %v2610, %v2592
    %v4015 = vpack.c.b16 %v2611, %v2593
    %v4016 = vpack.c.b16 %v2612, %v2594
    %v4017 = vpack.c.b16 %v2613, %v2595
    %v4018 = vpack.c.b16 %v2632, %v2614
    %v4019 = vpack.c.b16 %v2633, %v2615
    %v4020 = vpack.c.b16 %v2634, %v2616
    %v4021 = vpack.c.b16 %v2635, %v2617
    %v4022 = vpack.c.b16 %v2636, %v2618
    %v4023 = vpack.c.b16 %v2637, %v2619
    %v4024 = vpack.c.b16 %v2638, %v2620
    %v4025 = vpack.c.b16 %v2639, %v2621
    %v4026 = vpack.c.b16 %v2640, %v2622
    %v4027 = vpack.c.b16 %v2641, %v2623
    %v4028 = vpack.c.b16 %v2642, %v2624
    %v4029 = vpack.c.b16 %v2643, %v2625
    %v4030 = vpack.c.b16 %v2644, %v2626
    %v4031 = vpack.c.b16 %v2645, %v2627
    %v4032 = vpack.c.b16 %v2646, %v2628
    %v4033 = vpack.c.b16 %v2647, %v2629
    %v4034 = vpack.c.b16 %v2648, %v2630
    %v4035 = vpack.c.b16 %v2649, %v2631
    %v4036 = vpack.c.b16 %v2668, %v2650
    %v4037 = vpack.c.b16 %v2669, %v2651
    %v4038 = vpack.c.b16 %v2670, %v2652
    %v4039 = vpack.c.b16 %v2671, %v2653
    %v4040 = vpack.c.b16 %v2672, %v2654
    %v4041 = vpack.c.b16 %v2673, %v2655
    %v4042 = vpack.c.b16 %v2674, %v2656
    %v4043 = vpack.c.b16 %v2675, %v2657
    %v4044 = vpack.c.b16 %v2676, %v2658
    %v4045 = vpack.c.b16 %v2677, %v2659
    %v4046 = vpack.c.b16 %v2678, %v2660
    %v4047 = vpack.c.b16 %v2679, %v2661
    %v4048 = vpack.c.b16 %v2680, %v2662
    %v4049 = vpack.c.b16 %v2681, %v2663
    %v4050 = vpack.c.b16 %v2682, %v2664
    %v4051 = vpack.c.b16 %v2683, %v2665
    %v4052 = vpack.c.b16 %v2684, %v2666
    %v4053 = vpack.c.b16 %v2685, %v2667
    %v4054 = vpack.c.b16 %v2704, %v2686
    %v4055 = vpack.c.b16 %v2705, %v2687
    %v4056 = vpack.c.b16 %v2706, %v2688
    %v4057 = vpack.c.b16 %v2707, %v2689
    %v4058 = vpack.c.b16 %v2708, %v2690
    %v4059 = vpack.c.b16 %v2709, %v2691
    %v4060 = vpack.c.b16 %v2710, %v2692
    %v4061 = vpack.c.b16 %v2711, %v2693
    %v4062 = vpack.c.b16 %v2712, %v2694
    %v4063 = vpack.c.b16 %v2713, %v2695
    %v4064 = vpack.c.b16 %v2714, %v2696
    %v4065 = vpack.c.b16 %v2715, %v2697
    %v4066 = vpack.c.b16 %v2716, %v2698
    %v4067 = vpack.c.b16 %v2717, %v2699
    %v4068 = vpack.c.b16 %v2718, %v2700
    %v4069 = vpack.c.b16 %v2719, %v2701
    %v4070 = vpack.c.b16 %v2720, %v2702
    %v4071 = vpack.c.b16 %v2721, %v2703
    %v4072 = vpack.c.b16 %v2740, %v2722
    %v4073 = vpack.c.b16 %v2741, %v2723
    %v4074 = vpack.c.b16 %v2742, %v2724
    %v4075 = vpack.c.b16 %v2743, %v2725
    %v4076 = vpack.c.b16 %v2744, %v2726
    %v4077 = vpack.c.b16 %v2745, %v2727
    %v4078 = vpack.c.b16 %v2746, %v2728
    %v4079 = vpack.c.b16 %v2747, %v2729
    %v4080 = vpack.c.b16 %v2748, %v2730
    %v4081 = vpack.c.b16 %v2749, %v2731
    %v4082 = vpack.c.b16 %v2750, %v2732
    %v4083 = vpack.c.b16 %v2751, %v2733
    %v4084 = vpack.c.b16 %v2752, %v2734
    %v4085 = vpack.c.b16 %v2753, %v2735
    %v4086 = vpack.c.b16 %v2754, %v2736
    %v4087 = vpack.c.b16 %v2755, %v2737
    %v4088 = vpack.c.b16 %v2756, %v2738
    %v4089 = vpack.c.b16 %v2757, %v2739
    %v4090 = vpack.c.b16 %v2776, %v2758
    %v4091 = vpack.c.b16 %v2777, %v2759
    %v4092 = vpack.c.b16 %v2778, %v2760
    %v4093 = vpack.c.b16 %v2779, %v2761
    %v4094 = vpack.c.b16 %v2780, %v2762
    %v4095 = vpack.c.b16 %v2781, %v2763
    %v4096 = vpack.c.b16 %v2782, %v2764
    %v4097 = vpack.c.b16 %v2783, %v2765
    %v4098 = vpack.c.b16 %v2784, %v2766
    %v4099 = vpack.c.b16 %v2785, %v2767
    %v4100 = vpack.c.b16 %v2786, %v2768
    %v4101 = vpack.c.b16 %v2787, %v2769
    %v4102 = vpack.c.b16 %v2788, %v2770
    %v4103 = vpack.c.b16 %v2789, %v2771
    %v4104 = vpack.c.b16 %v2790, %v2772
    %v4105 = vpack.c.b16 %v2791, %v2773
    %v4106 = vpack.c.b16 %v2792, %v2774
    %v4107 = vpack.c.b16 %v2793, %v2775
    %v4108 = vpack.c.b16 %v2812, %v2794
    %v4109 = vpack.c.b16 %v2813, %v2795
    %v4110 = vpack.c.b16 %v2814, %v2796
    %v4111 = vpack.c.b16 %v2815, %v2797
    %v4112 = vpack.c.b16 %v2816, %v2798
    %v4113 = vpack.c.b16 %v2817, %v2799
    %v4114 = vpack.c.b16 %v2818, %v2800
    %v4115 = vpack.c.b16 %v2819, %v2801
    %v4116 = vpack.c.b16 %v2820, %v2802
    %v4117 = vpack.c.b16 %v2821, %v2803
    %v4118 = vpack.c.b16 %v2822, %v2804
    %v4119 = vpack.c.b16 %v2823, %v2805
    %v4120 = vpack.c.b16 %v2824, %v2806
    %v4121 = vpack.c.b16 %v2825, %v2807
    %v4122 = vpack.c.b16 %v2826, %v2808
    %v4123 = vpack.c.b16 %v2827, %v2809
    %v4124 = vpack.c.b16 %v2828, %v2810
    %v4125 = vpack.c.b16 %v2829, %v2811
    %v4126 = vpack.c.b16 %v2848, %v2830
    %v4127 = vpack.c.b16 %v2849, %v2831
    %v4128 = vpack.c.b16 %v2850, %v2832
    %v4129 = vpack.c.b16 %v2851, %v2833
    %v4130 = vpack.c.b16 %v2852, %v2834
    %v4131 = vpack.c.b16 %v2853, %v2835
    %v4132 = vpack.c.b16 %v2854, %v2836
    %v4133 = vpack.c.b16 %v2855, %v2837
    %v4134 = vpack.c.b16 %v2856, %v2838
    %v4135 = vpack.c.b16 %v2857, %v2839
    %v4136 = vpack.c.b16 %v2858, %v2840
    %v4137 = vpack.c.b16 %v2859, %v2841
    %v4138 = vpack.c.b16 %v2860, %v2842
    %v4139 = vpack.c.b16 %v2861, %v2843
    %v4140 = vpack.c.b16 %v2862, %v2844
    %v4141 = vpack.c.b16 %v2863, %v2845
    %v4142 = vpack.c.b16 %v2864, %v2846
    %v4143 = vpack.c.b16 %v2865, %v2847
    %v4144 = vpack.c.b16 %v2884, %v2866
    %v4145 = vpack.c.b16 %v2885, %v2867
    %v4146 = vpack.c.b16 %v2886, %v2868
    %v4147 = vpack.c.b16 %v2887, %v2869
    %v4148 = vpack.c.b16 %v2888, %v2870
    %v4149 = vpack.c.b16 %v2889, %v2871
    %v4150 = vpack.c.b16 %v2890, %v2872
    %v4151 = vpack.c.b16 %v2891, %v2873
    %v4152 = vpack.c.b16 %v2892, %v2874
    %v4153 = vpack.c.b16 %v2893, %v2875
    %v4154 = vpack.c.b16 %v2894, %v2876
    %v4155 = vpack.c.b16 %v2895, %v2877
    %v4156 = vpack.c.b16 %v2896, %v2878
    %v4157 = vpack.c.b16 %v2897, %v2879
    %v4158 = vpack.c.b16 %v2898, %v2880
    %v4159 = vpack.c.b16 %v2899, %v2881
    %v4160 = vpack.c.b16 %v2900, %v2882
    %v4161 = vpack.c.b16 %v2901, %v2883
    %v4162 = vpack.c.b16 %v2920, %v2902
    %v4163 = vpack.c.b16 %v2921, %v2903
    %v4164 = vpack.c.b16 %v2922, %v2904
    %v4165 = vpack.c.b16 %v2923, %v2905
    %v4166 = vpack.c.b16 %v2924, %v2906
    %v4167 = vpack.c.b16 %v2925, %v2907
    %v4168 = vpack.c.b16 %v2926, %v2908
    %v4169 = vpack.c.b16 %v2927, %v2909
    %v4170 = vpack.c.b16 %v2928, %v2910
    %v4171 = vpack.c.b16 %v2929, %v2911
    %v4172 = vpack.c.b16 %v2930, %v2912
    %v4173 = vpack.c.b16 %v2931, %v2913
    %v4174 = vpack.c.b16 %v2932, %v2914
    %v4175 = vpack.c.b16 %v2933, %v2915
    %v4176 = vpack.c.b16 %v2934, %v2916
    %v4177 = vpack.c.b16 %v2935, %v2917
    %v4178 = vpack.c.b16 %v2936, %v2918
    %v4179 = vpack.c.b16 %v2937, %v2919
    %v4180 = vpack.c.b16 %v2956, %v2938
    %v4181 = vpack.c.b16 %v2957, %v2939
    %v4182 = vpack.c.b16 %v2958, %v2940
    %v4183 = vpack.c.b16 %v2959, %v2941
    %v4184 = vpack.c.b16 %v2960, %v2942
    %v4185 = vpack.c.b16 %v2961, %v2943
    %v4186 = vpack.c.b16 %v2962, %v2944
    %v4187 = vpack.c.b16 %v2963, %v2945
    %v4188 = vpack.c.b16 %v2964, %v2946
    %v4189 = vpack.c.b16 %v2965, %v2947
    %v4190 = vpack.c.b16 %v2966, %v2948
    %v4191 = vpack.c.b16 %v2967, %v2949
    %v4192 = vpack.c.b16 %v2968, %v2950
    %v4193 = vpack.c.b16 %v2969, %v2951
    %v4194 = vpack.c.b16 %v2970, %v2952
    %v4195 = vpack.c.b16 %v2971, %v2953
    %v4196 = vpack.c.b16 %v2972, %v2954
    %v4197 = vpack.c.b16 %v2973, %v2955
    %v4198 = vpack.c.b16 %v2992, %v2974
    %v4199 = vpack.c.b16 %v2993, %v2975
    %v4200 = vpack.c.b16 %v2994, %v2976
    %v4201 = vpack.c.b16 %v2995, %v2977
    %v4202 = vpack.c.b16 %v2996, %v2978
    %v4203 = vpack.c.b16 %v2997, %v2979
    %v4204 = vpack.c.b16 %v2998, %v2980
    %v4205 = vpack.c.b16 %v2999, %v2981
    %v4206 = vpack.c.b16 %v3000, %v2982
    %v4207 = vpack.c.b16 %v3001, %v2983
    %v4208 = vpack.c.b16 %v3002, %v2984
    %v4209 = vpack.c.b16 %v3003, %v2985
    %v4210 = vpack.c.b16 %v3004, %v2986
    %v4211 = vpack.c.b16 %v3005, %v2987
    %v4212 = vpack.c.b16 %v3006, %v2988
    %v4213 = vpack.c.b16 %v3007, %v2989
    %v4214 = vpack.c.b16 %v3008, %v2990
    %v4215 = vpack.c.b16 %v3009, %v2991
    %v4216 = vpack.c.b16 %v3028, %v3010
    %v4217 = vpack.c.b16 %v3029, %v3011
    %v4218 = vpack.c.b16 %v3030, %v3012
    %v4219 = vpack.c.b16 %v3031, %v3013
    %v4220 = vpack.c.b16 %v3032, %v3014
    %v4221 = vpack.c.b16 %v3033, %v3015
    %v4222 = vpack.c.b16 %v3034, %v3016
    %v4223 = vpack.c.b16 %v3035, %v3017
    %v4224 = vpack.c.b16 %v3036, %v3018
    %v4225 = vpack.c.b16 %v3037, %v3019
    %v4226 = vpack.c.b16 %v3038, %v3020
    %v4227 = vpack.c.b16 %v3039, %v3021
    %v4228 = vpack.c.b16 %v3040, %v3022
    %v4229 = vpack.c.b16 %v3041, %v3023
    %v4230 = vpack.c.b16 %v3042, %v3024
    %v4231 = vpack.c.b16 %v3043, %v3025
    %v4232 = vpack.c.b16 %v3044, %v3026
    %v4233 = vpack.c.b16 %v3045, %v3027
    %v4234 = vpack.c.b16 %v3064, %v3046
    %v4235 = vpack.c.b16 %v3065, %v3047
    %v4236 = vpack.c.b16 %v3066, %v3048
    %v4237 = vpack.c.b16 %v3067, %v3049
    %v4238 = vpack.c.b16 %v3068, %v3050
    %v4239 = vpack.c.b16 %v3069, %v3051
    %v4240 = vpack.c.b16 %v3070, %v3052
    %v4241 = vpack.c.b16 %v3071, %v3053
    %v4242 = vpack.c.b16 %v3072, %v3054
    %v4243 = vpack.c.b16 %v3073, %v3055
    %v4244 = vpack.c.b16 %v3074, %v3056
    %v4245 = vpack.c.b16 %v3075, %v3057
    %v4246 = vpack.c.b16 %v3076, %v3058
    %v4247 = vpack.c.b16 %v3077, %v3059
    %v4248 = vpack.c.b16 %v3078, %v3060
    %v4249 = vpack.c.b16 %v3079, %v3061
    %v4250 = vpack.c.b16 %v3080, %v3062
    %v4251 = vpack.c.b16 %v3081, %v3063
    %v4252 = vpack.c.b16 %v3100, %v3082
    %v4253 = vpack.c.b16 %v3101, %v3083
    %v4254 = vpack.c.b16 %v3102, %v3084
    %v4255 = vpack.c.b16 %v3103, %v3085
    %v4256 = vpack.c.b16 %v3104, %v3086
    %v4257 = vpack.c.b16 %v3105, %v3087
    %v4258 = vpack.c.b16 %v3106, %v3088
    %v4259 = vpack.c.b16 %v3107, %v3089
    %v4260 = vpack.c.b16 %v3108, %v3090
    %v4261 = vpack.c.b16 %v3109, %v3091
    %v4262 = vpack.c.b16 %v3110, %v3092
    %v4263 = vpack.c.b16 %v3111, %v3093
    %v4264 = vpack.c.b16 %v3112, %v3094
    %v4265 = vpack.c.b16 %v3113, %v3095
    %v4266 = vpack.c.b16 %v3114, %v3096
    %v4267 = vpack.c.b16 %v3115, %v3097
    %v4268 = vpack.c.b16 %v3116, %v3098
    %v4269 = vpack.c.b16 %v3117, %v3099
    %v4270 = vpack.c.b16 %v3136, %v3118
    %v4271 = vpack.c.b16 %v3137, %v3119
    %v4272 = vpack.c.b16 %v3138, %v3120
    %v4273 = vpack.c.b16 %v3139, %v3121
    %v4274 = vpack.c.b16 %v3140, %v3122
    %v4275 = vpack.c.b16 %v3141, %v3123
    %v4276 = vpack.c.b16 %v3142, %v3124
    %v4277 = vpack.c.b16 %v3143, %v3125
    %v4278 = vpack.c.b16 %v3144, %v3126
    %v4279 = vpack.c.b16 %v3145, %v3127
    %v4280 = vpack.c.b16 %v3146, %v3128
    %v4281 = vpack.c.b16 %v3147, %v3129
    %v4282 = vpack.c.b16 %v3148, %v3130
    %v4283 = vpack.c.b16 %v3149, %v3131
    %v4284 = vpack.c.b16 %v3150, %v3132
    %v4285 = vpack.c.b16 %v3151, %v3133
    %v4286 = vpack.c.b16 %v3152, %v3134
    %v4287 = vpack.c.b16 %v3153, %v3135
    %v4288 = vpack.c.b16 %v3172, %v3154
    %v4289 = vpack.c.b16 %v3173, %v3155
    %v4290 = vpack.c.b16 %v3174, %v3156
    %v4291 = vpack.c.b16 %v3175, %v3157
    %v4292 = vpack.c.b16 %v3176, %v3158
    %v4293 = vpack.c.b16 %v3177, %v3159
    %v4294 = vpack.c.b16 %v3178, %v3160
    %v4295 = vpack.c.b16 %v3179, %v3161
    %v4296 = vpack.c.b16 %v3180, %v3162
    %v4297 = vpack.c.b16 %v3181, %v3163
    %v4298 = vpack.c.b16 %v3182, %v3164
    %v4299 = vpack.c.b16 %v3183, %v3165
    %v4300 = vpack.c.b16 %v3184, %v3166
    %v4301 = vpack.c.b16 %v3185, %v3167
    %v4302 = vpack.c.b16 %v3186, %v3168
    %v4303 = vpack.c.b16 %v3187, %v3169
    %v4304 = vpack.c.b16 %v3188, %v3170
    %v4305 = vpack.c.b16 %v3189, %v3171
    %v4306 = vpack.c.b16 %v3208, %v3190
    %v4307 = vpack.c.b16 %v3209, %v3191
    %v4308 = vpack.c.b16 %v3210, %v3192
    %v4309 = vpack.c.b16 %v3211, %v3193
    %v4310 = vpack.c.b16 %v3212, %v3194
    %v4311 = vpack.c.b16 %v3213, %v3195
    %v4312 = vpack.c.b16 %v3214, %v3196
    %v4313 = vpack.c.b16 %v3215, %v3197
    %v4314 = vpack.c.b16 %v3216, %v3198
    %v4315 = vpack.c.b16 %v3217, %v3199
    %v4316 = vpack.c.b16 %v3218, %v3200
    %v4317 = vpack.c.b16 %v3219, %v3201
    %v4318 = vpack.c.b16 %v3220, %v3202
    %v4319 = vpack.c.b16 %v3221, %v3203
    %v4320 = vpack.c.b16 %v3222, %v3204
    %v4321 = vpack.c.b16 %v3223, %v3205
    %v4322 = vpack.c.b16 %v3224, %v3206
    %v4323 = vpack.c.b16 %v3225, %v3207
    %v4324 = vpack.c.b16 %v3244, %v3226
    %v4325 = vpack.c.b16 %v3245, %v3227
    %v4326 = vpack.c.b16 %v3246, %v3228
    %v4327 = vpack.c.b16 %v3247, %v3229
    %v4328 = vpack.c.b16 %v3248, %v3230
    %v4329 = vpack.c.b16 %v3249, %v3231
    %v4330 = vpack.c.b16 %v3250, %v3232
    %v4331 = vpack.c.b16 %v3251, %v3233
    %v4332 = vpack.c.b16 %v3252, %v3234
    %v4333 = vpack.c.b16 %v3253, %v3235
    %v4334 = vpack.c.b16 %v3254, %v3236
    %v4335 = vpack.c.b16 %v3255, %v3237
    %v4336 = vpack.c.b16 %v3256, %v3238
    %v4337 = vpack.c.b16 %v3257, %v3239
    %v4338 = vpack.c.b16 %v3258, %v3240
    %v4339 = vpack.c.b16 %v3259, %v3241
    %v4340 = vpack.c.b16 %v3260, %v3242
    %v4341 = vpack.c.b16 %v3261, %v3243
    %v4342 = vpack.c.b16 %v3280, %v3262
    %v4343 = vpack.c.b16 %v3281, %v3263
    %v4344 = vpack.c.b16 %v3282, %v3264
    %v4345 = vpack.c.b16 %v3283, %v3265
    %v4346 = vpack.c.b16 %v3284, %v3266
    %v4347 = vpack.c.b16 %v3285, %v3267
    %v4348 = vpack.c.b16 %v3286, %v3268
    %v4349 = vpack.c.b16 %v3287, %v3269
    %v4350 = vpack.c.b16 %v3288, %v3270
    %v4351 = vpack.c.b16 %v3289, %v3271
    %v4352 = vpack.c.b16 %v3290, %v3272
    %v4353 = vpack.c.b16 %v3291, %v3273
    %v4354 = vpack.c.b16 %v3292, %v3274
    %v4355 = vpack.c.b16 %v3293, %v3275
    %v4356 = vpack.c.b16 %v3294, %v3276
    %v4357 = vpack.c.b16 %v3295, %v3277
    %v4358 = vpack.c.b16 %v3296, %v3278
    %v4359 = vpack.c.b16 %v3297, %v3279
    %v4360 = vpack.c.b16 %v3316, %v3298
    %v4361 = vpack.c.b16 %v3317, %v3299
    %v4362 = vpack.c.b16 %v3318, %v3300
    %v4363 = vpack.c.b16 %v3319, %v3301
    %v4364 = vpack.c.b16 %v3320, %v3302
    %v4365 = vpack.c.b16 %v3321, %v3303
    %v4366 = vpack.c.b16 %v3322, %v3304
    %v4367 = vpack.c.b16 %v3323, %v3305
    %v4368 = vpack.c.b16 %v3324, %v3306
    %v4369 = vpack.c.b16 %v3325, %v3307
    %v4370 = vpack.c.b16 %v3326, %v3308
    %v4371 = vpack.c.b16 %v3327, %v3309
    %v4372 = vpack.c.b16 %v3328, %v3310
    %v4373 = vpack.c.b16 %v3329, %v3311
    %v4374 = vpack.c.b16 %v3330, %v3312
    %v4375 = vpack.c.b16 %v3331, %v3313
    %v4376 = vpack.c.b16 %v3332, %v3314
    %v4377 = vpack.c.b16 %v3333, %v3315
    %v4378 = vpack.c.b16 %v3352, %v3334
    %v4379 = vpack.c.b16 %v3353, %v3335
    %v4380 = vpack.c.b16 %v3354, %v3336
    %v4381 = vpack.c.b16 %v3355, %v3337
    %v4382 = vpack.c.b16 %v3356, %v3338
    %v4383 = vpack.c.b16 %v3357, %v3339
    %v4384 = vpack.c.b16 %v3358, %v3340
    %v4385 = vpack.c.b16 %v3359, %v3341
    %v4386 = vpack.c.b16 %v3360, %v3342
    %v4387 = vpack.c.b16 %v3361, %v3343
    %v4388 = vpack.c.b16 %v3362, %v3344
    %v4389 = vpack.c.b16 %v3363, %v3345
    %v4390 = vpack.c.b16 %v3364, %v3346
    %v4391 = vpack.c.b16 %v3365, %v3347
    %v4392 = vpack.c.b16 %v3366, %v3348
    %v4393 = vpack.c.b16 %v3367, %v3349
    %v4394 = vpack.c.b16 %v3368, %v3350
    %v4395 = vpack.c.b16 %v3369, %v3351
    %v4396 = vpack.c.b16 %v3388, %v3370
    %v4397 = vpack.c.b16 %v3389, %v3371
    %v4398 = vpack.c.b16 %v3390, %v3372
    %v4399 = vpack.c.b16 %v3391, %v3373
    %v4400 = vpack.c.b16 %v3392, %v3374
    %v4401 = vpack.c.b16 %v3393, %v3375
    %v4402 = vpack.c.b16 %v3394, %v3376
    %v4403 = vpack.c.b16 %v3395, %v3377
    %v4404 = vpack.c.b16 %v3396, %v3378
    %v4405 = vpack.c.b16 %v3397, %v3379
    %v4406 = vpack.c.b16 %v3398, %v3380
    %v4407 = vpack.c.b16 %v3399, %v3381
    %v4408 = vpack.c.b16 %v3400, %v3382
    %v4409 = vpack.c.b16 %v3401, %v3383
    %v4410 = vpack.c.b16 %v3402, %v3384
    %v4411 = vpack.c.b16 %v3403, %v3385
    %v4412 = vpack.c.b16 %v3404, %v3386
    %v4413 = vpack.c.b16 %v3405, %v3387
    %v4414 = vpack.c.b16 %v3424, %v3406
    %v4415 = vpack.c.b16 %v3425, %v3407
    %v4416 = vpack.c.b16 %v3426, %v3408
    %v4417 = vpack.c.b16 %v3427, %v3409
    %v4418 = vpack.c.b16 %v3428, %v3410
    %v4419 = vpack.c.b16 %v3429, %v3411
    %v4420 = vpack.c.b16 %v3430, %v3412
    %v4421 = vpack.c.b16 %v3431, %v3413
    %v4422 = vpack.c.b16 %v3432, %v3414
    %v4423 = vpack.c.b16 %v3433, %v3415
    %v4424 = vpack.c.b16 %v3434, %v3416
    %v4425 = vpack.c.b16 %v3435, %v3417
    %v4426 = vpack.c.b16 %v3436, %v3418
    %v4427 = vpack.c.b16 %v3437, %v3419
    %v4428 = vpack.c.b16 %v3438, %v3420
    %v4429 = vpack.c.b16 %v3439, %v3421
    %v4430 = vpack.c.b16 %v3440, %v3422
    %v4431 = vpack.c.b16 %v3441, %v3423
    %v4432 = vpack.c.b16 %v3460, %v3442
    %v4433 = vpack.c.b16 %v3461, %v3443
    %v4434 = vpack.c.b16 %v3462, %v3444
    %v4435 = vpack.c.b16 %v3463, %v3445
    %v4436 = vpack.c.b16 %v3464, %v3446
    %v4437 = vpack.c.b16 %v3465, %v3447
    %v4438 = vpack.c.b16 %v3466, %v3448
    %v4439 = vpack.c.b16 %v3467, %v3449
    %v4440 = vpack.c.b16 %v3468, %v3450
    %v4441 = vpack.c.b16 %v3469, %v3451
    %v4442 = vpack.c.b16 %v3470, %v3452
    %v4443 = vpack.c.b16 %v3471, %v3453
    %v4444 = vpack.c.b16 %v3472, %v3454
    %v4445 = vpack.c.b16 %v3473, %v3455
    %v4446 = vpack.c.b16 %v3474, %v3456
    %v4447 = vpack.c.b16 %v3475, %v3457
    %v4448 = vpack.c.b16 %v3476, %v3458
    %v4449 = vpack.c.b16 %v3477, %v3459
    %v4450 = vpack.c.b16 %v3496, %v3478
    %v4451 = vpack.c.b16 %v3497, %v3479
    %v4452 = vpack.c.b16 %v3498, %v3480
    %v4453 = vpack.c.b16 %v3499, %v3481
    %v4454 = vpack.c.b16 %v3500, %v3482
    %v4455 = vpack.c.b16 %v3501, %v3483
    %v4456 = vpack.c.b16 %v3502, %v3484
    %v4457 = vpack.c.b16 %v3503, %v3485
    %v4458 = vpack.c.b16 %v3504, %v3486
    %v4459 = vpack.c.b16 %v3505, %v3487
    %v4460 = vpack.c.b16 %v3506, %v3488
    %v4461 = vpack.c.b16 %v3507, %v3489
    %v4462 = vpack.c.b16 %v3508, %v3490
    %v4463 = vpack.c.b16 %v3509, %v3491
    %v4464 = vpack.c.b16 %v3510, %v3492
    %v4465 = vpack.c.b16 %v3511, %v3493
    %v4466 = vpack.c.b16 %v3512, %v3494
    %v4467 = vpack.c.b16 %v3513, %v3495
    %v4468 = vpack.c.b16 %v3532, %v3514
    %v4469 = vpack.c.b16 %v3533, %v3515
    %v4470 = vpack.c.b16 %v3534, %v3516
    %v4471 = vpack.c.b16 %v3535, %v3517
    %v4472 = vpack.c.b16 %v3536, %v3518
    %v4473 = vpack.c.b16 %v3537, %v3519
    %v4474 = vpack.c.b16 %v3538, %v3520
    %v4475 = vpack.c.b16 %v3539, %v3521
    %v4476 = vpack.c.b16 %v3540, %v3522
    %v4477 = vpack.c.b16 %v3541, %v3523
    %v4478 = vpack.c.b16 %v3542, %v3524
    %v4479 = vpack.c.b16 %v3543, %v3525
    %v4480 = vpack.c.b16 %v3544, %v3526
    %v4481 = vpack.c.b16 %v3545, %v3527
    %v4482 = vpack.c.b16 %v3546, %v3528
    %v4483 = vpack.c.b16 %v3547, %v3529
    %v4484 = vpack.c.b16 %v3548, %v3530
    %v4485 = vpack.c.b16 %v3549, %v3531
    %v4486 = vpack.c.b16 %v3568, %v3550
    %v4487 = vpack.c.b16 %v3569, %v3551
    %v4488 = vpack.c.b16 %v3570, %v3552
    %v4489 = vpack.c.b16 %v3571, %v3553
    %v4490 = vpack.c.b16 %v3572, %v3554
    %v4491 = vpack.c.b16 %v3573, %v3555
    %v4492 = vpack.c.b16 %v3574, %v3556
    %v4493 = vpack.c.b16 %v3575, %v3557
    %v4494 = vpack.c.b16 %v3576, %v3558
    %v4495 = vpack.c.b16 %v3577, %v3559
    %v4496 = vpack.c.b16 %v3578, %v3560
    %v4497 = vpack.c.b16 %v3579, %v3561
    %v4498 = vpack.c.b16 %v3580, %v3562
    %v4499 = vpack.c.b16 %v3581, %v3563
    %v4500 = vpack.c.b16 %v3582, %v3564
    %v4501 = vpack.c.b16 %v3583, %v3565
    %v4502 = vpack.c.b16 %v3584, %v3566
    %v4503 = vpack.c.b16 %v3585, %v3567
    %v4504 = vpack.c.b16 %v3604, %v3586
    %v4505 = vpack.c.b16 %v3605, %v3587
    %v4506 = vpack.c.b16 %v3606, %v3588
    %v4507 = vpack.c.b16 %v3607, %v3589
    %v4508 = vpack.c.b16 %v3608, %v3590
    %v4509 = vpack.c.b16 %v3609, %v3591
    %v4510 = vpack.c.b16 %v3610, %v3592
    %v4511 = vpack.c.b16 %v3611, %v3593
    %v4512 = vpack.c.b16 %v3612, %v3594
    %v4513 = vpack.c.b16 %v3613, %v3595
    %v4514 = vpack.c.b16 %v3614, %v3596
    %v4515 = vpack.c.b16 %v3615, %v3597
    %v4516 = vpack.c.b16 %v3616, %v3598
    %v4517 = vpack.c.b16 %v3617, %v3599
    %v4518 = vpack.c.b16 %v3618, %v3600
    %v4519 = vpack.c.b16 %v3619, %v3601
    %v4520 = vpack.c.b16 %v3620, %v3602
    %v4521 = vpack.c.b16 %v3621, %v3603
    %v4522 = vpack.c.b16 %v3640, %v3622
    %v4523 = vpack.c.b16 %v3641, %v3623
    %v4524 = vpack.c.b16 %v3642, %v3624
    %v4525 = vpack.c.b16 %v3643, %v3625
    %v4526 = vpack.c.b16 %v3644, %v3626
    %v4527 = vpack.c.b16 %v3645, %v3627
    %v4528 = vpack.c.b16 %v3646, %v3628
    %v4529 = vpack.c.b16 %v3647, %v3629
    %v4530 = vpack.c.b16 %v3648, %v3630
    %v4531 = vpack.c.b16 %v3649, %v3631
    %v4532 = vpack.c.b16 %v3650, %v3632
    %v4533 = vpack.c.b16 %v3651, %v3633
    %v4534 = vpack.c.b16 %v3652, %v3634
    %v4535 = vpack.c.b16 %v3653, %v3635
    %v4536 = vpack.c.b16 %v3654, %v3636
    %v4537 = vpack.c.b16 %v3655, %v3637
    %v4538 = vpack.c.b16 %v3656, %v3638
    %v4539 = vpack.c.b16 %v3657, %v3639
    %v4540 = vpack.c.b16 %v3676, %v3658
    %v4541 = vpack.c.b16 %v3677, %v3659
    %v4542 = vpack.c.b16 %v3678, %v3660
    %v4543 = vpack.c.b16 %v3679, %v3661
    %v4544 = vpack.c.b16 %v3680, %v3662
    %v4545 = vpack.c.b16 %v3681, %v3663
    %v4546 = vpack.c.b16 %v3682, %v3664
    %v4547 = vpack.c.b16 %v3683, %v3665
    %v4548 = vpack.c.b16 %v3684, %v3666
    %v4549 = vpack.c.b16 %v3685, %v3667
    %v4550 = vpack.c.b16 %v3686, %v3668
    %v4551 = vpack.c.b16 %v3687, %v3669
    %v4552 = vpack.c.b16 %v3688, %v3670
    %v4553 = vpack.c.b16 %v3689, %v3671
    %v4554 = vpack.c.b16 %v3690, %v3672
    %v4555 = vpack.c.b16 %v3691, %v3673
    %v4556 = vpack.c.b16 %v3692, %v3674
    %v4557 = vpack.c.b16 %v3693, %v3675
    %5422 = vmatprep.subr.bf16.mxu0 %v3695
    %5423 = vmatpush1.bf16.msra.mxu0 %v3694
    %5424 = vmatprep.subr.bf16.mxu0 %v3713
    %5425 = vmatpush1.bf16.msra.mxu0 %v3712
    %5426 = vmatprep.subr.bf16.mxu0 %v3731
    %5427 = vmatpush1.bf16.msra.mxu0 %v3730
    %5428 = vmatprep.subr.bf16.mxu0 %v3749
    %5429 = vmatpush1.bf16.msra.mxu0 %v3748
    %5430 = vmatprep.subr.bf16.mxu0 %v3767
    %5431 = vmatpush1.bf16.msra.mxu0 %v3766
    %5432 = vmatprep.subr.bf16.mxu0 %v3785
    %5433 = vmatpush1.bf16.msra.mxu0 %v3784
    %5434 = vmatprep.subr.bf16.mxu0 %v3803
    %5435 = vmatpush1.bf16.msra.mxu0 %v3802
    %5436 = vmatprep.subr.bf16.mxu0 %v3821
    %5437 = vmatpush1.bf16.msra.mxu0 %v3820
    %5438 = vmatprep.subr.bf16.mxu0 %v3839
    %5439 = vmatpush1.bf16.msra.mxu0 %v3838
    %5440 = vmatprep.subr.bf16.mxu0 %v3857
    %5441 = vmatpush1.bf16.msra.mxu0 %v3856
    %5442 = vmatprep.subr.bf16.mxu0 %v3875
    %5443 = vmatpush1.bf16.msra.mxu0 %v3874
    %5444 = vmatprep.subr.bf16.mxu0 %v3893
    %5445 = vmatpush1.bf16.msra.mxu0 %v3892
    %5446 = vmatprep.subr.bf16.mxu0 %v3911
    %5447 = vmatpush1.bf16.msra.mxu0 %v3910
    %5448 = vmatprep.subr.bf16.mxu0 %v3929
    %5449 = vmatpush1.bf16.msra.mxu0 %v3928
    %5450 = vmatprep.subr.bf16.mxu0 %v3947
    %5451 = vmatpush1.bf16.msra.mxu0 %v3946
    %5452 = vmatprep.subr.bf16.mxu0 %v3965
    %5453 = vmatpush1.bf16.msra.mxu0 %v3964
    %5454 = vmatprep.mubr.bf16.mxu0 %v137
    %5455 = vmatmul.mubr.bf16.gmra.mrb[0].mxu0 %v136
    %v5456 = vpop.f32.mrb[0].mxu0
    %v5457 = vadd.f32 %v1015, %v5456
    %v5458 = vpop.f32.mrb[0].mxu0
    %v5459 = vadd.f32 %v1019, %v5458
    %v5460 = vpop.f32.mrb[0].mxu0
    %v5461 = vpop.f32.mrb[0].mxu0
    %5462 = vdwg.mxu0
    %5463 = vmatprep.subr.bf16.mxu0 %v3983
    %5464 = vmatpush1.bf16.msra.mxu0 %v3982
    %5465 = vmatprep.subr.bf16.mxu0 %v4001
    %5466 = vmatpush1.bf16.msra.mxu0 %v4000
    %5467 = vmatprep.subr.bf16.mxu0 %v4019
    %5468 = vmatpush1.bf16.msra.mxu0 %v4018
    %5469 = vmatprep.subr.bf16.mxu0 %v4037
    %5470 = vmatpush1.bf16.msra.mxu0 %v4036
    %5471 = vmatprep.subr.bf16.mxu0 %v4055
    %5472 = vmatpush1.bf16.msra.mxu0 %v4054
    %5473 = vmatprep.subr.bf16.mxu0 %v4073
    %5474 = vmatpush1.bf16.msra.mxu0 %v4072
    %5475 = vmatprep.subr.bf16.mxu0 %v4091
    %5476 = vmatpush1.bf16.msra.mxu0 %v4090
    %5477 = vmatprep.subr.bf16.mxu0 %v4109
    %5478 = vmatpush1.bf16.msra.mxu0 %v4108
    %5479 = vmatprep.subr.bf16.mxu0 %v4127
    %5480 = vmatpush1.bf16.msra.mxu0 %v4126
    %5481 = vmatprep.subr.bf16.mxu0 %v4145
    %5482 = vmatpush1.bf16.msra.mxu0 %v4144
    %5483 = vmatprep.subr.bf16.mxu0 %v4163
    %5484 = vmatpush1.bf16.msra.mxu0 %v4162
    %5485 = vmatprep.subr.bf16.mxu0 %v4181
    %5486 = vmatpush1.bf16.msra.mxu0 %v4180
    %5487 = vmatprep.subr.bf16.mxu0 %v4199
    %5488 = vmatpush1.bf16.msra.mxu0 %v4198
    %5489 = vmatprep.subr.bf16.mxu0 %v4217
    %5490 = vmatpush1.bf16.msra.mxu0 %v4216
    %5491 = vmatprep.subr.bf16.mxu0 %v4235
    %5492 = vmatpush1.bf16.msra.mxu0 %v4234
    %5493 = vmatprep.subr.bf16.mxu0 %v4253
    %5494 = vmatpush1.bf16.msra.mxu0 %v4252
    %5495 = vmatprep.mubr.bf16.mxu0 %v139
    %5496 = vmatmul.mubr.bf16.gmra.mrb[0].mxu0 %v138
    %v5497 = vpop.f32.mrb[0].mxu0
    %v5498 = vadd.f32 %v5457, %v5497
    %v5499 = vpop.f32.mrb[0].mxu0
    %v5500 = vadd.f32 %v5459, %v5499
    %v5501 = vpop.f32.mrb[0].mxu0
    %v5502 = vpop.f32.mrb[0].mxu0
    %5503 = vdwg.mxu0
    %5504 = vmatprep.subr.bf16.mxu0 %v4271
    %5505 = vmatpush1.bf16.msra.mxu0 %v4270
    %5506 = vmatprep.subr.bf16.mxu0 %v4289
    %5507 = vmatpush1.bf16.msra.mxu0 %v4288
    %5508 = vmatprep.subr.bf16.mxu0 %v4307
    %5509 = vmatpush1.bf16.msra.mxu0 %v4306
    %5510 = vmatprep.subr.bf16.mxu0 %v4325
    %5511 = vmatpush1.bf16.msra.mxu0 %v4324
    %5512 = vmatprep.subr.bf16.mxu0 %v4343
    %5513 = vmatpush1.bf16.msra.mxu0 %v4342
    %5514 = vmatprep.subr.bf16.mxu0 %v4361
    %5515 = vmatpush1.bf16.msra.mxu0 %v4360
    %5516 = vmatprep.subr.bf16.mxu0 %v4379
    %5517 = vmatpush1.bf16.msra.mxu0 %v4378
    %5518 = vmatprep.subr.bf16.mxu0 %v4397
    %5519 = vmatpush1.bf16.msra.mxu0 %v4396
    %5520 = vmatprep.subr.bf16.mxu0 %v4415
    %5521 = vmatpush1.bf16.msra.mxu0 %v4414
    %5522 = vmatprep.subr.bf16.mxu0 %v4433
    %5523 = vmatpush1.bf16.msra.mxu0 %v4432
    %5524 = vmatprep.subr.bf16.mxu0 %v4451
    %5525 = vmatpush1.bf16.msra.mxu0 %v4450
    %5526 = vmatprep.subr.bf16.mxu0 %v4469
    %5527 = vmatpush1.bf16.msra.mxu0 %v4468
    %5528 = vmatprep.subr.bf16.mxu0 %v4487
    %5529 = vmatpush1.bf16.msra.mxu0 %v4486
    %5530 = vmatprep.subr.bf16.mxu0 %v4505
    %5531 = vmatpush1.bf16.msra.mxu0 %v4504
    %5532 = vmatprep.subr.bf16.mxu0 %v4523
    %5533 = vmatpush1.bf16.msra.mxu0 %v4522
    %5534 = vmatprep.subr.bf16.mxu0 %v4541
    %5535 = vmatpush1.bf16.msra.mxu0 %v4540
    %5536 = vmatprep.mubr.bf16.mxu0 %v141
    %5537 = vmatmul.mubr.bf16.gmra.mrb[0].mxu0 %v140
    %v5538 = vpop.f32.mrb[0].mxu0
    %v5539 = vadd.f32 %v5498, %v5538
    %v5540 = vpop.f32.mrb[0].mxu0
    %v5541 = vadd.f32 %v5500, %v5540
    %v5542 = vpop.f32.mrb[0].mxu0
    %v5543 = vpop.f32.mrb[0].mxu0
    %5544 = vdwg.mxu0
    %5545 = vmatprep.subr.bf16.mxu0 %v3697
    %5546 = vmatpush1.bf16.msra.mxu0 %v3696
    %5547 = vmatprep.subr.bf16.mxu0 %v3715
    %5548 = vmatpush1.bf16.msra.mxu0 %v3714
    %5549 = vmatprep.subr.bf16.mxu0 %v3733
    %5550 = vmatpush1.bf16.msra.mxu0 %v3732
    %5551 = vmatprep.subr.bf16.mxu0 %v3751
    %5552 = vmatpush1.bf16.msra.mxu0 %v3750
    %5553 = vmatprep.subr.bf16.mxu0 %v3769
    %5554 = vmatpush1.bf16.msra.mxu0 %v3768
    %5555 = vmatprep.subr.bf16.mxu0 %v3787
    %5556 = vmatpush1.bf16.msra.mxu0 %v3786
    %5557 = vmatprep.subr.bf16.mxu0 %v3805
    %5558 = vmatpush1.bf16.msra.mxu0 %v3804
    %5559 = vmatprep.subr.bf16.mxu0 %v3823
    %5560 = vmatpush1.bf16.msra.mxu0 %v3822
    %5561 = vmatprep.subr.bf16.mxu0 %v3841
    %5562 = vmatpush1.bf16.msra.mxu0 %v3840
    %5563 = vmatprep.subr.bf16.mxu0 %v3859
    %5564 = vmatpush1.bf16.msra.mxu0 %v3858
    %5565 = vmatprep.subr.bf16.mxu0 %v3877
    %5566 = vmatpush1.bf16.msra.mxu0 %v3876
    %5567 = vmatprep.subr.bf16.mxu0 %v3895
    %5568 = vmatpush1.bf16.msra.mxu0 %v3894
    %5569 = vmatprep.subr.bf16.mxu0 %v3913
    %5570 = vmatpush1.bf16.msra.mxu0 %v3912
    %5571 = vmatprep.subr.bf16.mxu0 %v3931
    %5572 = vmatpush1.bf16.msra.mxu0 %v3930
    %5573 = vmatprep.subr.bf16.mxu0 %v3949
    %5574 = vmatpush1.bf16.msra.mxu0 %v3948
    %5575 = vmatprep.subr.bf16.mxu0 %v3967
    %5576 = vmatpush1.bf16.msra.mxu0 %v3966
    %5577 = vmatprep.mubr.bf16.mxu0 %v137
    %5578 = vmatmul.mubr.bf16.gmra.mrb[0].mxu0 %v136
    %v5579 = vpop.f32.mrb[0].mxu0
    %v5580 = vadd.f32 %v1023, %v5579
    %v5581 = vpop.f32.mrb[0].mxu0
    %v5582 = vadd.f32 %v1027, %v5581
    %v5583 = vpop.f32.mrb[0].mxu0
    %v5584 = vpop.f32.mrb[0].mxu0
    %5585 = vdwg.mxu0
    %5586 = vmatprep.subr.bf16.mxu0 %v3985
    %5587 = vmatpush1.bf16.msra.mxu0 %v3984
    %5588 = vmatprep.subr.bf16.mxu0 %v4003
    %5589 = vmatpush1.bf16.msra.mxu0 %v4002
    %5590 = vmatprep.subr.bf16.mxu0 %v4021
    %5591 = vmatpush1.bf16.msra.mxu0 %v4020
    %5592 = vmatprep.subr.bf16.mxu0 %v4039
    %5593 = vmatpush1.bf16.msra.mxu0 %v4038
    %5594 = vmatprep.subr.bf16.mxu0 %v4057
    %5595 = vmatpush1.bf16.msra.mxu0 %v4056
    %5596 = vmatprep.subr.bf16.mxu0 %v4075
    %5597 = vmatpush1.bf16.msra.mxu0 %v4074
    %5598 = vmatprep.subr.bf16.mxu0 %v4093
    %5599 = vmatpush1.bf16.msra.mxu0 %v4092
    %5600 = vmatprep.subr.bf16.mxu0 %v4111
    %5601 = vmatpush1.bf16.msra.mxu0 %v4110
    %5602 = vmatprep.subr.bf16.mxu0 %v4129
    %5603 = vmatpush1.bf16.msra.mxu0 %v4128
    %5604 = vmatprep.subr.bf16.mxu0 %v4147
    %5605 = vmatpush1.bf16.msra.mxu0 %v4146
    %5606 = vmatprep.subr.bf16.mxu0 %v4165
    %5607 = vmatpush1.bf16.msra.mxu0 %v4164
    %5608 = vmatprep.subr.bf16.mxu0 %v4183
    %5609 = vmatpush1.bf16.msra.mxu0 %v4182
    %5610 = vmatprep.subr.bf16.mxu0 %v4201
    %5611 = vmatpush1.bf16.msra.mxu0 %v4200
    %5612 = vmatprep.subr.bf16.mxu0 %v4219
    %5613 = vmatpush1.bf16.msra.mxu0 %v4218
    %5614 = vmatprep.subr.bf16.mxu0 %v4237
    %5615 = vmatpush1.bf16.msra.mxu0 %v4236
    %5616 = vmatprep.subr.bf16.mxu0 %v4255
    %5617 = vmatpush1.bf16.msra.mxu0 %v4254
    %5618 = vmatprep.mubr.bf16.mxu0 %v139
    %5619 = vmatmul.mubr.bf16.gmra.mrb[0].mxu0 %v138
    %v5620 = vpop.f32.mrb[0].mxu0
    %v5621 = vadd.f32 %v5580, %v5620
    %v5622 = vpop.f32.mrb[0].mxu0
    %v5623 = vadd.f32 %v5582, %v5622
    %v5624 = vpop.f32.mrb[0].mxu0
    %v5625 = vpop.f32.mrb[0].mxu0
    %5626 = vdwg.mxu0
    %5627 = vmatprep.subr.bf16.mxu0 %v4273
    %5628 = vmatpush1.bf16.msra.mxu0 %v4272
    %5629 = vmatprep.subr.bf16.mxu0 %v4291
    %5630 = vmatpush1.bf16.msra.mxu0 %v4290
    %5631 = vmatprep.subr.bf16.mxu0 %v4309
    %5632 = vmatpush1.bf16.msra.mxu0 %v4308
    %5633 = vmatprep.subr.bf16.mxu0 %v4327
    %5634 = vmatpush1.bf16.msra.mxu0 %v4326
    %5635 = vmatprep.subr.bf16.mxu0 %v4345
    %5636 = vmatpush1.bf16.msra.mxu0 %v4344
    %5637 = vmatprep.subr.bf16.mxu0 %v4363
    %5638 = vmatpush1.bf16.msra.mxu0 %v4362
    %5639 = vmatprep.subr.bf16.mxu0 %v4381
    %5640 = vmatpush1.bf16.msra.mxu0 %v4380
    %5641 = vmatprep.subr.bf16.mxu0 %v4399
    %5642 = vmatpush1.bf16.msra.mxu0 %v4398
    %5643 = vmatprep.subr.bf16.mxu0 %v4417
    %5644 = vmatpush1.bf16.msra.mxu0 %v4416
    %5645 = vmatprep.subr.bf16.mxu0 %v4435
    %5646 = vmatpush1.bf16.msra.mxu0 %v4434
    %5647 = vmatprep.subr.bf16.mxu0 %v4453
    %5648 = vmatpush1.bf16.msra.mxu0 %v4452
    %5649 = vmatprep.subr.bf16.mxu0 %v4471
    %5650 = vmatpush1.bf16.msra.mxu0 %v4470
    %5651 = vmatprep.subr.bf16.mxu0 %v4489
    %5652 = vmatpush1.bf16.msra.mxu0 %v4488
    %5653 = vmatprep.subr.bf16.mxu0 %v4507
    %5654 = vmatpush1.bf16.msra.mxu0 %v4506
    %5655 = vmatprep.subr.bf16.mxu0 %v4525
    %5656 = vmatpush1.bf16.msra.mxu0 %v4524
    %5657 = vmatprep.subr.bf16.mxu0 %v4543
    %5658 = vmatpush1.bf16.msra.mxu0 %v4542
    %5659 = vmatprep.mubr.bf16.mxu0 %v141
    %5660 = vmatmul.mubr.bf16.gmra.mrb[0].mxu0 %v140
    %v5661 = vpop.f32.mrb[0].mxu0
    %v5662 = vadd.f32 %v5621, %v5661
    %v5663 = vpop.f32.mrb[0].mxu0
    %v5664 = vadd.f32 %v5623, %v5663
    %v5665 = vpop.f32.mrb[0].mxu0
    %v5666 = vpop.f32.mrb[0].mxu0
    %5667 = vdwg.mxu0
    %5668 = vmatprep.subr.bf16.mxu0 %v3699
    %5669 = vmatpush1.bf16.msra.mxu0 %v3698
    %5670 = vmatprep.subr.bf16.mxu0 %v3717
    %5671 = vmatpush1.bf16.msra.mxu0 %v3716
    %5672 = vmatprep.subr.bf16.mxu0 %v3735
    %5673 = vmatpush1.bf16.msra.mxu0 %v3734
    %5674 = vmatprep.subr.bf16.mxu0 %v3753
    %5675 = vmatpush1.bf16.msra.mxu0 %v3752
    %5676 = vmatprep.subr.bf16.mxu0 %v3771
    %5677 = vmatpush1.bf16.msra.mxu0 %v3770
    %5678 = vmatprep.subr.bf16.mxu0 %v3789
    %5679 = vmatpush1.bf16.msra.mxu0 %v3788
    %5680 = vmatprep.subr.bf16.mxu0 %v3807
    %5681 = vmatpush1.bf16.msra.mxu0 %v3806
    %5682 = vmatprep.subr.bf16.mxu0 %v3825
    %5683 = vmatpush1.bf16.msra.mxu0 %v3824
    %5684 = vmatprep.subr.bf16.mxu0 %v3843
    %5685 = vmatpush1.bf16.msra.mxu0 %v3842
    %5686 = vmatprep.subr.bf16.mxu0 %v3861
    %5687 = vmatpush1.bf16.msra.mxu0 %v3860
    %5688 = vmatprep.subr.bf16.mxu0 %v3879
    %5689 = vmatpush1.bf16.msra.mxu0 %v3878
    %5690 = vmatprep.subr.bf16.mxu0 %v3897
    %5691 = vmatpush1.bf16.msra.mxu0 %v3896
    %5692 = vmatprep.subr.bf16.mxu0 %v3915
    %5693 = vmatpush1.bf16.msra.mxu0 %v3914
    %5694 = vmatprep.subr.bf16.mxu0 %v3933
    %5695 = vmatpush1.bf16.msra.mxu0 %v3932
    %5696 = vmatprep.subr.bf16.mxu0 %v3951
    %5697 = vmatpush1.bf16.msra.mxu0 %v3950
    %5698 = vmatprep.subr.bf16.mxu0 %v3969
    %5699 = vmatpush1.bf16.msra.mxu0 %v3968
    %5700 = vmatprep.mubr.bf16.mxu0 %v137
    %5701 = vmatmul.mubr.bf16.gmra.mrb[0].mxu0 %v136
    %v5702 = vpop.f32.mrb[0].mxu0
    %v5703 = vadd.f32 %v1031, %v5702
    %v5704 = vpop.f32.mrb[0].mxu0
    %v5705 = vadd.f32 %v1035, %v5704
    %v5706 = vpop.f32.mrb[0].mxu0
    %v5707 = vpop.f32.mrb[0].mxu0
    %5708 = vdwg.mxu0
    %5709 = vmatprep.subr.bf16.mxu0 %v3987
    %5710 = vmatpush1.bf16.msra.mxu0 %v3986
    %5711 = vmatprep.subr.bf16.mxu0 %v4005
    %5712 = vmatpush1.bf16.msra.mxu0 %v4004
    %5713 = vmatprep.subr.bf16.mxu0 %v4023
    %5714 = vmatpush1.bf16.msra.mxu0 %v4022
    %5715 = vmatprep.subr.bf16.mxu0 %v4041
    %5716 = vmatpush1.bf16.msra.mxu0 %v4040
    %5717 = vmatprep.subr.bf16.mxu0 %v4059
    %5718 = vmatpush1.bf16.msra.mxu0 %v4058
    %5719 = vmatprep.subr.bf16.mxu0 %v4077
    %5720 = vmatpush1.bf16.msra.mxu0 %v4076
    %5721 = vmatprep.subr.bf16.mxu0 %v4095
    %5722 = vmatpush1.bf16.msra.mxu0 %v4094
    %5723 = vmatprep.subr.bf16.mxu0 %v4113
    %5724 = vmatpush1.bf16.msra.mxu0 %v4112
    %5725 = vmatprep.subr.bf16.mxu0 %v4131
    %5726 = vmatpush1.bf16.msra.mxu0 %v4130
    %5727 = vmatprep.subr.bf16.mxu0 %v4149
    %5728 = vmatpush1.bf16.msra.mxu0 %v4148
    %5729 = vmatprep.subr.bf16.mxu0 %v4167
    %5730 = vmatpush1.bf16.msra.mxu0 %v4166
    %5731 = vmatprep.subr.bf16.mxu0 %v4185
    %5732 = vmatpush1.bf16.msra.mxu0 %v4184
    %5733 = vmatprep.subr.bf16.mxu0 %v4203
    %5734 = vmatpush1.bf16.msra.mxu0 %v4202
    %5735 = vmatprep.subr.bf16.mxu0 %v4221
    %5736 = vmatpush1.bf16.msra.mxu0 %v4220
    %5737 = vmatprep.subr.bf16.mxu0 %v4239
    %5738 = vmatpush1.bf16.msra.mxu0 %v4238
    %5739 = vmatprep.subr.bf16.mxu0 %v4257
    %5740 = vmatpush1.bf16.msra.mxu0 %v4256
    %5741 = vmatprep.mubr.bf16.mxu0 %v139
    %5742 = vmatmul.mubr.bf16.gmra.mrb[0].mxu0 %v138
    %v5743 = vpop.f32.mrb[0].mxu0
    %v5744 = vadd.f32 %v5703, %v5743
    %v5745 = vpop.f32.mrb[0].mxu0
    %v5746 = vadd.f32 %v5705, %v5745
    %v5747 = vpop.f32.mrb[0].mxu0
    %v5748 = vpop.f32.mrb[0].mxu0
    %5749 = vdwg.mxu0
    %5750 = vmatprep.subr.bf16.mxu0 %v4275
    %5751 = vmatpush1.bf16.msra.mxu0 %v4274
    %5752 = vmatprep.subr.bf16.mxu0 %v4293
    %5753 = vmatpush1.bf16.msra.mxu0 %v4292
    %5754 = vmatprep.subr.bf16.mxu0 %v4311
    %5755 = vmatpush1.bf16.msra.mxu0 %v4310
    %5756 = vmatprep.subr.bf16.mxu0 %v4329
    %5757 = vmatpush1.bf16.msra.mxu0 %v4328
    %5758 = vmatprep.subr.bf16.mxu0 %v4347
    %5759 = vmatpush1.bf16.msra.mxu0 %v4346
    %5760 = vmatprep.subr.bf16.mxu0 %v4365
    %5761 = vmatpush1.bf16.msra.mxu0 %v4364
    %5762 = vmatprep.subr.bf16.mxu0 %v4383
    %5763 = vmatpush1.bf16.msra.mxu0 %v4382
    %5764 = vmatprep.subr.bf16.mxu0 %v4401
    %5765 = vmatpush1.bf16.msra.mxu0 %v4400
    %5766 = vmatprep.subr.bf16.mxu0 %v4419
    %5767 = vmatpush1.bf16.msra.mxu0 %v4418
    %5768 = vmatprep.subr.bf16.mxu0 %v4437
    %5769 = vmatpush1.bf16.msra.mxu0 %v4436
    %5770 = vmatprep.subr.bf16.mxu0 %v4455
    %5771 = vmatpush1.bf16.msra.mxu0 %v4454
    %5772 = vmatprep.subr.bf16.mxu0 %v4473
    %5773 = vmatpush1.bf16.msra.mxu0 %v4472
    %5774 = vmatprep.subr.bf16.mxu0 %v4491
    %5775 = vmatpush1.bf16.msra.mxu0 %v4490
    %5776 = vmatprep.subr.bf16.mxu0 %v4509
    %5777 = vmatpush1.bf16.msra.mxu0 %v4508
    %5778 = vmatprep.subr.bf16.mxu0 %v4527
    %5779 = vmatpush1.bf16.msra.mxu0 %v4526
    %5780 = vmatprep.subr.bf16.mxu0 %v4545
    %5781 = vmatpush1.bf16.msra.mxu0 %v4544
    %5782 = vmatprep.mubr.bf16.mxu0 %v141
    %5783 = vmatmul.mubr.bf16.gmra.mrb[0].mxu0 %v140
    %v5784 = vpop.f32.mrb[0].mxu0
    %v5785 = vadd.f32 %v5744, %v5784
    %v5786 = vpop.f32.mrb[0].mxu0
    %v5787 = vadd.f32 %v5746, %v5786
    %v5788 = vpop.f32.mrb[0].mxu0
    %v5789 = vpop.f32.mrb[0].mxu0
    %5790 = vdwg.mxu0
    %5791 = vmatprep.subr.bf16.mxu0 %v3701
    %5792 = vmatpush1.bf16.msra.mxu0 %v3700
    %5793 = vmatprep.subr.bf16.mxu0 %v3719
    %5794 = vmatpush1.bf16.msra.mxu0 %v3718
    %5795 = vmatprep.subr.bf16.mxu0 %v3737
    %5796 = vmatpush1.bf16.msra.mxu0 %v3736
    %5797 = vmatprep.subr.bf16.mxu0 %v3755
    %5798 = vmatpush1.bf16.msra.mxu0 %v3754
    %5799 = vmatprep.subr.bf16.mxu0 %v3773
    %5800 = vmatpush1.bf16.msra.mxu0 %v3772
    %5801 = vmatprep.subr.bf16.mxu0 %v3791
    %5802 = vmatpush1.bf16.msra.mxu0 %v3790
    %5803 = vmatprep.subr.bf16.mxu0 %v3809
    %5804 = vmatpush1.bf16.msra.mxu0 %v3808
    %5805 = vmatprep.subr.bf16.mxu0 %v3827
    %5806 = vmatpush1.bf16.msra.mxu0 %v3826
    %5807 = vmatprep.subr.bf16.mxu0 %v3845
    %5808 = vmatpush1.bf16.msra.mxu0 %v3844
    %5809 = vmatprep.subr.bf16.mxu0 %v3863
    %5810 = vmatpush1.bf16.msra.mxu0 %v3862
    %5811 = vmatprep.subr.bf16.mxu0 %v3881
    %5812 = vmatpush1.bf16.msra.mxu0 %v3880
    %5813 = vmatprep.subr.bf16.mxu0 %v3899
    %5814 = vmatpush1.bf16.msra.mxu0 %v3898
    %5815 = vmatprep.subr.bf16.mxu0 %v3917
    %5816 = vmatpush1.bf16.msra.mxu0 %v3916
    %5817 = vmatprep.subr.bf16.mxu0 %v3935
    %5818 = vmatpush1.bf16.msra.mxu0 %v3934
    %5819 = vmatprep.subr.bf16.mxu0 %v3953
    %5820 = vmatpush1.bf16.msra.mxu0 %v3952
    %5821 = vmatprep.subr.bf16.mxu0 %v3971
    %5822 = vmatpush1.bf16.msra.mxu0 %v3970
    %5823 = vmatprep.mubr.bf16.mxu0 %v137
    %5824 = vmatmul.mubr.bf16.gmra.mrb[0].mxu0 %v136
    %v5825 = vpop.f32.mrb[0].mxu0
    %v5826 = vadd.f32 %v1039, %v5825
    %v5827 = vpop.f32.mrb[0].mxu0
    %v5828 = vadd.f32 %v1043, %v5827
    %v5829 = vpop.f32.mrb[0].mxu0
    %v5830 = vpop.f32.mrb[0].mxu0
    %5831 = vdwg.mxu0
    %5832 = vmatprep.subr.bf16.mxu0 %v3989
    %5833 = vmatpush1.bf16.msra.mxu0 %v3988
    %5834 = vmatprep.subr.bf16.mxu0 %v4007
    %5835 = vmatpush1.bf16.msra.mxu0 %v4006
    %5836 = vmatprep.subr.bf16.mxu0 %v4025
    %5837 = vmatpush1.bf16.msra.mxu0 %v4024
    %5838 = vmatprep.subr.bf16.mxu0 %v4043
    %5839 = vmatpush1.bf16.msra.mxu0 %v4042
    %5840 = vmatprep.subr.bf16.mxu0 %v4061
    %5841 = vmatpush1.bf16.msra.mxu0 %v4060
    %5842 = vmatprep.subr.bf16.mxu0 %v4079
    %5843 = vmatpush1.bf16.msra.mxu0 %v4078
    %5844 = vmatprep.subr.bf16.mxu0 %v4097
    %5845 = vmatpush1.bf16.msra.mxu0 %v4096
    %5846 = vmatprep.subr.bf16.mxu0 %v4115
    %5847 = vmatpush1.bf16.msra.mxu0 %v4114
    %5848 = vmatprep.subr.bf16.mxu0 %v4133
    %5849 = vmatpush1.bf16.msra.mxu0 %v4132
    %5850 = vmatprep.subr.bf16.mxu0 %v4151
    %5851 = vmatpush1.bf16.msra.mxu0 %v4150
    %5852 = vmatprep.subr.bf16.mxu0 %v4169
    %5853 = vmatpush1.bf16.msra.mxu0 %v4168
    %5854 = vmatprep.subr.bf16.mxu0 %v4187
    %5855 = vmatpush1.bf16.msra.mxu0 %v4186
    %5856 = vmatprep.subr.bf16.mxu0 %v4205
    %5857 = vmatpush1.bf16.msra.mxu0 %v4204
    %5858 = vmatprep.subr.bf16.mxu0 %v4223
    %5859 = vmatpush1.bf16.msra.mxu0 %v4222
    %5860 = vmatprep.subr.bf16.mxu0 %v4241
    %5861 = vmatpush1.bf16.msra.mxu0 %v4240
    %5862 = vmatprep.subr.bf16.mxu0 %v4259
    %5863 = vmatpush1.bf16.msra.mxu0 %v4258
    %5864 = vmatprep.mubr.bf16.mxu0 %v139
    %5865 = vmatmul.mubr.bf16.gmra.mrb[0].mxu0 %v138
    %v5866 = vpop.f32.mrb[0].mxu0
    %v5867 = vadd.f32 %v5826, %v5866
    %v5868 = vpop.f32.mrb[0].mxu0
    %v5869 = vadd.f32 %v5828, %v5868
    %v5870 = vpop.f32.mrb[0].mxu0
    %v5871 = vpop.f32.mrb[0].mxu0
    %5872 = vdwg.mxu0
    %5873 = vmatprep.subr.bf16.mxu0 %v4277
    %5874 = vmatpush1.bf16.msra.mxu0 %v4276
    %5875 = vmatprep.subr.bf16.mxu0 %v4295
    %5876 = vmatpush1.bf16.msra.mxu0 %v4294
    %5877 = vmatprep.subr.bf16.mxu0 %v4313
    %5878 = vmatpush1.bf16.msra.mxu0 %v4312
    %5879 = vmatprep.subr.bf16.mxu0 %v4331
    %5880 = vmatpush1.bf16.msra.mxu0 %v4330
    %5881 = vmatprep.subr.bf16.mxu0 %v4349
    %5882 = vmatpush1.bf16.msra.mxu0 %v4348
    %5883 = vmatprep.subr.bf16.mxu0 %v4367
    %5884 = vmatpush1.bf16.msra.mxu0 %v4366
    %5885 = vmatprep.subr.bf16.mxu0 %v4385
    %5886 = vmatpush1.bf16.msra.mxu0 %v4384
    %5887 = vmatprep.subr.bf16.mxu0 %v4403
    %5888 = vmatpush1.bf16.msra.mxu0 %v4402
    %5889 = vmatprep.subr.bf16.mxu0 %v4421
    %5890 = vmatpush1.bf16.msra.mxu0 %v4420
    %5891 = vmatprep.subr.bf16.mxu0 %v4439
    %5892 = vmatpush1.bf16.msra.mxu0 %v4438
    %5893 = vmatprep.subr.bf16.mxu0 %v4457
    %5894 = vmatpush1.bf16.msra.mxu0 %v4456
    %5895 = vmatprep.subr.bf16.mxu0 %v4475
    %5896 = vmatpush1.bf16.msra.mxu0 %v4474
    %5897 = vmatprep.subr.bf16.mxu0 %v4493
    %5898 = vmatpush1.bf16.msra.mxu0 %v4492
    %5899 = vmatprep.subr.bf16.mxu0 %v4511
    %5900 = vmatpush1.bf16.msra.mxu0 %v4510
    %5901 = vmatprep.subr.bf16.mxu0 %v4529
    %5902 = vmatpush1.bf16.msra.mxu0 %v4528
    %5903 = vmatprep.subr.bf16.mxu0 %v4547
    %5904 = vmatpush1.bf16.msra.mxu0 %v4546
    %5905 = vmatprep.mubr.bf16.mxu0 %v141
    %5906 = vmatmul.mubr.bf16.gmra.mrb[0].mxu0 %v140
    %v5907 = vpop.f32.mrb[0].mxu0
    %v5908 = vadd.f32 %v5867, %v5907
    %v5909 = vpop.f32.mrb[0].mxu0
    %v5910 = vadd.f32 %v5869, %v5909
    %v5911 = vpop.f32.mrb[0].mxu0
    %v5912 = vpop.f32.mrb[0].mxu0
    %5913 = vdwg.mxu0
    %5914 = vmatprep.subr.bf16.mxu0 %v3703
    %5915 = vmatpush1.bf16.msra.mxu0 %v3702
    %5916 = vmatprep.subr.bf16.mxu0 %v3721
    %5917 = vmatpush1.bf16.msra.mxu0 %v3720
    %5918 = vmatprep.subr.bf16.mxu0 %v3739
    %5919 = vmatpush1.bf16.msra.mxu0 %v3738
    %5920 = vmatprep.subr.bf16.mxu0 %v3757
    %5921 = vmatpush1.bf16.msra.mxu0 %v3756
    %5922 = vmatprep.subr.bf16.mxu0 %v3775
    %5923 = vmatpush1.bf16.msra.mxu0 %v3774
    %5924 = vmatprep.subr.bf16.mxu0 %v3793
    %5925 = vmatpush1.bf16.msra.mxu0 %v3792
    %5926 = vmatprep.subr.bf16.mxu0 %v3811
    %5927 = vmatpush1.bf16.msra.mxu0 %v3810
    %5928 = vmatprep.subr.bf16.mxu0 %v3829
    %5929 = vmatpush1.bf16.msra.mxu0 %v3828
    %5930 = vmatprep.subr.bf16.mxu0 %v3847
    %5931 = vmatpush1.bf16.msra.mxu0 %v3846
    %5932 = vmatprep.subr.bf16.mxu0 %v3865
    %5933 = vmatpush1.bf16.msra.mxu0 %v3864
    %5934 = vmatprep.subr.bf16.mxu0 %v3883
    %5935 = vmatpush1.bf16.msra.mxu0 %v3882
    %5936 = vmatprep.subr.bf16.mxu0 %v3901
    %5937 = vmatpush1.bf16.msra.mxu0 %v3900
    %5938 = vmatprep.subr.bf16.mxu0 %v3919
    %5939 = vmatpush1.bf16.msra.mxu0 %v3918
    %5940 = vmatprep.subr.bf16.mxu0 %v3937
    %5941 = vmatpush1.bf16.msra.mxu0 %v3936
    %5942 = vmatprep.subr.bf16.mxu0 %v3955
    %5943 = vmatpush1.bf16.msra.mxu0 %v3954
    %5944 = vmatprep.subr.bf16.mxu0 %v3973
    %5945 = vmatpush1.bf16.msra.mxu0 %v3972
    %5946 = vmatprep.mubr.bf16.mxu0 %v137
    %5947 = vmatmul.mubr.bf16.gmra.mrb[0].mxu0 %v136
    %v5948 = vpop.f32.mrb[0].mxu0
    %v5949 = vadd.f32 %v1047, %v5948
    %v5950 = vpop.f32.mrb[0].mxu0
    %v5951 = vadd.f32 %v1051, %v5950
    %v5952 = vpop.f32.mrb[0].mxu0
    %v5953 = vpop.f32.mrb[0].mxu0
    %5954 = vdwg.mxu0
    %5955 = vmatprep.subr.bf16.mxu0 %v3991
    %5956 = vmatpush1.bf16.msra.mxu0 %v3990
    %5957 = vmatprep.subr.bf16.mxu0 %v4009
    %5958 = vmatpush1.bf16.msra.mxu0 %v4008
    %5959 = vmatprep.subr.bf16.mxu0 %v4027
    %5960 = vmatpush1.bf16.msra.mxu0 %v4026
    %5961 = vmatprep.subr.bf16.mxu0 %v4045
    %5962 = vmatpush1.bf16.msra.mxu0 %v4044
    %5963 = vmatprep.subr.bf16.mxu0 %v4063
    %5964 = vmatpush1.bf16.msra.mxu0 %v4062
    %5965 = vmatprep.subr.bf16.mxu0 %v4081
    %5966 = vmatpush1.bf16.msra.mxu0 %v4080
    %5967 = vmatprep.subr.bf16.mxu0 %v4099
    %5968 = vmatpush1.bf16.msra.mxu0 %v4098
    %5969 = vmatprep.subr.bf16.mxu0 %v4117
    %5970 = vmatpush1.bf16.msra.mxu0 %v4116
    %5971 = vmatprep.subr.bf16.mxu0 %v4135
    %5972 = vmatpush1.bf16.msra.mxu0 %v4134
    %5973 = vmatprep.subr.bf16.mxu0 %v4153
    %5974 = vmatpush1.bf16.msra.mxu0 %v4152
    %5975 = vmatprep.subr.bf16.mxu0 %v4171
    %5976 = vmatpush1.bf16.msra.mxu0 %v4170
    %5977 = vmatprep.subr.bf16.mxu0 %v4189
    %5978 = vmatpush1.bf16.msra.mxu0 %v4188
    %5979 = vmatprep.subr.bf16.mxu0 %v4207
    %5980 = vmatpush1.bf16.msra.mxu0 %v4206
    %5981 = vmatprep.subr.bf16.mxu0 %v4225
    %5982 = vmatpush1.bf16.msra.mxu0 %v4224
    %5983 = vmatprep.subr.bf16.mxu0 %v4243
    %5984 = vmatpush1.bf16.msra.mxu0 %v4242
    %5985 = vmatprep.subr.bf16.mxu0 %v4261
    %5986 = vmatpush1.bf16.msra.mxu0 %v4260
    %5987 = vmatprep.mubr.bf16.mxu0 %v139
    %5988 = vmatmul.mubr.bf16.gmra.mrb[0].mxu0 %v138
    %v5989 = vpop.f32.mrb[0].mxu0
    %v5990 = vadd.f32 %v5949, %v5989
    %v5991 = vpop.f32.mrb[0].mxu0
    %v5992 = vadd.f32 %v5951, %v5991
    %v5993 = vpop.f32.mrb[0].mxu0
    %v5994 = vpop.f32.mrb[0].mxu0
    %5995 = vdwg.mxu0
    %5996 = vmatprep.subr.bf16.mxu0 %v4279
    %5997 = vmatpush1.bf16.msra.mxu0 %v4278
    %5998 = vmatprep.subr.bf16.mxu0 %v4297
    %5999 = vmatpush1.bf16.msra.mxu0 %v4296
    %6000 = vmatprep.subr.bf16.mxu0 %v4315
    %6001 = vmatpush1.bf16.msra.mxu0 %v4314
    %6002 = vmatprep.subr.bf16.mxu0 %v4333
    %6003 = vmatpush1.bf16.msra.mxu0 %v4332
    %6004 = vmatprep.subr.bf16.mxu0 %v4351
    %6005 = vmatpush1.bf16.msra.mxu0 %v4350
    %6006 = vmatprep.subr.bf16.mxu0 %v4369
    %6007 = vmatpush1.bf16.msra.mxu0 %v4368
    %6008 = vmatprep.subr.bf16.mxu0 %v4387
    %6009 = vmatpush1.bf16.msra.mxu0 %v4386
    %6010 = vmatprep.subr.bf16.mxu0 %v4405
    %6011 = vmatpush1.bf16.msra.mxu0 %v4404
    %6012 = vmatprep.subr.bf16.mxu0 %v4423
    %6013 = vmatpush1.bf16.msra.mxu0 %v4422
    %6014 = vmatprep.subr.bf16.mxu0 %v4441
    %6015 = vmatpush1.bf16.msra.mxu0 %v4440
    %6016 = vmatprep.subr.bf16.mxu0 %v4459
    %6017 = vmatpush1.bf16.msra.mxu0 %v4458
    %6018 = vmatprep.subr.bf16.mxu0 %v4477
    %6019 = vmatpush1.bf16.msra.mxu0 %v4476
    %6020 = vmatprep.subr.bf16.mxu0 %v4495
    %6021 = vmatpush1.bf16.msra.mxu0 %v4494
    %6022 = vmatprep.subr.bf16.mxu0 %v4513
    %6023 = vmatpush1.bf16.msra.mxu0 %v4512
    %6024 = vmatprep.subr.bf16.mxu0 %v4531
    %6025 = vmatpush1.bf16.msra.mxu0 %v4530
    %6026 = vmatprep.subr.bf16.mxu0 %v4549
    %6027 = vmatpush1.bf16.msra.mxu0 %v4548
    %6028 = vmatprep.mubr.bf16.mxu0 %v141
    %6029 = vmatmul.mubr.bf16.gmra.mrb[0].mxu0 %v140
    %v6030 = vpop.f32.mrb[0].mxu0
    %v6031 = vadd.f32 %v5990, %v6030
    %v6032 = vpop.f32.mrb[0].mxu0
    %v6033 = vadd.f32 %v5992, %v6032
    %v6034 = vpop.f32.mrb[0].mxu0
    %v6035 = vpop.f32.mrb[0].mxu0
    %6036 = vdwg.mxu0
    %6037 = vmatprep.subr.bf16.mxu0 %v3705
    %6038 = vmatpush1.bf16.msra.mxu0 %v3704
    %6039 = vmatprep.subr.bf16.mxu0 %v3723
    %6040 = vmatpush1.bf16.msra.mxu0 %v3722
    %6041 = vmatprep.subr.bf16.mxu0 %v3741
    %6042 = vmatpush1.bf16.msra.mxu0 %v3740
    %6043 = vmatprep.subr.bf16.mxu0 %v3759
    %6044 = vmatpush1.bf16.msra.mxu0 %v3758
    %6045 = vmatprep.subr.bf16.mxu0 %v3777
    %6046 = vmatpush1.bf16.msra.mxu0 %v3776
    %6047 = vmatprep.subr.bf16.mxu0 %v3795
    %6048 = vmatpush1.bf16.msra.mxu0 %v3794
    %6049 = vmatprep.subr.bf16.mxu0 %v3813
    %6050 = vmatpush1.bf16.msra.mxu0 %v3812
    %6051 = vmatprep.subr.bf16.mxu0 %v3831
    %6052 = vmatpush1.bf16.msra.mxu0 %v3830
    %6053 = vmatprep.subr.bf16.mxu0 %v3849
    %6054 = vmatpush1.bf16.msra.mxu0 %v3848
    %6055 = vmatprep.subr.bf16.mxu0 %v3867
    %6056 = vmatpush1.bf16.msra.mxu0 %v3866
    %6057 = vmatprep.subr.bf16.mxu0 %v3885
    %6058 = vmatpush1.bf16.msra.mxu0 %v3884
    %6059 = vmatprep.subr.bf16.mxu0 %v3903
    %6060 = vmatpush1.bf16.msra.mxu0 %v3902
    %6061 = vmatprep.subr.bf16.mxu0 %v3921
    %6062 = vmatpush1.bf16.msra.mxu0 %v3920
    %6063 = vmatprep.subr.bf16.mxu0 %v3939
    %6064 = vmatpush1.bf16.msra.mxu0 %v3938
    %6065 = vmatprep.subr.bf16.mxu0 %v3957
    %6066 = vmatpush1.bf16.msra.mxu0 %v3956
    %6067 = vmatprep.subr.bf16.mxu0 %v3975
    %6068 = vmatpush1.bf16.msra.mxu0 %v3974
    %6069 = vmatprep.mubr.bf16.mxu0 %v137
    %6070 = vmatmul.mubr.bf16.gmra.mrb[0].mxu0 %v136
    %v6071 = vpop.f32.mrb[0].mxu0
    %v6072 = vadd.f32 %v1055, %v6071
    %v6073 = vpop.f32.mrb[0].mxu0
    %v6074 = vadd.f32 %v1059, %v6073
    %v6075 = vpop.f32.mrb[0].mxu0
    %v6076 = vpop.f32.mrb[0].mxu0
    %6077 = vdwg.mxu0
    %6078 = vmatprep.subr.bf16.mxu0 %v3993
    %6079 = vmatpush1.bf16.msra.mxu0 %v3992
    %6080 = vmatprep.subr.bf16.mxu0 %v4011
    %6081 = vmatpush1.bf16.msra.mxu0 %v4010
    %6082 = vmatprep.subr.bf16.mxu0 %v4029
    %6083 = vmatpush1.bf16.msra.mxu0 %v4028
    %6084 = vmatprep.subr.bf16.mxu0 %v4047
    %6085 = vmatpush1.bf16.msra.mxu0 %v4046
    %6086 = vmatprep.subr.bf16.mxu0 %v4065
    %6087 = vmatpush1.bf16.msra.mxu0 %v4064
    %6088 = vmatprep.subr.bf16.mxu0 %v4083
    %6089 = vmatpush1.bf16.msra.mxu0 %v4082
    %6090 = vmatprep.subr.bf16.mxu0 %v4101
    %6091 = vmatpush1.bf16.msra.mxu0 %v4100
    %6092 = vmatprep.subr.bf16.mxu0 %v4119
    %6093 = vmatpush1.bf16.msra.mxu0 %v4118
    %6094 = vmatprep.subr.bf16.mxu0 %v4137
    %6095 = vmatpush1.bf16.msra.mxu0 %v4136
    %6096 = vmatprep.subr.bf16.mxu0 %v4155
    %6097 = vmatpush1.bf16.msra.mxu0 %v4154
    %6098 = vmatprep.subr.bf16.mxu0 %v4173
    %6099 = vmatpush1.bf16.msra.mxu0 %v4172
    %6100 = vmatprep.subr.bf16.mxu0 %v4191
    %6101 = vmatpush1.bf16.msra.mxu0 %v4190
    %6102 = vmatprep.subr.bf16.mxu0 %v4209
    %6103 = vmatpush1.bf16.msra.mxu0 %v4208
    %6104 = vmatprep.subr.bf16.mxu0 %v4227
    %6105 = vmatpush1.bf16.msra.mxu0 %v4226
    %6106 = vmatprep.subr.bf16.mxu0 %v4245
    %6107 = vmatpush1.bf16.msra.mxu0 %v4244
    %6108 = vmatprep.subr.bf16.mxu0 %v4263
    %6109 = vmatpush1.bf16.msra.mxu0 %v4262
    %6110 = vmatprep.mubr.bf16.mxu0 %v139
    %6111 = vmatmul.mubr.bf16.gmra.mrb[0].mxu0 %v138
    %v6112 = vpop.f32.mrb[0].mxu0
    %v6113 = vadd.f32 %v6072, %v6112
    %v6114 = vpop.f32.mrb[0].mxu0
    %v6115 = vadd.f32 %v6074, %v6114
    %v6116 = vpop.f32.mrb[0].mxu0
    %v6117 = vpop.f32.mrb[0].mxu0
    %6118 = vdwg.mxu0
    %6119 = vmatprep.subr.bf16.mxu0 %v4281
    %6120 = vmatpush1.bf16.msra.mxu0 %v4280
    %6121 = vmatprep.subr.bf16.mxu0 %v4299
    %6122 = vmatpush1.bf16.msra.mxu0 %v4298
    %6123 = vmatprep.subr.bf16.mxu0 %v4317
    %6124 = vmatpush1.bf16.msra.mxu0 %v4316
    %6125 = vmatprep.subr.bf16.mxu0 %v4335
    %6126 = vmatpush1.bf16.msra.mxu0 %v4334
    %6127 = vmatprep.subr.bf16.mxu0 %v4353
    %6128 = vmatpush1.bf16.msra.mxu0 %v4352
    %6129 = vmatprep.subr.bf16.mxu0 %v4371
    %6130 = vmatpush1.bf16.msra.mxu0 %v4370
    %6131 = vmatprep.subr.bf16.mxu0 %v4389
    %6132 = vmatpush1.bf16.msra.mxu0 %v4388
    %6133 = vmatprep.subr.bf16.mxu0 %v4407
    %6134 = vmatpush1.bf16.msra.mxu0 %v4406
    %6135 = vmatprep.subr.bf16.mxu0 %v4425
    %6136 = vmatpush1.bf16.msra.mxu0 %v4424
    %6137 = vmatprep.subr.bf16.mxu0 %v4443
    %6138 = vmatpush1.bf16.msra.mxu0 %v4442
    %6139 = vmatprep.subr.bf16.mxu0 %v4461
    %6140 = vmatpush1.bf16.msra.mxu0 %v4460
    %6141 = vmatprep.subr.bf16.mxu0 %v4479
    %6142 = vmatpush1.bf16.msra.mxu0 %v4478
    %6143 = vmatprep.subr.bf16.mxu0 %v4497
    %6144 = vmatpush1.bf16.msra.mxu0 %v4496
    %6145 = vmatprep.subr.bf16.mxu0 %v4515
    %6146 = vmatpush1.bf16.msra.mxu0 %v4514
    %6147 = vmatprep.subr.bf16.mxu0 %v4533
    %6148 = vmatpush1.bf16.msra.mxu0 %v4532
    %6149 = vmatprep.subr.bf16.mxu0 %v4551
    %6150 = vmatpush1.bf16.msra.mxu0 %v4550
    %6151 = vmatprep.mubr.bf16.mxu0 %v141
    %6152 = vmatmul.mubr.bf16.gmra.mrb[0].mxu0 %v140
    %v6153 = vpop.f32.mrb[0].mxu0
    %v6154 = vadd.f32 %v6113, %v6153
    %v6155 = vpop.f32.mrb[0].mxu0
    %v6156 = vadd.f32 %v6115, %v6155
    %v6157 = vpop.f32.mrb[0].mxu0
    %v6158 = vpop.f32.mrb[0].mxu0
    %6159 = vdwg.mxu0
    %6160 = vmatprep.subr.bf16.mxu0 %v3707
    %6161 = vmatpush1.bf16.msra.mxu0 %v3706
    %6162 = vmatprep.subr.bf16.mxu0 %v3725
    %6163 = vmatpush1.bf16.msra.mxu0 %v3724
    %6164 = vmatprep.subr.bf16.mxu0 %v3743
    %6165 = vmatpush1.bf16.msra.mxu0 %v3742
    %6166 = vmatprep.subr.bf16.mxu0 %v3761
    %6167 = vmatpush1.bf16.msra.mxu0 %v3760
    %6168 = vmatprep.subr.bf16.mxu0 %v3779
    %6169 = vmatpush1.bf16.msra.mxu0 %v3778
    %6170 = vmatprep.subr.bf16.mxu0 %v3797
    %6171 = vmatpush1.bf16.msra.mxu0 %v3796
    %6172 = vmatprep.subr.bf16.mxu0 %v3815
    %6173 = vmatpush1.bf16.msra.mxu0 %v3814
    %6174 = vmatprep.subr.bf16.mxu0 %v3833
    %6175 = vmatpush1.bf16.msra.mxu0 %v3832
    %6176 = vmatprep.subr.bf16.mxu0 %v3851
    %6177 = vmatpush1.bf16.msra.mxu0 %v3850
    %6178 = vmatprep.subr.bf16.mxu0 %v3869
    %6179 = vmatpush1.bf16.msra.mxu0 %v3868
    %6180 = vmatprep.subr.bf16.mxu0 %v3887
    %6181 = vmatpush1.bf16.msra.mxu0 %v3886
    %6182 = vmatprep.subr.bf16.mxu0 %v3905
    %6183 = vmatpush1.bf16.msra.mxu0 %v3904
    %6184 = vmatprep.subr.bf16.mxu0 %v3923
    %6185 = vmatpush1.bf16.msra.mxu0 %v3922
    %6186 = vmatprep.subr.bf16.mxu0 %v3941
    %6187 = vmatpush1.bf16.msra.mxu0 %v3940
    %6188 = vmatprep.subr.bf16.mxu0 %v3959
    %6189 = vmatpush1.bf16.msra.mxu0 %v3958
    %6190 = vmatprep.subr.bf16.mxu0 %v3977
    %6191 = vmatpush1.bf16.msra.mxu0 %v3976
    %6192 = vmatprep.mubr.bf16.mxu0 %v137
    %6193 = vmatmul.mubr.bf16.gmra.mrb[0].mxu0 %v136
    %v6194 = vpop.f32.mrb[0].mxu0
    %v6195 = vadd.f32 %v1063, %v6194
    %v6196 = vpop.f32.mrb[0].mxu0
    %v6197 = vadd.f32 %v1067, %v6196
    %v6198 = vpop.f32.mrb[0].mxu0
    %v6199 = vpop.f32.mrb[0].mxu0
    %6200 = vdwg.mxu0
    %6201 = vmatprep.subr.bf16.mxu0 %v3995
    %6202 = vmatpush1.bf16.msra.mxu0 %v3994
    %6203 = vmatprep.subr.bf16.mxu0 %v4013
    %6204 = vmatpush1.bf16.msra.mxu0 %v4012
    %6205 = vmatprep.subr.bf16.mxu0 %v4031
    %6206 = vmatpush1.bf16.msra.mxu0 %v4030
    %6207 = vmatprep.subr.bf16.mxu0 %v4049
    %6208 = vmatpush1.bf16.msra.mxu0 %v4048
    %6209 = vmatprep.subr.bf16.mxu0 %v4067
    %6210 = vmatpush1.bf16.msra.mxu0 %v4066
    %6211 = vmatprep.subr.bf16.mxu0 %v4085
    %6212 = vmatpush1.bf16.msra.mxu0 %v4084
    %6213 = vmatprep.subr.bf16.mxu0 %v4103
    %6214 = vmatpush1.bf16.msra.mxu0 %v4102
    %6215 = vmatprep.subr.bf16.mxu0 %v4121
    %6216 = vmatpush1.bf16.msra.mxu0 %v4120
    %6217 = vmatprep.subr.bf16.mxu0 %v4139
    %6218 = vmatpush1.bf16.msra.mxu0 %v4138
    %6219 = vmatprep.subr.bf16.mxu0 %v4157
    %6220 = vmatpush1.bf16.msra.mxu0 %v4156
    %6221 = vmatprep.subr.bf16.mxu0 %v4175
    %6222 = vmatpush1.bf16.msra.mxu0 %v4174
    %6223 = vmatprep.subr.bf16.mxu0 %v4193
    %6224 = vmatpush1.bf16.msra.mxu0 %v4192
    %6225 = vmatprep.subr.bf16.mxu0 %v4211
    %6226 = vmatpush1.bf16.msra.mxu0 %v4210
    %6227 = vmatprep.subr.bf16.mxu0 %v4229
    %6228 = vmatpush1.bf16.msra.mxu0 %v4228
    %6229 = vmatprep.subr.bf16.mxu0 %v4247
    %6230 = vmatpush1.bf16.msra.mxu0 %v4246
    %6231 = vmatprep.subr.bf16.mxu0 %v4265
    %6232 = vmatpush1.bf16.msra.mxu0 %v4264
    %6233 = vmatprep.mubr.bf16.mxu0 %v139
    %6234 = vmatmul.mubr.bf16.gmra.mrb[0].mxu0 %v138
    %v6235 = vpop.f32.mrb[0].mxu0
    %v6236 = vadd.f32 %v6195, %v6235
    %v6237 = vpop.f32.mrb[0].mxu0
    %v6238 = vadd.f32 %v6197, %v6237
    %v6239 = vpop.f32.mrb[0].mxu0
    %v6240 = vpop.f32.mrb[0].mxu0
    %6241 = vdwg.mxu0
    %6242 = vmatprep.subr.bf16.mxu0 %v4283
    %6243 = vmatpush1.bf16.msra.mxu0 %v4282
    %6244 = vmatprep.subr.bf16.mxu0 %v4301
    %6245 = vmatpush1.bf16.msra.mxu0 %v4300
    %6246 = vmatprep.subr.bf16.mxu0 %v4319
    %6247 = vmatpush1.bf16.msra.mxu0 %v4318
    %6248 = vmatprep.subr.bf16.mxu0 %v4337
    %6249 = vmatpush1.bf16.msra.mxu0 %v4336
    %6250 = vmatprep.subr.bf16.mxu0 %v4355
    %6251 = vmatpush1.bf16.msra.mxu0 %v4354
    %6252 = vmatprep.subr.bf16.mxu0 %v4373
    %6253 = vmatpush1.bf16.msra.mxu0 %v4372
    %6254 = vmatprep.subr.bf16.mxu0 %v4391
    %6255 = vmatpush1.bf16.msra.mxu0 %v4390
    %6256 = vmatprep.subr.bf16.mxu0 %v4409
    %6257 = vmatpush1.bf16.msra.mxu0 %v4408
    %6258 = vmatprep.subr.bf16.mxu0 %v4427
    %6259 = vmatpush1.bf16.msra.mxu0 %v4426
    %6260 = vmatprep.subr.bf16.mxu0 %v4445
    %6261 = vmatpush1.bf16.msra.mxu0 %v4444
    %6262 = vmatprep.subr.bf16.mxu0 %v4463
    %6263 = vmatpush1.bf16.msra.mxu0 %v4462
    %6264 = vmatprep.subr.bf16.mxu0 %v4481
    %6265 = vmatpush1.bf16.msra.mxu0 %v4480
    %6266 = vmatprep.subr.bf16.mxu0 %v4499
    %6267 = vmatpush1.bf16.msra.mxu0 %v4498
    %6268 = vmatprep.subr.bf16.mxu0 %v4517
    %6269 = vmatpush1.bf16.msra.mxu0 %v4516
    %6270 = vmatprep.subr.bf16.mxu0 %v4535
    %6271 = vmatpush1.bf16.msra.mxu0 %v4534
    %6272 = vmatprep.subr.bf16.mxu0 %v4553
    %6273 = vmatpush1.bf16.msra.mxu0 %v4552
    %6274 = vmatprep.mubr.bf16.mxu0 %v141
    %6275 = vmatmul.mubr.bf16.gmra.mrb[0].mxu0 %v140
    %v6276 = vpop.f32.mrb[0].mxu0
    %v6277 = vadd.f32 %v6236, %v6276
    %v6278 = vpop.f32.mrb[0].mxu0
    %v6279 = vadd.f32 %v6238, %v6278
    %v6280 = vpop.f32.mrb[0].mxu0
    %v6281 = vpop.f32.mrb[0].mxu0
    %6282 = vdwg.mxu0
    %6283 = vmatprep.subr.bf16.mxu0 %v3709
    %6284 = vmatpush1.bf16.msra.mxu0 %v3708
    %6285 = vmatprep.subr.bf16.mxu0 %v3727
    %6286 = vmatpush1.bf16.msra.mxu0 %v3726
    %6287 = vmatprep.subr.bf16.mxu0 %v3745
    %6288 = vmatpush1.bf16.msra.mxu0 %v3744
    %6289 = vmatprep.subr.bf16.mxu0 %v3763
    %6290 = vmatpush1.bf16.msra.mxu0 %v3762
    %6291 = vmatprep.subr.bf16.mxu0 %v3781
    %6292 = vmatpush1.bf16.msra.mxu0 %v3780
    %6293 = vmatprep.subr.bf16.mxu0 %v3799
    %6294 = vmatpush1.bf16.msra.mxu0 %v3798
    %6295 = vmatprep.subr.bf16.mxu0 %v3817
    %6296 = vmatpush1.bf16.msra.mxu0 %v3816
    %6297 = vmatprep.subr.bf16.mxu0 %v3835
    %6298 = vmatpush1.bf16.msra.mxu0 %v3834
    %6299 = vmatprep.subr.bf16.mxu0 %v3853
    %6300 = vmatpush1.bf16.msra.mxu0 %v3852
    %6301 = vmatprep.subr.bf16.mxu0 %v3871
    %6302 = vmatpush1.bf16.msra.mxu0 %v3870
    %6303 = vmatprep.subr.bf16.mxu0 %v3889
    %6304 = vmatpush1.bf16.msra.mxu0 %v3888
    %6305 = vmatprep.subr.bf16.mxu0 %v3907
    %6306 = vmatpush1.bf16.msra.mxu0 %v3906
    %6307 = vmatprep.subr.bf16.mxu0 %v3925
    %6308 = vmatpush1.bf16.msra.mxu0 %v3924
    %6309 = vmatprep.subr.bf16.mxu0 %v3943
    %6310 = vmatpush1.bf16.msra.mxu0 %v3942
    %6311 = vmatprep.subr.bf16.mxu0 %v3961
    %6312 = vmatpush1.bf16.msra.mxu0 %v3960
    %6313 = vmatprep.subr.bf16.mxu0 %v3979
    %6314 = vmatpush1.bf16.msra.mxu0 %v3978
    %6315 = vmatprep.mubr.bf16.mxu0 %v137
    %6316 = vmatmul.mubr.bf16.gmra.mrb[0].mxu0 %v136
    %v6317 = vpop.f32.mrb[0].mxu0
    %v6318 = vadd.f32 %v1071, %v6317
    %v6319 = vpop.f32.mrb[0].mxu0
    %v6320 = vadd.f32 %v1075, %v6319
    %v6321 = vpop.f32.mrb[0].mxu0
    %v6322 = vpop.f32.mrb[0].mxu0
    %6323 = vdwg.mxu0
    %6324 = vmatprep.subr.bf16.mxu0 %v3997
    %6325 = vmatpush1.bf16.msra.mxu0 %v3996
    %6326 = vmatprep.subr.bf16.mxu0 %v4015
    %6327 = vmatpush1.bf16.msra.mxu0 %v4014
    %6328 = vmatprep.subr.bf16.mxu0 %v4033
    %6329 = vmatpush1.bf16.msra.mxu0 %v4032
    %6330 = vmatprep.subr.bf16.mxu0 %v4051
    %6331 = vmatpush1.bf16.msra.mxu0 %v4050
    %6332 = vmatprep.subr.bf16.mxu0 %v4069
    %6333 = vmatpush1.bf16.msra.mxu0 %v4068
    %6334 = vmatprep.subr.bf16.mxu0 %v4087
    %6335 = vmatpush1.bf16.msra.mxu0 %v4086
    %6336 = vmatprep.subr.bf16.mxu0 %v4105
    %6337 = vmatpush1.bf16.msra.mxu0 %v4104
    %6338 = vmatprep.subr.bf16.mxu0 %v4123
    %6339 = vmatpush1.bf16.msra.mxu0 %v4122
    %6340 = vmatprep.subr.bf16.mxu0 %v4141
    %6341 = vmatpush1.bf16.msra.mxu0 %v4140
    %6342 = vmatprep.subr.bf16.mxu0 %v4159
    %6343 = vmatpush1.bf16.msra.mxu0 %v4158
    %6344 = vmatprep.subr.bf16.mxu0 %v4177
    %6345 = vmatpush1.bf16.msra.mxu0 %v4176
    %6346 = vmatprep.subr.bf16.mxu0 %v4195
    %6347 = vmatpush1.bf16.msra.mxu0 %v4194
    %6348 = vmatprep.subr.bf16.mxu0 %v4213
    %6349 = vmatpush1.bf16.msra.mxu0 %v4212
    %6350 = vmatprep.subr.bf16.mxu0 %v4231
    %6351 = vmatpush1.bf16.msra.mxu0 %v4230
    %6352 = vmatprep.subr.bf16.mxu0 %v4249
    %6353 = vmatpush1.bf16.msra.mxu0 %v4248
    %6354 = vmatprep.subr.bf16.mxu0 %v4267
    %6355 = vmatpush1.bf16.msra.mxu0 %v4266
    %6356 = vmatprep.mubr.bf16.mxu0 %v139
    %6357 = vmatmul.mubr.bf16.gmra.mrb[0].mxu0 %v138
    %v6358 = vpop.f32.mrb[0].mxu0
    %v6359 = vadd.f32 %v6318, %v6358
    %v6360 = vpop.f32.mrb[0].mxu0
    %v6361 = vadd.f32 %v6320, %v6360
    %v6362 = vpop.f32.mrb[0].mxu0
    %v6363 = vpop.f32.mrb[0].mxu0
    %6364 = vdwg.mxu0
    %6365 = vmatprep.subr.bf16.mxu0 %v4285
    %6366 = vmatpush1.bf16.msra.mxu0 %v4284
    %6367 = vmatprep.subr.bf16.mxu0 %v4303
    %6368 = vmatpush1.bf16.msra.mxu0 %v4302
    %6369 = vmatprep.subr.bf16.mxu0 %v4321
    %6370 = vmatpush1.bf16.msra.mxu0 %v4320
    %6371 = vmatprep.subr.bf16.mxu0 %v4339
    %6372 = vmatpush1.bf16.msra.mxu0 %v4338
    %6373 = vmatprep.subr.bf16.mxu0 %v4357
    %6374 = vmatpush1.bf16.msra.mxu0 %v4356
    %6375 = vmatprep.subr.bf16.mxu0 %v4375
    %6376 = vmatpush1.bf16.msra.mxu0 %v4374
    %6377 = vmatprep.subr.bf16.mxu0 %v4393
    %6378 = vmatpush1.bf16.msra.mxu0 %v4392
    %6379 = vmatprep.subr.bf16.mxu0 %v4411
    %6380 = vmatpush1.bf16.msra.mxu0 %v4410
    %6381 = vmatprep.subr.bf16.mxu0 %v4429
    %6382 = vmatpush1.bf16.msra.mxu0 %v4428
    %6383 = vmatprep.subr.bf16.mxu0 %v4447
    %6384 = vmatpush1.bf16.msra.mxu0 %v4446
    %6385 = vmatprep.subr.bf16.mxu0 %v4465
    %6386 = vmatpush1.bf16.msra.mxu0 %v4464
    %6387 = vmatprep.subr.bf16.mxu0 %v4483
    %6388 = vmatpush1.bf16.msra.mxu0 %v4482
    %6389 = vmatprep.subr.bf16.mxu0 %v4501
    %6390 = vmatpush1.bf16.msra.mxu0 %v4500
    %6391 = vmatprep.subr.bf16.mxu0 %v4519
    %6392 = vmatpush1.bf16.msra.mxu0 %v4518
    %6393 = vmatprep.subr.bf16.mxu0 %v4537
    %6394 = vmatpush1.bf16.msra.mxu0 %v4536
    %6395 = vmatprep.subr.bf16.mxu0 %v4555
    %6396 = vmatpush1.bf16.msra.mxu0 %v4554
    %6397 = vmatprep.mubr.bf16.mxu0 %v141
    %6398 = vmatmul.mubr.bf16.gmra.mrb[0].mxu0 %v140
    %v6399 = vpop.f32.mrb[0].mxu0
    %v6400 = vadd.f32 %v6359, %v6399
    %v6401 = vpop.f32.mrb[0].mxu0
    %v6402 = vadd.f32 %v6361, %v6401
    %v6403 = vpop.f32.mrb[0].mxu0
    %v6404 = vpop.f32.mrb[0].mxu0
    %6405 = vdwg.mxu0
    %6406 = vmatprep.subr.bf16.mxu0 %v3711
    %6407 = vmatpush1.bf16.msra.mxu0 %v3710
    %6408 = vmatprep.subr.bf16.mxu0 %v3729
    %6409 = vmatpush1.bf16.msra.mxu0 %v3728
    %6410 = vmatprep.subr.bf16.mxu0 %v3747
    %6411 = vmatpush1.bf16.msra.mxu0 %v3746
    %6412 = vmatprep.subr.bf16.mxu0 %v3765
    %6413 = vmatpush1.bf16.msra.mxu0 %v3764
    %6414 = vmatprep.subr.bf16.mxu0 %v3783
    %6415 = vmatpush1.bf16.msra.mxu0 %v3782
    %6416 = vmatprep.subr.bf16.mxu0 %v3801
    %6417 = vmatpush1.bf16.msra.mxu0 %v3800
    %6418 = vmatprep.subr.bf16.mxu0 %v3819
    %6419 = vmatpush1.bf16.msra.mxu0 %v3818
    %6420 = vmatprep.subr.bf16.mxu0 %v3837
    %6421 = vmatpush1.bf16.msra.mxu0 %v3836
    %6422 = vmatprep.subr.bf16.mxu0 %v3855
    %6423 = vmatpush1.bf16.msra.mxu0 %v3854
    %6424 = vmatprep.subr.bf16.mxu0 %v3873
    %6425 = vmatpush1.bf16.msra.mxu0 %v3872
    %6426 = vmatprep.subr.bf16.mxu0 %v3891
    %6427 = vmatpush1.bf16.msra.mxu0 %v3890
    %6428 = vmatprep.subr.bf16.mxu0 %v3909
    %6429 = vmatpush1.bf16.msra.mxu0 %v3908
    %6430 = vmatprep.subr.bf16.mxu0 %v3927
    %6431 = vmatpush1.bf16.msra.mxu0 %v3926
    %6432 = vmatprep.subr.bf16.mxu0 %v3945
    %6433 = vmatpush1.bf16.msra.mxu0 %v3944
    %6434 = vmatprep.subr.bf16.mxu0 %v3963
    %6435 = vmatpush1.bf16.msra.mxu0 %v3962
    %6436 = vmatprep.subr.bf16.mxu0 %v3981
    %6437 = vmatpush1.bf16.msra.mxu0 %v3980
    %6438 = vmatprep.mubr.bf16.mxu0 %v137
    %6439 = vmatmul.mubr.bf16.gmra.mrb[0].mxu0 %v136
    %v6440 = vpop.f32.mrb[0].mxu0
    %v6441 = vadd.f32 %v1079, %v6440
    %v6442 = vpop.f32.mrb[0].mxu0
    %v6443 = vadd.f32 %v1083, %v6442
    %v6444 = vpop.f32.mrb[0].mxu0
    %v6445 = vpop.f32.mrb[0].mxu0
    %6446 = vdwg.mxu0
    %6447 = vmatprep.subr.bf16.mxu0 %v3999
    %6448 = vmatpush1.bf16.msra.mxu0 %v3998
    %6449 = vmatprep.subr.bf16.mxu0 %v4017
    %6450 = vmatpush1.bf16.msra.mxu0 %v4016
    %6451 = vmatprep.subr.bf16.mxu0 %v4035
    %6452 = vmatpush1.bf16.msra.mxu0 %v4034
    %6453 = vmatprep.subr.bf16.mxu0 %v4053
    %6454 = vmatpush1.bf16.msra.mxu0 %v4052
    %6455 = vmatprep.subr.bf16.mxu0 %v4071
    %6456 = vmatpush1.bf16.msra.mxu0 %v4070
    %6457 = vmatprep.subr.bf16.mxu0 %v4089
    %6458 = vmatpush1.bf16.msra.mxu0 %v4088
    %6459 = vmatprep.subr.bf16.mxu0 %v4107
    %6460 = vmatpush1.bf16.msra.mxu0 %v4106
    %6461 = vmatprep.subr.bf16.mxu0 %v4125
    %6462 = vmatpush1.bf16.msra.mxu0 %v4124
    %6463 = vmatprep.subr.bf16.mxu0 %v4143
    %6464 = vmatpush1.bf16.msra.mxu0 %v4142
    %6465 = vmatprep.subr.bf16.mxu0 %v4161
    %6466 = vmatpush1.bf16.msra.mxu0 %v4160
    %6467 = vmatprep.subr.bf16.mxu0 %v4179
    %6468 = vmatpush1.bf16.msra.mxu0 %v4178
    %6469 = vmatprep.subr.bf16.mxu0 %v4197
    %6470 = vmatpush1.bf16.msra.mxu0 %v4196
    %6471 = vmatprep.subr.bf16.mxu0 %v4215
    %6472 = vmatpush1.bf16.msra.mxu0 %v4214
    %6473 = vmatprep.subr.bf16.mxu0 %v4233
    %6474 = vmatpush1.bf16.msra.mxu0 %v4232
    %6475 = vmatprep.subr.bf16.mxu0 %v4251
    %6476 = vmatpush1.bf16.msra.mxu0 %v4250
    %6477 = vmatprep.subr.bf16.mxu0 %v4269
    %6478 = vmatpush1.bf16.msra.mxu0 %v4268
    %6479 = vmatprep.mubr.bf16.mxu0 %v139
    %6480 = vmatmul.mubr.bf16.gmra.mrb[0].mxu0 %v138
    %v6481 = vpop.f32.mrb[0].mxu0
    %v6482 = vadd.f32 %v6441, %v6481
    %v6483 = vpop.f32.mrb[0].mxu0
    %v6484 = vadd.f32 %v6443, %v6483
    %v6485 = vpop.f32.mrb[0].mxu0
    %v6486 = vpop.f32.mrb[0].mxu0
    %6487 = vdwg.mxu0
    %6488 = vmatprep.subr.bf16.mxu0 %v4287
    %6489 = vmatpush1.bf16.msra.mxu0 %v4286
    %6490 = vmatprep.subr.bf16.mxu0 %v4305
    %6491 = vmatpush1.bf16.msra.mxu0 %v4304
    %6492 = vmatprep.subr.bf16.mxu0 %v4323
    %6493 = vmatpush1.bf16.msra.mxu0 %v4322
    %6494 = vmatprep.subr.bf16.mxu0 %v4341
    %6495 = vmatpush1.bf16.msra.mxu0 %v4340
    %6496 = vmatprep.subr.bf16.mxu0 %v4359
    %6497 = vmatpush1.bf16.msra.mxu0 %v4358
    %6498 = vmatprep.subr.bf16.mxu0 %v4377
    %6499 = vmatpush1.bf16.msra.mxu0 %v4376
    %6500 = vmatprep.subr.bf16.mxu0 %v4395
    %6501 = vmatpush1.bf16.msra.mxu0 %v4394
    %6502 = vmatprep.subr.bf16.mxu0 %v4413
    %6503 = vmatpush1.bf16.msra.mxu0 %v4412
    %6504 = vmatprep.subr.bf16.mxu0 %v4431
    %6505 = vmatpush1.bf16.msra.mxu0 %v4430
    %6506 = vmatprep.subr.bf16.mxu0 %v4449
    %6507 = vmatpush1.bf16.msra.mxu0 %v4448
    %6508 = vmatprep.subr.bf16.mxu0 %v4467
    %6509 = vmatpush1.bf16.msra.mxu0 %v4466
    %6510 = vmatprep.subr.bf16.mxu0 %v4485
    %6511 = vmatpush1.bf16.msra.mxu0 %v4484
    %6512 = vmatprep.subr.bf16.mxu0 %v4503
    %6513 = vmatpush1.bf16.msra.mxu0 %v4502
    %6514 = vmatprep.subr.bf16.mxu0 %v4521
    %6515 = vmatpush1.bf16.msra.mxu0 %v4520
    %6516 = vmatprep.subr.bf16.mxu0 %v4539
    %6517 = vmatpush1.bf16.msra.mxu0 %v4538
    %6518 = vmatprep.subr.bf16.mxu0 %v4557
    %6519 = vmatpush1.bf16.msra.mxu0 %v4556
    %6520 = vmatprep.mubr.bf16.mxu0 %v141
    %6521 = vmatmul.mubr.bf16.gmra.mrb[0].mxu0 %v140
    %v6522 = vpop.f32.mrb[0].mxu0
    %v6523 = vadd.f32 %v6482, %v6522
    %v6524 = vpop.f32.mrb[0].mxu0
    %v6525 = vadd.f32 %v6484, %v6524
    %v6526 = vpop.f32.mrb[0].mxu0
    %v6527 = vpop.f32.mrb[0].mxu0
    %6528 = vdwg.mxu0
    %v6529 = vxor.u32 %v5539, 2147483648
    %v6530 = vxor.u32 %v5541, 2147483648
    %v6531 = vxor.u32 %v5662, 2147483648
    %v6532 = vmul.f32 %v6529, 1.442695
    %v6533 = vpow.pop %v6532
    %v6534 = vmul.f32 %v6530, 1.442695
    %v6535 = vpow.pop %v6534
    %v6536 = vmul.f32 %v6531, 1.442695
    %v6537 = vpow.pop %v6536
    %v6538 = vadd.f32 %v6533, 1.0
    %v6539 = vadd.f32 %v6535, 1.0
    %v6540 = vadd.f32 %v6537, 1.0
    %v6541 = vrcp.pop %v6538
    %v6542 = vmul.f32 1.0, %v6541
    %v6543 = vrcp.pop %v6539
    %v6544 = vmul.f32 1.0, %v6543
    %v6545 = vrcp.pop %v6540
    %v6546 = vmul.f32 1.0, %v6545
    %v6547 = vtanh.pop %v5664
    %v6548 = vtanh.pop %v5785
    %v6549 = vtanh.pop %v5787
    %v6550 = vxor.u32 %v5908, 2147483648
    %v6551 = vxor.u32 %v5910, 2147483648
    %v6552 = vxor.u32 %v6031, 2147483648
    %v6553 = vmul.f32 %v6550, 1.442695
    %v6554 = vpow.pop %v6553
    %v6555 = vmul.f32 %v6551, 1.442695
    %v6556 = vpow.pop %v6555
    %v6557 = vmul.f32 %v6552, 1.442695
    %v6558 = vpow.pop %v6557
    %v6559 = vadd.f32 %v6554, 1.0
    %v6560 = vadd.f32 %v6556, 1.0
    %v6561 = vadd.f32 %v6558, 1.0
    %v6562 = vrcp.pop %v6559
    %v6563 = vmul.f32 1.0, %v6562
    %v6564 = vrcp.pop %v6560
    %v6565 = vmul.f32 1.0, %v6564
    %v6566 = vrcp.pop %v6561
    %v6567 = vmul.f32 1.0, %v6566
    %v6568 = vmul.f32 %v6542, %v6547
    %v6569 = vmul.f32 %v6544, %v6548
    %v6570 = vmul.f32 %v6546, %v6549
    %v6571 = vtanh.pop %v6568
    %v6572 = vtanh.pop %v6569
    %v6573 = vtanh.pop %v6570
    %v6574 = vmul.f32 %v6563, %v6571
    %v6575 = vmul.f32 %v6565, %v6572
    %v6576 = vmul.f32 %v6567, %v6573
    %v6577 = vxor.u32 %v6033, 2147483648
    %v6578 = vxor.u32 %v6154, 2147483648
    %v6579 = vxor.u32 %v6156, 2147483648
    %v6580 = vmul.f32 %v6577, 1.442695
    %v6581 = vpow.pop %v6580
    %v6582 = vmul.f32 %v6578, 1.442695
    %v6583 = vpow.pop %v6582
    %v6584 = vmul.f32 %v6579, 1.442695
    %v6585 = vpow.pop %v6584
    %v6586 = vadd.f32 %v6581, 1.0
    %v6587 = vadd.f32 %v6583, 1.0
    %v6588 = vadd.f32 %v6585, 1.0
    %v6589 = vrcp.pop %v6586
    %v6590 = vmul.f32 1.0, %v6589
    %v6591 = vrcp.pop %v6587
    %v6592 = vmul.f32 1.0, %v6591
    %v6593 = vrcp.pop %v6588
    %v6594 = vmul.f32 1.0, %v6593
    %v6595 = vtanh.pop %v6277
    %v6596 = vtanh.pop %v6279
    %v6597 = vtanh.pop %v6400
    %v6598 = vxor.u32 %v6402, 2147483648
    %v6599 = vxor.u32 %v6523, 2147483648
    %v6600 = vxor.u32 %v6525, 2147483648
    %v6601 = vmul.f32 %v6598, 1.442695
    %v6602 = vpow.pop %v6601
    %v6603 = vmul.f32 %v6599, 1.442695
    %v6604 = vpow.pop %v6603
    %v6605 = vmul.f32 %v6600, 1.442695
    %v6606 = vpow.pop %v6605
    %v6607 = vadd.f32 %v6602, 1.0
    %v6608 = vadd.f32 %v6604, 1.0
    %v6609 = vadd.f32 %v6606, 1.0
    %v6610 = vrcp.pop %v6607
    %v6611 = vmul.f32 1.0, %v6610
    %v6612 = vrcp.pop %v6608
    %v6613 = vmul.f32 1.0, %v6612
    %v6614 = vrcp.pop %v6609
    %v6615 = vmul.f32 1.0, %v6614
    %v6616 = vmul.f32 %v6590, %v6595
    %v6617 = vmul.f32 %v6592, %v6596
    %v6618 = vmul.f32 %v6594, %v6597
    %v6619 = vtanh.pop %v6616
    %v6620 = vtanh.pop %v6617
    %v6621 = vtanh.pop %v6618
    %v6622 = vmul.f32 %v6611, %v6619
    %v6623 = vmul.f32 %v6613, %v6620
    %v6624 = vmul.f32 %v6615, %v6621
    %v6625 = vpack.c.bf16 %v6574, %v6574
    %v6626 = vpack.c.bf16 %v6575, %v6575
    %v6627 = vpack.c.bf16 %v6576, %v6576
    %v6628 = vpack.c.bf16 %v6622, %v6622
    %v6629 = vpack.c.bf16 %v6623, %v6623
    %v6630 = vpack.c.bf16 %v6624, %v6624
    %v6631 = vld [vmem:[#allocation8] sm:$0xff]
    %v6632 = vld [vmem:[#allocation8 + $0x8] sm:$0xff]
    %v6633 = vld [vmem:[#allocation8 + $0x10] sm:$0xff]
    %v6634 = vld [vmem:[#allocation8 + $0x18] sm:$0xff]
    %v6635 = vld [vmem:[#allocation8 + $0x20] sm:$0xff]
    %v6636 = vld [vmem:[#allocation8 + $0x28] sm:$0xff]
    %v6637 = vld [vmem:[#allocation8 + $0x30] sm:$0xff]
    %v6638 = vld [vmem:[#allocation8 + $0x38] sm:$0xff]
    %v6639 = vld [vmem:[#allocation8 + $0x40] sm:$0xff]
    %v6640 = vld [vmem:[#allocation8 + $0x48] sm:$0xff]
    %v6641 = vld [vmem:[#allocation8 + $0x50] sm:$0xff]
    %v6642 = vld [vmem:[#allocation8 + $0x58] sm:$0xff]
    %v6643 = vld [vmem:[#allocation8 + $0x60] sm:$0xff]
    %v6644 = vld [vmem:[#allocation8 + $0x68] sm:$0xff]
    %v6645 = vld [vmem:[#allocation8 + $0x70] sm:$0xff]
    %v6646 = vld [vmem:[#allocation8 + $0x78] sm:$0xff]
    %v6647 = vld [vmem:[#allocation8 + $0x80] sm:$0xff]
    %v6648 = vld [vmem:[#allocation8 + $0x88] sm:$0xff]
    %v6649 = vld [vmem:[#allocation8 + $0x90] sm:$0xff]
    %v6650 = vld [vmem:[#allocation8 + $0x98] sm:$0xff]
    %v6651 = vld [vmem:[#allocation8 + $0xa0] sm:$0xff]
    %v6652 = vld [vmem:[#allocation8 + $0xa8] sm:$0xff]
    %v6653 = vld [vmem:[#allocation8 + $0xb0] sm:$0xff]
    %v6654 = vld [vmem:[#allocation8 + $0xb8] sm:$0xff]
    %v6655 = vld [vmem:[#allocation8 + $0xc0] sm:$0xff]
    %v6656 = vld [vmem:[#allocation8 + $0xc8] sm:$0xff]
    %v6657 = vld [vmem:[#allocation8 + $0xd0] sm:$0xff]
    %v6658 = vld [vmem:[#allocation8 + $0xd8] sm:$0xff]
    %v6659 = vld [vmem:[#allocation8 + $0xe0] sm:$0xff]
    %v6660 = vld [vmem:[#allocation8 + $0xe8] sm:$0xff]
    %v6661 = vld [vmem:[#allocation8 + $0xf0] sm:$0xff]
    %v6662 = vld [vmem:[#allocation8 + $0xf8] sm:$0xff]
    %v6663 = vld [vmem:[#allocation8 + $0x100] sm:$0xff]
    %v6664 = vld [vmem:[#allocation8 + $0x108] sm:$0xff]
    %v6665 = vld [vmem:[#allocation8 + $0x110] sm:$0xff]
    %v6666 = vld [vmem:[#allocation8 + $0x118] sm:$0xff]
    %v6667 = vld [vmem:[#allocation8 + $0x120] sm:$0xff]
    %v6668 = vld [vmem:[#allocation8 + $0x128] sm:$0xff]
    %v6669 = vld [vmem:[#allocation8 + $0x130] sm:$0xff]
    %v6670 = vld [vmem:[#allocation8 + $0x138] sm:$0xff]
    %v6671 = vld [vmem:[#allocation8 + $0x140] sm:$0xff]
    %v6672 = vld [vmem:[#allocation8 + $0x148] sm:$0xff]
    %v6673 = vld [vmem:[#allocation8 + $0x150] sm:$0xff]
    %v6674 = vld [vmem:[#allocation8 + $0x158] sm:$0xff]
    %v6675 = vld [vmem:[#allocation8 + $0x160] sm:$0xff]
    %v6676 = vld [vmem:[#allocation8 + $0x168] sm:$0xff]
    %v6677 = vld [vmem:[#allocation8 + $0x170] sm:$0xff]
    %v6678 = vld [vmem:[#allocation8 + $0x178] sm:$0xff]
    %v6679 = vld [vmem:[#allocation8 + $0x180] sm:$0xff]
    %v6680 = vld [vmem:[#allocation8 + $0x188] sm:$0xff]
    %v6681 = vld [vmem:[#allocation8 + $0x190] sm:$0xff]
    %v6682 = vld [vmem:[#allocation8 + $0x198] sm:$0xff]
    %v6683 = vld [vmem:[#allocation8 + $0x1a0] sm:$0xff]
    %v6684 = vld [vmem:[#allocation8 + $0x1a8] sm:$0xff]
    %v6685 = vld [vmem:[#allocation8 + $0x1b0] sm:$0xff]
    %v6686 = vld [vmem:[#allocation8 + $0x1b8] sm:$0xff]
    %v6687 = vld [vmem:[#allocation8 + $0x1c0] sm:$0xff]
    %v6688 = vld [vmem:[#allocation8 + $0x1c8] sm:$0xff]
    %v6689 = vld [vmem:[#allocation8 + $0x1d0] sm:$0xff]
    %v6690 = vld [vmem:[#allocation8 + $0x1d8] sm:$0xff]
    %v6691 = vld [vmem:[#allocation8 + $0x1e0] sm:$0xff]
    %v6692 = vld [vmem:[#allocation8 + $0x1e8] sm:$0xff]
    %v6693 = vld [vmem:[#allocation8 + $0x1f0] sm:$0xff]
    %v6694 = vld [vmem:[#allocation8 + $0x1f8] sm:$0xff]
    %v6695 = vld [vmem:[#allocation8 + $0x200] sm:$0xff]
    %v6696 = vld [vmem:[#allocation8 + $0x208] sm:$0xff]
    %v6697 = vld [vmem:[#allocation8 + $0x210] sm:$0xff]
    %v6698 = vld [vmem:[#allocation8 + $0x218] sm:$0xff]
    %v6699 = vld [vmem:[#allocation8 + $0x220] sm:$0xff]
    %v6700 = vld [vmem:[#allocation8 + $0x228] sm:$0xff]
    %v6701 = vld [vmem:[#allocation8 + $0x230] sm:$0xff]
    %v6702 = vld [vmem:[#allocation8 + $0x238] sm:$0xff]
    %v6703 = vld [vmem:[#allocation8 + $0x240] sm:$0xff]
    %v6704 = vld [vmem:[#allocation8 + $0x248] sm:$0xff]
    %v6705 = vld [vmem:[#allocation8 + $0x250] sm:$0xff]
    %v6706 = vld [vmem:[#allocation8 + $0x258] sm:$0xff]
    %v6707 = vld [vmem:[#allocation8 + $0x260] sm:$0xff]
    %v6708 = vld [vmem:[#allocation8 + $0x268] sm:$0xff]
    %v6709 = vld [vmem:[#allocation8 + $0x270] sm:$0xff]
    %v6710 = vld [vmem:[#allocation8 + $0x278] sm:$0xff]
    %v6711 = vld [vmem:[#allocation8 + $0x280] sm:$0xff]
    %v6712 = vld [vmem:[#allocation8 + $0x288] sm:$0xff]
    %v6713 = vld [vmem:[#allocation8 + $0x290] sm:$0xff]
    %v6714 = vld [vmem:[#allocation8 + $0x298] sm:$0xff]
    %v6715 = vld [vmem:[#allocation8 + $0x2a0] sm:$0xff]
    %v6716 = vld [vmem:[#allocation8 + $0x2a8] sm:$0xff]
    %v6717 = vld [vmem:[#allocation8 + $0x2b0] sm:$0xff]
    %v6718 = vld [vmem:[#allocation8 + $0x2b8] sm:$0xff]
    %v6719 = vld [vmem:[#allocation8 + $0x2c0] sm:$0xff]
    %v6720 = vld [vmem:[#allocation8 + $0x2c8] sm:$0xff]
    %v6721 = vld [vmem:[#allocation8 + $0x2d0] sm:$0xff]
    %v6722 = vld [vmem:[#allocation8 + $0x2d8] sm:$0xff]
    %v6723 = vld [vmem:[#allocation8 + $0x2e0] sm:$0xff]
    %v6724 = vld [vmem:[#allocation8 + $0x2e8] sm:$0xff]
    %v6725 = vld [vmem:[#allocation8 + $0x2f0] sm:$0xff]
    %v6726 = vld [vmem:[#allocation8 + $0x2f8] sm:$0xff]
    %v6727 = vld [vmem:[#allocation8 + $0x300] sm:$0xff]
    %v6728 = vld [vmem:[#allocation8 + $0x308] sm:$0xff]
    %v6729 = vld [vmem:[#allocation8 + $0x310] sm:$0xff]
    %v6730 = vld [vmem:[#allocation8 + $0x318] sm:$0xff]
    %v6731 = vld [vmem:[#allocation8 + $0x320] sm:$0xff]
    %v6732 = vld [vmem:[#allocation8 + $0x328] sm:$0xff]
    %v6733 = vld [vmem:[#allocation8 + $0x330] sm:$0xff]
    %v6734 = vld [vmem:[#allocation8 + $0x338] sm:$0xff]
    %v6735 = vld [vmem:[#allocation8 + $0x340] sm:$0xff]
    %v6736 = vld [vmem:[#allocation8 + $0x348] sm:$0xff]
    %v6737 = vld [vmem:[#allocation8 + $0x350] sm:$0xff]
    %v6738 = vld [vmem:[#allocation8 + $0x358] sm:$0xff]
    %v6739 = vld [vmem:[#allocation8 + $0x360] sm:$0xff]
    %v6740 = vld [vmem:[#allocation8 + $0x368] sm:$0xff]
    %v6741 = vld [vmem:[#allocation8 + $0x370] sm:$0xff]
    %v6742 = vld [vmem:[#allocation8 + $0x378] sm:$0xff]
    %v6743 = vld [vmem:[#allocation8 + $0x380] sm:$0xff]
    %v6744 = vld [vmem:[#allocation8 + $0x388] sm:$0xff]
    %v6745 = vld [vmem:[#allocation8 + $0x390] sm:$0xff]
    %v6746 = vld [vmem:[#allocation8 + $0x398] sm:$0xff]
    %v6747 = vld [vmem:[#allocation8 + $0x3a0] sm:$0xff]
    %v6748 = vld [vmem:[#allocation8 + $0x3a8] sm:$0xff]
    %v6749 = vld [vmem:[#allocation8 + $0x3b0] sm:$0xff]
    %v6750 = vld [vmem:[#allocation8 + $0x3b8] sm:$0xff]
    %v6751 = vld [vmem:[#allocation8 + $0x3c0] sm:$0xff]
    %v6752 = vld [vmem:[#allocation8 + $0x3c8] sm:$0xff]
    %v6753 = vld [vmem:[#allocation8 + $0x3d0] sm:$0xff]
    %v6754 = vld [vmem:[#allocation8 + $0x3d8] sm:$0xff]
    %v6755 = vld [vmem:[#allocation8 + $0x3e0] sm:$0xff]
    %v6756 = vld [vmem:[#allocation8 + $0x3e8] sm:$0xff]
    %v6757 = vld [vmem:[#allocation8 + $0x3f0] sm:$0xff]
    %v6758 = vld [vmem:[#allocation8 + $0x3f8] sm:$0xff]
    %v6759 = vld [vmem:[#allocation8 + $0x400] sm:$0xff]
    %v6760 = vld [vmem:[#allocation8 + $0x408] sm:$0xff]
    %v6761 = vld [vmem:[#allocation8 + $0x410] sm:$0xff]
    %v6762 = vld [vmem:[#allocation8 + $0x418] sm:$0xff]
    %v6763 = vld [vmem:[#allocation8 + $0x420] sm:$0xff]
    %v6764 = vld [vmem:[#allocation8 + $0x428] sm:$0xff]
    %v6765 = vld [vmem:[#allocation8 + $0x430] sm:$0xff]
    %v6766 = vld [vmem:[#allocation8 + $0x438] sm:$0xff]
    %v6767 = vld [vmem:[#allocation8 + $0x440] sm:$0xff]
    %v6768 = vld [vmem:[#allocation8 + $0x448] sm:$0xff]
    %v6769 = vld [vmem:[#allocation8 + $0x450] sm:$0xff]
    %v6770 = vld [vmem:[#allocation8 + $0x458] sm:$0xff]
    %v6771 = vld [vmem:[#allocation8 + $0x460] sm:$0xff]
    %v6772 = vld [vmem:[#allocation8 + $0x468] sm:$0xff]
    %v6773 = vld [vmem:[#allocation8 + $0x470] sm:$0xff]
    %v6774 = vld [vmem:[#allocation8 + $0x478] sm:$0xff]
    %v6775 = vld [vmem:[#allocation8 + $0x480] sm:$0xff]
    %v6776 = vld [vmem:[#allocation8 + $0x488] sm:$0xff]
    %v6777 = vld [vmem:[#allocation8 + $0x490] sm:$0xff]
    %v6778 = vld [vmem:[#allocation8 + $0x498] sm:$0xff]
    %v6779 = vld [vmem:[#allocation8 + $0x4a0] sm:$0xff]
    %v6780 = vld [vmem:[#allocation8 + $0x4a8] sm:$0xff]
    %v6781 = vld [vmem:[#allocation8 + $0x4b0] sm:$0xff]
    %v6782 = vld [vmem:[#allocation8 + $0x4b8] sm:$0xff]
    %v6783 = vld [vmem:[#allocation8 + $0x4c0] sm:$0xff]
    %v6784 = vld [vmem:[#allocation8 + $0x4c8] sm:$0xff]
    %v6785 = vld [vmem:[#allocation8 + $0x4d0] sm:$0xff]
    %v6786 = vld [vmem:[#allocation8 + $0x4d8] sm:$0xff]
    %v6787 = vld [vmem:[#allocation8 + $0x4e0] sm:$0xff]
    %v6788 = vld [vmem:[#allocation8 + $0x4e8] sm:$0xff]
    %v6789 = vld [vmem:[#allocation8 + $0x4f0] sm:$0xff]
    %v6790 = vld [vmem:[#allocation8 + $0x4f8] sm:$0xff]
    %v6791 = vld [vmem:[#allocation8 + $0x500] sm:$0xff]
    %v6792 = vld [vmem:[#allocation8 + $0x508] sm:$0xff]
    %v6793 = vld [vmem:[#allocation8 + $0x510] sm:$0xff]
    %v6794 = vld [vmem:[#allocation8 + $0x518] sm:$0xff]
    %v6795 = vld [vmem:[#allocation8 + $0x520] sm:$0xff]
    %v6796 = vld [vmem:[#allocation8 + $0x528] sm:$0xff]
    %v6797 = vld [vmem:[#allocation8 + $0x530] sm:$0xff]
    %v6798 = vld [vmem:[#allocation8 + $0x538] sm:$0xff]
    %v6799 = vld [vmem:[#allocation8 + $0x540] sm:$0xff]
    %v6800 = vld [vmem:[#allocation8 + $0x548] sm:$0xff]
    %v6801 = vld [vmem:[#allocation8 + $0x550] sm:$0xff]
    %v6802 = vld [vmem:[#allocation8 + $0x558] sm:$0xff]
    %v6803 = vld [vmem:[#allocation8 + $0x560] sm:$0xff]
    %v6804 = vld [vmem:[#allocation8 + $0x568] sm:$0xff]
    %v6805 = vld [vmem:[#allocation8 + $0x570] sm:$0xff]
    %v6806 = vld [vmem:[#allocation8 + $0x578] sm:$0xff]
    %v6807 = vld [vmem:[#allocation8 + $0x580] sm:$0xff]
    %v6808 = vld [vmem:[#allocation8 + $0x588] sm:$0xff]
    %v6809 = vld [vmem:[#allocation8 + $0x590] sm:$0xff]
    %v6810 = vld [vmem:[#allocation8 + $0x598] sm:$0xff]
    %v6811 = vld [vmem:[#allocation8 + $0x5a0] sm:$0xff]
    %v6812 = vld [vmem:[#allocation8 + $0x5a8] sm:$0xff]
    %v6813 = vld [vmem:[#allocation8 + $0x5b0] sm:$0xff]
    %v6814 = vld [vmem:[#allocation8 + $0x5b8] sm:$0xff]
    %v6815 = vld [vmem:[#allocation8 + $0x5c0] sm:$0xff]
    %v6816 = vld [vmem:[#allocation8 + $0x5c8] sm:$0xff]
    %v6817 = vld [vmem:[#allocation8 + $0x5d0] sm:$0xff]
    %v6818 = vld [vmem:[#allocation8 + $0x5d8] sm:$0xff]
    %v6819 = vld [vmem:[#allocation8 + $0x5e0] sm:$0xff]
    %v6820 = vld [vmem:[#allocation8 + $0x5e8] sm:$0xff]
    %v6821 = vld [vmem:[#allocation8 + $0x5f0] sm:$0xff]
    %v6822 = vld [vmem:[#allocation8 + $0x5f8] sm:$0xff]
    %v6823 = vld [vmem:[#allocation8 + $0x600] sm:$0xff]
    %v6824 = vld [vmem:[#allocation8 + $0x608] sm:$0xff]
    %v6825 = vld [vmem:[#allocation8 + $0x610] sm:$0xff]
    %v6826 = vld [vmem:[#allocation8 + $0x618] sm:$0xff]
    %v6827 = vld [vmem:[#allocation8 + $0x620] sm:$0xff]
    %v6828 = vld [vmem:[#allocation8 + $0x628] sm:$0xff]
    %v6829 = vld [vmem:[#allocation8 + $0x630] sm:$0xff]
    %v6830 = vld [vmem:[#allocation8 + $0x638] sm:$0xff]
    %v6831 = vld [vmem:[#allocation8 + $0x640] sm:$0xff]
    %v6832 = vld [vmem:[#allocation8 + $0x648] sm:$0xff]
    %v6833 = vld [vmem:[#allocation8 + $0x650] sm:$0xff]
    %v6834 = vld [vmem:[#allocation8 + $0x658] sm:$0xff]
    %v6835 = vld [vmem:[#allocation8 + $0x660] sm:$0xff]
    %v6836 = vld [vmem:[#allocation8 + $0x668] sm:$0xff]
    %v6837 = vld [vmem:[#allocation8 + $0x670] sm:$0xff]
    %v6838 = vld [vmem:[#allocation8 + $0x678] sm:$0xff]
    %v6839 = vld [vmem:[#allocation8 + $0x680] sm:$0xff]
    %v6840 = vld [vmem:[#allocation8 + $0x688] sm:$0xff]
    %v6841 = vld [vmem:[#allocation8 + $0x690] sm:$0xff]
    %v6842 = vld [vmem:[#allocation8 + $0x698] sm:$0xff]
    %v6843 = vld [vmem:[#allocation8 + $0x6a0] sm:$0xff]
    %v6844 = vld [vmem:[#allocation8 + $0x6a8] sm:$0xff]
    %v6845 = vld [vmem:[#allocation8 + $0x6b0] sm:$0xff]
    %v6846 = vld [vmem:[#allocation8 + $0x6b8] sm:$0xff]
    %v6847 = vld [vmem:[#allocation8 + $0x6c0] sm:$0xff]
    %v6848 = vld [vmem:[#allocation8 + $0x6c8] sm:$0xff]
    %v6849 = vld [vmem:[#allocation8 + $0x6d0] sm:$0xff]
    %v6850 = vld [vmem:[#allocation8 + $0x6d8] sm:$0xff]
    %v6851 = vld [vmem:[#allocation8 + $0x6e0] sm:$0xff]
    %v6852 = vld [vmem:[#allocation8 + $0x6e8] sm:$0xff]
    %v6853 = vld [vmem:[#allocation8 + $0x6f0] sm:$0xff]
    %v6854 = vld [vmem:[#allocation8 + $0x6f8] sm:$0xff]
    %v6855 = vld [vmem:[#allocation8 + $0x700] sm:$0xff]
    %v6856 = vld [vmem:[#allocation8 + $0x708] sm:$0xff]
    %v6857 = vld [vmem:[#allocation8 + $0x710] sm:$0xff]
    %v6858 = vld [vmem:[#allocation8 + $0x718] sm:$0xff]
    %v6859 = vld [vmem:[#allocation8 + $0x720] sm:$0xff]
    %v6860 = vld [vmem:[#allocation8 + $0x728] sm:$0xff]
    %v6861 = vld [vmem:[#allocation8 + $0x730] sm:$0xff]
    %v6862 = vld [vmem:[#allocation8 + $0x738] sm:$0xff]
    %v6863 = vld [vmem:[#allocation8 + $0x740] sm:$0xff]
    %v6864 = vld [vmem:[#allocation8 + $0x748] sm:$0xff]
    %v6865 = vld [vmem:[#allocation8 + $0x750] sm:$0xff]
    %v6866 = vld [vmem:[#allocation8 + $0x758] sm:$0xff]
    %v6867 = vld [vmem:[#allocation8 + $0x760] sm:$0xff]
    %v6868 = vld [vmem:[#allocation8 + $0x768] sm:$0xff]
    %v6869 = vld [vmem:[#allocation8 + $0x770] sm:$0xff]
    %v6870 = vld [vmem:[#allocation8 + $0x778] sm:$0xff]
    %v6871 = vld [vmem:[#allocation8 + $0x780] sm:$0xff]
    %v6872 = vld [vmem:[#allocation8 + $0x788] sm:$0xff]
    %v6873 = vld [vmem:[#allocation8 + $0x790] sm:$0xff]
    %v6874 = vld [vmem:[#allocation8 + $0x798] sm:$0xff]
    %v6875 = vld [vmem:[#allocation8 + $0x7a0] sm:$0xff]
    %v6876 = vld [vmem:[#allocation8 + $0x7a8] sm:$0xff]
    %v6877 = vld [vmem:[#allocation8 + $0x7b0] sm:$0xff]
    %v6878 = vld [vmem:[#allocation8 + $0x7b8] sm:$0xff]
    %v6879 = vld [vmem:[#allocation8 + $0x7c0] sm:$0xff]
    %v6880 = vld [vmem:[#allocation8 + $0x7c8] sm:$0xff]
    %v6881 = vld [vmem:[#allocation8 + $0x7d0] sm:$0xff]
    %v6882 = vld [vmem:[#allocation8 + $0x7d8] sm:$0xff]
    %v6883 = vld [vmem:[#allocation8 + $0x7e0] sm:$0xff]
    %v6884 = vld [vmem:[#allocation8 + $0x7e8] sm:$0xff]
    %v6885 = vld [vmem:[#allocation8 + $0x7f0] sm:$0xff]
    %v6886 = vld [vmem:[#allocation8 + $0x7f8] sm:$0xff]
    %v6887 = vld [vmem:[#allocation8 + $0x800] sm:$0xff]
    %v6888 = vld [vmem:[#allocation8 + $0x808] sm:$0xff]
    %v6889 = vld [vmem:[#allocation8 + $0x810] sm:$0xff]
    %v6890 = vld [vmem:[#allocation8 + $0x818] sm:$0xff]
    %v6891 = vld [vmem:[#allocation8 + $0x820] sm:$0xff]
    %v6892 = vld [vmem:[#allocation8 + $0x828] sm:$0xff]
    %v6893 = vld [vmem:[#allocation8 + $0x830] sm:$0xff]
    %v6894 = vld [vmem:[#allocation8 + $0x838] sm:$0xff]
    %v6895 = vld [vmem:[#allocation8 + $0x840] sm:$0xff]
    %v6896 = vld [vmem:[#allocation8 + $0x848] sm:$0xff]
    %v6897 = vld [vmem:[#allocation8 + $0x850] sm:$0xff]
    %v6898 = vld [vmem:[#allocation8 + $0x858] sm:$0xff]
    %v6899 = vld [vmem:[#allocation8 + $0x860] sm:$0xff]
    %v6900 = vld [vmem:[#allocation8 + $0x868] sm:$0xff]
    %v6901 = vld [vmem:[#allocation8 + $0x870] sm:$0xff]
    %v6902 = vld [vmem:[#allocation8 + $0x878] sm:$0xff]
    %v6903 = vld [vmem:[#allocation8 + $0x880] sm:$0xff]
    %v6904 = vld [vmem:[#allocation8 + $0x888] sm:$0xff]
    %v6905 = vld [vmem:[#allocation8 + $0x890] sm:$0xff]
    %v6906 = vld [vmem:[#allocation8 + $0x898] sm:$0xff]
    %v6907 = vld [vmem:[#allocation8 + $0x8a0] sm:$0xff]
    %v6908 = vld [vmem:[#allocation8 + $0x8a8] sm:$0xff]
    %v6909 = vld [vmem:[#allocation8 + $0x8b0] sm:$0xff]
    %v6910 = vld [vmem:[#allocation8 + $0x8b8] sm:$0xff]
    %v6911 = vld [vmem:[#allocation8 + $0x8c0] sm:$0xff]
    %v6912 = vld [vmem:[#allocation8 + $0x8c8] sm:$0xff]
    %v6913 = vld [vmem:[#allocation8 + $0x8d0] sm:$0xff]
    %v6914 = vld [vmem:[#allocation8 + $0x8d8] sm:$0xff]
    %v6915 = vld [vmem:[#allocation8 + $0x8e0] sm:$0xff]
    %v6916 = vld [vmem:[#allocation8 + $0x8e8] sm:$0xff]
    %v6917 = vld [vmem:[#allocation8 + $0x8f0] sm:$0xff]
    %v6918 = vld [vmem:[#allocation8 + $0x8f8] sm:$0xff]
    %v6919 = vld [vmem:[#allocation8 + $0x900] sm:$0xff]
    %v6920 = vld [vmem:[#allocation8 + $0x908] sm:$0xff]
    %v6921 = vld [vmem:[#allocation8 + $0x910] sm:$0xff]
    %v6922 = vld [vmem:[#allocation8 + $0x918] sm:$0xff]
    %v6923 = vld [vmem:[#allocation8 + $0x920] sm:$0xff]
    %v6924 = vld [vmem:[#allocation8 + $0x928] sm:$0xff]
    %v6925 = vld [vmem:[#allocation8 + $0x930] sm:$0xff]
    %v6926 = vld [vmem:[#allocation8 + $0x938] sm:$0xff]
    %v6927 = vld [vmem:[#allocation8 + $0x940] sm:$0xff]
    %v6928 = vld [vmem:[#allocation8 + $0x948] sm:$0xff]
    %v6929 = vld [vmem:[#allocation8 + $0x950] sm:$0xff]
    %v6930 = vld [vmem:[#allocation8 + $0x958] sm:$0xff]
    %v6931 = vld [vmem:[#allocation8 + $0x960] sm:$0xff]
    %v6932 = vld [vmem:[#allocation8 + $0x968] sm:$0xff]
    %v6933 = vld [vmem:[#allocation8 + $0x970] sm:$0xff]
    %v6934 = vld [vmem:[#allocation8 + $0x978] sm:$0xff]
    %v6935 = vld [vmem:[#allocation8 + $0x980] sm:$0xff]
    %v6936 = vld [vmem:[#allocation8 + $0x988] sm:$0xff]
    %v6937 = vld [vmem:[#allocation8 + $0x990] sm:$0xff]
    %v6938 = vld [vmem:[#allocation8 + $0x998] sm:$0xff]
    %v6939 = vld [vmem:[#allocation8 + $0x9a0] sm:$0xff]
    %v6940 = vld [vmem:[#allocation8 + $0x9a8] sm:$0xff]
    %v6941 = vld [vmem:[#allocation8 + $0x9b0] sm:$0xff]
    %v6942 = vld [vmem:[#allocation8 + $0x9b8] sm:$0xff]
    %v6943 = vld [vmem:[#allocation8 + $0x9c0] sm:$0xff]
    %v6944 = vld [vmem:[#allocation8 + $0x9c8] sm:$0xff]
    %v6945 = vld [vmem:[#allocation8 + $0x9d0] sm:$0xff]
    %v6946 = vld [vmem:[#allocation8 + $0x9d8] sm:$0xff]
    %v6947 = vld [vmem:[#allocation8 + $0x9e0] sm:$0xff]
    %v6948 = vld [vmem:[#allocation8 + $0x9e8] sm:$0xff]
    %v6949 = vld [vmem:[#allocation8 + $0x9f0] sm:$0xff]
    %v6950 = vld [vmem:[#allocation8 + $0x9f8] sm:$0xff]
    %v6951 = vld [vmem:[#allocation8 + $0xa00] sm:$0xff]
    %v6952 = vld [vmem:[#allocation8 + $0xa08] sm:$0xff]
    %v6953 = vld [vmem:[#allocation8 + $0xa10] sm:$0xff]
    %v6954 = vld [vmem:[#allocation8 + $0xa18] sm:$0xff]
    %v6955 = vld [vmem:[#allocation8 + $0xa20] sm:$0xff]
    %v6956 = vld [vmem:[#allocation8 + $0xa28] sm:$0xff]
    %v6957 = vld [vmem:[#allocation8 + $0xa30] sm:$0xff]
    %v6958 = vld [vmem:[#allocation8 + $0xa38] sm:$0xff]
    %v6959 = vld [vmem:[#allocation8 + $0xa40] sm:$0xff]
    %v6960 = vld [vmem:[#allocation8 + $0xa48] sm:$0xff]
    %v6961 = vld [vmem:[#allocation8 + $0xa50] sm:$0xff]
    %v6962 = vld [vmem:[#allocation8 + $0xa58] sm:$0xff]
    %v6963 = vld [vmem:[#allocation8 + $0xa60] sm:$0xff]
    %v6964 = vld [vmem:[#allocation8 + $0xa68] sm:$0xff]
    %v6965 = vld [vmem:[#allocation8 + $0xa70] sm:$0xff]
    %v6966 = vld [vmem:[#allocation8 + $0xa78] sm:$0xff]
    %v6967 = vld [vmem:[#allocation8 + $0xa80] sm:$0xff]
    %v6968 = vld [vmem:[#allocation8 + $0xa88] sm:$0xff]
    %v6969 = vld [vmem:[#allocation8 + $0xa90] sm:$0xff]
    %v6970 = vld [vmem:[#allocation8 + $0xa98] sm:$0xff]
    %v6971 = vld [vmem:[#allocation8 + $0xaa0] sm:$0xff]
    %v6972 = vld [vmem:[#allocation8 + $0xaa8] sm:$0xff]
    %v6973 = vld [vmem:[#allocation8 + $0xab0] sm:$0xff]
    %v6974 = vld [vmem:[#allocation8 + $0xab8] sm:$0xff]
    %v6975 = vld [vmem:[#allocation8 + $0xac0] sm:$0xff]
    %v6976 = vld [vmem:[#allocation8 + $0xac8] sm:$0xff]
    %v6977 = vld [vmem:[#allocation8 + $0xad0] sm:$0xff]
    %v6978 = vld [vmem:[#allocation8 + $0xad8] sm:$0xff]
    %v6979 = vld [vmem:[#allocation8 + $0xae0] sm:$0xff]
    %v6980 = vld [vmem:[#allocation8 + $0xae8] sm:$0xff]
    %v6981 = vld [vmem:[#allocation8 + $0xaf0] sm:$0xff]
    %v6982 = vld [vmem:[#allocation8 + $0xaf8] sm:$0xff]
    %v6983 = vld [vmem:[#allocation8 + $0xb00] sm:$0xff]
    %v6984 = vld [vmem:[#allocation8 + $0xb08] sm:$0xff]
    %v6985 = vld [vmem:[#allocation8 + $0xb10] sm:$0xff]
    %v6986 = vld [vmem:[#allocation8 + $0xb18] sm:$0xff]
    %v6987 = vld [vmem:[#allocation8 + $0xb20] sm:$0xff]
    %v6988 = vld [vmem:[#allocation8 + $0xb28] sm:$0xff]
    %v6989 = vld [vmem:[#allocation8 + $0xb30] sm:$0xff]
    %v6990 = vld [vmem:[#allocation8 + $0xb38] sm:$0xff]
    %v6991 = vld [vmem:[#allocation8 + $0xb40] sm:$0xff]
    %v6992 = vld [vmem:[#allocation8 + $0xb48] sm:$0xff]
    %v6993 = vld [vmem:[#allocation8 + $0xb50] sm:$0xff]
    %v6994 = vld [vmem:[#allocation8 + $0xb58] sm:$0xff]
    %v6995 = vld [vmem:[#allocation8 + $0xb60] sm:$0xff]
    %v6996 = vld [vmem:[#allocation8 + $0xb68] sm:$0xff]
    %v6997 = vld [vmem:[#allocation8 + $0xb70] sm:$0xff]
    %v6998 = vld [vmem:[#allocation8 + $0xb78] sm:$0xff]
    %v6999 = vld [vmem:[#allocation8 + $0xb80] sm:$0xff]
    %v7000 = vld [vmem:[#allocation8 + $0xb88] sm:$0xff]
    %v7001 = vld [vmem:[#allocation8 + $0xb90] sm:$0xff]
    %v7002 = vld [vmem:[#allocation8 + $0xb98] sm:$0xff]
    %v7003 = vld [vmem:[#allocation8 + $0xba0] sm:$0xff]
    %v7004 = vld [vmem:[#allocation8 + $0xba8] sm:$0xff]
    %v7005 = vld [vmem:[#allocation8 + $0xbb0] sm:$0xff]
    %v7006 = vld [vmem:[#allocation8 + $0xbb8] sm:$0xff]
    %v7007 = vld [vmem:[#allocation8 + $0xbc0] sm:$0xff]
    %v7008 = vld [vmem:[#allocation8 + $0xbc8] sm:$0xff]
    %v7009 = vld [vmem:[#allocation8 + $0xbd0] sm:$0xff]
    %v7010 = vld [vmem:[#allocation8 + $0xbd8] sm:$0xff]
    %v7011 = vld [vmem:[#allocation8 + $0xbe0] sm:$0xff]
    %v7012 = vld [vmem:[#allocation8 + $0xbe8] sm:$0xff]
    %v7013 = vld [vmem:[#allocation8 + $0xbf0] sm:$0xff]
    %v7014 = vld [vmem:[#allocation8 + $0xbf8] sm:$0xff]
    %v7015 = vld [vmem:[#allocation8 + $0xc00] sm:$0xff]
    %v7016 = vld [vmem:[#allocation8 + $0xc08] sm:$0xff]
    %v7017 = vld [vmem:[#allocation8 + $0xc10] sm:$0xff]
    %v7018 = vld [vmem:[#allocation8 + $0xc18] sm:$0xff]
    %v7019 = vld [vmem:[#allocation8 + $0xc20] sm:$0xff]
    %v7020 = vld [vmem:[#allocation8 + $0xc28] sm:$0xff]
    %v7021 = vld [vmem:[#allocation8 + $0xc30] sm:$0xff]
    %v7022 = vld [vmem:[#allocation8 + $0xc38] sm:$0xff]
    %v7023 = vld [vmem:[#allocation8 + $0xc40] sm:$0xff]
    %v7024 = vld [vmem:[#allocation8 + $0xc48] sm:$0xff]
    %v7025 = vld [vmem:[#allocation8 + $0xc50] sm:$0xff]
    %v7026 = vld [vmem:[#allocation8 + $0xc58] sm:$0xff]
    %v7027 = vld [vmem:[#allocation8 + $0xc60] sm:$0xff]
    %v7028 = vld [vmem:[#allocation8 + $0xc68] sm:$0xff]
    %v7029 = vld [vmem:[#allocation8 + $0xc70] sm:$0xff]
    %v7030 = vld [vmem:[#allocation8 + $0xc78] sm:$0xff]
    %v7031 = vld [vmem:[#allocation8 + $0xc80] sm:$0xff]
    %v7032 = vld [vmem:[#allocation8 + $0xc88] sm:$0xff]
    %v7033 = vld [vmem:[#allocation8 + $0xc90] sm:$0xff]
    %v7034 = vld [vmem:[#allocation8 + $0xc98] sm:$0xff]
    %v7035 = vld [vmem:[#allocation8 + $0xca0] sm:$0xff]
    %v7036 = vld [vmem:[#allocation8 + $0xca8] sm:$0xff]
    %v7037 = vld [vmem:[#allocation8 + $0xcb0] sm:$0xff]
    %v7038 = vld [vmem:[#allocation8 + $0xcb8] sm:$0xff]
    %v7039 = vld [vmem:[#allocation8 + $0xcc0] sm:$0xff]
    %v7040 = vld [vmem:[#allocation8 + $0xcc8] sm:$0xff]
    %v7041 = vld [vmem:[#allocation8 + $0xcd0] sm:$0xff]
    %v7042 = vld [vmem:[#allocation8 + $0xcd8] sm:$0xff]
    %v7043 = vld [vmem:[#allocation8 + $0xce0] sm:$0xff]
    %v7044 = vld [vmem:[#allocation8 + $0xce8] sm:$0xff]
    %v7045 = vld [vmem:[#allocation8 + $0xcf0] sm:$0xff]
    %v7046 = vld [vmem:[#allocation8 + $0xcf8] sm:$0xff]
    %v7047 = vld [vmem:[#allocation8 + $0xd00] sm:$0xff]
    %v7048 = vld [vmem:[#allocation8 + $0xd08] sm:$0xff]
    %v7049 = vld [vmem:[#allocation8 + $0xd10] sm:$0xff]
    %v7050 = vld [vmem:[#allocation8 + $0xd18] sm:$0xff]
    %v7051 = vld [vmem:[#allocation8 + $0xd20] sm:$0xff]
    %v7052 = vld [vmem:[#allocation8 + $0xd28] sm:$0xff]
    %v7053 = vld [vmem:[#allocation8 + $0xd30] sm:$0xff]
    %v7054 = vld [vmem:[#allocation8 + $0xd38] sm:$0xff]
    %v7055 = vld [vmem:[#allocation8 + $0xd40] sm:$0xff]
    %v7056 = vld [vmem:[#allocation8 + $0xd48] sm:$0xff]
    %v7057 = vld [vmem:[#allocation8 + $0xd50] sm:$0xff]
    %v7058 = vld [vmem:[#allocation8 + $0xd58] sm:$0xff]
    %v7059 = vld [vmem:[#allocation8 + $0xd60] sm:$0xff]
    %v7060 = vld [vmem:[#allocation8 + $0xd68] sm:$0xff]
    %v7061 = vld [vmem:[#allocation8 + $0xd70] sm:$0xff]
    %v7062 = vld [vmem:[#allocation8 + $0xd78] sm:$0xff]
    %v7063 = vld [vmem:[#allocation8 + $0xd80] sm:$0xff]
    %v7064 = vld [vmem:[#allocation8 + $0xd88] sm:$0xff]
    %v7065 = vld [vmem:[#allocation8 + $0xd90] sm:$0xff]
    %v7066 = vld [vmem:[#allocation8 + $0xd98] sm:$0xff]
    %v7067 = vld [vmem:[#allocation8 + $0xda0] sm:$0xff]
    %v7068 = vld [vmem:[#allocation8 + $0xda8] sm:$0xff]
    %v7069 = vld [vmem:[#allocation8 + $0xdb0] sm:$0xff]
    %v7070 = vld [vmem:[#allocation8 + $0xdb8] sm:$0xff]
    %v7071 = vld [vmem:[#allocation8 + $0xdc0] sm:$0xff]
    %v7072 = vld [vmem:[#allocation8 + $0xdc8] sm:$0xff]
    %v7073 = vld [vmem:[#allocation8 + $0xdd0] sm:$0xff]
    %v7074 = vld [vmem:[#allocation8 + $0xdd8] sm:$0xff]
    %v7075 = vld [vmem:[#allocation8 + $0xde0] sm:$0xff]
    %v7076 = vld [vmem:[#allocation8 + $0xde8] sm:$0xff]
    %v7077 = vld [vmem:[#allocation8 + $0xdf0] sm:$0xff]
    %v7078 = vld [vmem:[#allocation8 + $0xdf8] sm:$0xff]
    %v7079 = vld [vmem:[#allocation8 + $0xe00] sm:$0xff]
    %v7080 = vld [vmem:[#allocation8 + $0xe08] sm:$0xff]
    %v7081 = vld [vmem:[#allocation8 + $0xe10] sm:$0xff]
    %v7082 = vld [vmem:[#allocation8 + $0xe18] sm:$0xff]
    %v7083 = vld [vmem:[#allocation8 + $0xe20] sm:$0xff]
    %v7084 = vld [vmem:[#allocation8 + $0xe28] sm:$0xff]
    %v7085 = vld [vmem:[#allocation8 + $0xe30] sm:$0xff]
    %v7086 = vld [vmem:[#allocation8 + $0xe38] sm:$0xff]
    %v7087 = vld [vmem:[#allocation8 + $0xe40] sm:$0xff]
    %v7088 = vld [vmem:[#allocation8 + $0xe48] sm:$0xff]
    %v7089 = vld [vmem:[#allocation8 + $0xe50] sm:$0xff]
    %v7090 = vld [vmem:[#allocation8 + $0xe58] sm:$0xff]
    %v7091 = vld [vmem:[#allocation8 + $0xe60] sm:$0xff]
    %v7092 = vld [vmem:[#allocation8 + $0xe68] sm:$0xff]
    %v7093 = vld [vmem:[#allocation8 + $0xe70] sm:$0xff]
    %v7094 = vld [vmem:[#allocation8 + $0xe78] sm:$0xff]
    %v7095 = vld [vmem:[#allocation8 + $0xe80] sm:$0xff]
    %v7096 = vld [vmem:[#allocation8 + $0xe88] sm:$0xff]
    %v7097 = vld [vmem:[#allocation8 + $0xe90] sm:$0xff]
    %v7098 = vld [vmem:[#allocation8 + $0xe98] sm:$0xff]
    %v7099 = vld [vmem:[#allocation8 + $0xea0] sm:$0xff]
    %v7100 = vld [vmem:[#allocation8 + $0xea8] sm:$0xff]
    %v7101 = vld [vmem:[#allocation8 + $0xeb0] sm:$0xff]
    %v7102 = vld [vmem:[#allocation8 + $0xeb8] sm:$0xff]
    %v7103 = vld [vmem:[#allocation8 + $0xec0] sm:$0xff]
    %v7104 = vld [vmem:[#allocation8 + $0xec8] sm:$0xff]
    %v7105 = vld [vmem:[#allocation8 + $0xed0] sm:$0xff]
    %v7106 = vld [vmem:[#allocation8 + $0xed8] sm:$0xff]
    %v7107 = vld [vmem:[#allocation8 + $0xee0] sm:$0xff]
    %v7108 = vld [vmem:[#allocation8 + $0xee8] sm:$0xff]
    %v7109 = vld [vmem:[#allocation8 + $0xef0] sm:$0xff]
    %v7110 = vld [vmem:[#allocation8 + $0xef8] sm:$0xff]
    %v7111 = vld [vmem:[#allocation8 + $0xf00] sm:$0xff]
    %v7112 = vld [vmem:[#allocation8 + $0xf08] sm:$0xff]
    %v7113 = vld [vmem:[#allocation8 + $0xf10] sm:$0xff]
    %v7114 = vld [vmem:[#allocation8 + $0xf18] sm:$0xff]
    %v7115 = vld [vmem:[#allocation8 + $0xf20] sm:$0xff]
    %v7116 = vld [vmem:[#allocation8 + $0xf28] sm:$0xff]
    %v7117 = vld [vmem:[#allocation8 + $0xf30] sm:$0xff]
    %v7118 = vld [vmem:[#allocation8 + $0xf38] sm:$0xff]
    %v7119 = vld [vmem:[#allocation8 + $0xf40] sm:$0xff]
    %v7120 = vld [vmem:[#allocation8 + $0xf48] sm:$0xff]
    %v7121 = vld [vmem:[#allocation8 + $0xf50] sm:$0xff]
    %v7122 = vld [vmem:[#allocation8 + $0xf58] sm:$0xff]
    %v7123 = vld [vmem:[#allocation8 + $0xf60] sm:$0xff]
    %v7124 = vld [vmem:[#allocation8 + $0xf68] sm:$0xff]
    %v7125 = vld [vmem:[#allocation8 + $0xf70] sm:$0xff]
    %v7126 = vld [vmem:[#allocation8 + $0xf78] sm:$0xff]
    %v7127 = vld [vmem:[#allocation8 + $0xf80] sm:$0xff]
    %v7128 = vld [vmem:[#allocation8 + $0xf88] sm:$0xff]
    %v7129 = vld [vmem:[#allocation8 + $0xf90] sm:$0xff]
    %v7130 = vld [vmem:[#allocation8 + $0xf98] sm:$0xff]
    %v7131 = vld [vmem:[#allocation8 + $0xfa0] sm:$0xff]
    %v7132 = vld [vmem:[#allocation8 + $0xfa8] sm:$0xff]
    %v7133 = vld [vmem:[#allocation8 + $0xfb0] sm:$0xff]
    %v7134 = vld [vmem:[#allocation8 + $0xfb8] sm:$0xff]
    %v7135 = vld [vmem:[#allocation8 + $0xfc0] sm:$0xff]
    %v7136 = vld [vmem:[#allocation8 + $0xfc8] sm:$0xff]
    %v7137 = vld [vmem:[#allocation8 + $0xfd0] sm:$0xff]
    %v7138 = vld [vmem:[#allocation8 + $0xfd8] sm:$0xff]
    %v7139 = vld [vmem:[#allocation8 + $0xfe0] sm:$0xff]
    %v7140 = vld [vmem:[#allocation8 + $0xfe8] sm:$0xff]
    %v7141 = vld [vmem:[#allocation8 + $0xff0] sm:$0xff]
    %v7142 = vld [vmem:[#allocation8 + $0xff8] sm:$0xff]
    %v7143 = vld [vmem:[#allocation8 + $0x1000] sm:$0xff]
    %v7144 = vld [vmem:[#allocation8 + $0x1008] sm:$0xff]
    %v7145 = vld [vmem:[#allocation8 + $0x1010] sm:$0xff]
    %v7146 = vld [vmem:[#allocation8 + $0x1018] sm:$0xff]
    %v7147 = vld [vmem:[#allocation8 + $0x1020] sm:$0xff]
    %v7148 = vld [vmem:[#allocation8 + $0x1028] sm:$0xff]
    %v7149 = vld [vmem:[#allocation8 + $0x1030] sm:$0xff]
    %v7150 = vld [vmem:[#allocation8 + $0x1038] sm:$0xff]
    %v7151 = vld [vmem:[#allocation8 + $0x1040] sm:$0xff]
    %v7152 = vld [vmem:[#allocation8 + $0x1048] sm:$0xff]
    %v7153 = vld [vmem:[#allocation8 + $0x1050] sm:$0xff]
    %v7154 = vld [vmem:[#allocation8 + $0x1058] sm:$0xff]
    %v7155 = vld [vmem:[#allocation8 + $0x1060] sm:$0xff]
    %v7156 = vld [vmem:[#allocation8 + $0x1068] sm:$0xff]
    %v7157 = vld [vmem:[#allocation8 + $0x1070] sm:$0xff]
    %v7158 = vld [vmem:[#allocation8 + $0x1078] sm:$0xff]
    %v7159 = vld [vmem:[#allocation8 + $0x1080] sm:$0xff]
    %v7160 = vld [vmem:[#allocation8 + $0x1088] sm:$0xff]
    %v7161 = vld [vmem:[#allocation8 + $0x1090] sm:$0xff]
    %v7162 = vld [vmem:[#allocation8 + $0x1098] sm:$0xff]
    %v7163 = vld [vmem:[#allocation8 + $0x10a0] sm:$0xff]
    %v7164 = vld [vmem:[#allocation8 + $0x10a8] sm:$0xff]
    %v7165 = vld [vmem:[#allocation8 + $0x10b0] sm:$0xff]
    %v7166 = vld [vmem:[#allocation8 + $0x10b8] sm:$0xff]
    %v7167 = vld [vmem:[#allocation8 + $0x10c0] sm:$0xff]
    %v7168 = vld [vmem:[#allocation8 + $0x10c8] sm:$0xff]
    %v7169 = vld [vmem:[#allocation8 + $0x10d0] sm:$0xff]
    %v7170 = vld [vmem:[#allocation8 + $0x10d8] sm:$0xff]
    %v7171 = vld [vmem:[#allocation8 + $0x10e0] sm:$0xff]
    %v7172 = vld [vmem:[#allocation8 + $0x10e8] sm:$0xff]
    %v7173 = vld [vmem:[#allocation8 + $0x10f0] sm:$0xff]
    %v7174 = vld [vmem:[#allocation8 + $0x10f8] sm:$0xff]
    %v7175 = vld [vmem:[#allocation8 + $0x1100] sm:$0xff]
    %v7176 = vld [vmem:[#allocation8 + $0x1108] sm:$0xff]
    %v7177 = vld [vmem:[#allocation8 + $0x1110] sm:$0xff]
    %v7178 = vld [vmem:[#allocation8 + $0x1118] sm:$0xff]
    %v7179 = vld [vmem:[#allocation8 + $0x1120] sm:$0xff]
    %v7180 = vld [vmem:[#allocation8 + $0x1128] sm:$0xff]
    %v7181 = vld [vmem:[#allocation8 + $0x1130] sm:$0xff]
    %v7182 = vld [vmem:[#allocation8 + $0x1138] sm:$0xff]
    %v7183 = vld [vmem:[#allocation8 + $0x1140] sm:$0xff]
    %v7184 = vld [vmem:[#allocation8 + $0x1148] sm:$0xff]
    %v7185 = vld [vmem:[#allocation8 + $0x1150] sm:$0xff]
    %v7186 = vld [vmem:[#allocation8 + $0x1158] sm:$0xff]
    %v7187 = vld [vmem:[#allocation8 + $0x1160] sm:$0xff]
    %v7188 = vld [vmem:[#allocation8 + $0x1168] sm:$0xff]
    %v7189 = vld [vmem:[#allocation8 + $0x1170] sm:$0xff]
    %v7190 = vld [vmem:[#allocation8 + $0x1178] sm:$0xff]
    %v7191 = vld [vmem:[#allocation8 + $0x1180] sm:$0xff]
    %v7192 = vld [vmem:[#allocation8 + $0x1188] sm:$0xff]
    %v7193 = vld [vmem:[#allocation8 + $0x1190] sm:$0xff]
    %v7194 = vld [vmem:[#allocation8 + $0x1198] sm:$0xff]
    %v7195 = vld [vmem:[#allocation8 + $0x11a0] sm:$0xff]
    %v7196 = vld [vmem:[#allocation8 + $0x11a8] sm:$0xff]
    %v7197 = vld [vmem:[#allocation8 + $0x11b0] sm:$0xff]
    %v7198 = vld [vmem:[#allocation8 + $0x11b8] sm:$0xff]
    %v7199 = vld [vmem:[#allocation8 + $0x11c0] sm:$0xff]
    %v7200 = vld [vmem:[#allocation8 + $0x11c8] sm:$0xff]
    %v7201 = vld [vmem:[#allocation8 + $0x11d0] sm:$0xff]
    %v7202 = vld [vmem:[#allocation8 + $0x11d8] sm:$0xff]
    %v7203 = vld [vmem:[#allocation8 + $0x11e0] sm:$0xff]
    %v7204 = vld [vmem:[#allocation8 + $0x11e8] sm:$0xff]
    %v7205 = vld [vmem:[#allocation8 + $0x11f0] sm:$0xff]
    %v7206 = vld [vmem:[#allocation8 + $0x11f8] sm:$0xff]
    %v7207 = vld [vmem:[#allocation8 + $0x1200] sm:$0xff]
    %v7208 = vld [vmem:[#allocation8 + $0x1208] sm:$0xff]
    %v7209 = vld [vmem:[#allocation8 + $0x1210] sm:$0xff]
    %v7210 = vld [vmem:[#allocation8 + $0x1218] sm:$0xff]
    %v7211 = vld [vmem:[#allocation8 + $0x1220] sm:$0xff]
    %v7212 = vld [vmem:[#allocation8 + $0x1228] sm:$0xff]
    %v7213 = vld [vmem:[#allocation8 + $0x1230] sm:$0xff]
    %v7214 = vld [vmem:[#allocation8 + $0x1238] sm:$0xff]
    %v7215 = vld [vmem:[#allocation8 + $0x1240] sm:$0xff]
    %v7216 = vld [vmem:[#allocation8 + $0x1248] sm:$0xff]
    %v7217 = vld [vmem:[#allocation8 + $0x1250] sm:$0xff]
    %v7218 = vld [vmem:[#allocation8 + $0x1258] sm:$0xff]
    %v7219 = vld [vmem:[#allocation8 + $0x1260] sm:$0xff]
    %v7220 = vld [vmem:[#allocation8 + $0x1268] sm:$0xff]
    %v7221 = vld [vmem:[#allocation8 + $0x1270] sm:$0xff]
    %v7222 = vld [vmem:[#allocation8 + $0x1278] sm:$0xff]
    %v7223 = vld [vmem:[#allocation8 + $0x1280] sm:$0xff]
    %v7224 = vld [vmem:[#allocation8 + $0x1288] sm:$0xff]
    %v7225 = vld [vmem:[#allocation8 + $0x1290] sm:$0xff]
    %v7226 = vld [vmem:[#allocation8 + $0x1298] sm:$0xff]
    %v7227 = vld [vmem:[#allocation8 + $0x12a0] sm:$0xff]
    %v7228 = vld [vmem:[#allocation8 + $0x12a8] sm:$0xff]
    %v7229 = vld [vmem:[#allocation8 + $0x12b0] sm:$0xff]
    %v7230 = vld [vmem:[#allocation8 + $0x12b8] sm:$0xff]
    %v7231 = vld [vmem:[#allocation8 + $0x12c0] sm:$0xff]
    %v7232 = vld [vmem:[#allocation8 + $0x12c8] sm:$0xff]
    %v7233 = vld [vmem:[#allocation8 + $0x12d0] sm:$0xff]
    %v7234 = vld [vmem:[#allocation8 + $0x12d8] sm:$0xff]
    %v7235 = vld [vmem:[#allocation8 + $0x12e0] sm:$0xff]
    %v7236 = vld [vmem:[#allocation8 + $0x12e8] sm:$0xff]
    %v7237 = vld [vmem:[#allocation8 + $0x12f0] sm:$0xff]
    %v7238 = vld [vmem:[#allocation8 + $0x12f8] sm:$0xff]
    %v7239 = vld [vmem:[#allocation8 + $0x1300] sm:$0xff]
    %v7240 = vld [vmem:[#allocation8 + $0x1308] sm:$0xff]
    %v7241 = vld [vmem:[#allocation8 + $0x1310] sm:$0xff]
    %v7242 = vld [vmem:[#allocation8 + $0x1318] sm:$0xff]
    %v7243 = vld [vmem:[#allocation8 + $0x1320] sm:$0xff]
    %v7244 = vld [vmem:[#allocation8 + $0x1328] sm:$0xff]
    %v7245 = vld [vmem:[#allocation8 + $0x1330] sm:$0xff]
    %v7246 = vld [vmem:[#allocation8 + $0x1338] sm:$0xff]
    %v7247 = vld [vmem:[#allocation8 + $0x1340] sm:$0xff]
    %v7248 = vld [vmem:[#allocation8 + $0x1348] sm:$0xff]
    %v7249 = vld [vmem:[#allocation8 + $0x1350] sm:$0xff]
    %v7250 = vld [vmem:[#allocation8 + $0x1358] sm:$0xff]
    %v7251 = vld [vmem:[#allocation8 + $0x1360] sm:$0xff]
    %v7252 = vld [vmem:[#allocation8 + $0x1368] sm:$0xff]
    %v7253 = vld [vmem:[#allocation8 + $0x1370] sm:$0xff]
    %v7254 = vld [vmem:[#allocation8 + $0x1378] sm:$0xff]
    %v7255 = vld [vmem:[#allocation8 + $0x1380] sm:$0xff]
    %v7256 = vld [vmem:[#allocation8 + $0x1388] sm:$0xff]
    %v7257 = vld [vmem:[#allocation8 + $0x1390] sm:$0xff]
    %v7258 = vld [vmem:[#allocation8 + $0x1398] sm:$0xff]
    %v7259 = vld [vmem:[#allocation8 + $0x13a0] sm:$0xff]
    %v7260 = vld [vmem:[#allocation8 + $0x13a8] sm:$0xff]
    %v7261 = vld [vmem:[#allocation8 + $0x13b0] sm:$0xff]
    %v7262 = vld [vmem:[#allocation8 + $0x13b8] sm:$0xff]
    %v7263 = vld [vmem:[#allocation8 + $0x13c0] sm:$0xff]
    %v7264 = vld [vmem:[#allocation8 + $0x13c8] sm:$0xff]
    %v7265 = vld [vmem:[#allocation8 + $0x13d0] sm:$0xff]
    %v7266 = vld [vmem:[#allocation8 + $0x13d8] sm:$0xff]
    %v7267 = vld [vmem:[#allocation8 + $0x13e0] sm:$0xff]
    %v7268 = vld [vmem:[#allocation8 + $0x13e8] sm:$0xff]
    %v7269 = vld [vmem:[#allocation8 + $0x13f0] sm:$0xff]
    %v7270 = vld [vmem:[#allocation8 + $0x13f8] sm:$0xff]
    %v7271 = vld [vmem:[#allocation8 + $0x1400] sm:$0xff]
    %v7272 = vld [vmem:[#allocation8 + $0x1408] sm:$0xff]
    %v7273 = vld [vmem:[#allocation8 + $0x1410] sm:$0xff]
    %v7274 = vld [vmem:[#allocation8 + $0x1418] sm:$0xff]
    %v7275 = vld [vmem:[#allocation8 + $0x1420] sm:$0xff]
    %v7276 = vld [vmem:[#allocation8 + $0x1428] sm:$0xff]
    %v7277 = vld [vmem:[#allocation8 + $0x1430] sm:$0xff]
    %v7278 = vld [vmem:[#allocation8 + $0x1438] sm:$0xff]
    %v7279 = vld [vmem:[#allocation8 + $0x1440] sm:$0xff]
    %v7280 = vld [vmem:[#allocation8 + $0x1448] sm:$0xff]
    %v7281 = vld [vmem:[#allocation8 + $0x1450] sm:$0xff]
    %v7282 = vld [vmem:[#allocation8 + $0x1458] sm:$0xff]
    %v7283 = vld [vmem:[#allocation8 + $0x1460] sm:$0xff]
    %v7284 = vld [vmem:[#allocation8 + $0x1468] sm:$0xff]
    %v7285 = vld [vmem:[#allocation8 + $0x1470] sm:$0xff]
    %v7286 = vld [vmem:[#allocation8 + $0x1478] sm:$0xff]
    %v7287 = vld [vmem:[#allocation8 + $0x1480] sm:$0xff]
    %v7288 = vld [vmem:[#allocation8 + $0x1488] sm:$0xff]
    %v7289 = vld [vmem:[#allocation8 + $0x1490] sm:$0xff]
    %v7290 = vld [vmem:[#allocation8 + $0x1498] sm:$0xff]
    %v7291 = vld [vmem:[#allocation8 + $0x14a0] sm:$0xff]
    %v7292 = vld [vmem:[#allocation8 + $0x14a8] sm:$0xff]
    %v7293 = vld [vmem:[#allocation8 + $0x14b0] sm:$0xff]
    %v7294 = vld [vmem:[#allocation8 + $0x14b8] sm:$0xff]
    %v7295 = vld [vmem:[#allocation8 + $0x14c0] sm:$0xff]
    %v7296 = vld [vmem:[#allocation8 + $0x14c8] sm:$0xff]
    %v7297 = vld [vmem:[#allocation8 + $0x14d0] sm:$0xff]
    %v7298 = vld [vmem:[#allocation8 + $0x14d8] sm:$0xff]
    %v7299 = vld [vmem:[#allocation8 + $0x14e0] sm:$0xff]
    %v7300 = vld [vmem:[#allocation8 + $0x14e8] sm:$0xff]
    %v7301 = vld [vmem:[#allocation8 + $0x14f0] sm:$0xff]
    %v7302 = vld [vmem:[#allocation8 + $0x14f8] sm:$0xff]
    %v7303 = vld [vmem:[#allocation8 + $0x1500] sm:$0xff]
    %v7304 = vld [vmem:[#allocation8 + $0x1508] sm:$0xff]
    %v7305 = vld [vmem:[#allocation8 + $0x1510] sm:$0xff]
    %v7306 = vld [vmem:[#allocation8 + $0x1518] sm:$0xff]
    %v7307 = vld [vmem:[#allocation8 + $0x1520] sm:$0xff]
    %v7308 = vld [vmem:[#allocation8 + $0x1528] sm:$0xff]
    %v7309 = vld [vmem:[#allocation8 + $0x1530] sm:$0xff]
    %v7310 = vld [vmem:[#allocation8 + $0x1538] sm:$0xff]
    %v7311 = vld [vmem:[#allocation8 + $0x1540] sm:$0xff]
    %v7312 = vld [vmem:[#allocation8 + $0x1548] sm:$0xff]
    %v7313 = vld [vmem:[#allocation8 + $0x1550] sm:$0xff]
    %v7314 = vld [vmem:[#allocation8 + $0x1558] sm:$0xff]
    %v7315 = vld [vmem:[#allocation8 + $0x1560] sm:$0xff]
    %v7316 = vld [vmem:[#allocation8 + $0x1568] sm:$0xff]
    %v7317 = vld [vmem:[#allocation8 + $0x1570] sm:$0xff]
    %v7318 = vld [vmem:[#allocation8 + $0x1578] sm:$0xff]
    %v7319 = vld [vmem:[#allocation8 + $0x1580] sm:$0xff]
    %v7320 = vld [vmem:[#allocation8 + $0x1588] sm:$0xff]
    %v7321 = vld [vmem:[#allocation8 + $0x1590] sm:$0xff]
    %v7322 = vld [vmem:[#allocation8 + $0x1598] sm:$0xff]
    %v7323 = vld [vmem:[#allocation8 + $0x15a0] sm:$0xff]
    %v7324 = vld [vmem:[#allocation8 + $0x15a8] sm:$0xff]
    %v7325 = vld [vmem:[#allocation8 + $0x15b0] sm:$0xff]
    %v7326 = vld [vmem:[#allocation8 + $0x15b8] sm:$0xff]
    %v7327 = vld [vmem:[#allocation8 + $0x15c0] sm:$0xff]
    %v7328 = vld [vmem:[#allocation8 + $0x15c8] sm:$0xff]
    %v7329 = vld [vmem:[#allocation8 + $0x15d0] sm:$0xff]
    %v7330 = vld [vmem:[#allocation8 + $0x15d8] sm:$0xff]
    %v7331 = vld [vmem:[#allocation8 + $0x15e0] sm:$0xff]
    %v7332 = vld [vmem:[#allocation8 + $0x15e8] sm:$0xff]
    %v7333 = vld [vmem:[#allocation8 + $0x15f0] sm:$0xff]
    %v7334 = vld [vmem:[#allocation8 + $0x15f8] sm:$0xff]
    %v7335 = vld [vmem:[#allocation8 + $0x1600] sm:$0xff]
    %v7336 = vld [vmem:[#allocation8 + $0x1608] sm:$0xff]
    %v7337 = vld [vmem:[#allocation8 + $0x1610] sm:$0xff]
    %v7338 = vld [vmem:[#allocation8 + $0x1618] sm:$0xff]
    %v7339 = vld [vmem:[#allocation8 + $0x1620] sm:$0xff]
    %v7340 = vld [vmem:[#allocation8 + $0x1628] sm:$0xff]
    %v7341 = vld [vmem:[#allocation8 + $0x1630] sm:$0xff]
    %v7342 = vld [vmem:[#allocation8 + $0x1638] sm:$0xff]
    %v7343 = vld [vmem:[#allocation8 + $0x1640] sm:$0xff]
    %v7344 = vld [vmem:[#allocation8 + $0x1648] sm:$0xff]
    %v7345 = vld [vmem:[#allocation8 + $0x1650] sm:$0xff]
    %v7346 = vld [vmem:[#allocation8 + $0x1658] sm:$0xff]
    %v7347 = vld [vmem:[#allocation8 + $0x1660] sm:$0xff]
    %v7348 = vld [vmem:[#allocation8 + $0x1668] sm:$0xff]
    %v7349 = vld [vmem:[#allocation8 + $0x1670] sm:$0xff]
    %v7350 = vld [vmem:[#allocation8 + $0x1678] sm:$0xff]
    %v7351 = vld [vmem:[#allocation8 + $0x1680] sm:$0xff]
    %v7352 = vld [vmem:[#allocation8 + $0x1688] sm:$0xff]
    %v7353 = vld [vmem:[#allocation8 + $0x1690] sm:$0xff]
    %v7354 = vld [vmem:[#allocation8 + $0x1698] sm:$0xff]
    %v7355 = vld [vmem:[#allocation8 + $0x16a0] sm:$0xff]
    %v7356 = vld [vmem:[#allocation8 + $0x16a8] sm:$0xff]
    %v7357 = vld [vmem:[#allocation8 + $0x16b0] sm:$0xff]
    %v7358 = vld [vmem:[#allocation8 + $0x16b8] sm:$0xff]
    %v7359 = vld [vmem:[#allocation8 + $0x16c0] sm:$0xff]
    %v7360 = vld [vmem:[#allocation8 + $0x16c8] sm:$0xff]
    %v7361 = vld [vmem:[#allocation8 + $0x16d0] sm:$0xff]
    %v7362 = vld [vmem:[#allocation8 + $0x16d8] sm:$0xff]
    %v7363 = vld [vmem:[#allocation8 + $0x16e0] sm:$0xff]
    %v7364 = vld [vmem:[#allocation8 + $0x16e8] sm:$0xff]
    %v7365 = vld [vmem:[#allocation8 + $0x16f0] sm:$0xff]
    %v7366 = vld [vmem:[#allocation8 + $0x16f8] sm:$0xff]
    %v7367 = vld [vmem:[#allocation8 + $0x1700] sm:$0xff]
    %v7368 = vld [vmem:[#allocation8 + $0x1708] sm:$0xff]
    %v7369 = vld [vmem:[#allocation8 + $0x1710] sm:$0xff]
    %v7370 = vld [vmem:[#allocation8 + $0x1718] sm:$0xff]
    %v7371 = vld [vmem:[#allocation8 + $0x1720] sm:$0xff]
    %v7372 = vld [vmem:[#allocation8 + $0x1728] sm:$0xff]
    %v7373 = vld [vmem:[#allocation8 + $0x1730] sm:$0xff]
    %v7374 = vld [vmem:[#allocation8 + $0x1738] sm:$0xff]
    %v7375 = vld [vmem:[#allocation8 + $0x1740] sm:$0xff]
    %v7376 = vld [vmem:[#allocation8 + $0x1748] sm:$0xff]
    %v7377 = vld [vmem:[#allocation8 + $0x1750] sm:$0xff]
    %v7378 = vld [vmem:[#allocation8 + $0x1758] sm:$0xff]
    %v7379 = vld [vmem:[#allocation8 + $0x1760] sm:$0xff]
    %v7380 = vld [vmem:[#allocation8 + $0x1768] sm:$0xff]
    %v7381 = vld [vmem:[#allocation8 + $0x1770] sm:$0xff]
    %v7382 = vld [vmem:[#allocation8 + $0x1778] sm:$0xff]
    %v7383 = vld [vmem:[#allocation8 + $0x1780] sm:$0xff]
    %v7384 = vld [vmem:[#allocation8 + $0x1788] sm:$0xff]
    %v7385 = vld [vmem:[#allocation8 + $0x1790] sm:$0xff]
    %v7386 = vld [vmem:[#allocation8 + $0x1798] sm:$0xff]
    %v7387 = vld [vmem:[#allocation8 + $0x17a0] sm:$0xff]
    %v7388 = vld [vmem:[#allocation8 + $0x17a8] sm:$0xff]
    %v7389 = vld [vmem:[#allocation8 + $0x17b0] sm:$0xff]
    %v7390 = vld [vmem:[#allocation8 + $0x17b8] sm:$0xff]
    %v7391 = vld [vmem:[#allocation8 + $0x17c0] sm:$0xff]
    %v7392 = vld [vmem:[#allocation8 + $0x17c8] sm:$0xff]
    %v7393 = vld [vmem:[#allocation8 + $0x17d0] sm:$0xff]
    %v7394 = vld [vmem:[#allocation8 + $0x17d8] sm:$0xff]
    %v7395 = vld [vmem:[#allocation8 + $0x17e0] sm:$0xff]
    %v7396 = vld [vmem:[#allocation8 + $0x17e8] sm:$0xff]
    %v7397 = vld [vmem:[#allocation8 + $0x17f0] sm:$0xff]
    %v7398 = vld [vmem:[#allocation8 + $0x17f8] sm:$0xff]
    %v7399 = vld [vmem:[#allocation8 + $0x1800] sm:$0xff]
    %v7400 = vld [vmem:[#allocation8 + $0x1808] sm:$0xff]
    %v7401 = vld [vmem:[#allocation8 + $0x1810] sm:$0xff]
    %v7402 = vld [vmem:[#allocation8 + $0x1818] sm:$0xff]
    %v7403 = vld [vmem:[#allocation8 + $0x1820] sm:$0xff]
    %v7404 = vld [vmem:[#allocation8 + $0x1828] sm:$0xff]
    %v7405 = vld [vmem:[#allocation8 + $0x1830] sm:$0xff]
    %v7406 = vld [vmem:[#allocation8 + $0x1838] sm:$0xff]
    %v7407 = vld [vmem:[#allocation8 + $0x1840] sm:$0xff]
    %v7408 = vld [vmem:[#allocation8 + $0x1848] sm:$0xff]
    %v7409 = vld [vmem:[#allocation8 + $0x1850] sm:$0xff]
    %v7410 = vld [vmem:[#allocation8 + $0x1858] sm:$0xff]
    %v7411 = vld [vmem:[#allocation8 + $0x1860] sm:$0xff]
    %v7412 = vld [vmem:[#allocation8 + $0x1868] sm:$0xff]
    %v7413 = vld [vmem:[#allocation8 + $0x1870] sm:$0xff]
    %v7414 = vld [vmem:[#allocation8 + $0x1878] sm:$0xff]
    %v7415 = vld [vmem:[#allocation8 + $0x1880] sm:$0xff]
    %v7416 = vld [vmem:[#allocation8 + $0x1888] sm:$0xff]
    %v7417 = vld [vmem:[#allocation8 + $0x1890] sm:$0xff]
    %v7418 = vld [vmem:[#allocation8 + $0x1898] sm:$0xff]
    %v7419 = vld [vmem:[#allocation8 + $0x18a0] sm:$0xff]
    %v7420 = vld [vmem:[#allocation8 + $0x18a8] sm:$0xff]
    %v7421 = vld [vmem:[#allocation8 + $0x18b0] sm:$0xff]
    %v7422 = vld [vmem:[#allocation8 + $0x18b8] sm:$0xff]
    %v7423 = vld [vmem:[#allocation8 + $0x18c0] sm:$0xff]
    %v7424 = vld [vmem:[#allocation8 + $0x18c8] sm:$0xff]
    %v7425 = vld [vmem:[#allocation8 + $0x18d0] sm:$0xff]
    %v7426 = vld [vmem:[#allocation8 + $0x18d8] sm:$0xff]
    %v7427 = vld [vmem:[#allocation8 + $0x18e0] sm:$0xff]
    %v7428 = vld [vmem:[#allocation8 + $0x18e8] sm:$0xff]
    %v7429 = vld [vmem:[#allocation8 + $0x18f0] sm:$0xff]
    %v7430 = vld [vmem:[#allocation8 + $0x18f8] sm:$0xff]
    %v7431 = vld [vmem:[#allocation8 + $0x1900] sm:$0xff]
    %v7432 = vld [vmem:[#allocation8 + $0x1908] sm:$0xff]
    %v7433 = vld [vmem:[#allocation8 + $0x1910] sm:$0xff]
    %v7434 = vld [vmem:[#allocation8 + $0x1918] sm:$0xff]
    %v7435 = vld [vmem:[#allocation8 + $0x1920] sm:$0xff]
    %v7436 = vld [vmem:[#allocation8 + $0x1928] sm:$0xff]
    %v7437 = vld [vmem:[#allocation8 + $0x1930] sm:$0xff]
    %v7438 = vld [vmem:[#allocation8 + $0x1938] sm:$0xff]
    %v7439 = vld [vmem:[#allocation8 + $0x1940] sm:$0xff]
    %v7440 = vld [vmem:[#allocation8 + $0x1948] sm:$0xff]
    %v7441 = vld [vmem:[#allocation8 + $0x1950] sm:$0xff]
    %v7442 = vld [vmem:[#allocation8 + $0x1958] sm:$0xff]
    %v7443 = vld [vmem:[#allocation8 + $0x1960] sm:$0xff]
    %v7444 = vld [vmem:[#allocation8 + $0x1968] sm:$0xff]
    %v7445 = vld [vmem:[#allocation8 + $0x1970] sm:$0xff]
    %v7446 = vld [vmem:[#allocation8 + $0x1978] sm:$0xff]
    %v7447 = vld [vmem:[#allocation8 + $0x1980] sm:$0xff]
    %v7448 = vld [vmem:[#allocation8 + $0x1988] sm:$0xff]
    %v7449 = vld [vmem:[#allocation8 + $0x1990] sm:$0xff]
    %v7450 = vld [vmem:[#allocation8 + $0x1998] sm:$0xff]
    %v7451 = vld [vmem:[#allocation8 + $0x19a0] sm:$0xff]
    %v7452 = vld [vmem:[#allocation8 + $0x19a8] sm:$0xff]
    %v7453 = vld [vmem:[#allocation8 + $0x19b0] sm:$0xff]
    %v7454 = vld [vmem:[#allocation8 + $0x19b8] sm:$0xff]
    %v7455 = vld [vmem:[#allocation8 + $0x19c0] sm:$0xff]
    %v7456 = vld [vmem:[#allocation8 + $0x19c8] sm:$0xff]
    %v7457 = vld [vmem:[#allocation8 + $0x19d0] sm:$0xff]
    %v7458 = vld [vmem:[#allocation8 + $0x19d8] sm:$0xff]
    %v7459 = vld [vmem:[#allocation8 + $0x19e0] sm:$0xff]
    %v7460 = vld [vmem:[#allocation8 + $0x19e8] sm:$0xff]
    %v7461 = vld [vmem:[#allocation8 + $0x19f0] sm:$0xff]
    %v7462 = vld [vmem:[#allocation8 + $0x19f8] sm:$0xff]
    %v7463 = vld [vmem:[#allocation8 + $0x1a00] sm:$0xff]
    %v7464 = vld [vmem:[#allocation8 + $0x1a08] sm:$0xff]
    %v7465 = vld [vmem:[#allocation8 + $0x1a10] sm:$0xff]
    %v7466 = vld [vmem:[#allocation8 + $0x1a18] sm:$0xff]
    %v7467 = vld [vmem:[#allocation8 + $0x1a20] sm:$0xff]
    %v7468 = vld [vmem:[#allocation8 + $0x1a28] sm:$0xff]
    %v7469 = vld [vmem:[#allocation8 + $0x1a30] sm:$0xff]
    %v7470 = vld [vmem:[#allocation8 + $0x1a38] sm:$0xff]
    %v7471 = vld [vmem:[#allocation8 + $0x1a40] sm:$0xff]
    %v7472 = vld [vmem:[#allocation8 + $0x1a48] sm:$0xff]
    %v7473 = vld [vmem:[#allocation8 + $0x1a50] sm:$0xff]
    %v7474 = vld [vmem:[#allocation8 + $0x1a58] sm:$0xff]
    %v7475 = vld [vmem:[#allocation8 + $0x1a60] sm:$0xff]
    %v7476 = vld [vmem:[#allocation8 + $0x1a68] sm:$0xff]
    %v7477 = vld [vmem:[#allocation8 + $0x1a70] sm:$0xff]
    %v7478 = vld [vmem:[#allocation8 + $0x1a78] sm:$0xff]
    %v7479 = vld [vmem:[#allocation8 + $0x1a80] sm:$0xff]
    %v7480 = vld [vmem:[#allocation8 + $0x1a88] sm:$0xff]
    %v7481 = vld [vmem:[#allocation8 + $0x1a90] sm:$0xff]
    %v7482 = vld [vmem:[#allocation8 + $0x1a98] sm:$0xff]
    %v7483 = vld [vmem:[#allocation8 + $0x1aa0] sm:$0xff]
    %v7484 = vld [vmem:[#allocation8 + $0x1aa8] sm:$0xff]
    %v7485 = vld [vmem:[#allocation8 + $0x1ab0] sm:$0xff]
    %v7486 = vld [vmem:[#allocation8 + $0x1ab8] sm:$0xff]
    %v7487 = vld [vmem:[#allocation8 + $0x1ac0] sm:$0xff]
    %v7488 = vld [vmem:[#allocation8 + $0x1ac8] sm:$0xff]
    %v7489 = vld [vmem:[#allocation8 + $0x1ad0] sm:$0xff]
    %v7490 = vld [vmem:[#allocation8 + $0x1ad8] sm:$0xff]
    %v7491 = vld [vmem:[#allocation8 + $0x1ae0] sm:$0xff]
    %v7492 = vld [vmem:[#allocation8 + $0x1ae8] sm:$0xff]
    %v7493 = vld [vmem:[#allocation8 + $0x1af0] sm:$0xff]
    %v7494 = vld [vmem:[#allocation8 + $0x1af8] sm:$0xff]
    %v7495 = vld [vmem:[#allocation10] sm:$0xff]
    %v7496 = vld [vmem:[#allocation10 + $0x8] sm:$0xff]
    %v7497 = vld [vmem:[#allocation10 + $0x10] sm:$0x3]
    %v7501 = vlaneseq
    %v7502 = vshrl.u32 %v7501, 7
    %v7503 = vsub.s32 0, %v7502
    %v7504 = vrot.slane %v7495, %v7503
    %v7505 = vlaneseq
    %v7506 = vshrl.u32 %v7505, 7
    %v7507 = vsub.s32 1, %v7506
    %v7508 = vrot.slane %v7495, %v7507
    %v7509 = vlaneseq
    %v7510 = vshrl.u32 %v7509, 7
    %v7511 = vsub.s32 2, %v7510
    %v7512 = vrot.slane %v7495, %v7511
    %v7513 = vlaneseq
    %v7514 = vshrl.u32 %v7513, 7
    %v7515 = vsub.s32 3, %v7514
    %v7516 = vrot.slane %v7495, %v7515
    %v7517 = vlaneseq
    %v7518 = vshrl.u32 %v7517, 7
    %v7519 = vsub.s32 4, %v7518
    %v7520 = vrot.slane %v7495, %v7519
    %v7521 = vlaneseq
    %v7522 = vshrl.u32 %v7521, 7
    %v7523 = vsub.s32 5, %v7522
    %v7524 = vrot.slane %v7495, %v7523
    %v7525 = vlaneseq
    %v7526 = vshrl.u32 %v7525, 7
    %v7527 = vsub.s32 6, %v7526
    %v7528 = vrot.slane %v7495, %v7527
    %v7529 = vlaneseq
    %v7530 = vshrl.u32 %v7529, 7
    %v7531 = vsub.s32 7, %v7530
    %v7532 = vrot.slane %v7495, %v7531
    %v7533 = vlaneseq
    %v7534 = vshrl.u32 %v7533, 7
    %v7535 = vsub.s32 0, %v7534
    %v7536 = vrot.slane %v7496, %v7535
    %v7537 = vlaneseq
    %v7538 = vshrl.u32 %v7537, 7
    %v7539 = vsub.s32 1, %v7538
    %v7540 = vrot.slane %v7496, %v7539
    %v7541 = vlaneseq
    %v7542 = vshrl.u32 %v7541, 7
    %v7543 = vsub.s32 2, %v7542
    %v7544 = vrot.slane %v7496, %v7543
    %v7545 = vlaneseq
    %v7546 = vshrl.u32 %v7545, 7
    %v7547 = vsub.s32 3, %v7546
    %v7548 = vrot.slane %v7496, %v7547
    %v7549 = vlaneseq
    %v7550 = vshrl.u32 %v7549, 7
    %v7551 = vsub.s32 4, %v7550
    %v7552 = vrot.slane %v7496, %v7551
    %v7553 = vlaneseq
    %v7554 = vshrl.u32 %v7553, 7
    %v7555 = vsub.s32 5, %v7554
    %v7556 = vrot.slane %v7496, %v7555
    %v7557 = vlaneseq
    %v7558 = vshrl.u32 %v7557, 7
    %v7559 = vsub.s32 6, %v7558
    %v7560 = vrot.slane %v7496, %v7559
    %v7561 = vlaneseq
    %v7562 = vshrl.u32 %v7561, 7
    %v7563 = vsub.s32 7, %v7562
    %v7564 = vrot.slane %v7496, %v7563
    %v7565 = vlaneseq
    %v7566 = vshrl.u32 %v7565, 7
    %v7567 = vsub.s32 0, %v7566
    %v7568 = vrot.slane %v7497, %v7567
    %v7569 = vlaneseq
    %v7570 = vshrl.u32 %v7569, 7
    %v7571 = vsub.s32 1, %v7570
    %v7572 = vrot.slane %v7497, %v7571
    %v8455 = vunpack.c.l.b16 %v6631
    %v8456 = vunpack.c.h.b16 %v6631
    %v8457 = vunpack.c.l.b16 %v6632
    %v8458 = vunpack.c.h.b16 %v6632
    %v8459 = vunpack.c.l.b16 %v6633
    %v8460 = vunpack.c.h.b16 %v6633
    %v8461 = vunpack.c.l.b16 %v6634
    %v8462 = vunpack.c.h.b16 %v6634
    %v8463 = vunpack.c.l.b16 %v6635
    %v8464 = vunpack.c.h.b16 %v6635
    %v8465 = vunpack.c.l.b16 %v6636
    %v8466 = vunpack.c.h.b16 %v6636
    %v8467 = vunpack.c.l.b16 %v6637
    %v8468 = vunpack.c.h.b16 %v6637
    %v8469 = vunpack.c.l.b16 %v6638
    %v8470 = vunpack.c.h.b16 %v6638
    %v8471 = vunpack.c.l.b16 %v6639
    %v8472 = vunpack.c.h.b16 %v6639
    %v8473 = vunpack.c.l.b16 %v6640
    %v8474 = vunpack.c.h.b16 %v6640
    %v8475 = vunpack.c.l.b16 %v6641
    %v8476 = vunpack.c.h.b16 %v6641
    %v8477 = vunpack.c.l.b16 %v6642
    %v8478 = vunpack.c.h.b16 %v6642
    %v8479 = vunpack.c.l.b16 %v6643
    %v8480 = vunpack.c.h.b16 %v6643
    %v8481 = vunpack.c.l.b16 %v6644
    %v8482 = vunpack.c.h.b16 %v6644
    %v8483 = vunpack.c.l.b16 %v6645
    %v8484 = vunpack.c.h.b16 %v6645
    %v8485 = vunpack.c.l.b16 %v6646
    %v8486 = vunpack.c.h.b16 %v6646
    %v8487 = vunpack.c.l.b16 %v6647
    %v8488 = vunpack.c.h.b16 %v6647
    %v8489 = vunpack.c.l.b16 %v6648
    %v8490 = vunpack.c.h.b16 %v6648
    %v8491 = vunpack.c.l.b16 %v6649
    %v8492 = vunpack.c.h.b16 %v6649
    %v8493 = vunpack.c.l.b16 %v6650
    %v8494 = vunpack.c.h.b16 %v6650
    %v8495 = vunpack.c.l.b16 %v6651
    %v8496 = vunpack.c.h.b16 %v6651
    %v8497 = vunpack.c.l.b16 %v6652
    %v8498 = vunpack.c.h.b16 %v6652
    %v8499 = vunpack.c.l.b16 %v6653
    %v8500 = vunpack.c.h.b16 %v6653
    %v8501 = vunpack.c.l.b16 %v6654
    %v8502 = vunpack.c.h.b16 %v6654
    %v8503 = vunpack.c.l.b16 %v6655
    %v8504 = vunpack.c.h.b16 %v6655
    %v8505 = vunpack.c.l.b16 %v6656
    %v8506 = vunpack.c.h.b16 %v6656
    %v8507 = vunpack.c.l.b16 %v6657
    %v8508 = vunpack.c.h.b16 %v6657
    %v8509 = vunpack.c.l.b16 %v6658
    %v8510 = vunpack.c.h.b16 %v6658
    %v8511 = vunpack.c.l.b16 %v6659
    %v8512 = vunpack.c.h.b16 %v6659
    %v8513 = vunpack.c.l.b16 %v6660
    %v8514 = vunpack.c.h.b16 %v6660
    %v8515 = vunpack.c.l.b16 %v6661
    %v8516 = vunpack.c.h.b16 %v6661
    %v8517 = vunpack.c.l.b16 %v6662
    %v8518 = vunpack.c.h.b16 %v6662
    %v8519 = vunpack.c.l.b16 %v6663
    %v8520 = vunpack.c.h.b16 %v6663
    %v8521 = vunpack.c.l.b16 %v6664
    %v8522 = vunpack.c.h.b16 %v6664
    %v8523 = vunpack.c.l.b16 %v6665
    %v8524 = vunpack.c.h.b16 %v6665
    %v8525 = vunpack.c.l.b16 %v6666
    %v8526 = vunpack.c.h.b16 %v6666
    %v8527 = vunpack.c.l.b16 %v6667
    %v8528 = vunpack.c.h.b16 %v6667
    %v8529 = vunpack.c.l.b16 %v6668
    %v8530 = vunpack.c.h.b16 %v6668
    %v8531 = vunpack.c.l.b16 %v6669
    %v8532 = vunpack.c.h.b16 %v6669
    %v8533 = vunpack.c.l.b16 %v6670
    %v8534 = vunpack.c.h.b16 %v6670
    %v8535 = vunpack.c.l.b16 %v6671
    %v8536 = vunpack.c.h.b16 %v6671
    %v8537 = vunpack.c.l.b16 %v6672
    %v8538 = vunpack.c.h.b16 %v6672
    %v8539 = vunpack.c.l.b16 %v6673
    %v8540 = vunpack.c.h.b16 %v6673
    %v8541 = vunpack.c.l.b16 %v6674
    %v8542 = vunpack.c.h.b16 %v6674
    %v8543 = vunpack.c.l.b16 %v6675
    %v8544 = vunpack.c.h.b16 %v6675
    %v8545 = vunpack.c.l.b16 %v6676
    %v8546 = vunpack.c.h.b16 %v6676
    %v8547 = vunpack.c.l.b16 %v6677
    %v8548 = vunpack.c.h.b16 %v6677
    %v8549 = vunpack.c.l.b16 %v6678
    %v8550 = vunpack.c.h.b16 %v6678
    %v8551 = vunpack.c.l.b16 %v6679
    %v8552 = vunpack.c.h.b16 %v6679
    %v8553 = vunpack.c.l.b16 %v6680
    %v8554 = vunpack.c.h.b16 %v6680
    %v8555 = vunpack.c.l.b16 %v6681
    %v8556 = vunpack.c.h.b16 %v6681
    %v8557 = vunpack.c.l.b16 %v6682
    %v8558 = vunpack.c.h.b16 %v6682
    %v8559 = vunpack.c.l.b16 %v6683
    %v8560 = vunpack.c.h.b16 %v6683
    %v8561 = vunpack.c.l.b16 %v6684
    %v8562 = vunpack.c.h.b16 %v6684
    %v8563 = vunpack.c.l.b16 %v6685
    %v8564 = vunpack.c.h.b16 %v6685
    %v8565 = vunpack.c.l.b16 %v6686
    %v8566 = vunpack.c.h.b16 %v6686
    %v8567 = vunpack.c.l.b16 %v6687
    %v8568 = vunpack.c.h.b16 %v6687
    %v8569 = vunpack.c.l.b16 %v6688
    %v8570 = vunpack.c.h.b16 %v6688
    %v8571 = vunpack.c.l.b16 %v6689
    %v8572 = vunpack.c.h.b16 %v6689
    %v8573 = vunpack.c.l.b16 %v6690
    %v8574 = vunpack.c.h.b16 %v6690
    %v8575 = vunpack.c.l.b16 %v6691
    %v8576 = vunpack.c.h.b16 %v6691
    %v8577 = vunpack.c.l.b16 %v6692
    %v8578 = vunpack.c.h.b16 %v6692
    %v8579 = vunpack.c.l.b16 %v6693
    %v8580 = vunpack.c.h.b16 %v6693
    %v8581 = vunpack.c.l.b16 %v6694
    %v8582 = vunpack.c.h.b16 %v6694
    %v8583 = vunpack.c.l.b16 %v6695
    %v8584 = vunpack.c.h.b16 %v6695
    %v8585 = vunpack.c.l.b16 %v6696
    %v8586 = vunpack.c.h.b16 %v6696
    %v8587 = vunpack.c.l.b16 %v6697
    %v8588 = vunpack.c.h.b16 %v6697
    %v8589 = vunpack.c.l.b16 %v6698
    %v8590 = vunpack.c.h.b16 %v6698
    %v8591 = vunpack.c.l.b16 %v6699
    %v8592 = vunpack.c.h.b16 %v6699
    %v8593 = vunpack.c.l.b16 %v6700
    %v8594 = vunpack.c.h.b16 %v6700
    %v8595 = vunpack.c.l.b16 %v6701
    %v8596 = vunpack.c.h.b16 %v6701
    %v8597 = vunpack.c.l.b16 %v6702
    %v8598 = vunpack.c.h.b16 %v6702
    %v8599 = vunpack.c.l.b16 %v6703
    %v8600 = vunpack.c.h.b16 %v6703
    %v8601 = vunpack.c.l.b16 %v6704
    %v8602 = vunpack.c.h.b16 %v6704
    %v8603 = vunpack.c.l.b16 %v6705
    %v8604 = vunpack.c.h.b16 %v6705
    %v8605 = vunpack.c.l.b16 %v6706
    %v8606 = vunpack.c.h.b16 %v6706
    %v8607 = vunpack.c.l.b16 %v6707
    %v8608 = vunpack.c.h.b16 %v6707
    %v8609 = vunpack.c.l.b16 %v6708
    %v8610 = vunpack.c.h.b16 %v6708
    %v8611 = vunpack.c.l.b16 %v6709
    %v8612 = vunpack.c.h.b16 %v6709
    %v8613 = vunpack.c.l.b16 %v6710
    %v8614 = vunpack.c.h.b16 %v6710
    %v8615 = vunpack.c.l.b16 %v6711
    %v8616 = vunpack.c.h.b16 %v6711
    %v8617 = vunpack.c.l.b16 %v6712
    %v8618 = vunpack.c.h.b16 %v6712
    %v8619 = vunpack.c.l.b16 %v6713
    %v8620 = vunpack.c.h.b16 %v6713
    %v8621 = vunpack.c.l.b16 %v6714
    %v8622 = vunpack.c.h.b16 %v6714
    %v8623 = vunpack.c.l.b16 %v6715
    %v8624 = vunpack.c.h.b16 %v6715
    %v8625 = vunpack.c.l.b16 %v6716
    %v8626 = vunpack.c.h.b16 %v6716
    %v8627 = vunpack.c.l.b16 %v6717
    %v8628 = vunpack.c.h.b16 %v6717
    %v8629 = vunpack.c.l.b16 %v6718
    %v8630 = vunpack.c.h.b16 %v6718
    %v8631 = vunpack.c.l.b16 %v6719
    %v8632 = vunpack.c.h.b16 %v6719
    %v8633 = vunpack.c.l.b16 %v6720
    %v8634 = vunpack.c.h.b16 %v6720
    %v8635 = vunpack.c.l.b16 %v6721
    %v8636 = vunpack.c.h.b16 %v6721
    %v8637 = vunpack.c.l.b16 %v6722
    %v8638 = vunpack.c.h.b16 %v6722
    %v8639 = vunpack.c.l.b16 %v6723
    %v8640 = vunpack.c.h.b16 %v6723
    %v8641 = vunpack.c.l.b16 %v6724
    %v8642 = vunpack.c.h.b16 %v6724
    %v8643 = vunpack.c.l.b16 %v6725
    %v8644 = vunpack.c.h.b16 %v6725
    %v8645 = vunpack.c.l.b16 %v6726
    %v8646 = vunpack.c.h.b16 %v6726
    %v8647 = vunpack.c.l.b16 %v6727
    %v8648 = vunpack.c.h.b16 %v6727
    %v8649 = vunpack.c.l.b16 %v6728
    %v8650 = vunpack.c.h.b16 %v6728
    %v8651 = vunpack.c.l.b16 %v6729
    %v8652 = vunpack.c.h.b16 %v6729
    %v8653 = vunpack.c.l.b16 %v6730
    %v8654 = vunpack.c.h.b16 %v6730
    %v8655 = vunpack.c.l.b16 %v6731
    %v8656 = vunpack.c.h.b16 %v6731
    %v8657 = vunpack.c.l.b16 %v6732
    %v8658 = vunpack.c.h.b16 %v6732
    %v8659 = vunpack.c.l.b16 %v6733
    %v8660 = vunpack.c.h.b16 %v6733
    %v8661 = vunpack.c.l.b16 %v6734
    %v8662 = vunpack.c.h.b16 %v6734
    %v8663 = vunpack.c.l.b16 %v6735
    %v8664 = vunpack.c.h.b16 %v6735
    %v8665 = vunpack.c.l.b16 %v6736
    %v8666 = vunpack.c.h.b16 %v6736
    %v8667 = vunpack.c.l.b16 %v6737
    %v8668 = vunpack.c.h.b16 %v6737
    %v8669 = vunpack.c.l.b16 %v6738
    %v8670 = vunpack.c.h.b16 %v6738
    %v8671 = vunpack.c.l.b16 %v6739
    %v8672 = vunpack.c.h.b16 %v6739
    %v8673 = vunpack.c.l.b16 %v6740
    %v8674 = vunpack.c.h.b16 %v6740
    %v8675 = vunpack.c.l.b16 %v6741
    %v8676 = vunpack.c.h.b16 %v6741
    %v8677 = vunpack.c.l.b16 %v6742
    %v8678 = vunpack.c.h.b16 %v6742
    %v8679 = vunpack.c.l.b16 %v6743
    %v8680 = vunpack.c.h.b16 %v6743
    %v8681 = vunpack.c.l.b16 %v6744
    %v8682 = vunpack.c.h.b16 %v6744
    %v8683 = vunpack.c.l.b16 %v6745
    %v8684 = vunpack.c.h.b16 %v6745
    %v8685 = vunpack.c.l.b16 %v6746
    %v8686 = vunpack.c.h.b16 %v6746
    %v8687 = vunpack.c.l.b16 %v6747
    %v8688 = vunpack.c.h.b16 %v6747
    %v8689 = vunpack.c.l.b16 %v6748
    %v8690 = vunpack.c.h.b16 %v6748
    %v8691 = vunpack.c.l.b16 %v6749
    %v8692 = vunpack.c.h.b16 %v6749
    %v8693 = vunpack.c.l.b16 %v6750
    %v8694 = vunpack.c.h.b16 %v6750
    %v8695 = vunpack.c.l.b16 %v6751
    %v8696 = vunpack.c.h.b16 %v6751
    %v8697 = vunpack.c.l.b16 %v6752
    %v8698 = vunpack.c.h.b16 %v6752
    %v8699 = vunpack.c.l.b16 %v6753
    %v8700 = vunpack.c.h.b16 %v6753
    %v8701 = vunpack.c.l.b16 %v6754
    %v8702 = vunpack.c.h.b16 %v6754
    %v8703 = vunpack.c.l.b16 %v6755
    %v8704 = vunpack.c.h.b16 %v6755
    %v8705 = vunpack.c.l.b16 %v6756
    %v8706 = vunpack.c.h.b16 %v6756
    %v8707 = vunpack.c.l.b16 %v6757
    %v8708 = vunpack.c.h.b16 %v6757
    %v8709 = vunpack.c.l.b16 %v6758
    %v8710 = vunpack.c.h.b16 %v6758
    %v8711 = vunpack.c.l.b16 %v6759
    %v8712 = vunpack.c.h.b16 %v6759
    %v8713 = vunpack.c.l.b16 %v6760
    %v8714 = vunpack.c.h.b16 %v6760
    %v8715 = vunpack.c.l.b16 %v6761
    %v8716 = vunpack.c.h.b16 %v6761
    %v8717 = vunpack.c.l.b16 %v6762
    %v8718 = vunpack.c.h.b16 %v6762
    %v8719 = vunpack.c.l.b16 %v6763
    %v8720 = vunpack.c.h.b16 %v6763
    %v8721 = vunpack.c.l.b16 %v6764
    %v8722 = vunpack.c.h.b16 %v6764
    %v8723 = vunpack.c.l.b16 %v6765
    %v8724 = vunpack.c.h.b16 %v6765
    %v8725 = vunpack.c.l.b16 %v6766
    %v8726 = vunpack.c.h.b16 %v6766
    %v8727 = vunpack.c.l.b16 %v6767
    %v8728 = vunpack.c.h.b16 %v6767
    %v8729 = vunpack.c.l.b16 %v6768
    %v8730 = vunpack.c.h.b16 %v6768
    %v8731 = vunpack.c.l.b16 %v6769
    %v8732 = vunpack.c.h.b16 %v6769
    %v8733 = vunpack.c.l.b16 %v6770
    %v8734 = vunpack.c.h.b16 %v6770
    %v8735 = vunpack.c.l.b16 %v6771
    %v8736 = vunpack.c.h.b16 %v6771
    %v8737 = vunpack.c.l.b16 %v6772
    %v8738 = vunpack.c.h.b16 %v6772
    %v8739 = vunpack.c.l.b16 %v6773
    %v8740 = vunpack.c.h.b16 %v6773
    %v8741 = vunpack.c.l.b16 %v6774
    %v8742 = vunpack.c.h.b16 %v6774
    %v8743 = vunpack.c.l.b16 %v6775
    %v8744 = vunpack.c.h.b16 %v6775
    %v8745 = vunpack.c.l.b16 %v6776
    %v8746 = vunpack.c.h.b16 %v6776
    %v8747 = vunpack.c.l.b16 %v6777
    %v8748 = vunpack.c.h.b16 %v6777
    %v8749 = vunpack.c.l.b16 %v6778
    %v8750 = vunpack.c.h.b16 %v6778
    %v8751 = vunpack.c.l.b16 %v6779
    %v8752 = vunpack.c.h.b16 %v6779
    %v8753 = vunpack.c.l.b16 %v6780
    %v8754 = vunpack.c.h.b16 %v6780
    %v8755 = vunpack.c.l.b16 %v6781
    %v8756 = vunpack.c.h.b16 %v6781
    %v8757 = vunpack.c.l.b16 %v6782
    %v8758 = vunpack.c.h.b16 %v6782
    %v8759 = vunpack.c.l.b16 %v6783
    %v8760 = vunpack.c.h.b16 %v6783
    %v8761 = vunpack.c.l.b16 %v6784
    %v8762 = vunpack.c.h.b16 %v6784
    %v8763 = vunpack.c.l.b16 %v6785
    %v8764 = vunpack.c.h.b16 %v6785
    %v8765 = vunpack.c.l.b16 %v6786
    %v8766 = vunpack.c.h.b16 %v6786
    %v8767 = vunpack.c.l.b16 %v6787
    %v8768 = vunpack.c.h.b16 %v6787
    %v8769 = vunpack.c.l.b16 %v6788
    %v8770 = vunpack.c.h.b16 %v6788
    %v8771 = vunpack.c.l.b16 %v6789
    %v8772 = vunpack.c.h.b16 %v6789
    %v8773 = vunpack.c.l.b16 %v6790
    %v8774 = vunpack.c.h.b16 %v6790
    %v8775 = vunpack.c.l.b16 %v6791
    %v8776 = vunpack.c.h.b16 %v6791
    %v8777 = vunpack.c.l.b16 %v6792
    %v8778 = vunpack.c.h.b16 %v6792
    %v8779 = vunpack.c.l.b16 %v6793
    %v8780 = vunpack.c.h.b16 %v6793
    %v8781 = vunpack.c.l.b16 %v6794
    %v8782 = vunpack.c.h.b16 %v6794
    %v8783 = vunpack.c.l.b16 %v6795
    %v8784 = vunpack.c.h.b16 %v6795
    %v8785 = vunpack.c.l.b16 %v6796
    %v8786 = vunpack.c.h.b16 %v6796
    %v8787 = vunpack.c.l.b16 %v6797
    %v8788 = vunpack.c.h.b16 %v6797
    %v8789 = vunpack.c.l.b16 %v6798
    %v8790 = vunpack.c.h.b16 %v6798
    %v8791 = vunpack.c.l.b16 %v6799
    %v8792 = vunpack.c.h.b16 %v6799
    %v8793 = vunpack.c.l.b16 %v6800
    %v8794 = vunpack.c.h.b16 %v6800
    %v8795 = vunpack.c.l.b16 %v6801
    %v8796 = vunpack.c.h.b16 %v6801
    %v8797 = vunpack.c.l.b16 %v6802
    %v8798 = vunpack.c.h.b16 %v6802
    %v8799 = vunpack.c.l.b16 %v6803
    %v8800 = vunpack.c.h.b16 %v6803
    %v8801 = vunpack.c.l.b16 %v6804
    %v8802 = vunpack.c.h.b16 %v6804
    %v8803 = vunpack.c.l.b16 %v6805
    %v8804 = vunpack.c.h.b16 %v6805
    %v8805 = vunpack.c.l.b16 %v6806
    %v8806 = vunpack.c.h.b16 %v6806
    %v8807 = vunpack.c.l.b16 %v6807
    %v8808 = vunpack.c.h.b16 %v6807
    %v8809 = vunpack.c.l.b16 %v6808
    %v8810 = vunpack.c.h.b16 %v6808
    %v8811 = vunpack.c.l.b16 %v6809
    %v8812 = vunpack.c.h.b16 %v6809
    %v8813 = vunpack.c.l.b16 %v6810
    %v8814 = vunpack.c.h.b16 %v6810
    %v8815 = vunpack.c.l.b16 %v6811
    %v8816 = vunpack.c.h.b16 %v6811
    %v8817 = vunpack.c.l.b16 %v6812
    %v8818 = vunpack.c.h.b16 %v6812
    %v8819 = vunpack.c.l.b16 %v6813
    %v8820 = vunpack.c.h.b16 %v6813
    %v8821 = vunpack.c.l.b16 %v6814
    %v8822 = vunpack.c.h.b16 %v6814
    %v8823 = vunpack.c.l.b16 %v6815
    %v8824 = vunpack.c.h.b16 %v6815
    %v8825 = vunpack.c.l.b16 %v6816
    %v8826 = vunpack.c.h.b16 %v6816
    %v8827 = vunpack.c.l.b16 %v6817
    %v8828 = vunpack.c.h.b16 %v6817
    %v8829 = vunpack.c.l.b16 %v6818
    %v8830 = vunpack.c.h.b16 %v6818
    %v8831 = vunpack.c.l.b16 %v6819
    %v8832 = vunpack.c.h.b16 %v6819
    %v8833 = vunpack.c.l.b16 %v6820
    %v8834 = vunpack.c.h.b16 %v6820
    %v8835 = vunpack.c.l.b16 %v6821
    %v8836 = vunpack.c.h.b16 %v6821
    %v8837 = vunpack.c.l.b16 %v6822
    %v8838 = vunpack.c.h.b16 %v6822
    %v8839 = vunpack.c.l.b16 %v6823
    %v8840 = vunpack.c.h.b16 %v6823
    %v8841 = vunpack.c.l.b16 %v6824
    %v8842 = vunpack.c.h.b16 %v6824
    %v8843 = vunpack.c.l.b16 %v6825
    %v8844 = vunpack.c.h.b16 %v6825
    %v8845 = vunpack.c.l.b16 %v6826
    %v8846 = vunpack.c.h.b16 %v6826
    %v8847 = vunpack.c.l.b16 %v6827
    %v8848 = vunpack.c.h.b16 %v6827
    %v8849 = vunpack.c.l.b16 %v6828
    %v8850 = vunpack.c.h.b16 %v6828
    %v8851 = vunpack.c.l.b16 %v6829
    %v8852 = vunpack.c.h.b16 %v6829
    %v8853 = vunpack.c.l.b16 %v6830
    %v8854 = vunpack.c.h.b16 %v6830
    %v8855 = vunpack.c.l.b16 %v6831
    %v8856 = vunpack.c.h.b16 %v6831
    %v8857 = vunpack.c.l.b16 %v6832
    %v8858 = vunpack.c.h.b16 %v6832
    %v8859 = vunpack.c.l.b16 %v6833
    %v8860 = vunpack.c.h.b16 %v6833
    %v8861 = vunpack.c.l.b16 %v6834
    %v8862 = vunpack.c.h.b16 %v6834
    %v8863 = vunpack.c.l.b16 %v6835
    %v8864 = vunpack.c.h.b16 %v6835
    %v8865 = vunpack.c.l.b16 %v6836
    %v8866 = vunpack.c.h.b16 %v6836
    %v8867 = vunpack.c.l.b16 %v6837
    %v8868 = vunpack.c.h.b16 %v6837
    %v8869 = vunpack.c.l.b16 %v6838
    %v8870 = vunpack.c.h.b16 %v6838
    %v8871 = vunpack.c.l.b16 %v6839
    %v8872 = vunpack.c.h.b16 %v6839
    %v8873 = vunpack.c.l.b16 %v6840
    %v8874 = vunpack.c.h.b16 %v6840
    %v8875 = vunpack.c.l.b16 %v6841
    %v8876 = vunpack.c.h.b16 %v6841
    %v8877 = vunpack.c.l.b16 %v6842
    %v8878 = vunpack.c.h.b16 %v6842
    %v8879 = vunpack.c.l.b16 %v6843
    %v8880 = vunpack.c.h.b16 %v6843
    %v8881 = vunpack.c.l.b16 %v6844
    %v8882 = vunpack.c.h.b16 %v6844
    %v8883 = vunpack.c.l.b16 %v6845
    %v8884 = vunpack.c.h.b16 %v6845
    %v8885 = vunpack.c.l.b16 %v6846
    %v8886 = vunpack.c.h.b16 %v6846
    %v8887 = vunpack.c.l.b16 %v6847
    %v8888 = vunpack.c.h.b16 %v6847
    %v8889 = vunpack.c.l.b16 %v6848
    %v8890 = vunpack.c.h.b16 %v6848
    %v8891 = vunpack.c.l.b16 %v6849
    %v8892 = vunpack.c.h.b16 %v6849
    %v8893 = vunpack.c.l.b16 %v6850
    %v8894 = vunpack.c.h.b16 %v6850
    %v8895 = vunpack.c.l.b16 %v6851
    %v8896 = vunpack.c.h.b16 %v6851
    %v8897 = vunpack.c.l.b16 %v6852
    %v8898 = vunpack.c.h.b16 %v6852
    %v8899 = vunpack.c.l.b16 %v6853
    %v8900 = vunpack.c.h.b16 %v6853
    %v8901 = vunpack.c.l.b16 %v6854
    %v8902 = vunpack.c.h.b16 %v6854
    %v8903 = vunpack.c.l.b16 %v6855
    %v8904 = vunpack.c.h.b16 %v6855
    %v8905 = vunpack.c.l.b16 %v6856
    %v8906 = vunpack.c.h.b16 %v6856
    %v8907 = vunpack.c.l.b16 %v6857
    %v8908 = vunpack.c.h.b16 %v6857
    %v8909 = vunpack.c.l.b16 %v6858
    %v8910 = vunpack.c.h.b16 %v6858
    %v8911 = vunpack.c.l.b16 %v6859
    %v8912 = vunpack.c.h.b16 %v6859
    %v8913 = vunpack.c.l.b16 %v6860
    %v8914 = vunpack.c.h.b16 %v6860
    %v8915 = vunpack.c.l.b16 %v6861
    %v8916 = vunpack.c.h.b16 %v6861
    %v8917 = vunpack.c.l.b16 %v6862
    %v8918 = vunpack.c.h.b16 %v6862
    %v8919 = vunpack.c.l.b16 %v6863
    %v8920 = vunpack.c.h.b16 %v6863
    %v8921 = vunpack.c.l.b16 %v6864
    %v8922 = vunpack.c.h.b16 %v6864
    %v8923 = vunpack.c.l.b16 %v6865
    %v8924 = vunpack.c.h.b16 %v6865
    %v8925 = vunpack.c.l.b16 %v6866
    %v8926 = vunpack.c.h.b16 %v6866
    %v8927 = vunpack.c.l.b16 %v6867
    %v8928 = vunpack.c.h.b16 %v6867
    %v8929 = vunpack.c.l.b16 %v6868
    %v8930 = vunpack.c.h.b16 %v6868
    %v8931 = vunpack.c.l.b16 %v6869
    %v8932 = vunpack.c.h.b16 %v6869
    %v8933 = vunpack.c.l.b16 %v6870
    %v8934 = vunpack.c.h.b16 %v6870
    %v8935 = vunpack.c.l.b16 %v6871
    %v8936 = vunpack.c.h.b16 %v6871
    %v8937 = vunpack.c.l.b16 %v6872
    %v8938 = vunpack.c.h.b16 %v6872
    %v8939 = vunpack.c.l.b16 %v6873
    %v8940 = vunpack.c.h.b16 %v6873
    %v8941 = vunpack.c.l.b16 %v6874
    %v8942 = vunpack.c.h.b16 %v6874
    %v8943 = vunpack.c.l.b16 %v6875
    %v8944 = vunpack.c.h.b16 %v6875
    %v8945 = vunpack.c.l.b16 %v6876
    %v8946 = vunpack.c.h.b16 %v6876
    %v8947 = vunpack.c.l.b16 %v6877
    %v8948 = vunpack.c.h.b16 %v6877
    %v8949 = vunpack.c.l.b16 %v6878
    %v8950 = vunpack.c.h.b16 %v6878
    %v8951 = vunpack.c.l.b16 %v6879
    %v8952 = vunpack.c.h.b16 %v6879
    %v8953 = vunpack.c.l.b16 %v6880
    %v8954 = vunpack.c.h.b16 %v6880
    %v8955 = vunpack.c.l.b16 %v6881
    %v8956 = vunpack.c.h.b16 %v6881
    %v8957 = vunpack.c.l.b16 %v6882
    %v8958 = vunpack.c.h.b16 %v6882
    %v8959 = vunpack.c.l.b16 %v6883
    %v8960 = vunpack.c.h.b16 %v6883
    %v8961 = vunpack.c.l.b16 %v6884
    %v8962 = vunpack.c.h.b16 %v6884
    %v8963 = vunpack.c.l.b16 %v6885
    %v8964 = vunpack.c.h.b16 %v6885
    %v8965 = vunpack.c.l.b16 %v6886
    %v8966 = vunpack.c.h.b16 %v6886
    %v8967 = vunpack.c.l.b16 %v6887
    %v8968 = vunpack.c.h.b16 %v6887
    %v8969 = vunpack.c.l.b16 %v6888
    %v8970 = vunpack.c.h.b16 %v6888
    %v8971 = vunpack.c.l.b16 %v6889
    %v8972 = vunpack.c.h.b16 %v6889
    %v8973 = vunpack.c.l.b16 %v6890
    %v8974 = vunpack.c.h.b16 %v6890
    %v8975 = vunpack.c.l.b16 %v6891
    %v8976 = vunpack.c.h.b16 %v6891
    %v8977 = vunpack.c.l.b16 %v6892
    %v8978 = vunpack.c.h.b16 %v6892
    %v8979 = vunpack.c.l.b16 %v6893
    %v8980 = vunpack.c.h.b16 %v6893
    %v8981 = vunpack.c.l.b16 %v6894
    %v8982 = vunpack.c.h.b16 %v6894
    %v8983 = vunpack.c.l.b16 %v6895
    %v8984 = vunpack.c.h.b16 %v6895
    %v8985 = vunpack.c.l.b16 %v6896
    %v8986 = vunpack.c.h.b16 %v6896
    %v8987 = vunpack.c.l.b16 %v6897
    %v8988 = vunpack.c.h.b16 %v6897
    %v8989 = vunpack.c.l.b16 %v6898
    %v8990 = vunpack.c.h.b16 %v6898
    %v8991 = vunpack.c.l.b16 %v6899
    %v8992 = vunpack.c.h.b16 %v6899
    %v8993 = vunpack.c.l.b16 %v6900
    %v8994 = vunpack.c.h.b16 %v6900
    %v8995 = vunpack.c.l.b16 %v6901
    %v8996 = vunpack.c.h.b16 %v6901
    %v8997 = vunpack.c.l.b16 %v6902
    %v8998 = vunpack.c.h.b16 %v6902
    %v8999 = vunpack.c.l.b16 %v6903
    %v9000 = vunpack.c.h.b16 %v6903
    %v9001 = vunpack.c.l.b16 %v6904
    %v9002 = vunpack.c.h.b16 %v6904
    %v9003 = vunpack.c.l.b16 %v6905
    %v9004 = vunpack.c.h.b16 %v6905
    %v9005 = vunpack.c.l.b16 %v6906
    %v9006 = vunpack.c.h.b16 %v6906
    %v9007 = vunpack.c.l.b16 %v6907
    %v9008 = vunpack.c.h.b16 %v6907
    %v9009 = vunpack.c.l.b16 %v6908
    %v9010 = vunpack.c.h.b16 %v6908
    %v9011 = vunpack.c.l.b16 %v6909
    %v9012 = vunpack.c.h.b16 %v6909
    %v9013 = vunpack.c.l.b16 %v6910
    %v9014 = vunpack.c.h.b16 %v6910
    %v9015 = vunpack.c.l.b16 %v6911
    %v9016 = vunpack.c.h.b16 %v6911
    %v9017 = vunpack.c.l.b16 %v6912
    %v9018 = vunpack.c.h.b16 %v6912
    %v9019 = vunpack.c.l.b16 %v6913
    %v9020 = vunpack.c.h.b16 %v6913
    %v9021 = vunpack.c.l.b16 %v6914
    %v9022 = vunpack.c.h.b16 %v6914
    %v9023 = vunpack.c.l.b16 %v6915
    %v9024 = vunpack.c.h.b16 %v6915
    %v9025 = vunpack.c.l.b16 %v6916
    %v9026 = vunpack.c.h.b16 %v6916
    %v9027 = vunpack.c.l.b16 %v6917
    %v9028 = vunpack.c.h.b16 %v6917
    %v9029 = vunpack.c.l.b16 %v6918
    %v9030 = vunpack.c.h.b16 %v6918
    %v9031 = vunpack.c.l.b16 %v6919
    %v9032 = vunpack.c.h.b16 %v6919
    %v9033 = vunpack.c.l.b16 %v6920
    %v9034 = vunpack.c.h.b16 %v6920
    %v9035 = vunpack.c.l.b16 %v6921
    %v9036 = vunpack.c.h.b16 %v6921
    %v9037 = vunpack.c.l.b16 %v6922
    %v9038 = vunpack.c.h.b16 %v6922
    %v9039 = vunpack.c.l.b16 %v6923
    %v9040 = vunpack.c.h.b16 %v6923
    %v9041 = vunpack.c.l.b16 %v6924
    %v9042 = vunpack.c.h.b16 %v6924
    %v9043 = vunpack.c.l.b16 %v6925
    %v9044 = vunpack.c.h.b16 %v6925
    %v9045 = vunpack.c.l.b16 %v6926
    %v9046 = vunpack.c.h.b16 %v6926
    %v9047 = vunpack.c.l.b16 %v6927
    %v9048 = vunpack.c.h.b16 %v6927
    %v9049 = vunpack.c.l.b16 %v6928
    %v9050 = vunpack.c.h.b16 %v6928
    %v9051 = vunpack.c.l.b16 %v6929
    %v9052 = vunpack.c.h.b16 %v6929
    %v9053 = vunpack.c.l.b16 %v6930
    %v9054 = vunpack.c.h.b16 %v6930
    %v9055 = vunpack.c.l.b16 %v6931
    %v9056 = vunpack.c.h.b16 %v6931
    %v9057 = vunpack.c.l.b16 %v6932
    %v9058 = vunpack.c.h.b16 %v6932
    %v9059 = vunpack.c.l.b16 %v6933
    %v9060 = vunpack.c.h.b16 %v6933
    %v9061 = vunpack.c.l.b16 %v6934
    %v9062 = vunpack.c.h.b16 %v6934
    %v9063 = vunpack.c.l.b16 %v6935
    %v9064 = vunpack.c.h.b16 %v6935
    %v9065 = vunpack.c.l.b16 %v6936
    %v9066 = vunpack.c.h.b16 %v6936
    %v9067 = vunpack.c.l.b16 %v6937
    %v9068 = vunpack.c.h.b16 %v6937
    %v9069 = vunpack.c.l.b16 %v6938
    %v9070 = vunpack.c.h.b16 %v6938
    %v9071 = vunpack.c.l.b16 %v6939
    %v9072 = vunpack.c.h.b16 %v6939
    %v9073 = vunpack.c.l.b16 %v6940
    %v9074 = vunpack.c.h.b16 %v6940
    %v9075 = vunpack.c.l.b16 %v6941
    %v9076 = vunpack.c.h.b16 %v6941
    %v9077 = vunpack.c.l.b16 %v6942
    %v9078 = vunpack.c.h.b16 %v6942
    %v9079 = vunpack.c.l.b16 %v6943
    %v9080 = vunpack.c.h.b16 %v6943
    %v9081 = vunpack.c.l.b16 %v6944
    %v9082 = vunpack.c.h.b16 %v6944
    %v9083 = vunpack.c.l.b16 %v6945
    %v9084 = vunpack.c.h.b16 %v6945
    %v9085 = vunpack.c.l.b16 %v6946
    %v9086 = vunpack.c.h.b16 %v6946
    %v9087 = vunpack.c.l.b16 %v6947
    %v9088 = vunpack.c.h.b16 %v6947
    %v9089 = vunpack.c.l.b16 %v6948
    %v9090 = vunpack.c.h.b16 %v6948
    %v9091 = vunpack.c.l.b16 %v6949
    %v9092 = vunpack.c.h.b16 %v6949
    %v9093 = vunpack.c.l.b16 %v6950
    %v9094 = vunpack.c.h.b16 %v6950
    %v9095 = vunpack.c.l.b16 %v6951
    %v9096 = vunpack.c.h.b16 %v6951
    %v9097 = vunpack.c.l.b16 %v6952
    %v9098 = vunpack.c.h.b16 %v6952
    %v9099 = vunpack.c.l.b16 %v6953
    %v9100 = vunpack.c.h.b16 %v6953
    %v9101 = vunpack.c.l.b16 %v6954
    %v9102 = vunpack.c.h.b16 %v6954
    %v9103 = vunpack.c.l.b16 %v6955
    %v9104 = vunpack.c.h.b16 %v6955
    %v9105 = vunpack.c.l.b16 %v6956
    %v9106 = vunpack.c.h.b16 %v6956
    %v9107 = vunpack.c.l.b16 %v6957
    %v9108 = vunpack.c.h.b16 %v6957
    %v9109 = vunpack.c.l.b16 %v6958
    %v9110 = vunpack.c.h.b16 %v6958
    %v9111 = vunpack.c.l.b16 %v6959
    %v9112 = vunpack.c.h.b16 %v6959
    %v9113 = vunpack.c.l.b16 %v6960
    %v9114 = vunpack.c.h.b16 %v6960
    %v9115 = vunpack.c.l.b16 %v6961
    %v9116 = vunpack.c.h.b16 %v6961
    %v9117 = vunpack.c.l.b16 %v6962
    %v9118 = vunpack.c.h.b16 %v6962
    %v9119 = vunpack.c.l.b16 %v6963
    %v9120 = vunpack.c.h.b16 %v6963
    %v9121 = vunpack.c.l.b16 %v6964
    %v9122 = vunpack.c.h.b16 %v6964
    %v9123 = vunpack.c.l.b16 %v6965
    %v9124 = vunpack.c.h.b16 %v6965
    %v9125 = vunpack.c.l.b16 %v6966
    %v9126 = vunpack.c.h.b16 %v6966
    %v9127 = vunpack.c.l.b16 %v6967
    %v9128 = vunpack.c.h.b16 %v6967
    %v9129 = vunpack.c.l.b16 %v6968
    %v9130 = vunpack.c.h.b16 %v6968
    %v9131 = vunpack.c.l.b16 %v6969
    %v9132 = vunpack.c.h.b16 %v6969
    %v9133 = vunpack.c.l.b16 %v6970
    %v9134 = vunpack.c.h.b16 %v6970
    %v9135 = vunpack.c.l.b16 %v6971
    %v9136 = vunpack.c.h.b16 %v6971
    %v9137 = vunpack.c.l.b16 %v6972
    %v9138 = vunpack.c.h.b16 %v6972
    %v9139 = vunpack.c.l.b16 %v6973
    %v9140 = vunpack.c.h.b16 %v6973
    %v9141 = vunpack.c.l.b16 %v6974
    %v9142 = vunpack.c.h.b16 %v6974
    %v9143 = vunpack.c.l.b16 %v6975
    %v9144 = vunpack.c.h.b16 %v6975
    %v9145 = vunpack.c.l.b16 %v6976
    %v9146 = vunpack.c.h.b16 %v6976
    %v9147 = vunpack.c.l.b16 %v6977
    %v9148 = vunpack.c.h.b16 %v6977
    %v9149 = vunpack.c.l.b16 %v6978
    %v9150 = vunpack.c.h.b16 %v6978
    %v9151 = vunpack.c.l.b16 %v6979
    %v9152 = vunpack.c.h.b16 %v6979
    %v9153 = vunpack.c.l.b16 %v6980
    %v9154 = vunpack.c.h.b16 %v6980
    %v9155 = vunpack.c.l.b16 %v6981
    %v9156 = vunpack.c.h.b16 %v6981
    %v9157 = vunpack.c.l.b16 %v6982
    %v9158 = vunpack.c.h.b16 %v6982
    %v9159 = vunpack.c.l.b16 %v6983
    %v9160 = vunpack.c.h.b16 %v6983
    %v9161 = vunpack.c.l.b16 %v6984
    %v9162 = vunpack.c.h.b16 %v6984
    %v9163 = vunpack.c.l.b16 %v6985
    %v9164 = vunpack.c.h.b16 %v6985
    %v9165 = vunpack.c.l.b16 %v6986
    %v9166 = vunpack.c.h.b16 %v6986
    %v9167 = vunpack.c.l.b16 %v6987
    %v9168 = vunpack.c.h.b16 %v6987
    %v9169 = vunpack.c.l.b16 %v6988
    %v9170 = vunpack.c.h.b16 %v6988
    %v9171 = vunpack.c.l.b16 %v6989
    %v9172 = vunpack.c.h.b16 %v6989
    %v9173 = vunpack.c.l.b16 %v6990
    %v9174 = vunpack.c.h.b16 %v6990
    %v9175 = vunpack.c.l.b16 %v6991
    %v9176 = vunpack.c.h.b16 %v6991
    %v9177 = vunpack.c.l.b16 %v6992
    %v9178 = vunpack.c.h.b16 %v6992
    %v9179 = vunpack.c.l.b16 %v6993
    %v9180 = vunpack.c.h.b16 %v6993
    %v9181 = vunpack.c.l.b16 %v6994
    %v9182 = vunpack.c.h.b16 %v6994
    %v9183 = vunpack.c.l.b16 %v6995
    %v9184 = vunpack.c.h.b16 %v6995
    %v9185 = vunpack.c.l.b16 %v6996
    %v9186 = vunpack.c.h.b16 %v6996
    %v9187 = vunpack.c.l.b16 %v6997
    %v9188 = vunpack.c.h.b16 %v6997
    %v9189 = vunpack.c.l.b16 %v6998
    %v9190 = vunpack.c.h.b16 %v6998
    %v9191 = vunpack.c.l.b16 %v6999
    %v9192 = vunpack.c.h.b16 %v6999
    %v9193 = vunpack.c.l.b16 %v7000
    %v9194 = vunpack.c.h.b16 %v7000
    %v9195 = vunpack.c.l.b16 %v7001
    %v9196 = vunpack.c.h.b16 %v7001
    %v9197 = vunpack.c.l.b16 %v7002
    %v9198 = vunpack.c.h.b16 %v7002
    %v9199 = vunpack.c.l.b16 %v7003
    %v9200 = vunpack.c.h.b16 %v7003
    %v9201 = vunpack.c.l.b16 %v7004
    %v9202 = vunpack.c.h.b16 %v7004
    %v9203 = vunpack.c.l.b16 %v7005
    %v9204 = vunpack.c.h.b16 %v7005
    %v9205 = vunpack.c.l.b16 %v7006
    %v9206 = vunpack.c.h.b16 %v7006
    %v9207 = vunpack.c.l.b16 %v7007
    %v9208 = vunpack.c.h.b16 %v7007
    %v9209 = vunpack.c.l.b16 %v7008
    %v9210 = vunpack.c.h.b16 %v7008
    %v9211 = vunpack.c.l.b16 %v7009
    %v9212 = vunpack.c.h.b16 %v7009
    %v9213 = vunpack.c.l.b16 %v7010
    %v9214 = vunpack.c.h.b16 %v7010
    %v9215 = vunpack.c.l.b16 %v7011
    %v9216 = vunpack.c.h.b16 %v7011
    %v9217 = vunpack.c.l.b16 %v7012
    %v9218 = vunpack.c.h.b16 %v7012
    %v9219 = vunpack.c.l.b16 %v7013
    %v9220 = vunpack.c.h.b16 %v7013
    %v9221 = vunpack.c.l.b16 %v7014
    %v9222 = vunpack.c.h.b16 %v7014
    %v9223 = vunpack.c.l.b16 %v7015
    %v9224 = vunpack.c.h.b16 %v7015
    %v9225 = vunpack.c.l.b16 %v7016
    %v9226 = vunpack.c.h.b16 %v7016
    %v9227 = vunpack.c.l.b16 %v7017
    %v9228 = vunpack.c.h.b16 %v7017
    %v9229 = vunpack.c.l.b16 %v7018
    %v9230 = vunpack.c.h.b16 %v7018
    %v9231 = vunpack.c.l.b16 %v7019
    %v9232 = vunpack.c.h.b16 %v7019
    %v9233 = vunpack.c.l.b16 %v7020
    %v9234 = vunpack.c.h.b16 %v7020
    %v9235 = vunpack.c.l.b16 %v7021
    %v9236 = vunpack.c.h.b16 %v7021
    %v9237 = vunpack.c.l.b16 %v7022
    %v9238 = vunpack.c.h.b16 %v7022
    %v9239 = vunpack.c.l.b16 %v7023
    %v9240 = vunpack.c.h.b16 %v7023
    %v9241 = vunpack.c.l.b16 %v7024
    %v9242 = vunpack.c.h.b16 %v7024
    %v9243 = vunpack.c.l.b16 %v7025
    %v9244 = vunpack.c.h.b16 %v7025
    %v9245 = vunpack.c.l.b16 %v7026
    %v9246 = vunpack.c.h.b16 %v7026
    %v9247 = vunpack.c.l.b16 %v7027
    %v9248 = vunpack.c.h.b16 %v7027
    %v9249 = vunpack.c.l.b16 %v7028
    %v9250 = vunpack.c.h.b16 %v7028
    %v9251 = vunpack.c.l.b16 %v7029
    %v9252 = vunpack.c.h.b16 %v7029
    %v9253 = vunpack.c.l.b16 %v7030
    %v9254 = vunpack.c.h.b16 %v7030
    %v9255 = vunpack.c.l.b16 %v7031
    %v9256 = vunpack.c.h.b16 %v7031
    %v9257 = vunpack.c.l.b16 %v7032
    %v9258 = vunpack.c.h.b16 %v7032
    %v9259 = vunpack.c.l.b16 %v7033
    %v9260 = vunpack.c.h.b16 %v7033
    %v9261 = vunpack.c.l.b16 %v7034
    %v9262 = vunpack.c.h.b16 %v7034
    %v9263 = vunpack.c.l.b16 %v7035
    %v9264 = vunpack.c.h.b16 %v7035
    %v9265 = vunpack.c.l.b16 %v7036
    %v9266 = vunpack.c.h.b16 %v7036
    %v9267 = vunpack.c.l.b16 %v7037
    %v9268 = vunpack.c.h.b16 %v7037
    %v9269 = vunpack.c.l.b16 %v7038
    %v9270 = vunpack.c.h.b16 %v7038
    %v9271 = vunpack.c.l.b16 %v7039
    %v9272 = vunpack.c.h.b16 %v7039
    %v9273 = vunpack.c.l.b16 %v7040
    %v9274 = vunpack.c.h.b16 %v7040
    %v9275 = vunpack.c.l.b16 %v7041
    %v9276 = vunpack.c.h.b16 %v7041
    %v9277 = vunpack.c.l.b16 %v7042
    %v9278 = vunpack.c.h.b16 %v7042
    %v9279 = vunpack.c.l.b16 %v7043
    %v9280 = vunpack.c.h.b16 %v7043
    %v9281 = vunpack.c.l.b16 %v7044
    %v9282 = vunpack.c.h.b16 %v7044
    %v9283 = vunpack.c.l.b16 %v7045
    %v9284 = vunpack.c.h.b16 %v7045
    %v9285 = vunpack.c.l.b16 %v7046
    %v9286 = vunpack.c.h.b16 %v7046
    %v9287 = vunpack.c.l.b16 %v7047
    %v9288 = vunpack.c.h.b16 %v7047
    %v9289 = vunpack.c.l.b16 %v7048
    %v9290 = vunpack.c.h.b16 %v7048
    %v9291 = vunpack.c.l.b16 %v7049
    %v9292 = vunpack.c.h.b16 %v7049
    %v9293 = vunpack.c.l.b16 %v7050
    %v9294 = vunpack.c.h.b16 %v7050
    %v9295 = vunpack.c.l.b16 %v7051
    %v9296 = vunpack.c.h.b16 %v7051
    %v9297 = vunpack.c.l.b16 %v7052
    %v9298 = vunpack.c.h.b16 %v7052
    %v9299 = vunpack.c.l.b16 %v7053
    %v9300 = vunpack.c.h.b16 %v7053
    %v9301 = vunpack.c.l.b16 %v7054
    %v9302 = vunpack.c.h.b16 %v7054
    %v9303 = vunpack.c.l.b16 %v7055
    %v9304 = vunpack.c.h.b16 %v7055
    %v9305 = vunpack.c.l.b16 %v7056
    %v9306 = vunpack.c.h.b16 %v7056
    %v9307 = vunpack.c.l.b16 %v7057
    %v9308 = vunpack.c.h.b16 %v7057
    %v9309 = vunpack.c.l.b16 %v7058
    %v9310 = vunpack.c.h.b16 %v7058
    %v9311 = vunpack.c.l.b16 %v7059
    %v9312 = vunpack.c.h.b16 %v7059
    %v9313 = vunpack.c.l.b16 %v7060
    %v9314 = vunpack.c.h.b16 %v7060
    %v9315 = vunpack.c.l.b16 %v7061
    %v9316 = vunpack.c.h.b16 %v7061
    %v9317 = vunpack.c.l.b16 %v7062
    %v9318 = vunpack.c.h.b16 %v7062
    %v9319 = vunpack.c.l.b16 %v7063
    %v9320 = vunpack.c.h.b16 %v7063
    %v9321 = vunpack.c.l.b16 %v7064
    %v9322 = vunpack.c.h.b16 %v7064
    %v9323 = vunpack.c.l.b16 %v7065
    %v9324 = vunpack.c.h.b16 %v7065
    %v9325 = vunpack.c.l.b16 %v7066
    %v9326 = vunpack.c.h.b16 %v7066
    %v9327 = vunpack.c.l.b16 %v7067
    %v9328 = vunpack.c.h.b16 %v7067
    %v9329 = vunpack.c.l.b16 %v7068
    %v9330 = vunpack.c.h.b16 %v7068
    %v9331 = vunpack.c.l.b16 %v7069
    %v9332 = vunpack.c.h.b16 %v7069
    %v9333 = vunpack.c.l.b16 %v7070
    %v9334 = vunpack.c.h.b16 %v7070
    %v9335 = vunpack.c.l.b16 %v7071
    %v9336 = vunpack.c.h.b16 %v7071
    %v9337 = vunpack.c.l.b16 %v7072
    %v9338 = vunpack.c.h.b16 %v7072
    %v9339 = vunpack.c.l.b16 %v7073
    %v9340 = vunpack.c.h.b16 %v7073
    %v9341 = vunpack.c.l.b16 %v7074
    %v9342 = vunpack.c.h.b16 %v7074
    %v9343 = vunpack.c.l.b16 %v7075
    %v9344 = vunpack.c.h.b16 %v7075
    %v9345 = vunpack.c.l.b16 %v7076
    %v9346 = vunpack.c.h.b16 %v7076
    %v9347 = vunpack.c.l.b16 %v7077
    %v9348 = vunpack.c.h.b16 %v7077
    %v9349 = vunpack.c.l.b16 %v7078
    %v9350 = vunpack.c.h.b16 %v7078
    %v9351 = vunpack.c.l.b16 %v7079
    %v9352 = vunpack.c.h.b16 %v7079
    %v9353 = vunpack.c.l.b16 %v7080
    %v9354 = vunpack.c.h.b16 %v7080
    %v9355 = vunpack.c.l.b16 %v7081
    %v9356 = vunpack.c.h.b16 %v7081
    %v9357 = vunpack.c.l.b16 %v7082
    %v9358 = vunpack.c.h.b16 %v7082
    %v9359 = vunpack.c.l.b16 %v7083
    %v9360 = vunpack.c.h.b16 %v7083
    %v9361 = vunpack.c.l.b16 %v7084
    %v9362 = vunpack.c.h.b16 %v7084
    %v9363 = vunpack.c.l.b16 %v7085
    %v9364 = vunpack.c.h.b16 %v7085
    %v9365 = vunpack.c.l.b16 %v7086
    %v9366 = vunpack.c.h.b16 %v7086
    %v9367 = vunpack.c.l.b16 %v7087
    %v9368 = vunpack.c.h.b16 %v7087
    %v9369 = vunpack.c.l.b16 %v7088
    %v9370 = vunpack.c.h.b16 %v7088
    %v9371 = vunpack.c.l.b16 %v7089
    %v9372 = vunpack.c.h.b16 %v7089
    %v9373 = vunpack.c.l.b16 %v7090
    %v9374 = vunpack.c.h.b16 %v7090
    %v9375 = vunpack.c.l.b16 %v7091
    %v9376 = vunpack.c.h.b16 %v7091
    %v9377 = vunpack.c.l.b16 %v7092
    %v9378 = vunpack.c.h.b16 %v7092
    %v9379 = vunpack.c.l.b16 %v7093
    %v9380 = vunpack.c.h.b16 %v7093
    %v9381 = vunpack.c.l.b16 %v7094
    %v9382 = vunpack.c.h.b16 %v7094
    %v9383 = vunpack.c.l.b16 %v7095
    %v9384 = vunpack.c.h.b16 %v7095
    %v9385 = vunpack.c.l.b16 %v7096
    %v9386 = vunpack.c.h.b16 %v7096
    %v9387 = vunpack.c.l.b16 %v7097
    %v9388 = vunpack.c.h.b16 %v7097
    %v9389 = vunpack.c.l.b16 %v7098
    %v9390 = vunpack.c.h.b16 %v7098
    %v9391 = vunpack.c.l.b16 %v7099
    %v9392 = vunpack.c.h.b16 %v7099
    %v9393 = vunpack.c.l.b16 %v7100
    %v9394 = vunpack.c.h.b16 %v7100
    %v9395 = vunpack.c.l.b16 %v7101
    %v9396 = vunpack.c.h.b16 %v7101
    %v9397 = vunpack.c.l.b16 %v7102
    %v9398 = vunpack.c.h.b16 %v7102
    %v9399 = vunpack.c.l.b16 %v7103
    %v9400 = vunpack.c.h.b16 %v7103
    %v9401 = vunpack.c.l.b16 %v7104
    %v9402 = vunpack.c.h.b16 %v7104
    %v9403 = vunpack.c.l.b16 %v7105
    %v9404 = vunpack.c.h.b16 %v7105
    %v9405 = vunpack.c.l.b16 %v7106
    %v9406 = vunpack.c.h.b16 %v7106
    %v9407 = vunpack.c.l.b16 %v7107
    %v9408 = vunpack.c.h.b16 %v7107
    %v9409 = vunpack.c.l.b16 %v7108
    %v9410 = vunpack.c.h.b16 %v7108
    %v9411 = vunpack.c.l.b16 %v7109
    %v9412 = vunpack.c.h.b16 %v7109
    %v9413 = vunpack.c.l.b16 %v7110
    %v9414 = vunpack.c.h.b16 %v7110
    %v9415 = vunpack.c.l.b16 %v7111
    %v9416 = vunpack.c.h.b16 %v7111
    %v9417 = vunpack.c.l.b16 %v7112
    %v9418 = vunpack.c.h.b16 %v7112
    %v9419 = vunpack.c.l.b16 %v7113
    %v9420 = vunpack.c.h.b16 %v7113
    %v9421 = vunpack.c.l.b16 %v7114
    %v9422 = vunpack.c.h.b16 %v7114
    %v9423 = vunpack.c.l.b16 %v7115
    %v9424 = vunpack.c.h.b16 %v7115
    %v9425 = vunpack.c.l.b16 %v7116
    %v9426 = vunpack.c.h.b16 %v7116
    %v9427 = vunpack.c.l.b16 %v7117
    %v9428 = vunpack.c.h.b16 %v7117
    %v9429 = vunpack.c.l.b16 %v7118
    %v9430 = vunpack.c.h.b16 %v7118
    %v9431 = vunpack.c.l.b16 %v7119
    %v9432 = vunpack.c.h.b16 %v7119
    %v9433 = vunpack.c.l.b16 %v7120
    %v9434 = vunpack.c.h.b16 %v7120
    %v9435 = vunpack.c.l.b16 %v7121
    %v9436 = vunpack.c.h.b16 %v7121
    %v9437 = vunpack.c.l.b16 %v7122
    %v9438 = vunpack.c.h.b16 %v7122
    %v9439 = vunpack.c.l.b16 %v7123
    %v9440 = vunpack.c.h.b16 %v7123
    %v9441 = vunpack.c.l.b16 %v7124
    %v9442 = vunpack.c.h.b16 %v7124
    %v9443 = vunpack.c.l.b16 %v7125
    %v9444 = vunpack.c.h.b16 %v7125
    %v9445 = vunpack.c.l.b16 %v7126
    %v9446 = vunpack.c.h.b16 %v7126
    %v9447 = vunpack.c.l.b16 %v7127
    %v9448 = vunpack.c.h.b16 %v7127
    %v9449 = vunpack.c.l.b16 %v7128
    %v9450 = vunpack.c.h.b16 %v7128
    %v9451 = vunpack.c.l.b16 %v7129
    %v9452 = vunpack.c.h.b16 %v7129
    %v9453 = vunpack.c.l.b16 %v7130
    %v9454 = vunpack.c.h.b16 %v7130
    %v9455 = vunpack.c.l.b16 %v7131
    %v9456 = vunpack.c.h.b16 %v7131
    %v9457 = vunpack.c.l.b16 %v7132
    %v9458 = vunpack.c.h.b16 %v7132
    %v9459 = vunpack.c.l.b16 %v7133
    %v9460 = vunpack.c.h.b16 %v7133
    %v9461 = vunpack.c.l.b16 %v7134
    %v9462 = vunpack.c.h.b16 %v7134
    %v9463 = vunpack.c.l.b16 %v7135
    %v9464 = vunpack.c.h.b16 %v7135
    %v9465 = vunpack.c.l.b16 %v7136
    %v9466 = vunpack.c.h.b16 %v7136
    %v9467 = vunpack.c.l.b16 %v7137
    %v9468 = vunpack.c.h.b16 %v7137
    %v9469 = vunpack.c.l.b16 %v7138
    %v9470 = vunpack.c.h.b16 %v7138
    %v9471 = vunpack.c.l.b16 %v7139
    %v9472 = vunpack.c.h.b16 %v7139
    %v9473 = vunpack.c.l.b16 %v7140
    %v9474 = vunpack.c.h.b16 %v7140
    %v9475 = vunpack.c.l.b16 %v7141
    %v9476 = vunpack.c.h.b16 %v7141
    %v9477 = vunpack.c.l.b16 %v7142
    %v9478 = vunpack.c.h.b16 %v7142
    %v9479 = vunpack.c.l.b16 %v7143
    %v9480 = vunpack.c.h.b16 %v7143
    %v9481 = vunpack.c.l.b16 %v7144
    %v9482 = vunpack.c.h.b16 %v7144
    %v9483 = vunpack.c.l.b16 %v7145
    %v9484 = vunpack.c.h.b16 %v7145
    %v9485 = vunpack.c.l.b16 %v7146
    %v9486 = vunpack.c.h.b16 %v7146
    %v9487 = vunpack.c.l.b16 %v7147
    %v9488 = vunpack.c.h.b16 %v7147
    %v9489 = vunpack.c.l.b16 %v7148
    %v9490 = vunpack.c.h.b16 %v7148
    %v9491 = vunpack.c.l.b16 %v7149
    %v9492 = vunpack.c.h.b16 %v7149
    %v9493 = vunpack.c.l.b16 %v7150
    %v9494 = vunpack.c.h.b16 %v7150
    %v9495 = vunpack.c.l.b16 %v7151
    %v9496 = vunpack.c.h.b16 %v7151
    %v9497 = vunpack.c.l.b16 %v7152
    %v9498 = vunpack.c.h.b16 %v7152
    %v9499 = vunpack.c.l.b16 %v7153
    %v9500 = vunpack.c.h.b16 %v7153
    %v9501 = vunpack.c.l.b16 %v7154
    %v9502 = vunpack.c.h.b16 %v7154
    %v9503 = vunpack.c.l.b16 %v7155
    %v9504 = vunpack.c.h.b16 %v7155
    %v9505 = vunpack.c.l.b16 %v7156
    %v9506 = vunpack.c.h.b16 %v7156
    %v9507 = vunpack.c.l.b16 %v7157
    %v9508 = vunpack.c.h.b16 %v7157
    %v9509 = vunpack.c.l.b16 %v7158
    %v9510 = vunpack.c.h.b16 %v7158
    %v9511 = vunpack.c.l.b16 %v7159
    %v9512 = vunpack.c.h.b16 %v7159
    %v9513 = vunpack.c.l.b16 %v7160
    %v9514 = vunpack.c.h.b16 %v7160
    %v9515 = vunpack.c.l.b16 %v7161
    %v9516 = vunpack.c.h.b16 %v7161
    %v9517 = vunpack.c.l.b16 %v7162
    %v9518 = vunpack.c.h.b16 %v7162
    %v9519 = vunpack.c.l.b16 %v7163
    %v9520 = vunpack.c.h.b16 %v7163
    %v9521 = vunpack.c.l.b16 %v7164
    %v9522 = vunpack.c.h.b16 %v7164
    %v9523 = vunpack.c.l.b16 %v7165
    %v9524 = vunpack.c.h.b16 %v7165
    %v9525 = vunpack.c.l.b16 %v7166
    %v9526 = vunpack.c.h.b16 %v7166
    %v9527 = vunpack.c.l.b16 %v7167
    %v9528 = vunpack.c.h.b16 %v7167
    %v9529 = vunpack.c.l.b16 %v7168
    %v9530 = vunpack.c.h.b16 %v7168
    %v9531 = vunpack.c.l.b16 %v7169
    %v9532 = vunpack.c.h.b16 %v7169
    %v9533 = vunpack.c.l.b16 %v7170
    %v9534 = vunpack.c.h.b16 %v7170
    %v9535 = vunpack.c.l.b16 %v7171
    %v9536 = vunpack.c.h.b16 %v7171
    %v9537 = vunpack.c.l.b16 %v7172
    %v9538 = vunpack.c.h.b16 %v7172
    %v9539 = vunpack.c.l.b16 %v7173
    %v9540 = vunpack.c.h.b16 %v7173
    %v9541 = vunpack.c.l.b16 %v7174
    %v9542 = vunpack.c.h.b16 %v7174
    %v9543 = vunpack.c.l.b16 %v7175
    %v9544 = vunpack.c.h.b16 %v7175
    %v9545 = vunpack.c.l.b16 %v7176
    %v9546 = vunpack.c.h.b16 %v7176
    %v9547 = vunpack.c.l.b16 %v7177
    %v9548 = vunpack.c.h.b16 %v7177
    %v9549 = vunpack.c.l.b16 %v7178
    %v9550 = vunpack.c.h.b16 %v7178
    %v9551 = vunpack.c.l.b16 %v7179
    %v9552 = vunpack.c.h.b16 %v7179
    %v9553 = vunpack.c.l.b16 %v7180
    %v9554 = vunpack.c.h.b16 %v7180
    %v9555 = vunpack.c.l.b16 %v7181
    %v9556 = vunpack.c.h.b16 %v7181
    %v9557 = vunpack.c.l.b16 %v7182
    %v9558 = vunpack.c.h.b16 %v7182
    %v9559 = vunpack.c.l.b16 %v7183
    %v9560 = vunpack.c.h.b16 %v7183
    %v9561 = vunpack.c.l.b16 %v7184
    %v9562 = vunpack.c.h.b16 %v7184
    %v9563 = vunpack.c.l.b16 %v7185
    %v9564 = vunpack.c.h.b16 %v7185
    %v9565 = vunpack.c.l.b16 %v7186
    %v9566 = vunpack.c.h.b16 %v7186
    %v9567 = vunpack.c.l.b16 %v7187
    %v9568 = vunpack.c.h.b16 %v7187
    %v9569 = vunpack.c.l.b16 %v7188
    %v9570 = vunpack.c.h.b16 %v7188
    %v9571 = vunpack.c.l.b16 %v7189
    %v9572 = vunpack.c.h.b16 %v7189
    %v9573 = vunpack.c.l.b16 %v7190
    %v9574 = vunpack.c.h.b16 %v7190
    %v9575 = vunpack.c.l.b16 %v7191
    %v9576 = vunpack.c.h.b16 %v7191
    %v9577 = vunpack.c.l.b16 %v7192
    %v9578 = vunpack.c.h.b16 %v7192
    %v9579 = vunpack.c.l.b16 %v7193
    %v9580 = vunpack.c.h.b16 %v7193
    %v9581 = vunpack.c.l.b16 %v7194
    %v9582 = vunpack.c.h.b16 %v7194
    %v9583 = vunpack.c.l.b16 %v7195
    %v9584 = vunpack.c.h.b16 %v7195
    %v9585 = vunpack.c.l.b16 %v7196
    %v9586 = vunpack.c.h.b16 %v7196
    %v9587 = vunpack.c.l.b16 %v7197
    %v9588 = vunpack.c.h.b16 %v7197
    %v9589 = vunpack.c.l.b16 %v7198
    %v9590 = vunpack.c.h.b16 %v7198
    %v9591 = vunpack.c.l.b16 %v7199
    %v9592 = vunpack.c.h.b16 %v7199
    %v9593 = vunpack.c.l.b16 %v7200
    %v9594 = vunpack.c.h.b16 %v7200
    %v9595 = vunpack.c.l.b16 %v7201
    %v9596 = vunpack.c.h.b16 %v7201
    %v9597 = vunpack.c.l.b16 %v7202
    %v9598 = vunpack.c.h.b16 %v7202
    %v9599 = vunpack.c.l.b16 %v7203
    %v9600 = vunpack.c.h.b16 %v7203
    %v9601 = vunpack.c.l.b16 %v7204
    %v9602 = vunpack.c.h.b16 %v7204
    %v9603 = vunpack.c.l.b16 %v7205
    %v9604 = vunpack.c.h.b16 %v7205
    %v9605 = vunpack.c.l.b16 %v7206
    %v9606 = vunpack.c.h.b16 %v7206
    %v9607 = vunpack.c.l.b16 %v7207
    %v9608 = vunpack.c.h.b16 %v7207
    %v9609 = vunpack.c.l.b16 %v7208
    %v9610 = vunpack.c.h.b16 %v7208
    %v9611 = vunpack.c.l.b16 %v7209
    %v9612 = vunpack.c.h.b16 %v7209
    %v9613 = vunpack.c.l.b16 %v7210
    %v9614 = vunpack.c.h.b16 %v7210
    %v9615 = vunpack.c.l.b16 %v7211
    %v9616 = vunpack.c.h.b16 %v7211
    %v9617 = vunpack.c.l.b16 %v7212
    %v9618 = vunpack.c.h.b16 %v7212
    %v9619 = vunpack.c.l.b16 %v7213
    %v9620 = vunpack.c.h.b16 %v7213
    %v9621 = vunpack.c.l.b16 %v7214
    %v9622 = vunpack.c.h.b16 %v7214
    %v9623 = vunpack.c.l.b16 %v7215
    %v9624 = vunpack.c.h.b16 %v7215
    %v9625 = vunpack.c.l.b16 %v7216
    %v9626 = vunpack.c.h.b16 %v7216
    %v9627 = vunpack.c.l.b16 %v7217
    %v9628 = vunpack.c.h.b16 %v7217
    %v9629 = vunpack.c.l.b16 %v7218
    %v9630 = vunpack.c.h.b16 %v7218
    %v9631 = vunpack.c.l.b16 %v7219
    %v9632 = vunpack.c.h.b16 %v7219
    %v9633 = vunpack.c.l.b16 %v7220
    %v9634 = vunpack.c.h.b16 %v7220
    %v9635 = vunpack.c.l.b16 %v7221
    %v9636 = vunpack.c.h.b16 %v7221
    %v9637 = vunpack.c.l.b16 %v7222
    %v9638 = vunpack.c.h.b16 %v7222
    %v9639 = vunpack.c.l.b16 %v7223
    %v9640 = vunpack.c.h.b16 %v7223
    %v9641 = vunpack.c.l.b16 %v7224
    %v9642 = vunpack.c.h.b16 %v7224
    %v9643 = vunpack.c.l.b16 %v7225
    %v9644 = vunpack.c.h.b16 %v7225
    %v9645 = vunpack.c.l.b16 %v7226
    %v9646 = vunpack.c.h.b16 %v7226
    %v9647 = vunpack.c.l.b16 %v7227
    %v9648 = vunpack.c.h.b16 %v7227
    %v9649 = vunpack.c.l.b16 %v7228
    %v9650 = vunpack.c.h.b16 %v7228
    %v9651 = vunpack.c.l.b16 %v7229
    %v9652 = vunpack.c.h.b16 %v7229
    %v9653 = vunpack.c.l.b16 %v7230
    %v9654 = vunpack.c.h.b16 %v7230
    %v9655 = vunpack.c.l.b16 %v7231
    %v9656 = vunpack.c.h.b16 %v7231
    %v9657 = vunpack.c.l.b16 %v7232
    %v9658 = vunpack.c.h.b16 %v7232
    %v9659 = vunpack.c.l.b16 %v7233
    %v9660 = vunpack.c.h.b16 %v7233
    %v9661 = vunpack.c.l.b16 %v7234
    %v9662 = vunpack.c.h.b16 %v7234
    %v9663 = vunpack.c.l.b16 %v7235
    %v9664 = vunpack.c.h.b16 %v7235
    %v9665 = vunpack.c.l.b16 %v7236
    %v9666 = vunpack.c.h.b16 %v7236
    %v9667 = vunpack.c.l.b16 %v7237
    %v9668 = vunpack.c.h.b16 %v7237
    %v9669 = vunpack.c.l.b16 %v7238
    %v9670 = vunpack.c.h.b16 %v7238
    %v9671 = vunpack.c.l.b16 %v7239
    %v9672 = vunpack.c.h.b16 %v7239
    %v9673 = vunpack.c.l.b16 %v7240
    %v9674 = vunpack.c.h.b16 %v7240
    %v9675 = vunpack.c.l.b16 %v7241
    %v9676 = vunpack.c.h.b16 %v7241
    %v9677 = vunpack.c.l.b16 %v7242
    %v9678 = vunpack.c.h.b16 %v7242
    %v9679 = vunpack.c.l.b16 %v7243
    %v9680 = vunpack.c.h.b16 %v7243
    %v9681 = vunpack.c.l.b16 %v7244
    %v9682 = vunpack.c.h.b16 %v7244
    %v9683 = vunpack.c.l.b16 %v7245
    %v9684 = vunpack.c.h.b16 %v7245
    %v9685 = vunpack.c.l.b16 %v7246
    %v9686 = vunpack.c.h.b16 %v7246
    %v9687 = vunpack.c.l.b16 %v7247
    %v9688 = vunpack.c.h.b16 %v7247
    %v9689 = vunpack.c.l.b16 %v7248
    %v9690 = vunpack.c.h.b16 %v7248
    %v9691 = vunpack.c.l.b16 %v7249
    %v9692 = vunpack.c.h.b16 %v7249
    %v9693 = vunpack.c.l.b16 %v7250
    %v9694 = vunpack.c.h.b16 %v7250
    %v9695 = vunpack.c.l.b16 %v7251
    %v9696 = vunpack.c.h.b16 %v7251
    %v9697 = vunpack.c.l.b16 %v7252
    %v9698 = vunpack.c.h.b16 %v7252
    %v9699 = vunpack.c.l.b16 %v7253
    %v9700 = vunpack.c.h.b16 %v7253
    %v9701 = vunpack.c.l.b16 %v7254
    %v9702 = vunpack.c.h.b16 %v7254
    %v9703 = vunpack.c.l.b16 %v7255
    %v9704 = vunpack.c.h.b16 %v7255
    %v9705 = vunpack.c.l.b16 %v7256
    %v9706 = vunpack.c.h.b16 %v7256
    %v9707 = vunpack.c.l.b16 %v7257
    %v9708 = vunpack.c.h.b16 %v7257
    %v9709 = vunpack.c.l.b16 %v7258
    %v9710 = vunpack.c.h.b16 %v7258
    %v9711 = vunpack.c.l.b16 %v7259
    %v9712 = vunpack.c.h.b16 %v7259
    %v9713 = vunpack.c.l.b16 %v7260
    %v9714 = vunpack.c.h.b16 %v7260
    %v9715 = vunpack.c.l.b16 %v7261
    %v9716 = vunpack.c.h.b16 %v7261
    %v9717 = vunpack.c.l.b16 %v7262
    %v9718 = vunpack.c.h.b16 %v7262
    %v9719 = vunpack.c.l.b16 %v7263
    %v9720 = vunpack.c.h.b16 %v7263
    %v9721 = vunpack.c.l.b16 %v7264
    %v9722 = vunpack.c.h.b16 %v7264
    %v9723 = vunpack.c.l.b16 %v7265
    %v9724 = vunpack.c.h.b16 %v7265
    %v9725 = vunpack.c.l.b16 %v7266
    %v9726 = vunpack.c.h.b16 %v7266
    %v9727 = vunpack.c.l.b16 %v7267
    %v9728 = vunpack.c.h.b16 %v7267
    %v9729 = vunpack.c.l.b16 %v7268
    %v9730 = vunpack.c.h.b16 %v7268
    %v9731 = vunpack.c.l.b16 %v7269
    %v9732 = vunpack.c.h.b16 %v7269
    %v9733 = vunpack.c.l.b16 %v7270
    %v9734 = vunpack.c.h.b16 %v7270
    %v9735 = vunpack.c.l.b16 %v7271
    %v9736 = vunpack.c.h.b16 %v7271
    %v9737 = vunpack.c.l.b16 %v7272
    %v9738 = vunpack.c.h.b16 %v7272
    %v9739 = vunpack.c.l.b16 %v7273
    %v9740 = vunpack.c.h.b16 %v7273
    %v9741 = vunpack.c.l.b16 %v7274
    %v9742 = vunpack.c.h.b16 %v7274
    %v9743 = vunpack.c.l.b16 %v7275
    %v9744 = vunpack.c.h.b16 %v7275
    %v9745 = vunpack.c.l.b16 %v7276
    %v9746 = vunpack.c.h.b16 %v7276
    %v9747 = vunpack.c.l.b16 %v7277
    %v9748 = vunpack.c.h.b16 %v7277
    %v9749 = vunpack.c.l.b16 %v7278
    %v9750 = vunpack.c.h.b16 %v7278
    %v9751 = vunpack.c.l.b16 %v7279
    %v9752 = vunpack.c.h.b16 %v7279
    %v9753 = vunpack.c.l.b16 %v7280
    %v9754 = vunpack.c.h.b16 %v7280
    %v9755 = vunpack.c.l.b16 %v7281
    %v9756 = vunpack.c.h.b16 %v7281
    %v9757 = vunpack.c.l.b16 %v7282
    %v9758 = vunpack.c.h.b16 %v7282
    %v9759 = vunpack.c.l.b16 %v7283
    %v9760 = vunpack.c.h.b16 %v7283
    %v9761 = vunpack.c.l.b16 %v7284
    %v9762 = vunpack.c.h.b16 %v7284
    %v9763 = vunpack.c.l.b16 %v7285
    %v9764 = vunpack.c.h.b16 %v7285
    %v9765 = vunpack.c.l.b16 %v7286
    %v9766 = vunpack.c.h.b16 %v7286
    %v9767 = vunpack.c.l.b16 %v7287
    %v9768 = vunpack.c.h.b16 %v7287
    %v9769 = vunpack.c.l.b16 %v7288
    %v9770 = vunpack.c.h.b16 %v7288
    %v9771 = vunpack.c.l.b16 %v7289
    %v9772 = vunpack.c.h.b16 %v7289
    %v9773 = vunpack.c.l.b16 %v7290
    %v9774 = vunpack.c.h.b16 %v7290
    %v9775 = vunpack.c.l.b16 %v7291
    %v9776 = vunpack.c.h.b16 %v7291
    %v9777 = vunpack.c.l.b16 %v7292
    %v9778 = vunpack.c.h.b16 %v7292
    %v9779 = vunpack.c.l.b16 %v7293
    %v9780 = vunpack.c.h.b16 %v7293
    %v9781 = vunpack.c.l.b16 %v7294
    %v9782 = vunpack.c.h.b16 %v7294
    %v9783 = vunpack.c.l.b16 %v7295
    %v9784 = vunpack.c.h.b16 %v7295
    %v9785 = vunpack.c.l.b16 %v7296
    %v9786 = vunpack.c.h.b16 %v7296
    %v9787 = vunpack.c.l.b16 %v7297
    %v9788 = vunpack.c.h.b16 %v7297
    %v9789 = vunpack.c.l.b16 %v7298
    %v9790 = vunpack.c.h.b16 %v7298
    %v9791 = vunpack.c.l.b16 %v7299
    %v9792 = vunpack.c.h.b16 %v7299
    %v9793 = vunpack.c.l.b16 %v7300
    %v9794 = vunpack.c.h.b16 %v7300
    %v9795 = vunpack.c.l.b16 %v7301
    %v9796 = vunpack.c.h.b16 %v7301
    %v9797 = vunpack.c.l.b16 %v7302
    %v9798 = vunpack.c.h.b16 %v7302
    %v9799 = vunpack.c.l.b16 %v7303
    %v9800 = vunpack.c.h.b16 %v7303
    %v9801 = vunpack.c.l.b16 %v7304
    %v9802 = vunpack.c.h.b16 %v7304
    %v9803 = vunpack.c.l.b16 %v7305
    %v9804 = vunpack.c.h.b16 %v7305
    %v9805 = vunpack.c.l.b16 %v7306
    %v9806 = vunpack.c.h.b16 %v7306
    %v9807 = vunpack.c.l.b16 %v7307
    %v9808 = vunpack.c.h.b16 %v7307
    %v9809 = vunpack.c.l.b16 %v7308
    %v9810 = vunpack.c.h.b16 %v7308
    %v9811 = vunpack.c.l.b16 %v7309
    %v9812 = vunpack.c.h.b16 %v7309
    %v9813 = vunpack.c.l.b16 %v7310
    %v9814 = vunpack.c.h.b16 %v7310
    %v9815 = vunpack.c.l.b16 %v7311
    %v9816 = vunpack.c.h.b16 %v7311
    %v9817 = vunpack.c.l.b16 %v7312
    %v9818 = vunpack.c.h.b16 %v7312
    %v9819 = vunpack.c.l.b16 %v7313
    %v9820 = vunpack.c.h.b16 %v7313
    %v9821 = vunpack.c.l.b16 %v7314
    %v9822 = vunpack.c.h.b16 %v7314
    %v9823 = vunpack.c.l.b16 %v7315
    %v9824 = vunpack.c.h.b16 %v7315
    %v9825 = vunpack.c.l.b16 %v7316
    %v9826 = vunpack.c.h.b16 %v7316
    %v9827 = vunpack.c.l.b16 %v7317
    %v9828 = vunpack.c.h.b16 %v7317
    %v9829 = vunpack.c.l.b16 %v7318
    %v9830 = vunpack.c.h.b16 %v7318
    %v9831 = vunpack.c.l.b16 %v7319
    %v9832 = vunpack.c.h.b16 %v7319
    %v9833 = vunpack.c.l.b16 %v7320
    %v9834 = vunpack.c.h.b16 %v7320
    %v9835 = vunpack.c.l.b16 %v7321
    %v9836 = vunpack.c.h.b16 %v7321
    %v9837 = vunpack.c.l.b16 %v7322
    %v9838 = vunpack.c.h.b16 %v7322
    %v9839 = vunpack.c.l.b16 %v7323
    %v9840 = vunpack.c.h.b16 %v7323
    %v9841 = vunpack.c.l.b16 %v7324
    %v9842 = vunpack.c.h.b16 %v7324
    %v9843 = vunpack.c.l.b16 %v7325
    %v9844 = vunpack.c.h.b16 %v7325
    %v9845 = vunpack.c.l.b16 %v7326
    %v9846 = vunpack.c.h.b16 %v7326
    %v9847 = vunpack.c.l.b16 %v7327
    %v9848 = vunpack.c.h.b16 %v7327
    %v9849 = vunpack.c.l.b16 %v7328
    %v9850 = vunpack.c.h.b16 %v7328
    %v9851 = vunpack.c.l.b16 %v7329
    %v9852 = vunpack.c.h.b16 %v7329
    %v9853 = vunpack.c.l.b16 %v7330
    %v9854 = vunpack.c.h.b16 %v7330
    %v9855 = vunpack.c.l.b16 %v7331
    %v9856 = vunpack.c.h.b16 %v7331
    %v9857 = vunpack.c.l.b16 %v7332
    %v9858 = vunpack.c.h.b16 %v7332
    %v9859 = vunpack.c.l.b16 %v7333
    %v9860 = vunpack.c.h.b16 %v7333
    %v9861 = vunpack.c.l.b16 %v7334
    %v9862 = vunpack.c.h.b16 %v7334
    %v9863 = vunpack.c.l.b16 %v7335
    %v9864 = vunpack.c.h.b16 %v7335
    %v9865 = vunpack.c.l.b16 %v7336
    %v9866 = vunpack.c.h.b16 %v7336
    %v9867 = vunpack.c.l.b16 %v7337
    %v9868 = vunpack.c.h.b16 %v7337
    %v9869 = vunpack.c.l.b16 %v7338
    %v9870 = vunpack.c.h.b16 %v7338
    %v9871 = vunpack.c.l.b16 %v7339
    %v9872 = vunpack.c.h.b16 %v7339
    %v9873 = vunpack.c.l.b16 %v7340
    %v9874 = vunpack.c.h.b16 %v7340
    %v9875 = vunpack.c.l.b16 %v7341
    %v9876 = vunpack.c.h.b16 %v7341
    %v9877 = vunpack.c.l.b16 %v7342
    %v9878 = vunpack.c.h.b16 %v7342
    %v9879 = vunpack.c.l.b16 %v7343
    %v9880 = vunpack.c.h.b16 %v7343
    %v9881 = vunpack.c.l.b16 %v7344
    %v9882 = vunpack.c.h.b16 %v7344
    %v9883 = vunpack.c.l.b16 %v7345
    %v9884 = vunpack.c.h.b16 %v7345
    %v9885 = vunpack.c.l.b16 %v7346
    %v9886 = vunpack.c.h.b16 %v7346
    %v9887 = vunpack.c.l.b16 %v7347
    %v9888 = vunpack.c.h.b16 %v7347
    %v9889 = vunpack.c.l.b16 %v7348
    %v9890 = vunpack.c.h.b16 %v7348
    %v9891 = vunpack.c.l.b16 %v7349
    %v9892 = vunpack.c.h.b16 %v7349
    %v9893 = vunpack.c.l.b16 %v7350
    %v9894 = vunpack.c.h.b16 %v7350
    %v9895 = vunpack.c.l.b16 %v7351
    %v9896 = vunpack.c.h.b16 %v7351
    %v9897 = vunpack.c.l.b16 %v7352
    %v9898 = vunpack.c.h.b16 %v7352
    %v9899 = vunpack.c.l.b16 %v7353
    %v9900 = vunpack.c.h.b16 %v7353
    %v9901 = vunpack.c.l.b16 %v7354
    %v9902 = vunpack.c.h.b16 %v7354
    %v9903 = vunpack.c.l.b16 %v7355
    %v9904 = vunpack.c.h.b16 %v7355
    %v9905 = vunpack.c.l.b16 %v7356
    %v9906 = vunpack.c.h.b16 %v7356
    %v9907 = vunpack.c.l.b16 %v7357
    %v9908 = vunpack.c.h.b16 %v7357
    %v9909 = vunpack.c.l.b16 %v7358
    %v9910 = vunpack.c.h.b16 %v7358
    %v9911 = vunpack.c.l.b16 %v7359
    %v9912 = vunpack.c.h.b16 %v7359
    %v9913 = vunpack.c.l.b16 %v7360
    %v9914 = vunpack.c.h.b16 %v7360
    %v9915 = vunpack.c.l.b16 %v7361
    %v9916 = vunpack.c.h.b16 %v7361
    %v9917 = vunpack.c.l.b16 %v7362
    %v9918 = vunpack.c.h.b16 %v7362
    %v9919 = vunpack.c.l.b16 %v7363
    %v9920 = vunpack.c.h.b16 %v7363
    %v9921 = vunpack.c.l.b16 %v7364
    %v9922 = vunpack.c.h.b16 %v7364
    %v9923 = vunpack.c.l.b16 %v7365
    %v9924 = vunpack.c.h.b16 %v7365
    %v9925 = vunpack.c.l.b16 %v7366
    %v9926 = vunpack.c.h.b16 %v7366
    %v9927 = vunpack.c.l.b16 %v7367
    %v9928 = vunpack.c.h.b16 %v7367
    %v9929 = vunpack.c.l.b16 %v7368
    %v9930 = vunpack.c.h.b16 %v7368
    %v9931 = vunpack.c.l.b16 %v7369
    %v9932 = vunpack.c.h.b16 %v7369
    %v9933 = vunpack.c.l.b16 %v7370
    %v9934 = vunpack.c.h.b16 %v7370
    %v9935 = vunpack.c.l.b16 %v7371
    %v9936 = vunpack.c.h.b16 %v7371
    %v9937 = vunpack.c.l.b16 %v7372
    %v9938 = vunpack.c.h.b16 %v7372
    %v9939 = vunpack.c.l.b16 %v7373
    %v9940 = vunpack.c.h.b16 %v7373
    %v9941 = vunpack.c.l.b16 %v7374
    %v9942 = vunpack.c.h.b16 %v7374
    %v9943 = vunpack.c.l.b16 %v7375
    %v9944 = vunpack.c.h.b16 %v7375
    %v9945 = vunpack.c.l.b16 %v7376
    %v9946 = vunpack.c.h.b16 %v7376
    %v9947 = vunpack.c.l.b16 %v7377
    %v9948 = vunpack.c.h.b16 %v7377
    %v9949 = vunpack.c.l.b16 %v7378
    %v9950 = vunpack.c.h.b16 %v7378
    %v9951 = vunpack.c.l.b16 %v7379
    %v9952 = vunpack.c.h.b16 %v7379
    %v9953 = vunpack.c.l.b16 %v7380
    %v9954 = vunpack.c.h.b16 %v7380
    %v9955 = vunpack.c.l.b16 %v7381
    %v9956 = vunpack.c.h.b16 %v7381
    %v9957 = vunpack.c.l.b16 %v7382
    %v9958 = vunpack.c.h.b16 %v7382
    %v9959 = vunpack.c.l.b16 %v7383
    %v9960 = vunpack.c.h.b16 %v7383
    %v9961 = vunpack.c.l.b16 %v7384
    %v9962 = vunpack.c.h.b16 %v7384
    %v9963 = vunpack.c.l.b16 %v7385
    %v9964 = vunpack.c.h.b16 %v7385
    %v9965 = vunpack.c.l.b16 %v7386
    %v9966 = vunpack.c.h.b16 %v7386
    %v9967 = vunpack.c.l.b16 %v7387
    %v9968 = vunpack.c.h.b16 %v7387
    %v9969 = vunpack.c.l.b16 %v7388
    %v9970 = vunpack.c.h.b16 %v7388
    %v9971 = vunpack.c.l.b16 %v7389
    %v9972 = vunpack.c.h.b16 %v7389
    %v9973 = vunpack.c.l.b16 %v7390
    %v9974 = vunpack.c.h.b16 %v7390
    %v9975 = vunpack.c.l.b16 %v7391
    %v9976 = vunpack.c.h.b16 %v7391
    %v9977 = vunpack.c.l.b16 %v7392
    %v9978 = vunpack.c.h.b16 %v7392
    %v9979 = vunpack.c.l.b16 %v7393
    %v9980 = vunpack.c.h.b16 %v7393
    %v9981 = vunpack.c.l.b16 %v7394
    %v9982 = vunpack.c.h.b16 %v7394
    %v9983 = vunpack.c.l.b16 %v7395
    %v9984 = vunpack.c.h.b16 %v7395
    %v9985 = vunpack.c.l.b16 %v7396
    %v9986 = vunpack.c.h.b16 %v7396
    %v9987 = vunpack.c.l.b16 %v7397
    %v9988 = vunpack.c.h.b16 %v7397
    %v9989 = vunpack.c.l.b16 %v7398
    %v9990 = vunpack.c.h.b16 %v7398
    %v9991 = vunpack.c.l.b16 %v7399
    %v9992 = vunpack.c.h.b16 %v7399
    %v9993 = vunpack.c.l.b16 %v7400
    %v9994 = vunpack.c.h.b16 %v7400
    %v9995 = vunpack.c.l.b16 %v7401
    %v9996 = vunpack.c.h.b16 %v7401
    %v9997 = vunpack.c.l.b16 %v7402
    %v9998 = vunpack.c.h.b16 %v7402
    %v9999 = vunpack.c.l.b16 %v7403
    %v10000 = vunpack.c.h.b16 %v7403
    %v10001 = vunpack.c.l.b16 %v7404
    %v10002 = vunpack.c.h.b16 %v7404
    %v10003 = vunpack.c.l.b16 %v7405
    %v10004 = vunpack.c.h.b16 %v7405
    %v10005 = vunpack.c.l.b16 %v7406
    %v10006 = vunpack.c.h.b16 %v7406
    %v10007 = vunpack.c.l.b16 %v7407
    %v10008 = vunpack.c.h.b16 %v7407
    %v10009 = vunpack.c.l.b16 %v7408
    %v10010 = vunpack.c.h.b16 %v7408
    %v10011 = vunpack.c.l.b16 %v7409
    %v10012 = vunpack.c.h.b16 %v7409
    %v10013 = vunpack.c.l.b16 %v7410
    %v10014 = vunpack.c.h.b16 %v7410
    %v10015 = vunpack.c.l.b16 %v7411
    %v10016 = vunpack.c.h.b16 %v7411
    %v10017 = vunpack.c.l.b16 %v7412
    %v10018 = vunpack.c.h.b16 %v7412
    %v10019 = vunpack.c.l.b16 %v7413
    %v10020 = vunpack.c.h.b16 %v7413
    %v10021 = vunpack.c.l.b16 %v7414
    %v10022 = vunpack.c.h.b16 %v7414
    %v10023 = vunpack.c.l.b16 %v7415
    %v10024 = vunpack.c.h.b16 %v7415
    %v10025 = vunpack.c.l.b16 %v7416
    %v10026 = vunpack.c.h.b16 %v7416
    %v10027 = vunpack.c.l.b16 %v7417
    %v10028 = vunpack.c.h.b16 %v7417
    %v10029 = vunpack.c.l.b16 %v7418
    %v10030 = vunpack.c.h.b16 %v7418
    %v10031 = vunpack.c.l.b16 %v7419
    %v10032 = vunpack.c.h.b16 %v7419
    %v10033 = vunpack.c.l.b16 %v7420
    %v10034 = vunpack.c.h.b16 %v7420
    %v10035 = vunpack.c.l.b16 %v7421
    %v10036 = vunpack.c.h.b16 %v7421
    %v10037 = vunpack.c.l.b16 %v7422
    %v10038 = vunpack.c.h.b16 %v7422
    %v10039 = vunpack.c.l.b16 %v7423
    %v10040 = vunpack.c.h.b16 %v7423
    %v10041 = vunpack.c.l.b16 %v7424
    %v10042 = vunpack.c.h.b16 %v7424
    %v10043 = vunpack.c.l.b16 %v7425
    %v10044 = vunpack.c.h.b16 %v7425
    %v10045 = vunpack.c.l.b16 %v7426
    %v10046 = vunpack.c.h.b16 %v7426
    %v10047 = vunpack.c.l.b16 %v7427
    %v10048 = vunpack.c.h.b16 %v7427
    %v10049 = vunpack.c.l.b16 %v7428
    %v10050 = vunpack.c.h.b16 %v7428
    %v10051 = vunpack.c.l.b16 %v7429
    %v10052 = vunpack.c.h.b16 %v7429
    %v10053 = vunpack.c.l.b16 %v7430
    %v10054 = vunpack.c.h.b16 %v7430
    %v10055 = vunpack.c.l.b16 %v7431
    %v10056 = vunpack.c.h.b16 %v7431
    %v10057 = vunpack.c.l.b16 %v7432
    %v10058 = vunpack.c.h.b16 %v7432
    %v10059 = vunpack.c.l.b16 %v7433
    %v10060 = vunpack.c.h.b16 %v7433
    %v10061 = vunpack.c.l.b16 %v7434
    %v10062 = vunpack.c.h.b16 %v7434
    %v10063 = vunpack.c.l.b16 %v7435
    %v10064 = vunpack.c.h.b16 %v7435
    %v10065 = vunpack.c.l.b16 %v7436
    %v10066 = vunpack.c.h.b16 %v7436
    %v10067 = vunpack.c.l.b16 %v7437
    %v10068 = vunpack.c.h.b16 %v7437
    %v10069 = vunpack.c.l.b16 %v7438
    %v10070 = vunpack.c.h.b16 %v7438
    %v10071 = vunpack.c.l.b16 %v7439
    %v10072 = vunpack.c.h.b16 %v7439
    %v10073 = vunpack.c.l.b16 %v7440
    %v10074 = vunpack.c.h.b16 %v7440
    %v10075 = vunpack.c.l.b16 %v7441
    %v10076 = vunpack.c.h.b16 %v7441
    %v10077 = vunpack.c.l.b16 %v7442
    %v10078 = vunpack.c.h.b16 %v7442
    %v10079 = vunpack.c.l.b16 %v7443
    %v10080 = vunpack.c.h.b16 %v7443
    %v10081 = vunpack.c.l.b16 %v7444
    %v10082 = vunpack.c.h.b16 %v7444
    %v10083 = vunpack.c.l.b16 %v7445
    %v10084 = vunpack.c.h.b16 %v7445
    %v10085 = vunpack.c.l.b16 %v7446
    %v10086 = vunpack.c.h.b16 %v7446
    %v10087 = vunpack.c.l.b16 %v7447
    %v10088 = vunpack.c.h.b16 %v7447
    %v10089 = vunpack.c.l.b16 %v7448
    %v10090 = vunpack.c.h.b16 %v7448
    %v10091 = vunpack.c.l.b16 %v7449
    %v10092 = vunpack.c.h.b16 %v7449
    %v10093 = vunpack.c.l.b16 %v7450
    %v10094 = vunpack.c.h.b16 %v7450
    %v10095 = vunpack.c.l.b16 %v7451
    %v10096 = vunpack.c.h.b16 %v7451
    %v10097 = vunpack.c.l.b16 %v7452
    %v10098 = vunpack.c.h.b16 %v7452
    %v10099 = vunpack.c.l.b16 %v7453
    %v10100 = vunpack.c.h.b16 %v7453
    %v10101 = vunpack.c.l.b16 %v7454
    %v10102 = vunpack.c.h.b16 %v7454
    %v10103 = vunpack.c.l.b16 %v7455
    %v10104 = vunpack.c.h.b16 %v7455
    %v10105 = vunpack.c.l.b16 %v7456
    %v10106 = vunpack.c.h.b16 %v7456
    %v10107 = vunpack.c.l.b16 %v7457
    %v10108 = vunpack.c.h.b16 %v7457
    %v10109 = vunpack.c.l.b16 %v7458
    %v10110 = vunpack.c.h.b16 %v7458
    %v10111 = vunpack.c.l.b16 %v7459
    %v10112 = vunpack.c.h.b16 %v7459
    %v10113 = vunpack.c.l.b16 %v7460
    %v10114 = vunpack.c.h.b16 %v7460
    %v10115 = vunpack.c.l.b16 %v7461
    %v10116 = vunpack.c.h.b16 %v7461
    %v10117 = vunpack.c.l.b16 %v7462
    %v10118 = vunpack.c.h.b16 %v7462
    %v10119 = vunpack.c.l.b16 %v7463
    %v10120 = vunpack.c.h.b16 %v7463
    %v10121 = vunpack.c.l.b16 %v7464
    %v10122 = vunpack.c.h.b16 %v7464
    %v10123 = vunpack.c.l.b16 %v7465
    %v10124 = vunpack.c.h.b16 %v7465
    %v10125 = vunpack.c.l.b16 %v7466
    %v10126 = vunpack.c.h.b16 %v7466
    %v10127 = vunpack.c.l.b16 %v7467
    %v10128 = vunpack.c.h.b16 %v7467
    %v10129 = vunpack.c.l.b16 %v7468
    %v10130 = vunpack.c.h.b16 %v7468
    %v10131 = vunpack.c.l.b16 %v7469
    %v10132 = vunpack.c.h.b16 %v7469
    %v10133 = vunpack.c.l.b16 %v7470
    %v10134 = vunpack.c.h.b16 %v7470
    %v10135 = vunpack.c.l.b16 %v7471
    %v10136 = vunpack.c.h.b16 %v7471
    %v10137 = vunpack.c.l.b16 %v7472
    %v10138 = vunpack.c.h.b16 %v7472
    %v10139 = vunpack.c.l.b16 %v7473
    %v10140 = vunpack.c.h.b16 %v7473
    %v10141 = vunpack.c.l.b16 %v7474
    %v10142 = vunpack.c.h.b16 %v7474
    %v10143 = vunpack.c.l.b16 %v7475
    %v10144 = vunpack.c.h.b16 %v7475
    %v10145 = vunpack.c.l.b16 %v7476
    %v10146 = vunpack.c.h.b16 %v7476
    %v10147 = vunpack.c.l.b16 %v7477
    %v10148 = vunpack.c.h.b16 %v7477
    %v10149 = vunpack.c.l.b16 %v7478
    %v10150 = vunpack.c.h.b16 %v7478
    %v10151 = vunpack.c.l.b16 %v7479
    %v10152 = vunpack.c.h.b16 %v7479
    %v10153 = vunpack.c.l.b16 %v7480
    %v10154 = vunpack.c.h.b16 %v7480
    %v10155 = vunpack.c.l.b16 %v7481
    %v10156 = vunpack.c.h.b16 %v7481
    %v10157 = vunpack.c.l.b16 %v7482
    %v10158 = vunpack.c.h.b16 %v7482
    %v10159 = vunpack.c.l.b16 %v7483
    %v10160 = vunpack.c.h.b16 %v7483
    %v10161 = vunpack.c.l.b16 %v7484
    %v10162 = vunpack.c.h.b16 %v7484
    %v10163 = vunpack.c.l.b16 %v7485
    %v10164 = vunpack.c.h.b16 %v7485
    %v10165 = vunpack.c.l.b16 %v7486
    %v10166 = vunpack.c.h.b16 %v7486
    %v10167 = vunpack.c.l.b16 %v7487
    %v10168 = vunpack.c.h.b16 %v7487
    %v10169 = vunpack.c.l.b16 %v7488
    %v10170 = vunpack.c.h.b16 %v7488
    %v10171 = vunpack.c.l.b16 %v7489
    %v10172 = vunpack.c.h.b16 %v7489
    %v10173 = vunpack.c.l.b16 %v7490
    %v10174 = vunpack.c.h.b16 %v7490
    %v10175 = vunpack.c.l.b16 %v7491
    %v10176 = vunpack.c.h.b16 %v7491
    %v10177 = vunpack.c.l.b16 %v7492
    %v10178 = vunpack.c.h.b16 %v7492
    %v10179 = vunpack.c.l.b16 %v7493
    %v10180 = vunpack.c.h.b16 %v7493
    %v10181 = vunpack.c.l.b16 %v7494
    %v10182 = vunpack.c.h.b16 %v7494
    %v10183 = vpack.c.b16 %v8473, %v8455
    %v10184 = vpack.c.b16 %v8474, %v8456
    %v10185 = vpack.c.b16 %v8475, %v8457
    %v10186 = vpack.c.b16 %v8476, %v8458
    %v10187 = vpack.c.b16 %v8477, %v8459
    %v10188 = vpack.c.b16 %v8478, %v8460
    %v10189 = vpack.c.b16 %v8479, %v8461
    %v10190 = vpack.c.b16 %v8480, %v8462
    %v10191 = vpack.c.b16 %v8481, %v8463
    %v10192 = vpack.c.b16 %v8482, %v8464
    %v10193 = vpack.c.b16 %v8483, %v8465
    %v10194 = vpack.c.b16 %v8484, %v8466
    %v10195 = vpack.c.b16 %v8485, %v8467
    %v10196 = vpack.c.b16 %v8486, %v8468
    %v10197 = vpack.c.b16 %v8487, %v8469
    %v10198 = vpack.c.b16 %v8488, %v8470
    %v10199 = vpack.c.b16 %v8489, %v8471
    %v10200 = vpack.c.b16 %v8490, %v8472
    %v10201 = vpack.c.b16 %v8509, %v8491
    %v10202 = vpack.c.b16 %v8510, %v8492
    %v10203 = vpack.c.b16 %v8511, %v8493
    %v10204 = vpack.c.b16 %v8512, %v8494
    %v10205 = vpack.c.b16 %v8513, %v8495
    %v10206 = vpack.c.b16 %v8514, %v8496
    %v10207 = vpack.c.b16 %v8515, %v8497
    %v10208 = vpack.c.b16 %v8516, %v8498
    %v10209 = vpack.c.b16 %v8517, %v8499
    %v10210 = vpack.c.b16 %v8518, %v8500
    %v10211 = vpack.c.b16 %v8519, %v8501
    %v10212 = vpack.c.b16 %v8520, %v8502
    %v10213 = vpack.c.b16 %v8521, %v8503
    %v10214 = vpack.c.b16 %v8522, %v8504
    %v10215 = vpack.c.b16 %v8523, %v8505
    %v10216 = vpack.c.b16 %v8524, %v8506
    %v10217 = vpack.c.b16 %v8525, %v8507
    %v10218 = vpack.c.b16 %v8526, %v8508
    %v10219 = vpack.c.b16 %v8545, %v8527
    %v10220 = vpack.c.b16 %v8546, %v8528
    %v10221 = vpack.c.b16 %v8547, %v8529
    %v10222 = vpack.c.b16 %v8548, %v8530
    %v10223 = vpack.c.b16 %v8549, %v8531
    %v10224 = vpack.c.b16 %v8550, %v8532
    %v10225 = vpack.c.b16 %v8551, %v8533
    %v10226 = vpack.c.b16 %v8552, %v8534
    %v10227 = vpack.c.b16 %v8553, %v8535
    %v10228 = vpack.c.b16 %v8554, %v8536
    %v10229 = vpack.c.b16 %v8555, %v8537
    %v10230 = vpack.c.b16 %v8556, %v8538
    %v10231 = vpack.c.b16 %v8557, %v8539
    %v10232 = vpack.c.b16 %v8558, %v8540
    %v10233 = vpack.c.b16 %v8559, %v8541
    %v10234 = vpack.c.b16 %v8560, %v8542
    %v10235 = vpack.c.b16 %v8561, %v8543
    %v10236 = vpack.c.b16 %v8562, %v8544
    %v10237 = vpack.c.b16 %v8581, %v8563
    %v10238 = vpack.c.b16 %v8582, %v8564
    %v10239 = vpack.c.b16 %v8583, %v8565
    %v10240 = vpack.c.b16 %v8584, %v8566
    %v10241 = vpack.c.b16 %v8585, %v8567
    %v10242 = vpack.c.b16 %v8586, %v8568
    %v10243 = vpack.c.b16 %v8587, %v8569
    %v10244 = vpack.c.b16 %v8588, %v8570
    %v10245 = vpack.c.b16 %v8589, %v8571
    %v10246 = vpack.c.b16 %v8590, %v8572
    %v10247 = vpack.c.b16 %v8591, %v8573
    %v10248 = vpack.c.b16 %v8592, %v8574
    %v10249 = vpack.c.b16 %v8593, %v8575
    %v10250 = vpack.c.b16 %v8594, %v8576
    %v10251 = vpack.c.b16 %v8595, %v8577
    %v10252 = vpack.c.b16 %v8596, %v8578
    %v10253 = vpack.c.b16 %v8597, %v8579
    %v10254 = vpack.c.b16 %v8598, %v8580
    %v10255 = vpack.c.b16 %v8617, %v8599
    %v10256 = vpack.c.b16 %v8618, %v8600
    %v10257 = vpack.c.b16 %v8619, %v8601
    %v10258 = vpack.c.b16 %v8620, %v8602
    %v10259 = vpack.c.b16 %v8621, %v8603
    %v10260 = vpack.c.b16 %v8622, %v8604
    %v10261 = vpack.c.b16 %v8623, %v8605
    %v10262 = vpack.c.b16 %v8624, %v8606
    %v10263 = vpack.c.b16 %v8625, %v8607
    %v10264 = vpack.c.b16 %v8626, %v8608
    %v10265 = vpack.c.b16 %v8627, %v8609
    %v10266 = vpack.c.b16 %v8628, %v8610
    %v10267 = vpack.c.b16 %v8629, %v8611
    %v10268 = vpack.c.b16 %v8630, %v8612
    %v10269 = vpack.c.b16 %v8631, %v8613
    %v10270 = vpack.c.b16 %v8632, %v8614
    %v10271 = vpack.c.b16 %v8633, %v8615
    %v10272 = vpack.c.b16 %v8634, %v8616
    %v10273 = vpack.c.b16 %v8653, %v8635
    %v10274 = vpack.c.b16 %v8654, %v8636
    %v10275 = vpack.c.b16 %v8655, %v8637
    %v10276 = vpack.c.b16 %v8656, %v8638
    %v10277 = vpack.c.b16 %v8657, %v8639
    %v10278 = vpack.c.b16 %v8658, %v8640
    %v10279 = vpack.c.b16 %v8659, %v8641
    %v10280 = vpack.c.b16 %v8660, %v8642
    %v10281 = vpack.c.b16 %v8661, %v8643
    %v10282 = vpack.c.b16 %v8662, %v8644
    %v10283 = vpack.c.b16 %v8663, %v8645
    %v10284 = vpack.c.b16 %v8664, %v8646
    %v10285 = vpack.c.b16 %v8665, %v8647
    %v10286 = vpack.c.b16 %v8666, %v8648
    %v10287 = vpack.c.b16 %v8667, %v8649
    %v10288 = vpack.c.b16 %v8668, %v8650
    %v10289 = vpack.c.b16 %v8669, %v8651
    %v10290 = vpack.c.b16 %v8670, %v8652
    %v10291 = vpack.c.b16 %v8689, %v8671
    %v10292 = vpack.c.b16 %v8690, %v8672
    %v10293 = vpack.c.b16 %v8691, %v8673
    %v10294 = vpack.c.b16 %v8692, %v8674
    %v10295 = vpack.c.b16 %v8693, %v8675
    %v10296 = vpack.c.b16 %v8694, %v8676
    %v10297 = vpack.c.b16 %v8695, %v8677
    %v10298 = vpack.c.b16 %v8696, %v8678
    %v10299 = vpack.c.b16 %v8697, %v8679
    %v10300 = vpack.c.b16 %v8698, %v8680
    %v10301 = vpack.c.b16 %v8699, %v8681
    %v10302 = vpack.c.b16 %v8700, %v8682
    %v10303 = vpack.c.b16 %v8701, %v8683
    %v10304 = vpack.c.b16 %v8702, %v8684
    %v10305 = vpack.c.b16 %v8703, %v8685
    %v10306 = vpack.c.b16 %v8704, %v8686
    %v10307 = vpack.c.b16 %v8705, %v8687
    %v10308 = vpack.c.b16 %v8706, %v8688
    %v10309 = vpack.c.b16 %v8725, %v8707
    %v10310 = vpack.c.b16 %v8726, %v8708
    %v10311 = vpack.c.b16 %v8727, %v8709
    %v10312 = vpack.c.b16 %v8728, %v8710
    %v10313 = vpack.c.b16 %v8729, %v8711
    %v10314 = vpack.c.b16 %v8730, %v8712
    %v10315 = vpack.c.b16 %v8731, %v8713
    %v10316 = vpack.c.b16 %v8732, %v8714
    %v10317 = vpack.c.b16 %v8733, %v8715
    %v10318 = vpack.c.b16 %v8734, %v8716
    %v10319 = vpack.c.b16 %v8735, %v8717
    %v10320 = vpack.c.b16 %v8736, %v8718
    %v10321 = vpack.c.b16 %v8737, %v8719
    %v10322 = vpack.c.b16 %v8738, %v8720
    %v10323 = vpack.c.b16 %v8739, %v8721
    %v10324 = vpack.c.b16 %v8740, %v8722
    %v10325 = vpack.c.b16 %v8741, %v8723
    %v10326 = vpack.c.b16 %v8742, %v8724
    %v10327 = vpack.c.b16 %v8761, %v8743
    %v10328 = vpack.c.b16 %v8762, %v8744
    %v10329 = vpack.c.b16 %v8763, %v8745
    %v10330 = vpack.c.b16 %v8764, %v8746
    %v10331 = vpack.c.b16 %v8765, %v8747
    %v10332 = vpack.c.b16 %v8766, %v8748
    %v10333 = vpack.c.b16 %v8767, %v8749
    %v10334 = vpack.c.b16 %v8768, %v8750
    %v10335 = vpack.c.b16 %v8769, %v8751
    %v10336 = vpack.c.b16 %v8770, %v8752
    %v10337 = vpack.c.b16 %v8771, %v8753
    %v10338 = vpack.c.b16 %v8772, %v8754
    %v10339 = vpack.c.b16 %v8773, %v8755
    %v10340 = vpack.c.b16 %v8774, %v8756
    %v10341 = vpack.c.b16 %v8775, %v8757
    %v10342 = vpack.c.b16 %v8776, %v8758
    %v10343 = vpack.c.b16 %v8777, %v8759
    %v10344 = vpack.c.b16 %v8778, %v8760
    %v10345 = vpack.c.b16 %v8797, %v8779
    %v10346 = vpack.c.b16 %v8798, %v8780
    %v10347 = vpack.c.b16 %v8799, %v8781
    %v10348 = vpack.c.b16 %v8800, %v8782
    %v10349 = vpack.c.b16 %v8801, %v8783
    %v10350 = vpack.c.b16 %v8802, %v8784
    %v10351 = vpack.c.b16 %v8803, %v8785
    %v10352 = vpack.c.b16 %v8804, %v8786
    %v10353 = vpack.c.b16 %v8805, %v8787
    %v10354 = vpack.c.b16 %v8806, %v8788
    %v10355 = vpack.c.b16 %v8807, %v8789
    %v10356 = vpack.c.b16 %v8808, %v8790
    %v10357 = vpack.c.b16 %v8809, %v8791
    %v10358 = vpack.c.b16 %v8810, %v8792
    %v10359 = vpack.c.b16 %v8811, %v8793
    %v10360 = vpack.c.b16 %v8812, %v8794
    %v10361 = vpack.c.b16 %v8813, %v8795
    %v10362 = vpack.c.b16 %v8814, %v8796
    %v10363 = vpack.c.b16 %v8833, %v8815
    %v10364 = vpack.c.b16 %v8834, %v8816
    %v10365 = vpack.c.b16 %v8835, %v8817
    %v10366 = vpack.c.b16 %v8836, %v8818
    %v10367 = vpack.c.b16 %v8837, %v8819
    %v10368 = vpack.c.b16 %v8838, %v8820
    %v10369 = vpack.c.b16 %v8839, %v8821
    %v10370 = vpack.c.b16 %v8840, %v8822
    %v10371 = vpack.c.b16 %v8841, %v8823
    %v10372 = vpack.c.b16 %v8842, %v8824
    %v10373 = vpack.c.b16 %v8843, %v8825
    %v10374 = vpack.c.b16 %v8844, %v8826
    %v10375 = vpack.c.b16 %v8845, %v8827
    %v10376 = vpack.c.b16 %v8846, %v8828
    %v10377 = vpack.c.b16 %v8847, %v8829
    %v10378 = vpack.c.b16 %v8848, %v8830
    %v10379 = vpack.c.b16 %v8849, %v8831
    %v10380 = vpack.c.b16 %v8850, %v8832
    %v10381 = vpack.c.b16 %v8869, %v8851
    %v10382 = vpack.c.b16 %v8870, %v8852
    %v10383 = vpack.c.b16 %v8871, %v8853
    %v10384 = vpack.c.b16 %v8872, %v8854
    %v10385 = vpack.c.b16 %v8873, %v8855
    %v10386 = vpack.c.b16 %v8874, %v8856
    %v10387 = vpack.c.b16 %v8875, %v8857
    %v10388 = vpack.c.b16 %v8876, %v8858
    %v10389 = vpack.c.b16 %v8877, %v8859
    %v10390 = vpack.c.b16 %v8878, %v8860
    %v10391 = vpack.c.b16 %v8879, %v8861
    %v10392 = vpack.c.b16 %v8880, %v8862
    %v10393 = vpack.c.b16 %v8881, %v8863
    %v10394 = vpack.c.b16 %v8882, %v8864
    %v10395 = vpack.c.b16 %v8883, %v8865
    %v10396 = vpack.c.b16 %v8884, %v8866
    %v10397 = vpack.c.b16 %v8885, %v8867
    %v10398 = vpack.c.b16 %v8886, %v8868
    %v10399 = vpack.c.b16 %v8905, %v8887
    %v10400 = vpack.c.b16 %v8906, %v8888
    %v10401 = vpack.c.b16 %v8907, %v8889
    %v10402 = vpack.c.b16 %v8908, %v8890
    %v10403 = vpack.c.b16 %v8909, %v8891
    %v10404 = vpack.c.b16 %v8910, %v8892
    %v10405 = vpack.c.b16 %v8911, %v8893
    %v10406 = vpack.c.b16 %v8912, %v8894
    %v10407 = vpack.c.b16 %v8913, %v8895
    %v10408 = vpack.c.b16 %v8914, %v8896
    %v10409 = vpack.c.b16 %v8915, %v8897
    %v10410 = vpack.c.b16 %v8916, %v8898
    %v10411 = vpack.c.b16 %v8917, %v8899
    %v10412 = vpack.c.b16 %v8918, %v8900
    %v10413 = vpack.c.b16 %v8919, %v8901
    %v10414 = vpack.c.b16 %v8920, %v8902
    %v10415 = vpack.c.b16 %v8921, %v8903
    %v10416 = vpack.c.b16 %v8922, %v8904
    %v10417 = vpack.c.b16 %v8941, %v8923
    %v10418 = vpack.c.b16 %v8942, %v8924
    %v10419 = vpack.c.b16 %v8943, %v8925
    %v10420 = vpack.c.b16 %v8944, %v8926
    %v10421 = vpack.c.b16 %v8945, %v8927
    %v10422 = vpack.c.b16 %v8946, %v8928
    %v10423 = vpack.c.b16 %v8947, %v8929
    %v10424 = vpack.c.b16 %v8948, %v8930
    %v10425 = vpack.c.b16 %v8949, %v8931
    %v10426 = vpack.c.b16 %v8950, %v8932
    %v10427 = vpack.c.b16 %v8951, %v8933
    %v10428 = vpack.c.b16 %v8952, %v8934
    %v10429 = vpack.c.b16 %v8953, %v8935
    %v10430 = vpack.c.b16 %v8954, %v8936
    %v10431 = vpack.c.b16 %v8955, %v8937
    %v10432 = vpack.c.b16 %v8956, %v8938
    %v10433 = vpack.c.b16 %v8957, %v8939
    %v10434 = vpack.c.b16 %v8958, %v8940
    %v10435 = vpack.c.b16 %v8977, %v8959
    %v10436 = vpack.c.b16 %v8978, %v8960
    %v10437 = vpack.c.b16 %v8979, %v8961
    %v10438 = vpack.c.b16 %v8980, %v8962
    %v10439 = vpack.c.b16 %v8981, %v8963
    %v10440 = vpack.c.b16 %v8982, %v8964
    %v10441 = vpack.c.b16 %v8983, %v8965
    %v10442 = vpack.c.b16 %v8984, %v8966
    %v10443 = vpack.c.b16 %v8985, %v8967
    %v10444 = vpack.c.b16 %v8986, %v8968
    %v10445 = vpack.c.b16 %v8987, %v8969
    %v10446 = vpack.c.b16 %v8988, %v8970
    %v10447 = vpack.c.b16 %v8989, %v8971
    %v10448 = vpack.c.b16 %v8990, %v8972
    %v10449 = vpack.c.b16 %v8991, %v8973
    %v10450 = vpack.c.b16 %v8992, %v8974
    %v10451 = vpack.c.b16 %v8993, %v8975
    %v10452 = vpack.c.b16 %v8994, %v8976
    %v10453 = vpack.c.b16 %v9013, %v8995
    %v10454 = vpack.c.b16 %v9014, %v8996
    %v10455 = vpack.c.b16 %v9015, %v8997
    %v10456 = vpack.c.b16 %v9016, %v8998
    %v10457 = vpack.c.b16 %v9017, %v8999
    %v10458 = vpack.c.b16 %v9018, %v9000
    %v10459 = vpack.c.b16 %v9019, %v9001
    %v10460 = vpack.c.b16 %v9020, %v9002
    %v10461 = vpack.c.b16 %v9021, %v9003
    %v10462 = vpack.c.b16 %v9022, %v9004
    %v10463 = vpack.c.b16 %v9023, %v9005
    %v10464 = vpack.c.b16 %v9024, %v9006
    %v10465 = vpack.c.b16 %v9025, %v9007
    %v10466 = vpack.c.b16 %v9026, %v9008
    %v10467 = vpack.c.b16 %v9027, %v9009
    %v10468 = vpack.c.b16 %v9028, %v9010
    %v10469 = vpack.c.b16 %v9029, %v9011
    %v10470 = vpack.c.b16 %v9030, %v9012
    %v10471 = vpack.c.b16 %v9049, %v9031
    %v10472 = vpack.c.b16 %v9050, %v9032
    %v10473 = vpack.c.b16 %v9051, %v9033
    %v10474 = vpack.c.b16 %v9052, %v9034
    %v10475 = vpack.c.b16 %v9053, %v9035
    %v10476 = vpack.c.b16 %v9054, %v9036
    %v10477 = vpack.c.b16 %v9055, %v9037
    %v10478 = vpack.c.b16 %v9056, %v9038
    %v10479 = vpack.c.b16 %v9057, %v9039
    %v10480 = vpack.c.b16 %v9058, %v9040
    %v10481 = vpack.c.b16 %v9059, %v9041
    %v10482 = vpack.c.b16 %v9060, %v9042
    %v10483 = vpack.c.b16 %v9061, %v9043
    %v10484 = vpack.c.b16 %v9062, %v9044
    %v10485 = vpack.c.b16 %v9063, %v9045
    %v10486 = vpack.c.b16 %v9064, %v9046
    %v10487 = vpack.c.b16 %v9065, %v9047
    %v10488 = vpack.c.b16 %v9066, %v9048
    %v10489 = vpack.c.b16 %v9085, %v9067
    %v10490 = vpack.c.b16 %v9086, %v9068
    %v10491 = vpack.c.b16 %v9087, %v9069
    %v10492 = vpack.c.b16 %v9088, %v9070
    %v10493 = vpack.c.b16 %v9089, %v9071
    %v10494 = vpack.c.b16 %v9090, %v9072
    %v10495 = vpack.c.b16 %v9091, %v9073
    %v10496 = vpack.c.b16 %v9092, %v9074
    %v10497 = vpack.c.b16 %v9093, %v9075
    %v10498 = vpack.c.b16 %v9094, %v9076
    %v10499 = vpack.c.b16 %v9095, %v9077
    %v10500 = vpack.c.b16 %v9096, %v9078
    %v10501 = vpack.c.b16 %v9097, %v9079
    %v10502 = vpack.c.b16 %v9098, %v9080
    %v10503 = vpack.c.b16 %v9099, %v9081
    %v10504 = vpack.c.b16 %v9100, %v9082
    %v10505 = vpack.c.b16 %v9101, %v9083
    %v10506 = vpack.c.b16 %v9102, %v9084
    %v10507 = vpack.c.b16 %v9121, %v9103
    %v10508 = vpack.c.b16 %v9122, %v9104
    %v10509 = vpack.c.b16 %v9123, %v9105
    %v10510 = vpack.c.b16 %v9124, %v9106
    %v10511 = vpack.c.b16 %v9125, %v9107
    %v10512 = vpack.c.b16 %v9126, %v9108
    %v10513 = vpack.c.b16 %v9127, %v9109
    %v10514 = vpack.c.b16 %v9128, %v9110
    %v10515 = vpack.c.b16 %v9129, %v9111
    %v10516 = vpack.c.b16 %v9130, %v9112
    %v10517 = vpack.c.b16 %v9131, %v9113
    %v10518 = vpack.c.b16 %v9132, %v9114
    %v10519 = vpack.c.b16 %v9133, %v9115
    %v10520 = vpack.c.b16 %v9134, %v9116
    %v10521 = vpack.c.b16 %v9135, %v9117
    %v10522 = vpack.c.b16 %v9136, %v9118
    %v10523 = vpack.c.b16 %v9137, %v9119
    %v10524 = vpack.c.b16 %v9138, %v9120
    %v10525 = vpack.c.b16 %v9157, %v9139
    %v10526 = vpack.c.b16 %v9158, %v9140
    %v10527 = vpack.c.b16 %v9159, %v9141
    %v10528 = vpack.c.b16 %v9160, %v9142
    %v10529 = vpack.c.b16 %v9161, %v9143
    %v10530 = vpack.c.b16 %v9162, %v9144
    %v10531 = vpack.c.b16 %v9163, %v9145
    %v10532 = vpack.c.b16 %v9164, %v9146
    %v10533 = vpack.c.b16 %v9165, %v9147
    %v10534 = vpack.c.b16 %v9166, %v9148
    %v10535 = vpack.c.b16 %v9167, %v9149
    %v10536 = vpack.c.b16 %v9168, %v9150
    %v10537 = vpack.c.b16 %v9169, %v9151
    %v10538 = vpack.c.b16 %v9170, %v9152
    %v10539 = vpack.c.b16 %v9171, %v9153
    %v10540 = vpack.c.b16 %v9172, %v9154
    %v10541 = vpack.c.b16 %v9173, %v9155
    %v10542 = vpack.c.b16 %v9174, %v9156
    %v10543 = vpack.c.b16 %v9193, %v9175
    %v10544 = vpack.c.b16 %v9194, %v9176
    %v10545 = vpack.c.b16 %v9195, %v9177
    %v10546 = vpack.c.b16 %v9196, %v9178
    %v10547 = vpack.c.b16 %v9197, %v9179
    %v10548 = vpack.c.b16 %v9198, %v9180
    %v10549 = vpack.c.b16 %v9199, %v9181
    %v10550 = vpack.c.b16 %v9200, %v9182
    %v10551 = vpack.c.b16 %v9201, %v9183
    %v10552 = vpack.c.b16 %v9202, %v9184
    %v10553 = vpack.c.b16 %v9203, %v9185
    %v10554 = vpack.c.b16 %v9204, %v9186
    %v10555 = vpack.c.b16 %v9205, %v9187
    %v10556 = vpack.c.b16 %v9206, %v9188
    %v10557 = vpack.c.b16 %v9207, %v9189
    %v10558 = vpack.c.b16 %v9208, %v9190
    %v10559 = vpack.c.b16 %v9209, %v9191
    %v10560 = vpack.c.b16 %v9210, %v9192
    %v10561 = vpack.c.b16 %v9229, %v9211
    %v10562 = vpack.c.b16 %v9230, %v9212
    %v10563 = vpack.c.b16 %v9231, %v9213
    %v10564 = vpack.c.b16 %v9232, %v9214
    %v10565 = vpack.c.b16 %v9233, %v9215
    %v10566 = vpack.c.b16 %v9234, %v9216
    %v10567 = vpack.c.b16 %v9235, %v9217
    %v10568 = vpack.c.b16 %v9236, %v9218
    %v10569 = vpack.c.b16 %v9237, %v9219
    %v10570 = vpack.c.b16 %v9238, %v9220
    %v10571 = vpack.c.b16 %v9239, %v9221
    %v10572 = vpack.c.b16 %v9240, %v9222
    %v10573 = vpack.c.b16 %v9241, %v9223
    %v10574 = vpack.c.b16 %v9242, %v9224
    %v10575 = vpack.c.b16 %v9243, %v9225
    %v10576 = vpack.c.b16 %v9244, %v9226
    %v10577 = vpack.c.b16 %v9245, %v9227
    %v10578 = vpack.c.b16 %v9246, %v9228
    %v10579 = vpack.c.b16 %v9265, %v9247
    %v10580 = vpack.c.b16 %v9266, %v9248
    %v10581 = vpack.c.b16 %v9267, %v9249
    %v10582 = vpack.c.b16 %v9268, %v9250
    %v10583 = vpack.c.b16 %v9269, %v9251
    %v10584 = vpack.c.b16 %v9270, %v9252
    %v10585 = vpack.c.b16 %v9271, %v9253
    %v10586 = vpack.c.b16 %v9272, %v9254
    %v10587 = vpack.c.b16 %v9273, %v9255
    %v10588 = vpack.c.b16 %v9274, %v9256
    %v10589 = vpack.c.b16 %v9275, %v9257
    %v10590 = vpack.c.b16 %v9276, %v9258
    %v10591 = vpack.c.b16 %v9277, %v9259
    %v10592 = vpack.c.b16 %v9278, %v9260
    %v10593 = vpack.c.b16 %v9279, %v9261
    %v10594 = vpack.c.b16 %v9280, %v9262
    %v10595 = vpack.c.b16 %v9281, %v9263
    %v10596 = vpack.c.b16 %v9282, %v9264
    %v10597 = vpack.c.b16 %v9301, %v9283
    %v10598 = vpack.c.b16 %v9302, %v9284
    %v10599 = vpack.c.b16 %v9303, %v9285
    %v10600 = vpack.c.b16 %v9304, %v9286
    %v10601 = vpack.c.b16 %v9305, %v9287
    %v10602 = vpack.c.b16 %v9306, %v9288
    %v10603 = vpack.c.b16 %v9307, %v9289
    %v10604 = vpack.c.b16 %v9308, %v9290
    %v10605 = vpack.c.b16 %v9309, %v9291
    %v10606 = vpack.c.b16 %v9310, %v9292
    %v10607 = vpack.c.b16 %v9311, %v9293
    %v10608 = vpack.c.b16 %v9312, %v9294
    %v10609 = vpack.c.b16 %v9313, %v9295
    %v10610 = vpack.c.b16 %v9314, %v9296
    %v10611 = vpack.c.b16 %v9315, %v9297
    %v10612 = vpack.c.b16 %v9316, %v9298
    %v10613 = vpack.c.b16 %v9317, %v9299
    %v10614 = vpack.c.b16 %v9318, %v9300
    %v10615 = vpack.c.b16 %v9337, %v9319
    %v10616 = vpack.c.b16 %v9338, %v9320
    %v10617 = vpack.c.b16 %v9339, %v9321
    %v10618 = vpack.c.b16 %v9340, %v9322
    %v10619 = vpack.c.b16 %v9341, %v9323
    %v10620 = vpack.c.b16 %v9342, %v9324
    %v10621 = vpack.c.b16 %v9343, %v9325
    %v10622 = vpack.c.b16 %v9344, %v9326
    %v10623 = vpack.c.b16 %v9345, %v9327
    %v10624 = vpack.c.b16 %v9346, %v9328
    %v10625 = vpack.c.b16 %v9347, %v9329
    %v10626 = vpack.c.b16 %v9348, %v9330
    %v10627 = vpack.c.b16 %v9349, %v9331
    %v10628 = vpack.c.b16 %v9350, %v9332
    %v10629 = vpack.c.b16 %v9351, %v9333
    %v10630 = vpack.c.b16 %v9352, %v9334
    %v10631 = vpack.c.b16 %v9353, %v9335
    %v10632 = vpack.c.b16 %v9354, %v9336
    %v10633 = vpack.c.b16 %v9373, %v9355
    %v10634 = vpack.c.b16 %v9374, %v9356
    %v10635 = vpack.c.b16 %v9375, %v9357
    %v10636 = vpack.c.b16 %v9376, %v9358
    %v10637 = vpack.c.b16 %v9377, %v9359
    %v10638 = vpack.c.b16 %v9378, %v9360
    %v10639 = vpack.c.b16 %v9379, %v9361
    %v10640 = vpack.c.b16 %v9380, %v9362
    %v10641 = vpack.c.b16 %v9381, %v9363
    %v10642 = vpack.c.b16 %v9382, %v9364
    %v10643 = vpack.c.b16 %v9383, %v9365
    %v10644 = vpack.c.b16 %v9384, %v9366
    %v10645 = vpack.c.b16 %v9385, %v9367
    %v10646 = vpack.c.b16 %v9386, %v9368
    %v10647 = vpack.c.b16 %v9387, %v9369
    %v10648 = vpack.c.b16 %v9388, %v9370
    %v10649 = vpack.c.b16 %v9389, %v9371
    %v10650 = vpack.c.b16 %v9390, %v9372
    %v10651 = vpack.c.b16 %v9409, %v9391
    %v10652 = vpack.c.b16 %v9410, %v9392
    %v10653 = vpack.c.b16 %v9411, %v9393
    %v10654 = vpack.c.b16 %v9412, %v9394
    %v10655 = vpack.c.b16 %v9413, %v9395
    %v10656 = vpack.c.b16 %v9414, %v9396
    %v10657 = vpack.c.b16 %v9415, %v9397
    %v10658 = vpack.c.b16 %v9416, %v9398
    %v10659 = vpack.c.b16 %v9417, %v9399
    %v10660 = vpack.c.b16 %v9418, %v9400
    %v10661 = vpack.c.b16 %v9419, %v9401
    %v10662 = vpack.c.b16 %v9420, %v9402
    %v10663 = vpack.c.b16 %v9421, %v9403
    %v10664 = vpack.c.b16 %v9422, %v9404
    %v10665 = vpack.c.b16 %v9423, %v9405
    %v10666 = vpack.c.b16 %v9424, %v9406
    %v10667 = vpack.c.b16 %v9425, %v9407
    %v10668 = vpack.c.b16 %v9426, %v9408
    %v10669 = vpack.c.b16 %v9445, %v9427
    %v10670 = vpack.c.b16 %v9446, %v9428
    %v10671 = vpack.c.b16 %v9447, %v9429
    %v10672 = vpack.c.b16 %v9448, %v9430
    %v10673 = vpack.c.b16 %v9449, %v9431
    %v10674 = vpack.c.b16 %v9450, %v9432
    %v10675 = vpack.c.b16 %v9451, %v9433
    %v10676 = vpack.c.b16 %v9452, %v9434
    %v10677 = vpack.c.b16 %v9453, %v9435
    %v10678 = vpack.c.b16 %v9454, %v9436
    %v10679 = vpack.c.b16 %v9455, %v9437
    %v10680 = vpack.c.b16 %v9456, %v9438
    %v10681 = vpack.c.b16 %v9457, %v9439
    %v10682 = vpack.c.b16 %v9458, %v9440
    %v10683 = vpack.c.b16 %v9459, %v9441
    %v10684 = vpack.c.b16 %v9460, %v9442
    %v10685 = vpack.c.b16 %v9461, %v9443
    %v10686 = vpack.c.b16 %v9462, %v9444
    %v10687 = vpack.c.b16 %v9481, %v9463
    %v10688 = vpack.c.b16 %v9482, %v9464
    %v10689 = vpack.c.b16 %v9483, %v9465
    %v10690 = vpack.c.b16 %v9484, %v9466
    %v10691 = vpack.c.b16 %v9485, %v9467
    %v10692 = vpack.c.b16 %v9486, %v9468
    %v10693 = vpack.c.b16 %v9487, %v9469
    %v10694 = vpack.c.b16 %v9488, %v9470
    %v10695 = vpack.c.b16 %v9489, %v9471
    %v10696 = vpack.c.b16 %v9490, %v9472
    %v10697 = vpack.c.b16 %v9491, %v9473
    %v10698 = vpack.c.b16 %v9492, %v9474
    %v10699 = vpack.c.b16 %v9493, %v9475
    %v10700 = vpack.c.b16 %v9494, %v9476
    %v10701 = vpack.c.b16 %v9495, %v9477
    %v10702 = vpack.c.b16 %v9496, %v9478
    %v10703 = vpack.c.b16 %v9497, %v9479
    %v10704 = vpack.c.b16 %v9498, %v9480
    %v10705 = vpack.c.b16 %v9517, %v9499
    %v10706 = vpack.c.b16 %v9518, %v9500
    %v10707 = vpack.c.b16 %v9519, %v9501
    %v10708 = vpack.c.b16 %v9520, %v9502
    %v10709 = vpack.c.b16 %v9521, %v9503
    %v10710 = vpack.c.b16 %v9522, %v9504
    %v10711 = vpack.c.b16 %v9523, %v9505
    %v10712 = vpack.c.b16 %v9524, %v9506
    %v10713 = vpack.c.b16 %v9525, %v9507
    %v10714 = vpack.c.b16 %v9526, %v9508
    %v10715 = vpack.c.b16 %v9527, %v9509
    %v10716 = vpack.c.b16 %v9528, %v9510
    %v10717 = vpack.c.b16 %v9529, %v9511
    %v10718 = vpack.c.b16 %v9530, %v9512
    %v10719 = vpack.c.b16 %v9531, %v9513
    %v10720 = vpack.c.b16 %v9532, %v9514
    %v10721 = vpack.c.b16 %v9533, %v9515
    %v10722 = vpack.c.b16 %v9534, %v9516
    %v10723 = vpack.c.b16 %v9553, %v9535
    %v10724 = vpack.c.b16 %v9554, %v9536
    %v10725 = vpack.c.b16 %v9555, %v9537
    %v10726 = vpack.c.b16 %v9556, %v9538
    %v10727 = vpack.c.b16 %v9557, %v9539
    %v10728 = vpack.c.b16 %v9558, %v9540
    %v10729 = vpack.c.b16 %v9559, %v9541
    %v10730 = vpack.c.b16 %v9560, %v9542
    %v10731 = vpack.c.b16 %v9561, %v9543
    %v10732 = vpack.c.b16 %v9562, %v9544
    %v10733 = vpack.c.b16 %v9563, %v9545
    %v10734 = vpack.c.b16 %v9564, %v9546
    %v10735 = vpack.c.b16 %v9565, %v9547
    %v10736 = vpack.c.b16 %v9566, %v9548
    %v10737 = vpack.c.b16 %v9567, %v9549
    %v10738 = vpack.c.b16 %v9568, %v9550
    %v10739 = vpack.c.b16 %v9569, %v9551
    %v10740 = vpack.c.b16 %v9570, %v9552
    %v10741 = vpack.c.b16 %v9589, %v9571
    %v10742 = vpack.c.b16 %v9590, %v9572
    %v10743 = vpack.c.b16 %v9591, %v9573
    %v10744 = vpack.c.b16 %v9592, %v9574
    %v10745 = vpack.c.b16 %v9593, %v9575
    %v10746 = vpack.c.b16 %v9594, %v9576
    %v10747 = vpack.c.b16 %v9595, %v9577
    %v10748 = vpack.c.b16 %v9596, %v9578
    %v10749 = vpack.c.b16 %v9597, %v9579
    %v10750 = vpack.c.b16 %v9598, %v9580
    %v10751 = vpack.c.b16 %v9599, %v9581
    %v10752 = vpack.c.b16 %v9600, %v9582
    %v10753 = vpack.c.b16 %v9601, %v9583
    %v10754 = vpack.c.b16 %v9602, %v9584
    %v10755 = vpack.c.b16 %v9603, %v9585
    %v10756 = vpack.c.b16 %v9604, %v9586
    %v10757 = vpack.c.b16 %v9605, %v9587
    %v10758 = vpack.c.b16 %v9606, %v9588
    %v10759 = vpack.c.b16 %v9625, %v9607
    %v10760 = vpack.c.b16 %v9626, %v9608
    %v10761 = vpack.c.b16 %v9627, %v9609
    %v10762 = vpack.c.b16 %v9628, %v9610
    %v10763 = vpack.c.b16 %v9629, %v9611
    %v10764 = vpack.c.b16 %v9630, %v9612
    %v10765 = vpack.c.b16 %v9631, %v9613
    %v10766 = vpack.c.b16 %v9632, %v9614
    %v10767 = vpack.c.b16 %v9633, %v9615
    %v10768 = vpack.c.b16 %v9634, %v9616
    %v10769 = vpack.c.b16 %v9635, %v9617
    %v10770 = vpack.c.b16 %v9636, %v9618
    %v10771 = vpack.c.b16 %v9637, %v9619
    %v10772 = vpack.c.b16 %v9638, %v9620
    %v10773 = vpack.c.b16 %v9639, %v9621
    %v10774 = vpack.c.b16 %v9640, %v9622
    %v10775 = vpack.c.b16 %v9641, %v9623
    %v10776 = vpack.c.b16 %v9642, %v9624
    %v10777 = vpack.c.b16 %v9661, %v9643
    %v10778 = vpack.c.b16 %v9662, %v9644
    %v10779 = vpack.c.b16 %v9663, %v9645
    %v10780 = vpack.c.b16 %v9664, %v9646
    %v10781 = vpack.c.b16 %v9665, %v9647
    %v10782 = vpack.c.b16 %v9666, %v9648
    %v10783 = vpack.c.b16 %v9667, %v9649
    %v10784 = vpack.c.b16 %v9668, %v9650
    %v10785 = vpack.c.b16 %v9669, %v9651
    %v10786 = vpack.c.b16 %v9670, %v9652
    %v10787 = vpack.c.b16 %v9671, %v9653
    %v10788 = vpack.c.b16 %v9672, %v9654
    %v10789 = vpack.c.b16 %v9673, %v9655
    %v10790 = vpack.c.b16 %v9674, %v9656
    %v10791 = vpack.c.b16 %v9675, %v9657
    %v10792 = vpack.c.b16 %v9676, %v9658
    %v10793 = vpack.c.b16 %v9677, %v9659
    %v10794 = vpack.c.b16 %v9678, %v9660
    %v10795 = vpack.c.b16 %v9697, %v9679
    %v10796 = vpack.c.b16 %v9698, %v9680
    %v10797 = vpack.c.b16 %v9699, %v9681
    %v10798 = vpack.c.b16 %v9700, %v9682
    %v10799 = vpack.c.b16 %v9701, %v9683
    %v10800 = vpack.c.b16 %v9702, %v9684
    %v10801 = vpack.c.b16 %v9703, %v9685
    %v10802 = vpack.c.b16 %v9704, %v9686
    %v10803 = vpack.c.b16 %v9705, %v9687
    %v10804 = vpack.c.b16 %v9706, %v9688
    %v10805 = vpack.c.b16 %v9707, %v9689
    %v10806 = vpack.c.b16 %v9708, %v9690
    %v10807 = vpack.c.b16 %v9709, %v9691
    %v10808 = vpack.c.b16 %v9710, %v9692
    %v10809 = vpack.c.b16 %v9711, %v9693
    %v10810 = vpack.c.b16 %v9712, %v9694
    %v10811 = vpack.c.b16 %v9713, %v9695
    %v10812 = vpack.c.b16 %v9714, %v9696
    %v10813 = vpack.c.b16 %v9733, %v9715
    %v10814 = vpack.c.b16 %v9734, %v9716
    %v10815 = vpack.c.b16 %v9735, %v9717
    %v10816 = vpack.c.b16 %v9736, %v9718
    %v10817 = vpack.c.b16 %v9737, %v9719
    %v10818 = vpack.c.b16 %v9738, %v9720
    %v10819 = vpack.c.b16 %v9739, %v9721
    %v10820 = vpack.c.b16 %v9740, %v9722
    %v10821 = vpack.c.b16 %v9741, %v9723
    %v10822 = vpack.c.b16 %v9742, %v9724
    %v10823 = vpack.c.b16 %v9743, %v9725
    %v10824 = vpack.c.b16 %v9744, %v9726
    %v10825 = vpack.c.b16 %v9745, %v9727
    %v10826 = vpack.c.b16 %v9746, %v9728
    %v10827 = vpack.c.b16 %v9747, %v9729
    %v10828 = vpack.c.b16 %v9748, %v9730
    %v10829 = vpack.c.b16 %v9749, %v9731
    %v10830 = vpack.c.b16 %v9750, %v9732
    %v10831 = vpack.c.b16 %v9769, %v9751
    %v10832 = vpack.c.b16 %v9770, %v9752
    %v10833 = vpack.c.b16 %v9771, %v9753
    %v10834 = vpack.c.b16 %v9772, %v9754
    %v10835 = vpack.c.b16 %v9773, %v9755
    %v10836 = vpack.c.b16 %v9774, %v9756
    %v10837 = vpack.c.b16 %v9775, %v9757
    %v10838 = vpack.c.b16 %v9776, %v9758
    %v10839 = vpack.c.b16 %v9777, %v9759
    %v10840 = vpack.c.b16 %v9778, %v9760
    %v10841 = vpack.c.b16 %v9779, %v9761
    %v10842 = vpack.c.b16 %v9780, %v9762
    %v10843 = vpack.c.b16 %v9781, %v9763
    %v10844 = vpack.c.b16 %v9782, %v9764
    %v10845 = vpack.c.b16 %v9783, %v9765
    %v10846 = vpack.c.b16 %v9784, %v9766
    %v10847 = vpack.c.b16 %v9785, %v9767
    %v10848 = vpack.c.b16 %v9786, %v9768
    %v10849 = vpack.c.b16 %v9805, %v9787
    %v10850 = vpack.c.b16 %v9806, %v9788
    %v10851 = vpack.c.b16 %v9807, %v9789
    %v10852 = vpack.c.b16 %v9808, %v9790
    %v10853 = vpack.c.b16 %v9809, %v9791
    %v10854 = vpack.c.b16 %v9810, %v9792
    %v10855 = vpack.c.b16 %v9811, %v9793
    %v10856 = vpack.c.b16 %v9812, %v9794
    %v10857 = vpack.c.b16 %v9813, %v9795
    %v10858 = vpack.c.b16 %v9814, %v9796
    %v10859 = vpack.c.b16 %v9815, %v9797
    %v10860 = vpack.c.b16 %v9816, %v9798
    %v10861 = vpack.c.b16 %v9817, %v9799
    %v10862 = vpack.c.b16 %v9818, %v9800
    %v10863 = vpack.c.b16 %v9819, %v9801
    %v10864 = vpack.c.b16 %v9820, %v9802
    %v10865 = vpack.c.b16 %v9821, %v9803
    %v10866 = vpack.c.b16 %v9822, %v9804
    %v10867 = vpack.c.b16 %v9841, %v9823
    %v10868 = vpack.c.b16 %v9842, %v9824
    %v10869 = vpack.c.b16 %v9843, %v9825
    %v10870 = vpack.c.b16 %v9844, %v9826
    %v10871 = vpack.c.b16 %v9845, %v9827
    %v10872 = vpack.c.b16 %v9846, %v9828
    %v10873 = vpack.c.b16 %v9847, %v9829
    %v10874 = vpack.c.b16 %v9848, %v9830
    %v10875 = vpack.c.b16 %v9849, %v9831
    %v10876 = vpack.c.b16 %v9850, %v9832
    %v10877 = vpack.c.b16 %v9851, %v9833
    %v10878 = vpack.c.b16 %v9852, %v9834
    %v10879 = vpack.c.b16 %v9853, %v9835
    %v10880 = vpack.c.b16 %v9854, %v9836
    %v10881 = vpack.c.b16 %v9855, %v9837
    %v10882 = vpack.c.b16 %v9856, %v9838
    %v10883 = vpack.c.b16 %v9857, %v9839
    %v10884 = vpack.c.b16 %v9858, %v9840
    %v10885 = vpack.c.b16 %v9877, %v9859
    %v10886 = vpack.c.b16 %v9878, %v9860
    %v10887 = vpack.c.b16 %v9879, %v9861
    %v10888 = vpack.c.b16 %v9880, %v9862
    %v10889 = vpack.c.b16 %v9881, %v9863
    %v10890 = vpack.c.b16 %v9882, %v9864
    %v10891 = vpack.c.b16 %v9883, %v9865
    %v10892 = vpack.c.b16 %v9884, %v9866
    %v10893 = vpack.c.b16 %v9885, %v9867
    %v10894 = vpack.c.b16 %v9886, %v9868
    %v10895 = vpack.c.b16 %v9887, %v9869
    %v10896 = vpack.c.b16 %v9888, %v9870
    %v10897 = vpack.c.b16 %v9889, %v9871
    %v10898 = vpack.c.b16 %v9890, %v9872
    %v10899 = vpack.c.b16 %v9891, %v9873
    %v10900 = vpack.c.b16 %v9892, %v9874
    %v10901 = vpack.c.b16 %v9893, %v9875
    %v10902 = vpack.c.b16 %v9894, %v9876
    %v10903 = vpack.c.b16 %v9913, %v9895
    %v10904 = vpack.c.b16 %v9914, %v9896
    %v10905 = vpack.c.b16 %v9915, %v9897
    %v10906 = vpack.c.b16 %v9916, %v9898
    %v10907 = vpack.c.b16 %v9917, %v9899
    %v10908 = vpack.c.b16 %v9918, %v9900
    %v10909 = vpack.c.b16 %v9919, %v9901
    %v10910 = vpack.c.b16 %v9920, %v9902
    %v10911 = vpack.c.b16 %v9921, %v9903
    %v10912 = vpack.c.b16 %v9922, %v9904
    %v10913 = vpack.c.b16 %v9923, %v9905
    %v10914 = vpack.c.b16 %v9924, %v9906
    %v10915 = vpack.c.b16 %v9925, %v9907
    %v10916 = vpack.c.b16 %v9926, %v9908
    %v10917 = vpack.c.b16 %v9927, %v9909
    %v10918 = vpack.c.b16 %v9928, %v9910
    %v10919 = vpack.c.b16 %v9929, %v9911
    %v10920 = vpack.c.b16 %v9930, %v9912
    %v10921 = vpack.c.b16 %v9949, %v9931
    %v10922 = vpack.c.b16 %v9950, %v9932
    %v10923 = vpack.c.b16 %v9951, %v9933
    %v10924 = vpack.c.b16 %v9952, %v9934
    %v10925 = vpack.c.b16 %v9953, %v9935
    %v10926 = vpack.c.b16 %v9954, %v9936
    %v10927 = vpack.c.b16 %v9955, %v9937
    %v10928 = vpack.c.b16 %v9956, %v9938
    %v10929 = vpack.c.b16 %v9957, %v9939
    %v10930 = vpack.c.b16 %v9958, %v9940
    %v10931 = vpack.c.b16 %v9959, %v9941
    %v10932 = vpack.c.b16 %v9960, %v9942
    %v10933 = vpack.c.b16 %v9961, %v9943
    %v10934 = vpack.c.b16 %v9962, %v9944
    %v10935 = vpack.c.b16 %v9963, %v9945
    %v10936 = vpack.c.b16 %v9964, %v9946
    %v10937 = vpack.c.b16 %v9965, %v9947
    %v10938 = vpack.c.b16 %v9966, %v9948
    %v10939 = vpack.c.b16 %v9985, %v9967
    %v10940 = vpack.c.b16 %v9986, %v9968
    %v10941 = vpack.c.b16 %v9987, %v9969
    %v10942 = vpack.c.b16 %v9988, %v9970
    %v10943 = vpack.c.b16 %v9989, %v9971
    %v10944 = vpack.c.b16 %v9990, %v9972
    %v10945 = vpack.c.b16 %v9991, %v9973
    %v10946 = vpack.c.b16 %v9992, %v9974
    %v10947 = vpack.c.b16 %v9993, %v9975
    %v10948 = vpack.c.b16 %v9994, %v9976
    %v10949 = vpack.c.b16 %v9995, %v9977
    %v10950 = vpack.c.b16 %v9996, %v9978
    %v10951 = vpack.c.b16 %v9997, %v9979
    %v10952 = vpack.c.b16 %v9998, %v9980
    %v10953 = vpack.c.b16 %v9999, %v9981
    %v10954 = vpack.c.b16 %v10000, %v9982
    %v10955 = vpack.c.b16 %v10001, %v9983
    %v10956 = vpack.c.b16 %v10002, %v9984
    %v10957 = vpack.c.b16 %v10021, %v10003
    %v10958 = vpack.c.b16 %v10022, %v10004
    %v10959 = vpack.c.b16 %v10023, %v10005
    %v10960 = vpack.c.b16 %v10024, %v10006
    %v10961 = vpack.c.b16 %v10025, %v10007
    %v10962 = vpack.c.b16 %v10026, %v10008
    %v10963 = vpack.c.b16 %v10027, %v10009
    %v10964 = vpack.c.b16 %v10028, %v10010
    %v10965 = vpack.c.b16 %v10029, %v10011
    %v10966 = vpack.c.b16 %v10030, %v10012
    %v10967 = vpack.c.b16 %v10031, %v10013
    %v10968 = vpack.c.b16 %v10032, %v10014
    %v10969 = vpack.c.b16 %v10033, %v10015
    %v10970 = vpack.c.b16 %v10034, %v10016
    %v10971 = vpack.c.b16 %v10035, %v10017
    %v10972 = vpack.c.b16 %v10036, %v10018
    %v10973 = vpack.c.b16 %v10037, %v10019
    %v10974 = vpack.c.b16 %v10038, %v10020
    %v10975 = vpack.c.b16 %v10057, %v10039
    %v10976 = vpack.c.b16 %v10058, %v10040
    %v10977 = vpack.c.b16 %v10059, %v10041
    %v10978 = vpack.c.b16 %v10060, %v10042
    %v10979 = vpack.c.b16 %v10061, %v10043
    %v10980 = vpack.c.b16 %v10062, %v10044
    %v10981 = vpack.c.b16 %v10063, %v10045
    %v10982 = vpack.c.b16 %v10064, %v10046
    %v10983 = vpack.c.b16 %v10065, %v10047
    %v10984 = vpack.c.b16 %v10066, %v10048
    %v10985 = vpack.c.b16 %v10067, %v10049
    %v10986 = vpack.c.b16 %v10068, %v10050
    %v10987 = vpack.c.b16 %v10069, %v10051
    %v10988 = vpack.c.b16 %v10070, %v10052
    %v10989 = vpack.c.b16 %v10071, %v10053
    %v10990 = vpack.c.b16 %v10072, %v10054
    %v10991 = vpack.c.b16 %v10073, %v10055
    %v10992 = vpack.c.b16 %v10074, %v10056
    %v10993 = vpack.c.b16 %v10093, %v10075
    %v10994 = vpack.c.b16 %v10094, %v10076
    %v10995 = vpack.c.b16 %v10095, %v10077
    %v10996 = vpack.c.b16 %v10096, %v10078
    %v10997 = vpack.c.b16 %v10097, %v10079
    %v10998 = vpack.c.b16 %v10098, %v10080
    %v10999 = vpack.c.b16 %v10099, %v10081
    %v11000 = vpack.c.b16 %v10100, %v10082
    %v11001 = vpack.c.b16 %v10101, %v10083
    %v11002 = vpack.c.b16 %v10102, %v10084
    %v11003 = vpack.c.b16 %v10103, %v10085
    %v11004 = vpack.c.b16 %v10104, %v10086
    %v11005 = vpack.c.b16 %v10105, %v10087
    %v11006 = vpack.c.b16 %v10106, %v10088
    %v11007 = vpack.c.b16 %v10107, %v10089
    %v11008 = vpack.c.b16 %v10108, %v10090
    %v11009 = vpack.c.b16 %v10109, %v10091
    %v11010 = vpack.c.b16 %v10110, %v10092
    %v11011 = vpack.c.b16 %v10129, %v10111
    %v11012 = vpack.c.b16 %v10130, %v10112
    %v11013 = vpack.c.b16 %v10131, %v10113
    %v11014 = vpack.c.b16 %v10132, %v10114
    %v11015 = vpack.c.b16 %v10133, %v10115
    %v11016 = vpack.c.b16 %v10134, %v10116
    %v11017 = vpack.c.b16 %v10135, %v10117
    %v11018 = vpack.c.b16 %v10136, %v10118
    %v11019 = vpack.c.b16 %v10137, %v10119
    %v11020 = vpack.c.b16 %v10138, %v10120
    %v11021 = vpack.c.b16 %v10139, %v10121
    %v11022 = vpack.c.b16 %v10140, %v10122
    %v11023 = vpack.c.b16 %v10141, %v10123
    %v11024 = vpack.c.b16 %v10142, %v10124
    %v11025 = vpack.c.b16 %v10143, %v10125
    %v11026 = vpack.c.b16 %v10144, %v10126
    %v11027 = vpack.c.b16 %v10145, %v10127
    %v11028 = vpack.c.b16 %v10146, %v10128
    %v11029 = vpack.c.b16 %v10165, %v10147
    %v11030 = vpack.c.b16 %v10166, %v10148
    %v11031 = vpack.c.b16 %v10167, %v10149
    %v11032 = vpack.c.b16 %v10168, %v10150
    %v11033 = vpack.c.b16 %v10169, %v10151
    %v11034 = vpack.c.b16 %v10170, %v10152
    %v11035 = vpack.c.b16 %v10171, %v10153
    %v11036 = vpack.c.b16 %v10172, %v10154
    %v11037 = vpack.c.b16 %v10173, %v10155
    %v11038 = vpack.c.b16 %v10174, %v10156
    %v11039 = vpack.c.b16 %v10175, %v10157
    %v11040 = vpack.c.b16 %v10176, %v10158
    %v11041 = vpack.c.b16 %v10177, %v10159
    %v11042 = vpack.c.b16 %v10178, %v10160
    %v11043 = vpack.c.b16 %v10179, %v10161
    %v11044 = vpack.c.b16 %v10180, %v10162
    %v11045 = vpack.c.b16 %v10181, %v10163
    %v11046 = vpack.c.b16 %v10182, %v10164
    %11911 = vmatprep.subr.bf16.mxu0 %v10184
    %11912 = vmatpush1.bf16.msra.mxu0 %v10183
    %11913 = vmatprep.subr.bf16.mxu0 %v10202
    %11914 = vmatpush1.bf16.msra.mxu0 %v10201
    %11915 = vmatprep.subr.bf16.mxu0 %v10220
    %11916 = vmatpush1.bf16.msra.mxu0 %v10219
    %11917 = vmatprep.subr.bf16.mxu0 %v10238
    %11918 = vmatpush1.bf16.msra.mxu0 %v10237
    %11919 = vmatprep.subr.bf16.mxu0 %v10256
    %11920 = vmatpush1.bf16.msra.mxu0 %v10255
    %11921 = vmatprep.subr.bf16.mxu0 %v10274
    %11922 = vmatpush1.bf16.msra.mxu0 %v10273
    %11923 = vmatprep.subr.bf16.mxu0 %v10292
    %11924 = vmatpush1.bf16.msra.mxu0 %v10291
    %11925 = vmatprep.subr.bf16.mxu0 %v10310
    %11926 = vmatpush1.bf16.msra.mxu0 %v10309
    %11927 = vmatprep.subr.bf16.mxu0 %v10328
    %11928 = vmatpush1.bf16.msra.mxu0 %v10327
    %11929 = vmatprep.subr.bf16.mxu0 %v10346
    %11930 = vmatpush1.bf16.msra.mxu0 %v10345
    %11931 = vmatprep.subr.bf16.mxu0 %v10364
    %11932 = vmatpush1.bf16.msra.mxu0 %v10363
    %11933 = vmatprep.subr.bf16.mxu0 %v10382
    %11934 = vmatpush1.bf16.msra.mxu0 %v10381
    %11935 = vmatprep.subr.bf16.mxu0 %v10400
    %11936 = vmatpush1.bf16.msra.mxu0 %v10399
    %11937 = vmatprep.subr.bf16.mxu0 %v10418
    %11938 = vmatpush1.bf16.msra.mxu0 %v10417
    %11939 = vmatprep.subr.bf16.mxu0 %v10436
    %11940 = vmatpush1.bf16.msra.mxu0 %v10435
    %11941 = vmatprep.subr.bf16.mxu0 %v10454
    %11942 = vmatpush1.bf16.msra.mxu0 %v10453
    %11943 = vmatprep.mubr.bf16.mxu0 %v6626
    %11944 = vmatmul.mubr.bf16.gmra.mrb[0].mxu0 %v6625
    %v11945 = vpop.f32.mrb[0].mxu0
    %v11946 = vadd.f32 %v7504, %v11945
    %v11947 = vpop.f32.mrb[0].mxu0
    %v11948 = vadd.f32 %v7508, %v11947
    %v11949 = vpop.f32.mrb[0].mxu0
    %v11950 = vpop.f32.mrb[0].mxu0
    %11951 = vdwg.mxu0
    %11952 = vmatprep.subr.bf16.mxu0 %v10472
    %11953 = vmatpush1.bf16.msra.mxu0 %v10471
    %11954 = vmatprep.subr.bf16.mxu0 %v10490
    %11955 = vmatpush1.bf16.msra.mxu0 %v10489
    %11956 = vmatprep.subr.bf16.mxu0 %v10508
    %11957 = vmatpush1.bf16.msra.mxu0 %v10507
    %11958 = vmatprep.subr.bf16.mxu0 %v10526
    %11959 = vmatpush1.bf16.msra.mxu0 %v10525
    %11960 = vmatprep.subr.bf16.mxu0 %v10544
    %11961 = vmatpush1.bf16.msra.mxu0 %v10543
    %11962 = vmatprep.subr.bf16.mxu0 %v10562
    %11963 = vmatpush1.bf16.msra.mxu0 %v10561
    %11964 = vmatprep.subr.bf16.mxu0 %v10580
    %11965 = vmatpush1.bf16.msra.mxu0 %v10579
    %11966 = vmatprep.subr.bf16.mxu0 %v10598
    %11967 = vmatpush1.bf16.msra.mxu0 %v10597
    %11968 = vmatprep.subr.bf16.mxu0 %v10616
    %11969 = vmatpush1.bf16.msra.mxu0 %v10615
    %11970 = vmatprep.subr.bf16.mxu0 %v10634
    %11971 = vmatpush1.bf16.msra.mxu0 %v10633
    %11972 = vmatprep.subr.bf16.mxu0 %v10652
    %11973 = vmatpush1.bf16.msra.mxu0 %v10651
    %11974 = vmatprep.subr.bf16.mxu0 %v10670
    %11975 = vmatpush1.bf16.msra.mxu0 %v10669
    %11976 = vmatprep.subr.bf16.mxu0 %v10688
    %11977 = vmatpush1.bf16.msra.mxu0 %v10687
    %11978 = vmatprep.subr.bf16.mxu0 %v10706
    %11979 = vmatpush1.bf16.msra.mxu0 %v10705
    %11980 = vmatprep.subr.bf16.mxu0 %v10724
    %11981 = vmatpush1.bf16.msra.mxu0 %v10723
    %11982 = vmatprep.subr.bf16.mxu0 %v10742
    %11983 = vmatpush1.bf16.msra.mxu0 %v10741
    %11984 = vmatprep.mubr.bf16.mxu0 %v6628
    %11985 = vmatmul.mubr.bf16.gmra.mrb[0].mxu0 %v6627
    %v11986 = vpop.f32.mrb[0].mxu0
    %v11987 = vadd.f32 %v11946, %v11986
    %v11988 = vpop.f32.mrb[0].mxu0
    %v11989 = vadd.f32 %v11948, %v11988
    %v11990 = vpop.f32.mrb[0].mxu0
    %v11991 = vpop.f32.mrb[0].mxu0
    %11992 = vdwg.mxu0
    %11993 = vmatprep.subr.bf16.mxu0 %v10760
    %11994 = vmatpush1.bf16.msra.mxu0 %v10759
    %11995 = vmatprep.subr.bf16.mxu0 %v10778
    %11996 = vmatpush1.bf16.msra.mxu0 %v10777
    %11997 = vmatprep.subr.bf16.mxu0 %v10796
    %11998 = vmatpush1.bf16.msra.mxu0 %v10795
    %11999 = vmatprep.subr.bf16.mxu0 %v10814
    %12000 = vmatpush1.bf16.msra.mxu0 %v10813
    %12001 = vmatprep.subr.bf16.mxu0 %v10832
    %12002 = vmatpush1.bf16.msra.mxu0 %v10831
    %12003 = vmatprep.subr.bf16.mxu0 %v10850
    %12004 = vmatpush1.bf16.msra.mxu0 %v10849
    %12005 = vmatprep.subr.bf16.mxu0 %v10868
    %12006 = vmatpush1.bf16.msra.mxu0 %v10867
    %12007 = vmatprep.subr.bf16.mxu0 %v10886
    %12008 = vmatpush1.bf16.msra.mxu0 %v10885
    %12009 = vmatprep.subr.bf16.mxu0 %v10904
    %12010 = vmatpush1.bf16.msra.mxu0 %v10903
    %12011 = vmatprep.subr.bf16.mxu0 %v10922
    %12012 = vmatpush1.bf16.msra.mxu0 %v10921
    %12013 = vmatprep.subr.bf16.mxu0 %v10940
    %12014 = vmatpush1.bf16.msra.mxu0 %v10939
    %12015 = vmatprep.subr.bf16.mxu0 %v10958
    %12016 = vmatpush1.bf16.msra.mxu0 %v10957
    %12017 = vmatprep.subr.bf16.mxu0 %v10976
    %12018 = vmatpush1.bf16.msra.mxu0 %v10975
    %12019 = vmatprep.subr.bf16.mxu0 %v10994
    %12020 = vmatpush1.bf16.msra.mxu0 %v10993
    %12021 = vmatprep.subr.bf16.mxu0 %v11012
    %12022 = vmatpush1.bf16.msra.mxu0 %v11011
    %12023 = vmatprep.subr.bf16.mxu0 %v11030
    %12024 = vmatpush1.bf16.msra.mxu0 %v11029
    %12025 = vmatprep.mubr.bf16.mxu0 %v6630
    %12026 = vmatmul.mubr.bf16.gmra.mrb[0].mxu0 %v6629
    %v12027 = vpop.f32.mrb[0].mxu0
    %v12028 = vadd.f32 %v11987, %v12027
    %v12029 = vpop.f32.mrb[0].mxu0
    %v12030 = vadd.f32 %v11989, %v12029
    %v12031 = vpop.f32.mrb[0].mxu0
    %v12032 = vpop.f32.mrb[0].mxu0
    %12033 = vdwg.mxu0
    %12034 = vmatprep.subr.bf16.mxu0 %v10186
    %12035 = vmatpush1.bf16.msra.mxu0 %v10185
    %12036 = vmatprep.subr.bf16.mxu0 %v10204
    %12037 = vmatpush1.bf16.msra.mxu0 %v10203
    %12038 = vmatprep.subr.bf16.mxu0 %v10222
    %12039 = vmatpush1.bf16.msra.mxu0 %v10221
    %12040 = vmatprep.subr.bf16.mxu0 %v10240
    %12041 = vmatpush1.bf16.msra.mxu0 %v10239
    %12042 = vmatprep.subr.bf16.mxu0 %v10258
    %12043 = vmatpush1.bf16.msra.mxu0 %v10257
    %12044 = vmatprep.subr.bf16.mxu0 %v10276
    %12045 = vmatpush1.bf16.msra.mxu0 %v10275
    %12046 = vmatprep.subr.bf16.mxu0 %v10294
    %12047 = vmatpush1.bf16.msra.mxu0 %v10293
    %12048 = vmatprep.subr.bf16.mxu0 %v10312
    %12049 = vmatpush1.bf16.msra.mxu0 %v10311
    %12050 = vmatprep.subr.bf16.mxu0 %v10330
    %12051 = vmatpush1.bf16.msra.mxu0 %v10329
    %12052 = vmatprep.subr.bf16.mxu0 %v10348
    %12053 = vmatpush1.bf16.msra.mxu0 %v10347
    %12054 = vmatprep.subr.bf16.mxu0 %v10366
    %12055 = vmatpush1.bf16.msra.mxu0 %v10365
    %12056 = vmatprep.subr.bf16.mxu0 %v10384
    %12057 = vmatpush1.bf16.msra.mxu0 %v10383
    %12058 = vmatprep.subr.bf16.mxu0 %v10402
    %12059 = vmatpush1.bf16.msra.mxu0 %v10401
    %12060 = vmatprep.subr.bf16.mxu0 %v10420
    %12061 = vmatpush1.bf16.msra.mxu0 %v10419
    %12062 = vmatprep.subr.bf16.mxu0 %v10438
    %12063 = vmatpush1.bf16.msra.mxu0 %v10437
    %12064 = vmatprep.subr.bf16.mxu0 %v10456
    %12065 = vmatpush1.bf16.msra.mxu0 %v10455
    %12066 = vmatprep.mubr.bf16.mxu0 %v6626
    %12067 = vmatmul.mubr.bf16.gmra.mrb[0].mxu0 %v6625
    %v12068 = vpop.f32.mrb[0].mxu0
    %v12069 = vadd.f32 %v7512, %v12068
    %v12070 = vpop.f32.mrb[0].mxu0
    %v12071 = vadd.f32 %v7516, %v12070
    %v12072 = vpop.f32.mrb[0].mxu0
    %v12073 = vpop.f32.mrb[0].mxu0
    %12074 = vdwg.mxu0
    %12075 = vmatprep.subr.bf16.mxu0 %v10474
    %12076 = vmatpush1.bf16.msra.mxu0 %v10473
    %12077 = vmatprep.subr.bf16.mxu0 %v10492
    %12078 = vmatpush1.bf16.msra.mxu0 %v10491
    %12079 = vmatprep.subr.bf16.mxu0 %v10510
    %12080 = vmatpush1.bf16.msra.mxu0 %v10509
    %12081 = vmatprep.subr.bf16.mxu0 %v10528
    %12082 = vmatpush1.bf16.msra.mxu0 %v10527
    %12083 = vmatprep.subr.bf16.mxu0 %v10546
    %12084 = vmatpush1.bf16.msra.mxu0 %v10545
    %12085 = vmatprep.subr.bf16.mxu0 %v10564
    %12086 = vmatpush1.bf16.msra.mxu0 %v10563
    %12087 = vmatprep.subr.bf16.mxu0 %v10582
    %12088 = vmatpush1.bf16.msra.mxu0 %v10581
    %12089 = vmatprep.subr.bf16.mxu0 %v10600
    %12090 = vmatpush1.bf16.msra.mxu0 %v10599
    %12091 = vmatprep.subr.bf16.mxu0 %v10618
    %12092 = vmatpush1.bf16.msra.mxu0 %v10617
    %12093 = vmatprep.subr.bf16.mxu0 %v10636
    %12094 = vmatpush1.bf16.msra.mxu0 %v10635
    %12095 = vmatprep.subr.bf16.mxu0 %v10654
    %12096 = vmatpush1.bf16.msra.mxu0 %v10653
    %12097 = vmatprep.subr.bf16.mxu0 %v10672
    %12098 = vmatpush1.bf16.msra.mxu0 %v10671
    %12099 = vmatprep.subr.bf16.mxu0 %v10690
    %12100 = vmatpush1.bf16.msra.mxu0 %v10689
    %12101 = vmatprep.subr.bf16.mxu0 %v10708
    %12102 = vmatpush1.bf16.msra.mxu0 %v10707
    %12103 = vmatprep.subr.bf16.mxu0 %v10726
    %12104 = vmatpush1.bf16.msra.mxu0 %v10725
    %12105 = vmatprep.subr.bf16.mxu0 %v10744
    %12106 = vmatpush1.bf16.msra.mxu0 %v10743
    %12107 = vmatprep.mubr.bf16.mxu0 %v6628
    %12108 = vmatmul.mubr.bf16.gmra.mrb[0].mxu0 %v6627
    %v12109 = vpop.f32.mrb[0].mxu0
    %v12110 = vadd.f32 %v12069, %v12109
    %v12111 = vpop.f32.mrb[0].mxu0
    %v12112 = vadd.f32 %v12071, %v12111
    %v12113 = vpop.f32.mrb[0].mxu0
    %v12114 = vpop.f32.mrb[0].mxu0
    %12115 = vdwg.mxu0
    %12116 = vmatprep.subr.bf16.mxu0 %v10762
    %12117 = vmatpush1.bf16.msra.mxu0 %v10761
    %12118 = vmatprep.subr.bf16.mxu0 %v10780
    %12119 = vmatpush1.bf16.msra.mxu0 %v10779
    %12120 = vmatprep.subr.bf16.mxu0 %v10798
    %12121 = vmatpush1.bf16.msra.mxu0 %v10797
    %12122 = vmatprep.subr.bf16.mxu0 %v10816
    %12123 = vmatpush1.bf16.msra.mxu0 %v10815
    %12124 = vmatprep.subr.bf16.mxu0 %v10834
    %12125 = vmatpush1.bf16.msra.mxu0 %v10833
    %12126 = vmatprep.subr.bf16.mxu0 %v10852
    %12127 = vmatpush1.bf16.msra.mxu0 %v10851
    %12128 = vmatprep.subr.bf16.mxu0 %v10870
    %12129 = vmatpush1.bf16.msra.mxu0 %v10869
    %12130 = vmatprep.subr.bf16.mxu0 %v10888
    %12131 = vmatpush1.bf16.msra.mxu0 %v10887
    %12132 = vmatprep.subr.bf16.mxu0 %v10906
    %12133 = vmatpush1.bf16.msra.mxu0 %v10905
    %12134 = vmatprep.subr.bf16.mxu0 %v10924
    %12135 = vmatpush1.bf16.msra.mxu0 %v10923
    %12136 = vmatprep.subr.bf16.mxu0 %v10942
    %12137 = vmatpush1.bf16.msra.mxu0 %v10941
    %12138 = vmatprep.subr.bf16.mxu0 %v10960
    %12139 = vmatpush1.bf16.msra.mxu0 %v10959
    %12140 = vmatprep.subr.bf16.mxu0 %v10978
    %12141 = vmatpush1.bf16.msra.mxu0 %v10977
    %12142 = vmatprep.subr.bf16.mxu0 %v10996
    %12143 = vmatpush1.bf16.msra.mxu0 %v10995
    %12144 = vmatprep.subr.bf16.mxu0 %v11014
    %12145 = vmatpush1.bf16.msra.mxu0 %v11013
    %12146 = vmatprep.subr.bf16.mxu0 %v11032
    %12147 = vmatpush1.bf16.msra.mxu0 %v11031
    %12148 = vmatprep.mubr.bf16.mxu0 %v6630
    %12149 = vmatmul.mubr.bf16.gmra.mrb[0].mxu0 %v6629
    %v12150 = vpop.f32.mrb[0].mxu0
    %v12151 = vadd.f32 %v12110, %v12150
    %v12152 = vpop.f32.mrb[0].mxu0
    %v12153 = vadd.f32 %v12112, %v12152
    %v12154 = vpop.f32.mrb[0].mxu0
    %v12155 = vpop.f32.mrb[0].mxu0
    %12156 = vdwg.mxu0
    %12157 = vmatprep.subr.bf16.mxu0 %v10188
    %12158 = vmatpush1.bf16.msra.mxu0 %v10187
    %12159 = vmatprep.subr.bf16.mxu0 %v10206
    %12160 = vmatpush1.bf16.msra.mxu0 %v10205
    %12161 = vmatprep.subr.bf16.mxu0 %v10224
    %12162 = vmatpush1.bf16.msra.mxu0 %v10223
    %12163 = vmatprep.subr.bf16.mxu0 %v10242
    %12164 = vmatpush1.bf16.msra.mxu0 %v10241
    %12165 = vmatprep.subr.bf16.mxu0 %v10260
    %12166 = vmatpush1.bf16.msra.mxu0 %v10259
    %12167 = vmatprep.subr.bf16.mxu0 %v10278
    %12168 = vmatpush1.bf16.msra.mxu0 %v10277
    %12169 = vmatprep.subr.bf16.mxu0 %v10296
    %12170 = vmatpush1.bf16.msra.mxu0 %v10295
    %12171 = vmatprep.subr.bf16.mxu0 %v10314
    %12172 = vmatpush1.bf16.msra.mxu0 %v10313
    %12173 = vmatprep.subr.bf16.mxu0 %v10332
    %12174 = vmatpush1.bf16.msra.mxu0 %v10331
    %12175 = vmatprep.subr.bf16.mxu0 %v10350
    %12176 = vmatpush1.bf16.msra.mxu0 %v10349
    %12177 = vmatprep.subr.bf16.mxu0 %v10368
    %12178 = vmatpush1.bf16.msra.mxu0 %v10367
    %12179 = vmatprep.subr.bf16.mxu0 %v10386
    %12180 = vmatpush1.bf16.msra.mxu0 %v10385
    %12181 = vmatprep.subr.bf16.mxu0 %v10404
    %12182 = vmatpush1.bf16.msra.mxu0 %v10403
    %12183 = vmatprep.subr.bf16.mxu0 %v10422
    %12184 = vmatpush1.bf16.msra.mxu0 %v10421
    %12185 = vmatprep.subr.bf16.mxu0 %v10440
    %12186 = vmatpush1.bf16.msra.mxu0 %v10439
    %12187 = vmatprep.subr.bf16.mxu0 %v10458
    %12188 = vmatpush1.bf16.msra.mxu0 %v10457
    %12189 = vmatprep.mubr.bf16.mxu0 %v6626
    %12190 = vmatmul.mubr.bf16.gmra.mrb[0].mxu0 %v6625
    %v12191 = vpop.f32.mrb[0].mxu0
    %v12192 = vadd.f32 %v7520, %v12191
    %v12193 = vpop.f32.mrb[0].mxu0
    %v12194 = vadd.f32 %v7524, %v12193
    %v12195 = vpop.f32.mrb[0].mxu0
    %v12196 = vpop.f32.mrb[0].mxu0
    %12197 = vdwg.mxu0
    %12198 = vmatprep.subr.bf16.mxu0 %v10476
    %12199 = vmatpush1.bf16.msra.mxu0 %v10475
    %12200 = vmatprep.subr.bf16.mxu0 %v10494
    %12201 = vmatpush1.bf16.msra.mxu0 %v10493
    %12202 = vmatprep.subr.bf16.mxu0 %v10512
    %12203 = vmatpush1.bf16.msra.mxu0 %v10511
    %12204 = vmatprep.subr.bf16.mxu0 %v10530
    %12205 = vmatpush1.bf16.msra.mxu0 %v10529
    %12206 = vmatprep.subr.bf16.mxu0 %v10548
    %12207 = vmatpush1.bf16.msra.mxu0 %v10547
    %12208 = vmatprep.subr.bf16.mxu0 %v10566
    %12209 = vmatpush1.bf16.msra.mxu0 %v10565
    %12210 = vmatprep.subr.bf16.mxu0 %v10584
    %12211 = vmatpush1.bf16.msra.mxu0 %v10583
    %12212 = vmatprep.subr.bf16.mxu0 %v10602
    %12213 = vmatpush1.bf16.msra.mxu0 %v10601
    %12214 = vmatprep.subr.bf16.mxu0 %v10620
    %12215 = vmatpush1.bf16.msra.mxu0 %v10619
    %12216 = vmatprep.subr.bf16.mxu0 %v10638
    %12217 = vmatpush1.bf16.msra.mxu0 %v10637
    %12218 = vmatprep.subr.bf16.mxu0 %v10656
    %12219 = vmatpush1.bf16.msra.mxu0 %v10655
    %12220 = vmatprep.subr.bf16.mxu0 %v10674
    %12221 = vmatpush1.bf16.msra.mxu0 %v10673
    %12222 = vmatprep.subr.bf16.mxu0 %v10692
    %12223 = vmatpush1.bf16.msra.mxu0 %v10691
    %12224 = vmatprep.subr.bf16.mxu0 %v10710
    %12225 = vmatpush1.bf16.msra.mxu0 %v10709
    %12226 = vmatprep.subr.bf16.mxu0 %v10728
    %12227 = vmatpush1.bf16.msra.mxu0 %v10727
    %12228 = vmatprep.subr.bf16.mxu0 %v10746
    %12229 = vmatpush1.bf16.msra.mxu0 %v10745
    %12230 = vmatprep.mubr.bf16.mxu0 %v6628
    %12231 = vmatmul.mubr.bf16.gmra.mrb[0].mxu0 %v6627
    %v12232 = vpop.f32.mrb[0].mxu0
    %v12233 = vadd.f32 %v12192, %v12232
    %v12234 = vpop.f32.mrb[0].mxu0
    %v12235 = vadd.f32 %v12194, %v12234
    %v12236 = vpop.f32.mrb[0].mxu0
    %v12237 = vpop.f32.mrb[0].mxu0
    %12238 = vdwg.mxu0
    %12239 = vmatprep.subr.bf16.mxu0 %v10764
    %12240 = vmatpush1.bf16.msra.mxu0 %v10763
    %12241 = vmatprep.subr.bf16.mxu0 %v10782
    %12242 = vmatpush1.bf16.msra.mxu0 %v10781
    %12243 = vmatprep.subr.bf16.mxu0 %v10800
    %12244 = vmatpush1.bf16.msra.mxu0 %v10799
    %12245 = vmatprep.subr.bf16.mxu0 %v10818
    %12246 = vmatpush1.bf16.msra.mxu0 %v10817
    %12247 = vmatprep.subr.bf16.mxu0 %v10836
    %12248 = vmatpush1.bf16.msra.mxu0 %v10835
    %12249 = vmatprep.subr.bf16.mxu0 %v10854
    %12250 = vmatpush1.bf16.msra.mxu0 %v10853
    %12251 = vmatprep.subr.bf16.mxu0 %v10872
    %12252 = vmatpush1.bf16.msra.mxu0 %v10871
    %12253 = vmatprep.subr.bf16.mxu0 %v10890
    %12254 = vmatpush1.bf16.msra.mxu0 %v10889
    %12255 = vmatprep.subr.bf16.mxu0 %v10908
    %12256 = vmatpush1.bf16.msra.mxu0 %v10907
    %12257 = vmatprep.subr.bf16.mxu0 %v10926
    %12258 = vmatpush1.bf16.msra.mxu0 %v10925
    %12259 = vmatprep.subr.bf16.mxu0 %v10944
    %12260 = vmatpush1.bf16.msra.mxu0 %v10943
    %12261 = vmatprep.subr.bf16.mxu0 %v10962
    %12262 = vmatpush1.bf16.msra.mxu0 %v10961
    %12263 = vmatprep.subr.bf16.mxu0 %v10980
    %12264 = vmatpush1.bf16.msra.mxu0 %v10979
    %12265 = vmatprep.subr.bf16.mxu0 %v10998
    %12266 = vmatpush1.bf16.msra.mxu0 %v10997
    %12267 = vmatprep.subr.bf16.mxu0 %v11016
    %12268 = vmatpush1.bf16.msra.mxu0 %v11015
    %12269 = vmatprep.subr.bf16.mxu0 %v11034
    %12270 = vmatpush1.bf16.msra.mxu0 %v11033
    %12271 = vmatprep.mubr.bf16.mxu0 %v6630
    %12272 = vmatmul.mubr.bf16.gmra.mrb[0].mxu0 %v6629
    %v12273 = vpop.f32.mrb[0].mxu0
    %v12274 = vadd.f32 %v12233, %v12273
    %v12275 = vpop.f32.mrb[0].mxu0
    %v12276 = vadd.f32 %v12235, %v12275
    %v12277 = vpop.f32.mrb[0].mxu0
    %v12278 = vpop.f32.mrb[0].mxu0
    %12279 = vdwg.mxu0
    %12280 = vmatprep.subr.bf16.mxu0 %v10190
    %12281 = vmatpush1.bf16.msra.mxu0 %v10189
    %12282 = vmatprep.subr.bf16.mxu0 %v10208
    %12283 = vmatpush1.bf16.msra.mxu0 %v10207
    %12284 = vmatprep.subr.bf16.mxu0 %v10226
    %12285 = vmatpush1.bf16.msra.mxu0 %v10225
    %12286 = vmatprep.subr.bf16.mxu0 %v10244
    %12287 = vmatpush1.bf16.msra.mxu0 %v10243
    %12288 = vmatprep.subr.bf16.mxu0 %v10262
    %12289 = vmatpush1.bf16.msra.mxu0 %v10261
    %12290 = vmatprep.subr.bf16.mxu0 %v10280
    %12291 = vmatpush1.bf16.msra.mxu0 %v10279
    %12292 = vmatprep.subr.bf16.mxu0 %v10298
    %12293 = vmatpush1.bf16.msra.mxu0 %v10297
    %12294 = vmatprep.subr.bf16.mxu0 %v10316
    %12295 = vmatpush1.bf16.msra.mxu0 %v10315
    %12296 = vmatprep.subr.bf16.mxu0 %v10334
    %12297 = vmatpush1.bf16.msra.mxu0 %v10333
    %12298 = vmatprep.subr.bf16.mxu0 %v10352
    %12299 = vmatpush1.bf16.msra.mxu0 %v10351
    %12300 = vmatprep.subr.bf16.mxu0 %v10370
    %12301 = vmatpush1.bf16.msra.mxu0 %v10369
    %12302 = vmatprep.subr.bf16.mxu0 %v10388
    %12303 = vmatpush1.bf16.msra.mxu0 %v10387
    %12304 = vmatprep.subr.bf16.mxu0 %v10406
    %12305 = vmatpush1.bf16.msra.mxu0 %v10405
    %12306 = vmatprep.subr.bf16.mxu0 %v10424
    %12307 = vmatpush1.bf16.msra.mxu0 %v10423
    %12308 = vmatprep.subr.bf16.mxu0 %v10442
    %12309 = vmatpush1.bf16.msra.mxu0 %v10441
    %12310 = vmatprep.subr.bf16.mxu0 %v10460
    %12311 = vmatpush1.bf16.msra.mxu0 %v10459
    %12312 = vmatprep.mubr.bf16.mxu0 %v6626
    %12313 = vmatmul.mubr.bf16.gmra.mrb[0].mxu0 %v6625
    %v12314 = vpop.f32.mrb[0].mxu0
    %v12315 = vadd.f32 %v7528, %v12314
    %v12316 = vpop.f32.mrb[0].mxu0
    %v12317 = vadd.f32 %v7532, %v12316
    %v12318 = vpop.f32.mrb[0].mxu0
    %v12319 = vpop.f32.mrb[0].mxu0
    %12320 = vdwg.mxu0
    %12321 = vmatprep.subr.bf16.mxu0 %v10478
    %12322 = vmatpush1.bf16.msra.mxu0 %v10477
    %12323 = vmatprep.subr.bf16.mxu0 %v10496
    %12324 = vmatpush1.bf16.msra.mxu0 %v10495
    %12325 = vmatprep.subr.bf16.mxu0 %v10514
    %12326 = vmatpush1.bf16.msra.mxu0 %v10513
    %12327 = vmatprep.subr.bf16.mxu0 %v10532
    %12328 = vmatpush1.bf16.msra.mxu0 %v10531
    %12329 = vmatprep.subr.bf16.mxu0 %v10550
    %12330 = vmatpush1.bf16.msra.mxu0 %v10549
    %12331 = vmatprep.subr.bf16.mxu0 %v10568
    %12332 = vmatpush1.bf16.msra.mxu0 %v10567
    %12333 = vmatprep.subr.bf16.mxu0 %v10586
    %12334 = vmatpush1.bf16.msra.mxu0 %v10585
    %12335 = vmatprep.subr.bf16.mxu0 %v10604
    %12336 = vmatpush1.bf16.msra.mxu0 %v10603
    %12337 = vmatprep.subr.bf16.mxu0 %v10622
    %12338 = vmatpush1.bf16.msra.mxu0 %v10621
    %12339 = vmatprep.subr.bf16.mxu0 %v10640
    %12340 = vmatpush1.bf16.msra.mxu0 %v10639
    %12341 = vmatprep.subr.bf16.mxu0 %v10658
    %12342 = vmatpush1.bf16.msra.mxu0 %v10657
    %12343 = vmatprep.subr.bf16.mxu0 %v10676
    %12344 = vmatpush1.bf16.msra.mxu0 %v10675
    %12345 = vmatprep.subr.bf16.mxu0 %v10694
    %12346 = vmatpush1.bf16.msra.mxu0 %v10693
    %12347 = vmatprep.subr.bf16.mxu0 %v10712
    %12348 = vmatpush1.bf16.msra.mxu0 %v10711
    %12349 = vmatprep.subr.bf16.mxu0 %v10730
    %12350 = vmatpush1.bf16.msra.mxu0 %v10729
    %12351 = vmatprep.subr.bf16.mxu0 %v10748
    %12352 = vmatpush1.bf16.msra.mxu0 %v10747
    %12353 = vmatprep.mubr.bf16.mxu0 %v6628
    %12354 = vmatmul.mubr.bf16.gmra.mrb[0].mxu0 %v6627
    %v12355 = vpop.f32.mrb[0].mxu0
    %v12356 = vadd.f32 %v12315, %v12355
    %v12357 = vpop.f32.mrb[0].mxu0
    %v12358 = vadd.f32 %v12317, %v12357
    %v12359 = vpop.f32.mrb[0].mxu0
    %v12360 = vpop.f32.mrb[0].mxu0
    %12361 = vdwg.mxu0
    %12362 = vmatprep.subr.bf16.mxu0 %v10766
    %12363 = vmatpush1.bf16.msra.mxu0 %v10765
    %12364 = vmatprep.subr.bf16.mxu0 %v10784
    %12365 = vmatpush1.bf16.msra.mxu0 %v10783
    %12366 = vmatprep.subr.bf16.mxu0 %v10802
    %12367 = vmatpush1.bf16.msra.mxu0 %v10801
    %12368 = vmatprep.subr.bf16.mxu0 %v10820
    %12369 = vmatpush1.bf16.msra.mxu0 %v10819
    %12370 = vmatprep.subr.bf16.mxu0 %v10838
    %12371 = vmatpush1.bf16.msra.mxu0 %v10837
    %12372 = vmatprep.subr.bf16.mxu0 %v10856
    %12373 = vmatpush1.bf16.msra.mxu0 %v10855
    %12374 = vmatprep.subr.bf16.mxu0 %v10874
    %12375 = vmatpush1.bf16.msra.mxu0 %v10873
    %12376 = vmatprep.subr.bf16.mxu0 %v10892
    %12377 = vmatpush1.bf16.msra.mxu0 %v10891
    %12378 = vmatprep.subr.bf16.mxu0 %v10910
    %12379 = vmatpush1.bf16.msra.mxu0 %v10909
    %12380 = vmatprep.subr.bf16.mxu0 %v10928
    %12381 = vmatpush1.bf16.msra.mxu0 %v10927
    %12382 = vmatprep.subr.bf16.mxu0 %v10946
    %12383 = vmatpush1.bf16.msra.mxu0 %v10945
    %12384 = vmatprep.subr.bf16.mxu0 %v10964
    %12385 = vmatpush1.bf16.msra.mxu0 %v10963
    %12386 = vmatprep.subr.bf16.mxu0 %v10982
    %12387 = vmatpush1.bf16.msra.mxu0 %v10981
    %12388 = vmatprep.subr.bf16.mxu0 %v11000
    %12389 = vmatpush1.bf16.msra.mxu0 %v10999
    %12390 = vmatprep.subr.bf16.mxu0 %v11018
    %12391 = vmatpush1.bf16.msra.mxu0 %v11017
    %12392 = vmatprep.subr.bf16.mxu0 %v11036
    %12393 = vmatpush1.bf16.msra.mxu0 %v11035
    %12394 = vmatprep.mubr.bf16.mxu0 %v6630
    %12395 = vmatmul.mubr.bf16.gmra.mrb[0].mxu0 %v6629
    %v12396 = vpop.f32.mrb[0].mxu0
    %v12397 = vadd.f32 %v12356, %v12396
    %v12398 = vpop.f32.mrb[0].mxu0
    %v12399 = vadd.f32 %v12358, %v12398
    %v12400 = vpop.f32.mrb[0].mxu0
    %v12401 = vpop.f32.mrb[0].mxu0
    %12402 = vdwg.mxu0
    %12403 = vmatprep.subr.bf16.mxu0 %v10192
    %12404 = vmatpush1.bf16.msra.mxu0 %v10191
    %12405 = vmatprep.subr.bf16.mxu0 %v10210
    %12406 = vmatpush1.bf16.msra.mxu0 %v10209
    %12407 = vmatprep.subr.bf16.mxu0 %v10228
    %12408 = vmatpush1.bf16.msra.mxu0 %v10227
    %12409 = vmatprep.subr.bf16.mxu0 %v10246
    %12410 = vmatpush1.bf16.msra.mxu0 %v10245
    %12411 = vmatprep.subr.bf16.mxu0 %v10264
    %12412 = vmatpush1.bf16.msra.mxu0 %v10263
    %12413 = vmatprep.subr.bf16.mxu0 %v10282
    %12414 = vmatpush1.bf16.msra.mxu0 %v10281
    %12415 = vmatprep.subr.bf16.mxu0 %v10300
    %12416 = vmatpush1.bf16.msra.mxu0 %v10299
    %12417 = vmatprep.subr.bf16.mxu0 %v10318
    %12418 = vmatpush1.bf16.msra.mxu0 %v10317
    %12419 = vmatprep.subr.bf16.mxu0 %v10336
    %12420 = vmatpush1.bf16.msra.mxu0 %v10335
    %12421 = vmatprep.subr.bf16.mxu0 %v10354
    %12422 = vmatpush1.bf16.msra.mxu0 %v10353
    %12423 = vmatprep.subr.bf16.mxu0 %v10372
    %12424 = vmatpush1.bf16.msra.mxu0 %v10371
    %12425 = vmatprep.subr.bf16.mxu0 %v10390
    %12426 = vmatpush1.bf16.msra.mxu0 %v10389
    %12427 = vmatprep.subr.bf16.mxu0 %v10408
    %12428 = vmatpush1.bf16.msra.mxu0 %v10407
    %12429 = vmatprep.subr.bf16.mxu0 %v10426
    %12430 = vmatpush1.bf16.msra.mxu0 %v10425
    %12431 = vmatprep.subr.bf16.mxu0 %v10444
    %12432 = vmatpush1.bf16.msra.mxu0 %v10443
    %12433 = vmatprep.subr.bf16.mxu0 %v10462
    %12434 = vmatpush1.bf16.msra.mxu0 %v10461
    %12435 = vmatprep.mubr.bf16.mxu0 %v6626
    %12436 = vmatmul.mubr.bf16.gmra.mrb[0].mxu0 %v6625
    %v12437 = vpop.f32.mrb[0].mxu0
    %v12438 = vadd.f32 %v7536, %v12437
    %v12439 = vpop.f32.mrb[0].mxu0
    %v12440 = vadd.f32 %v7540, %v12439
    %v12441 = vpop.f32.mrb[0].mxu0
    %v12442 = vpop.f32.mrb[0].mxu0
    %12443 = vdwg.mxu0
    %12444 = vmatprep.subr.bf16.mxu0 %v10480
    %12445 = vmatpush1.bf16.msra.mxu0 %v10479
    %12446 = vmatprep.subr.bf16.mxu0 %v10498
    %12447 = vmatpush1.bf16.msra.mxu0 %v10497
    %12448 = vmatprep.subr.bf16.mxu0 %v10516
    %12449 = vmatpush1.bf16.msra.mxu0 %v10515
    %12450 = vmatprep.subr.bf16.mxu0 %v10534
    %12451 = vmatpush1.bf16.msra.mxu0 %v10533
    %12452 = vmatprep.subr.bf16.mxu0 %v10552
    %12453 = vmatpush1.bf16.msra.mxu0 %v10551
    %12454 = vmatprep.subr.bf16.mxu0 %v10570
    %12455 = vmatpush1.bf16.msra.mxu0 %v10569
    %12456 = vmatprep.subr.bf16.mxu0 %v10588
    %12457 = vmatpush1.bf16.msra.mxu0 %v10587
    %12458 = vmatprep.subr.bf16.mxu0 %v10606
    %12459 = vmatpush1.bf16.msra.mxu0 %v10605
    %12460 = vmatprep.subr.bf16.mxu0 %v10624
    %12461 = vmatpush1.bf16.msra.mxu0 %v10623
    %12462 = vmatprep.subr.bf16.mxu0 %v10642
    %12463 = vmatpush1.bf16.msra.mxu0 %v10641
    %12464 = vmatprep.subr.bf16.mxu0 %v10660
    %12465 = vmatpush1.bf16.msra.mxu0 %v10659
    %12466 = vmatprep.subr.bf16.mxu0 %v10678
    %12467 = vmatpush1.bf16.msra.mxu0 %v10677
    %12468 = vmatprep.subr.bf16.mxu0 %v10696
    %12469 = vmatpush1.bf16.msra.mxu0 %v10695
    %12470 = vmatprep.subr.bf16.mxu0 %v10714
    %12471 = vmatpush1.bf16.msra.mxu0 %v10713
    %12472 = vmatprep.subr.bf16.mxu0 %v10732
    %12473 = vmatpush1.bf16.msra.mxu0 %v10731
    %12474 = vmatprep.subr.bf16.mxu0 %v10750
    %12475 = vmatpush1.bf16.msra.mxu0 %v10749
    %12476 = vmatprep.mubr.bf16.mxu0 %v6628
    %12477 = vmatmul.mubr.bf16.gmra.mrb[0].mxu0 %v6627
    %v12478 = vpop.f32.mrb[0].mxu0
    %v12479 = vadd.f32 %v12438, %v12478
    %v12480 = vpop.f32.mrb[0].mxu0
    %v12481 = vadd.f32 %v12440, %v12480
    %v12482 = vpop.f32.mrb[0].mxu0
    %v12483 = vpop.f32.mrb[0].mxu0
    %12484 = vdwg.mxu0
    %12485 = vmatprep.subr.bf16.mxu0 %v10768
    %12486 = vmatpush1.bf16.msra.mxu0 %v10767
    %12487 = vmatprep.subr.bf16.mxu0 %v10786
    %12488 = vmatpush1.bf16.msra.mxu0 %v10785
    %12489 = vmatprep.subr.bf16.mxu0 %v10804
    %12490 = vmatpush1.bf16.msra.mxu0 %v10803
    %12491 = vmatprep.subr.bf16.mxu0 %v10822
    %12492 = vmatpush1.bf16.msra.mxu0 %v10821
    %12493 = vmatprep.subr.bf16.mxu0 %v10840
    %12494 = vmatpush1.bf16.msra.mxu0 %v10839
    %12495 = vmatprep.subr.bf16.mxu0 %v10858
    %12496 = vmatpush1.bf16.msra.mxu0 %v10857
    %12497 = vmatprep.subr.bf16.mxu0 %v10876
    %12498 = vmatpush1.bf16.msra.mxu0 %v10875
    %12499 = vmatprep.subr.bf16.mxu0 %v10894
    %12500 = vmatpush1.bf16.msra.mxu0 %v10893
    %12501 = vmatprep.subr.bf16.mxu0 %v10912
    %12502 = vmatpush1.bf16.msra.mxu0 %v10911
    %12503 = vmatprep.subr.bf16.mxu0 %v10930
    %12504 = vmatpush1.bf16.msra.mxu0 %v10929
    %12505 = vmatprep.subr.bf16.mxu0 %v10948
    %12506 = vmatpush1.bf16.msra.mxu0 %v10947
    %12507 = vmatprep.subr.bf16.mxu0 %v10966
    %12508 = vmatpush1.bf16.msra.mxu0 %v10965
    %12509 = vmatprep.subr.bf16.mxu0 %v10984
    %12510 = vmatpush1.bf16.msra.mxu0 %v10983
    %12511 = vmatprep.subr.bf16.mxu0 %v11002
    %12512 = vmatpush1.bf16.msra.mxu0 %v11001
    %12513 = vmatprep.subr.bf16.mxu0 %v11020
    %12514 = vmatpush1.bf16.msra.mxu0 %v11019
    %12515 = vmatprep.subr.bf16.mxu0 %v11038
    %12516 = vmatpush1.bf16.msra.mxu0 %v11037
    %12517 = vmatprep.mubr.bf16.mxu0 %v6630
    %12518 = vmatmul.mubr.bf16.gmra.mrb[0].mxu0 %v6629
    %v12519 = vpop.f32.mrb[0].mxu0
    %v12520 = vadd.f32 %v12479, %v12519
    %v12521 = vpop.f32.mrb[0].mxu0
    %v12522 = vadd.f32 %v12481, %v12521
    %v12523 = vpop.f32.mrb[0].mxu0
    %v12524 = vpop.f32.mrb[0].mxu0
    %12525 = vdwg.mxu0
    %12526 = vmatprep.subr.bf16.mxu0 %v10194
    %12527 = vmatpush1.bf16.msra.mxu0 %v10193
    %12528 = vmatprep.subr.bf16.mxu0 %v10212
    %12529 = vmatpush1.bf16.msra.mxu0 %v10211
    %12530 = vmatprep.subr.bf16.mxu0 %v10230
    %12531 = vmatpush1.bf16.msra.mxu0 %v10229
    %12532 = vmatprep.subr.bf16.mxu0 %v10248
    %12533 = vmatpush1.bf16.msra.mxu0 %v10247
    %12534 = vmatprep.subr.bf16.mxu0 %v10266
    %12535 = vmatpush1.bf16.msra.mxu0 %v10265
    %12536 = vmatprep.subr.bf16.mxu0 %v10284
    %12537 = vmatpush1.bf16.msra.mxu0 %v10283
    %12538 = vmatprep.subr.bf16.mxu0 %v10302
    %12539 = vmatpush1.bf16.msra.mxu0 %v10301
    %12540 = vmatprep.subr.bf16.mxu0 %v10320
    %12541 = vmatpush1.bf16.msra.mxu0 %v10319
    %12542 = vmatprep.subr.bf16.mxu0 %v10338
    %12543 = vmatpush1.bf16.msra.mxu0 %v10337
    %12544 = vmatprep.subr.bf16.mxu0 %v10356
    %12545 = vmatpush1.bf16.msra.mxu0 %v10355
    %12546 = vmatprep.subr.bf16.mxu0 %v10374
    %12547 = vmatpush1.bf16.msra.mxu0 %v10373
    %12548 = vmatprep.subr.bf16.mxu0 %v10392
    %12549 = vmatpush1.bf16.msra.mxu0 %v10391
    %12550 = vmatprep.subr.bf16.mxu0 %v10410
    %12551 = vmatpush1.bf16.msra.mxu0 %v10409
    %12552 = vmatprep.subr.bf16.mxu0 %v10428
    %12553 = vmatpush1.bf16.msra.mxu0 %v10427
    %12554 = vmatprep.subr.bf16.mxu0 %v10446
    %12555 = vmatpush1.bf16.msra.mxu0 %v10445
    %12556 = vmatprep.subr.bf16.mxu0 %v10464
    %12557 = vmatpush1.bf16.msra.mxu0 %v10463
    %12558 = vmatprep.mubr.bf16.mxu0 %v6626
    %12559 = vmatmul.mubr.bf16.gmra.mrb[0].mxu0 %v6625
    %v12560 = vpop.f32.mrb[0].mxu0
    %v12561 = vadd.f32 %v7544, %v12560
    %v12562 = vpop.f32.mrb[0].mxu0
    %v12563 = vadd.f32 %v7548, %v12562
    %v12564 = vpop.f32.mrb[0].mxu0
    %v12565 = vpop.f32.mrb[0].mxu0
    %12566 = vdwg.mxu0
    %12567 = vmatprep.subr.bf16.mxu0 %v10482
    %12568 = vmatpush1.bf16.msra.mxu0 %v10481
    %12569 = vmatprep.subr.bf16.mxu0 %v10500
    %12570 = vmatpush1.bf16.msra.mxu0 %v10499
    %12571 = vmatprep.subr.bf16.mxu0 %v10518
    %12572 = vmatpush1.bf16.msra.mxu0 %v10517
    %12573 = vmatprep.subr.bf16.mxu0 %v10536
    %12574 = vmatpush1.bf16.msra.mxu0 %v10535
    %12575 = vmatprep.subr.bf16.mxu0 %v10554
    %12576 = vmatpush1.bf16.msra.mxu0 %v10553
    %12577 = vmatprep.subr.bf16.mxu0 %v10572
    %12578 = vmatpush1.bf16.msra.mxu0 %v10571
    %12579 = vmatprep.subr.bf16.mxu0 %v10590
    %12580 = vmatpush1.bf16.msra.mxu0 %v10589
    %12581 = vmatprep.subr.bf16.mxu0 %v10608
    %12582 = vmatpush1.bf16.msra.mxu0 %v10607
    %12583 = vmatprep.subr.bf16.mxu0 %v10626
    %12584 = vmatpush1.bf16.msra.mxu0 %v10625
    %12585 = vmatprep.subr.bf16.mxu0 %v10644
    %12586 = vmatpush1.bf16.msra.mxu0 %v10643
    %12587 = vmatprep.subr.bf16.mxu0 %v10662
    %12588 = vmatpush1.bf16.msra.mxu0 %v10661
    %12589 = vmatprep.subr.bf16.mxu0 %v10680
    %12590 = vmatpush1.bf16.msra.mxu0 %v10679
    %12591 = vmatprep.subr.bf16.mxu0 %v10698
    %12592 = vmatpush1.bf16.msra.mxu0 %v10697
    %12593 = vmatprep.subr.bf16.mxu0 %v10716
    %12594 = vmatpush1.bf16.msra.mxu0 %v10715
    %12595 = vmatprep.subr.bf16.mxu0 %v10734
    %12596 = vmatpush1.bf16.msra.mxu0 %v10733
    %12597 = vmatprep.subr.bf16.mxu0 %v10752
    %12598 = vmatpush1.bf16.msra.mxu0 %v10751
    %12599 = vmatprep.mubr.bf16.mxu0 %v6628
    %12600 = vmatmul.mubr.bf16.gmra.mrb[0].mxu0 %v6627
    %v12601 = vpop.f32.mrb[0].mxu0
    %v12602 = vadd.f32 %v12561, %v12601
    %v12603 = vpop.f32.mrb[0].mxu0
    %v12604 = vadd.f32 %v12563, %v12603
    %v12605 = vpop.f32.mrb[0].mxu0
    %v12606 = vpop.f32.mrb[0].mxu0
    %12607 = vdwg.mxu0
    %12608 = vmatprep.subr.bf16.mxu0 %v10770
    %12609 = vmatpush1.bf16.msra.mxu0 %v10769
    %12610 = vmatprep.subr.bf16.mxu0 %v10788
    %12611 = vmatpush1.bf16.msra.mxu0 %v10787
    %12612 = vmatprep.subr.bf16.mxu0 %v10806
    %12613 = vmatpush1.bf16.msra.mxu0 %v10805
    %12614 = vmatprep.subr.bf16.mxu0 %v10824
    %12615 = vmatpush1.bf16.msra.mxu0 %v10823
    %12616 = vmatprep.subr.bf16.mxu0 %v10842
    %12617 = vmatpush1.bf16.msra.mxu0 %v10841
    %12618 = vmatprep.subr.bf16.mxu0 %v10860
    %12619 = vmatpush1.bf16.msra.mxu0 %v10859
    %12620 = vmatprep.subr.bf16.mxu0 %v10878
    %12621 = vmatpush1.bf16.msra.mxu0 %v10877
    %12622 = vmatprep.subr.bf16.mxu0 %v10896
    %12623 = vmatpush1.bf16.msra.mxu0 %v10895
    %12624 = vmatprep.subr.bf16.mxu0 %v10914
    %12625 = vmatpush1.bf16.msra.mxu0 %v10913
    %12626 = vmatprep.subr.bf16.mxu0 %v10932
    %12627 = vmatpush1.bf16.msra.mxu0 %v10931
    %12628 = vmatprep.subr.bf16.mxu0 %v10950
    %12629 = vmatpush1.bf16.msra.mxu0 %v10949
    %12630 = vmatprep.subr.bf16.mxu0 %v10968
    %12631 = vmatpush1.bf16.msra.mxu0 %v10967
    %12632 = vmatprep.subr.bf16.mxu0 %v10986
    %12633 = vmatpush1.bf16.msra.mxu0 %v10985
    %12634 = vmatprep.subr.bf16.mxu0 %v11004
    %12635 = vmatpush1.bf16.msra.mxu0 %v11003
    %12636 = vmatprep.subr.bf16.mxu0 %v11022
    %12637 = vmatpush1.bf16.msra.mxu0 %v11021
    %12638 = vmatprep.subr.bf16.mxu0 %v11040
    %12639 = vmatpush1.bf16.msra.mxu0 %v11039
    %12640 = vmatprep.mubr.bf16.mxu0 %v6630
    %12641 = vmatmul.mubr.bf16.gmra.mrb[0].mxu0 %v6629
    %v12642 = vpop.f32.mrb[0].mxu0
    %v12643 = vadd.f32 %v12602, %v12642
    %v12644 = vpop.f32.mrb[0].mxu0
    %v12645 = vadd.f32 %v12604, %v12644
    %v12646 = vpop.f32.mrb[0].mxu0
    %v12647 = vpop.f32.mrb[0].mxu0
    %12648 = vdwg.mxu0
    %12649 = vmatprep.subr.bf16.mxu0 %v10196
    %12650 = vmatpush1.bf16.msra.mxu0 %v10195
    %12651 = vmatprep.subr.bf16.mxu0 %v10214
    %12652 = vmatpush1.bf16.msra.mxu0 %v10213
    %12653 = vmatprep.subr.bf16.mxu0 %v10232
    %12654 = vmatpush1.bf16.msra.mxu0 %v10231
    %12655 = vmatprep.subr.bf16.mxu0 %v10250
    %12656 = vmatpush1.bf16.msra.mxu0 %v10249
    %12657 = vmatprep.subr.bf16.mxu0 %v10268
    %12658 = vmatpush1.bf16.msra.mxu0 %v10267
    %12659 = vmatprep.subr.bf16.mxu0 %v10286
    %12660 = vmatpush1.bf16.msra.mxu0 %v10285
    %12661 = vmatprep.subr.bf16.mxu0 %v10304
    %12662 = vmatpush1.bf16.msra.mxu0 %v10303
    %12663 = vmatprep.subr.bf16.mxu0 %v10322
    %12664 = vmatpush1.bf16.msra.mxu0 %v10321
    %12665 = vmatprep.subr.bf16.mxu0 %v10340
    %12666 = vmatpush1.bf16.msra.mxu0 %v10339
    %12667 = vmatprep.subr.bf16.mxu0 %v10358
    %12668 = vmatpush1.bf16.msra.mxu0 %v10357
    %12669 = vmatprep.subr.bf16.mxu0 %v10376
    %12670 = vmatpush1.bf16.msra.mxu0 %v10375
    %12671 = vmatprep.subr.bf16.mxu0 %v10394
    %12672 = vmatpush1.bf16.msra.mxu0 %v10393
    %12673 = vmatprep.subr.bf16.mxu0 %v10412
    %12674 = vmatpush1.bf16.msra.mxu0 %v10411
    %12675 = vmatprep.subr.bf16.mxu0 %v10430
    %12676 = vmatpush1.bf16.msra.mxu0 %v10429
    %12677 = vmatprep.subr.bf16.mxu0 %v10448
    %12678 = vmatpush1.bf16.msra.mxu0 %v10447
    %12679 = vmatprep.subr.bf16.mxu0 %v10466
    %12680 = vmatpush1.bf16.msra.mxu0 %v10465
    %12681 = vmatprep.mubr.bf16.mxu0 %v6626
    %12682 = vmatmul.mubr.bf16.gmra.mrb[0].mxu0 %v6625
    %v12683 = vpop.f32.mrb[0].mxu0
    %v12684 = vadd.f32 %v7552, %v12683
    %v12685 = vpop.f32.mrb[0].mxu0
    %v12686 = vadd.f32 %v7556, %v12685
    %v12687 = vpop.f32.mrb[0].mxu0
    %v12688 = vpop.f32.mrb[0].mxu0
    %12689 = vdwg.mxu0
    %12690 = vmatprep.subr.bf16.mxu0 %v10484
    %12691 = vmatpush1.bf16.msra.mxu0 %v10483
    %12692 = vmatprep.subr.bf16.mxu0 %v10502
    %12693 = vmatpush1.bf16.msra.mxu0 %v10501
    %12694 = vmatprep.subr.bf16.mxu0 %v10520
    %12695 = vmatpush1.bf16.msra.mxu0 %v10519
    %12696 = vmatprep.subr.bf16.mxu0 %v10538
    %12697 = vmatpush1.bf16.msra.mxu0 %v10537
    %12698 = vmatprep.subr.bf16.mxu0 %v10556
    %12699 = vmatpush1.bf16.msra.mxu0 %v10555
    %12700 = vmatprep.subr.bf16.mxu0 %v10574
    %12701 = vmatpush1.bf16.msra.mxu0 %v10573
    %12702 = vmatprep.subr.bf16.mxu0 %v10592
    %12703 = vmatpush1.bf16.msra.mxu0 %v10591
    %12704 = vmatprep.subr.bf16.mxu0 %v10610
    %12705 = vmatpush1.bf16.msra.mxu0 %v10609
    %12706 = vmatprep.subr.bf16.mxu0 %v10628
    %12707 = vmatpush1.bf16.msra.mxu0 %v10627
    %12708 = vmatprep.subr.bf16.mxu0 %v10646
    %12709 = vmatpush1.bf16.msra.mxu0 %v10645
    %12710 = vmatprep.subr.bf16.mxu0 %v10664
    %12711 = vmatpush1.bf16.msra.mxu0 %v10663
    %12712 = vmatprep.subr.bf16.mxu0 %v10682
    %12713 = vmatpush1.bf16.msra.mxu0 %v10681
    %12714 = vmatprep.subr.bf16.mxu0 %v10700
    %12715 = vmatpush1.bf16.msra.mxu0 %v10699
    %12716 = vmatprep.subr.bf16.mxu0 %v10718
    %12717 = vmatpush1.bf16.msra.mxu0 %v10717
    %12718 = vmatprep.subr.bf16.mxu0 %v10736
    %12719 = vmatpush1.bf16.msra.mxu0 %v10735
    %12720 = vmatprep.subr.bf16.mxu0 %v10754
    %12721 = vmatpush1.bf16.msra.mxu0 %v10753
    %12722 = vmatprep.mubr.bf16.mxu0 %v6628
    %12723 = vmatmul.mubr.bf16.gmra.mrb[0].mxu0 %v6627
    %v12724 = vpop.f32.mrb[0].mxu0
    %v12725 = vadd.f32 %v12684, %v12724
    %v12726 = vpop.f32.mrb[0].mxu0
    %v12727 = vadd.f32 %v12686, %v12726
    %v12728 = vpop.f32.mrb[0].mxu0
    %v12729 = vpop.f32.mrb[0].mxu0
    %12730 = vdwg.mxu0
    %12731 = vmatprep.subr.bf16.mxu0 %v10772
    %12732 = vmatpush1.bf16.msra.mxu0 %v10771
    %12733 = vmatprep.subr.bf16.mxu0 %v10790
    %12734 = vmatpush1.bf16.msra.mxu0 %v10789
    %12735 = vmatprep.subr.bf16.mxu0 %v10808
    %12736 = vmatpush1.bf16.msra.mxu0 %v10807
    %12737 = vmatprep.subr.bf16.mxu0 %v10826
    %12738 = vmatpush1.bf16.msra.mxu0 %v10825
    %12739 = vmatprep.subr.bf16.mxu0 %v10844
    %12740 = vmatpush1.bf16.msra.mxu0 %v10843
    %12741 = vmatprep.subr.bf16.mxu0 %v10862
    %12742 = vmatpush1.bf16.msra.mxu0 %v10861
    %12743 = vmatprep.subr.bf16.mxu0 %v10880
    %12744 = vmatpush1.bf16.msra.mxu0 %v10879
    %12745 = vmatprep.subr.bf16.mxu0 %v10898
    %12746 = vmatpush1.bf16.msra.mxu0 %v10897
    %12747 = vmatprep.subr.bf16.mxu0 %v10916
    %12748 = vmatpush1.bf16.msra.mxu0 %v10915
    %12749 = vmatprep.subr.bf16.mxu0 %v10934
    %12750 = vmatpush1.bf16.msra.mxu0 %v10933
    %12751 = vmatprep.subr.bf16.mxu0 %v10952
    %12752 = vmatpush1.bf16.msra.mxu0 %v10951
    %12753 = vmatprep.subr.bf16.mxu0 %v10970
    %12754 = vmatpush1.bf16.msra.mxu0 %v10969
    %12755 = vmatprep.subr.bf16.mxu0 %v10988
    %12756 = vmatpush1.bf16.msra.mxu0 %v10987
    %12757 = vmatprep.subr.bf16.mxu0 %v11006
    %12758 = vmatpush1.bf16.msra.mxu0 %v11005
    %12759 = vmatprep.subr.bf16.mxu0 %v11024
    %12760 = vmatpush1.bf16.msra.mxu0 %v11023
    %12761 = vmatprep.subr.bf16.mxu0 %v11042
    %12762 = vmatpush1.bf16.msra.mxu0 %v11041
    %12763 = vmatprep.mubr.bf16.mxu0 %v6630
    %12764 = vmatmul.mubr.bf16.gmra.mrb[0].mxu0 %v6629
    %v12765 = vpop.f32.mrb[0].mxu0
    %v12766 = vadd.f32 %v12725, %v12765
    %v12767 = vpop.f32.mrb[0].mxu0
    %v12768 = vadd.f32 %v12727, %v12767
    %v12769 = vpop.f32.mrb[0].mxu0
    %v12770 = vpop.f32.mrb[0].mxu0
    %12771 = vdwg.mxu0
    %12772 = vmatprep.subr.bf16.mxu0 %v10198
    %12773 = vmatpush1.bf16.msra.mxu0 %v10197
    %12774 = vmatprep.subr.bf16.mxu0 %v10216
    %12775 = vmatpush1.bf16.msra.mxu0 %v10215
    %12776 = vmatprep.subr.bf16.mxu0 %v10234
    %12777 = vmatpush1.bf16.msra.mxu0 %v10233
    %12778 = vmatprep.subr.bf16.mxu0 %v10252
    %12779 = vmatpush1.bf16.msra.mxu0 %v10251
    %12780 = vmatprep.subr.bf16.mxu0 %v10270
    %12781 = vmatpush1.bf16.msra.mxu0 %v10269
    %12782 = vmatprep.subr.bf16.mxu0 %v10288
    %12783 = vmatpush1.bf16.msra.mxu0 %v10287
    %12784 = vmatprep.subr.bf16.mxu0 %v10306
    %12785 = vmatpush1.bf16.msra.mxu0 %v10305
    %12786 = vmatprep.subr.bf16.mxu0 %v10324
    %12787 = vmatpush1.bf16.msra.mxu0 %v10323
    %12788 = vmatprep.subr.bf16.mxu0 %v10342
    %12789 = vmatpush1.bf16.msra.mxu0 %v10341
    %12790 = vmatprep.subr.bf16.mxu0 %v10360
    %12791 = vmatpush1.bf16.msra.mxu0 %v10359
    %12792 = vmatprep.subr.bf16.mxu0 %v10378
    %12793 = vmatpush1.bf16.msra.mxu0 %v10377
    %12794 = vmatprep.subr.bf16.mxu0 %v10396
    %12795 = vmatpush1.bf16.msra.mxu0 %v10395
    %12796 = vmatprep.subr.bf16.mxu0 %v10414
    %12797 = vmatpush1.bf16.msra.mxu0 %v10413
    %12798 = vmatprep.subr.bf16.mxu0 %v10432
    %12799 = vmatpush1.bf16.msra.mxu0 %v10431
    %12800 = vmatprep.subr.bf16.mxu0 %v10450
    %12801 = vmatpush1.bf16.msra.mxu0 %v10449
    %12802 = vmatprep.subr.bf16.mxu0 %v10468
    %12803 = vmatpush1.bf16.msra.mxu0 %v10467
    %12804 = vmatprep.mubr.bf16.mxu0 %v6626
    %12805 = vmatmul.mubr.bf16.gmra.mrb[0].mxu0 %v6625
    %v12806 = vpop.f32.mrb[0].mxu0
    %v12807 = vadd.f32 %v7560, %v12806
    %v12808 = vpop.f32.mrb[0].mxu0
    %v12809 = vadd.f32 %v7564, %v12808
    %v12810 = vpop.f32.mrb[0].mxu0
    %v12811 = vpop.f32.mrb[0].mxu0
    %12812 = vdwg.mxu0
    %12813 = vmatprep.subr.bf16.mxu0 %v10486
    %12814 = vmatpush1.bf16.msra.mxu0 %v10485
    %12815 = vmatprep.subr.bf16.mxu0 %v10504
    %12816 = vmatpush1.bf16.msra.mxu0 %v10503
    %12817 = vmatprep.subr.bf16.mxu0 %v10522
    %12818 = vmatpush1.bf16.msra.mxu0 %v10521
    %12819 = vmatprep.subr.bf16.mxu0 %v10540
    %12820 = vmatpush1.bf16.msra.mxu0 %v10539
    %12821 = vmatprep.subr.bf16.mxu0 %v10558
    %12822 = vmatpush1.bf16.msra.mxu0 %v10557
    %12823 = vmatprep.subr.bf16.mxu0 %v10576
    %12824 = vmatpush1.bf16.msra.mxu0 %v10575
    %12825 = vmatprep.subr.bf16.mxu0 %v10594
    %12826 = vmatpush1.bf16.msra.mxu0 %v10593
    %12827 = vmatprep.subr.bf16.mxu0 %v10612
    %12828 = vmatpush1.bf16.msra.mxu0 %v10611
    %12829 = vmatprep.subr.bf16.mxu0 %v10630
    %12830 = vmatpush1.bf16.msra.mxu0 %v10629
    %12831 = vmatprep.subr.bf16.mxu0 %v10648
    %12832 = vmatpush1.bf16.msra.mxu0 %v10647
    %12833 = vmatprep.subr.bf16.mxu0 %v10666
    %12834 = vmatpush1.bf16.msra.mxu0 %v10665
    %12835 = vmatprep.subr.bf16.mxu0 %v10684
    %12836 = vmatpush1.bf16.msra.mxu0 %v10683
    %12837 = vmatprep.subr.bf16.mxu0 %v10702
    %12838 = vmatpush1.bf16.msra.mxu0 %v10701
    %12839 = vmatprep.subr.bf16.mxu0 %v10720
    %12840 = vmatpush1.bf16.msra.mxu0 %v10719
    %12841 = vmatprep.subr.bf16.mxu0 %v10738
    %12842 = vmatpush1.bf16.msra.mxu0 %v10737
    %12843 = vmatprep.subr.bf16.mxu0 %v10756
    %12844 = vmatpush1.bf16.msra.mxu0 %v10755
    %12845 = vmatprep.mubr.bf16.mxu0 %v6628
    %12846 = vmatmul.mubr.bf16.gmra.mrb[0].mxu0 %v6627
    %v12847 = vpop.f32.mrb[0].mxu0
    %v12848 = vadd.f32 %v12807, %v12847
    %v12849 = vpop.f32.mrb[0].mxu0
    %v12850 = vadd.f32 %v12809, %v12849
    %v12851 = vpop.f32.mrb[0].mxu0
    %v12852 = vpop.f32.mrb[0].mxu0
    %12853 = vdwg.mxu0
    %12854 = vmatprep.subr.bf16.mxu0 %v10774
    %12855 = vmatpush1.bf16.msra.mxu0 %v10773
    %12856 = vmatprep.subr.bf16.mxu0 %v10792
    %12857 = vmatpush1.bf16.msra.mxu0 %v10791
    %12858 = vmatprep.subr.bf16.mxu0 %v10810
    %12859 = vmatpush1.bf16.msra.mxu0 %v10809
    %12860 = vmatprep.subr.bf16.mxu0 %v10828
    %12861 = vmatpush1.bf16.msra.mxu0 %v10827
    %12862 = vmatprep.subr.bf16.mxu0 %v10846
    %12863 = vmatpush1.bf16.msra.mxu0 %v10845
    %12864 = vmatprep.subr.bf16.mxu0 %v10864
    %12865 = vmatpush1.bf16.msra.mxu0 %v10863
    %12866 = vmatprep.subr.bf16.mxu0 %v10882
    %12867 = vmatpush1.bf16.msra.mxu0 %v10881
    %12868 = vmatprep.subr.bf16.mxu0 %v10900
    %12869 = vmatpush1.bf16.msra.mxu0 %v10899
    %12870 = vmatprep.subr.bf16.mxu0 %v10918
    %12871 = vmatpush1.bf16.msra.mxu0 %v10917
    %12872 = vmatprep.subr.bf16.mxu0 %v10936
    %12873 = vmatpush1.bf16.msra.mxu0 %v10935
    %12874 = vmatprep.subr.bf16.mxu0 %v10954
    %12875 = vmatpush1.bf16.msra.mxu0 %v10953
    %12876 = vmatprep.subr.bf16.mxu0 %v10972
    %12877 = vmatpush1.bf16.msra.mxu0 %v10971
    %12878 = vmatprep.subr.bf16.mxu0 %v10990
    %12879 = vmatpush1.bf16.msra.mxu0 %v10989
    %12880 = vmatprep.subr.bf16.mxu0 %v11008
    %12881 = vmatpush1.bf16.msra.mxu0 %v11007
    %12882 = vmatprep.subr.bf16.mxu0 %v11026
    %12883 = vmatpush1.bf16.msra.mxu0 %v11025
    %12884 = vmatprep.subr.bf16.mxu0 %v11044
    %12885 = vmatpush1.bf16.msra.mxu0 %v11043
    %12886 = vmatprep.mubr.bf16.mxu0 %v6630
    %12887 = vmatmul.mubr.bf16.gmra.mrb[0].mxu0 %v6629
    %v12888 = vpop.f32.mrb[0].mxu0
    %v12889 = vadd.f32 %v12848, %v12888
    %v12890 = vpop.f32.mrb[0].mxu0
    %v12891 = vadd.f32 %v12850, %v12890
    %v12892 = vpop.f32.mrb[0].mxu0
    %v12893 = vpop.f32.mrb[0].mxu0
    %12894 = vdwg.mxu0
    %12895 = vmatprep.subr.bf16.mxu0 %v10200
    %12896 = vmatpush1.bf16.msra.mxu0 %v10199
    %12897 = vmatprep.subr.bf16.mxu0 %v10218
    %12898 = vmatpush1.bf16.msra.mxu0 %v10217
    %12899 = vmatprep.subr.bf16.mxu0 %v10236
    %12900 = vmatpush1.bf16.msra.mxu0 %v10235
    %12901 = vmatprep.subr.bf16.mxu0 %v10254
    %12902 = vmatpush1.bf16.msra.mxu0 %v10253
    %12903 = vmatprep.subr.bf16.mxu0 %v10272
    %12904 = vmatpush1.bf16.msra.mxu0 %v10271
    %12905 = vmatprep.subr.bf16.mxu0 %v10290
    %12906 = vmatpush1.bf16.msra.mxu0 %v10289
    %12907 = vmatprep.subr.bf16.mxu0 %v10308
    %12908 = vmatpush1.bf16.msra.mxu0 %v10307
    %12909 = vmatprep.subr.bf16.mxu0 %v10326
    %12910 = vmatpush1.bf16.msra.mxu0 %v10325
    %12911 = vmatprep.subr.bf16.mxu0 %v10344
    %12912 = vmatpush1.bf16.msra.mxu0 %v10343
    %12913 = vmatprep.subr.bf16.mxu0 %v10362
    %12914 = vmatpush1.bf16.msra.mxu0 %v10361
    %12915 = vmatprep.subr.bf16.mxu0 %v10380
    %12916 = vmatpush1.bf16.msra.mxu0 %v10379
    %12917 = vmatprep.subr.bf16.mxu0 %v10398
    %12918 = vmatpush1.bf16.msra.mxu0 %v10397
    %12919 = vmatprep.subr.bf16.mxu0 %v10416
    %12920 = vmatpush1.bf16.msra.mxu0 %v10415
    %12921 = vmatprep.subr.bf16.mxu0 %v10434
    %12922 = vmatpush1.bf16.msra.mxu0 %v10433
    %12923 = vmatprep.subr.bf16.mxu0 %v10452
    %12924 = vmatpush1.bf16.msra.mxu0 %v10451
    %12925 = vmatprep.subr.bf16.mxu0 %v10470
    %12926 = vmatpush1.bf16.msra.mxu0 %v10469
    %12927 = vmatprep.mubr.bf16.mxu0 %v6626
    %12928 = vmatmul.mubr.bf16.gmra.mrb[0].mxu0 %v6625
    %v12929 = vpop.f32.mrb[0].mxu0
    %v12930 = vadd.f32 %v7568, %v12929
    %v12931 = vpop.f32.mrb[0].mxu0
    %v12932 = vadd.f32 %v7572, %v12931
    %v12933 = vpop.f32.mrb[0].mxu0
    %v12934 = vpop.f32.mrb[0].mxu0
    %12935 = vdwg.mxu0
    %12936 = vmatprep.subr.bf16.mxu0 %v10488
    %12937 = vmatpush1.bf16.msra.mxu0 %v10487
    %12938 = vmatprep.subr.bf16.mxu0 %v10506
    %12939 = vmatpush1.bf16.msra.mxu0 %v10505
    %12940 = vmatprep.subr.bf16.mxu0 %v10524
    %12941 = vmatpush1.bf16.msra.mxu0 %v10523
    %12942 = vmatprep.subr.bf16.mxu0 %v10542
    %12943 = vmatpush1.bf16.msra.mxu0 %v10541
    %12944 = vmatprep.subr.bf16.mxu0 %v10560
    %12945 = vmatpush1.bf16.msra.mxu0 %v10559
    %12946 = vmatprep.subr.bf16.mxu0 %v10578
    %12947 = vmatpush1.bf16.msra.mxu0 %v10577
    %12948 = vmatprep.subr.bf16.mxu0 %v10596
    %12949 = vmatpush1.bf16.msra.mxu0 %v10595
    %12950 = vmatprep.subr.bf16.mxu0 %v10614
    %12951 = vmatpush1.bf16.msra.mxu0 %v10613
    %12952 = vmatprep.subr.bf16.mxu0 %v10632
    %12953 = vmatpush1.bf16.msra.mxu0 %v10631
    %12954 = vmatprep.subr.bf16.mxu0 %v10650
    %12955 = vmatpush1.bf16.msra.mxu0 %v10649
    %12956 = vmatprep.subr.bf16.mxu0 %v10668
    %12957 = vmatpush1.bf16.msra.mxu0 %v10667
    %12958 = vmatprep.subr.bf16.mxu0 %v10686
    %12959 = vmatpush1.bf16.msra.mxu0 %v10685
    %12960 = vmatprep.subr.bf16.mxu0 %v10704
    %12961 = vmatpush1.bf16.msra.mxu0 %v10703
    %12962 = vmatprep.subr.bf16.mxu0 %v10722
    %12963 = vmatpush1.bf16.msra.mxu0 %v10721
    %12964 = vmatprep.subr.bf16.mxu0 %v10740
    %12965 = vmatpush1.bf16.msra.mxu0 %v10739
    %12966 = vmatprep.subr.bf16.mxu0 %v10758
    %12967 = vmatpush1.bf16.msra.mxu0 %v10757
    %12968 = vmatprep.mubr.bf16.mxu0 %v6628
    %12969 = vmatmul.mubr.bf16.gmra.mrb[0].mxu0 %v6627
    %v12970 = vpop.f32.mrb[0].mxu0
    %v12971 = vadd.f32 %v12930, %v12970
    %v12972 = vpop.f32.mrb[0].mxu0
    %v12973 = vadd.f32 %v12932, %v12972
    %v12974 = vpop.f32.mrb[0].mxu0
    %v12975 = vpop.f32.mrb[0].mxu0
    %12976 = vdwg.mxu0
    %12977 = vmatprep.subr.bf16.mxu0 %v10776
    %12978 = vmatpush1.bf16.msra.mxu0 %v10775
    %12979 = vmatprep.subr.bf16.mxu0 %v10794
    %12980 = vmatpush1.bf16.msra.mxu0 %v10793
    %12981 = vmatprep.subr.bf16.mxu0 %v10812
    %12982 = vmatpush1.bf16.msra.mxu0 %v10811
    %12983 = vmatprep.subr.bf16.mxu0 %v10830
    %12984 = vmatpush1.bf16.msra.mxu0 %v10829
    %12985 = vmatprep.subr.bf16.mxu0 %v10848
    %12986 = vmatpush1.bf16.msra.mxu0 %v10847
    %12987 = vmatprep.subr.bf16.mxu0 %v10866
    %12988 = vmatpush1.bf16.msra.mxu0 %v10865
    %12989 = vmatprep.subr.bf16.mxu0 %v10884
    %12990 = vmatpush1.bf16.msra.mxu0 %v10883
    %12991 = vmatprep.subr.bf16.mxu0 %v10902
    %12992 = vmatpush1.bf16.msra.mxu0 %v10901
    %12993 = vmatprep.subr.bf16.mxu0 %v10920
    %12994 = vmatpush1.bf16.msra.mxu0 %v10919
    %12995 = vmatprep.subr.bf16.mxu0 %v10938
    %12996 = vmatpush1.bf16.msra.mxu0 %v10937
    %12997 = vmatprep.subr.bf16.mxu0 %v10956
    %12998 = vmatpush1.bf16.msra.mxu0 %v10955
    %12999 = vmatprep.subr.bf16.mxu0 %v10974
    %13000 = vmatpush1.bf16.msra.mxu0 %v10973
    %13001 = vmatprep.subr.bf16.mxu0 %v10992
    %13002 = vmatpush1.bf16.msra.mxu0 %v10991
    %13003 = vmatprep.subr.bf16.mxu0 %v11010
    %13004 = vmatpush1.bf16.msra.mxu0 %v11009
    %13005 = vmatprep.subr.bf16.mxu0 %v11028
    %13006 = vmatpush1.bf16.msra.mxu0 %v11027
    %13007 = vmatprep.subr.bf16.mxu0 %v11046
    %13008 = vmatpush1.bf16.msra.mxu0 %v11045
    %13009 = vmatprep.mubr.bf16.mxu0 %v6630
    %13010 = vmatmul.mubr.bf16.gmra.mrb[0].mxu0 %v6629
    %v13011 = vpop.f32.mrb[0].mxu0
    %v13012 = vadd.f32 %v12971, %v13011
    %v13013 = vpop.f32.mrb[0].mxu0
    %v13014 = vadd.f32 %v12973, %v13013
    %v13015 = vpop.f32.mrb[0].mxu0
    %v13016 = vpop.f32.mrb[0].mxu0
    %13017 = vdwg.mxu0
    %v13018 = vxor.u32 %v12028, 2147483648
    %v13019 = vxor.u32 %v12030, 2147483648
    %v13020 = vxor.u32 %v12151, 2147483648
    %v13021 = vmul.f32 %v13018, 1.442695
    %v13022 = vpow.pop %v13021
    %v13023 = vmul.f32 %v13019, 1.442695
    %v13024 = vpow.pop %v13023
    %v13025 = vmul.f32 %v13020, 1.442695
    %v13026 = vpow.pop %v13025
    %v13027 = vadd.f32 %v13022, 1.0
    %v13028 = vadd.f32 %v13024, 1.0
    %v13029 = vadd.f32 %v13026, 1.0
    %v13030 = vrcp.pop %v13027
    %v13031 = vmul.f32 1.0, %v13030
    %v13032 = vrcp.pop %v13028
    %v13033 = vmul.f32 1.0, %v13032
    %v13034 = vrcp.pop %v13029
    %v13035 = vmul.f32 1.0, %v13034
    %v13036 = vtanh.pop %v12153
    %v13037 = vtanh.pop %v12274
    %v13038 = vtanh.pop %v12276
    %v13039 = vxor.u32 %v12397, 2147483648
    %v13040 = vxor.u32 %v12399, 2147483648
    %v13041 = vxor.u32 %v12520, 2147483648
    %v13042 = vmul.f32 %v13039, 1.442695
    %v13043 = vpow.pop %v13042
    %v13044 = vmul.f32 %v13040, 1.442695
    %v13045 = vpow.pop %v13044
    %v13046 = vmul.f32 %v13041, 1.442695
    %v13047 = vpow.pop %v13046
    %v13048 = vadd.f32 %v13043, 1.0
    %v13049 = vadd.f32 %v13045, 1.0
    %v13050 = vadd.f32 %v13047, 1.0
    %v13051 = vrcp.pop %v13048
    %v13052 = vmul.f32 1.0, %v13051
    %v13053 = vrcp.pop %v13049
    %v13054 = vmul.f32 1.0, %v13053
    %v13055 = vrcp.pop %v13050
    %v13056 = vmul.f32 1.0, %v13055
    %v13057 = vmul.f32 %v13031, %v13036
    %v13058 = vmul.f32 %v13033, %v13037
    %v13059 = vmul.f32 %v13035, %v13038
    %v13060 = vtanh.pop %v13057
    %v13061 = vtanh.pop %v13058
    %v13062 = vtanh.pop %v13059
    %v13063 = vmul.f32 %v13052, %v13060
    %v13064 = vmul.f32 %v13054, %v13061
    %v13065 = vmul.f32 %v13056, %v13062
    %v13066 = vxor.u32 %v12522, 2147483648
    %v13067 = vxor.u32 %v12643, 2147483648
    %v13068 = vxor.u32 %v12645, 2147483648
    %v13069 = vmul.f32 %v13066, 1.442695
    %v13070 = vpow.pop %v13069
    %v13071 = vmul.f32 %v13067, 1.442695
    %v13072 = vpow.pop %v13071
    %v13073 = vmul.f32 %v13068, 1.442695
    %v13074 = vpow.pop %v13073
    %v13075 = vadd.f32 %v13070, 1.0
    %v13076 = vadd.f32 %v13072, 1.0
    %v13077 = vadd.f32 %v13074, 1.0
    %v13078 = vrcp.pop %v13075
    %v13079 = vmul.f32 1.0, %v13078
    %v13080 = vrcp.pop %v13076
    %v13081 = vmul.f32 1.0, %v13080
    %v13082 = vrcp.pop %v13077
    %v13083 = vmul.f32 1.0, %v13082
    %v13084 = vtanh.pop %v12766
    %v13085 = vtanh.pop %v12768
    %v13086 = vtanh.pop %v12889
    %v13087 = vxor.u32 %v12891, 2147483648
    %v13088 = vxor.u32 %v13012, 2147483648
    %v13089 = vxor.u32 %v13014, 2147483648
    %v13090 = vmul.f32 %v13087, 1.442695
    %v13091 = vpow.pop %v13090
    %v13092 = vmul.f32 %v13088, 1.442695
    %v13093 = vpow.pop %v13092
    %v13094 = vmul.f32 %v13089, 1.442695
    %v13095 = vpow.pop %v13094
    %v13096 = vadd.f32 %v13091, 1.0
    %v13097 = vadd.f32 %v13093, 1.0
    %v13098 = vadd.f32 %v13095, 1.0
    %v13099 = vrcp.pop %v13096
    %v13100 = vmul.f32 1.0, %v13099
    %v13101 = vrcp.pop %v13097
    %v13102 = vmul.f32 1.0, %v13101
    %v13103 = vrcp.pop %v13098
    %v13104 = vmul.f32 1.0, %v13103
    %v13105 = vmul.f32 %v13079, %v13084
    %v13106 = vmul.f32 %v13081, %v13085
    %v13107 = vmul.f32 %v13083, %v13086
    %v13108 = vtanh.pop %v13105
    %v13109 = vtanh.pop %v13106
    %v13110 = vtanh.pop %v13107
    %v13111 = vmul.f32 %v13100, %v13108
    %v13112 = vmul.f32 %v13102, %v13109
    %v13113 = vmul.f32 %v13104, %v13110
    %v13114 = vld [vmem:[#allocation11] sm:$0x3f]
    %v13116 = vlaneseq
    %v13117 = vshrl.u32 %v13116, 7
    %v13118 = vsub.s32 0, %v13117
    %v13119 = vrot.slane %v13114, %v13118
    %v13120 = vlaneseq
    %v13121 = vshrl.u32 %v13120, 7
    %v13122 = vsub.s32 1, %v13121
    %v13123 = vrot.slane %v13114, %v13122
    %v13124 = vlaneseq
    %v13125 = vshrl.u32 %v13124, 7
    %v13126 = vsub.s32 2, %v13125
    %v13127 = vrot.slane %v13114, %v13126
    %v13128 = vlaneseq
    %v13129 = vshrl.u32 %v13128, 7
    %v13130 = vsub.s32 3, %v13129
    %v13131 = vrot.slane %v13114, %v13130
    %v13132 = vlaneseq
    %v13133 = vshrl.u32 %v13132, 7
    %v13134 = vsub.s32 4, %v13133
    %v13135 = vrot.slane %v13114, %v13134
    %v13136 = vlaneseq
    %v13137 = vshrl.u32 %v13136, 7
    %v13138 = vsub.s32 5, %v13137
    %v13139 = vrot.slane %v13114, %v13138
    %v13146 = vmul.f32 %v13063, %v13119
    %v13147 = vmul.f32 %v13064, %v13123
    %v13148 = vmul.f32 %v13065, %v13127
    %v13149 = vmul.f32 %v13111, %v13131
    %v13150 = vmul.f32 %v13112, %v13135
    %v13151 = vmul.f32 %v13113, %v13139
    %v13152 = vadd.f32 %v13146, %v13147
    %v13153 = vadd.f32 %v13152, %v13148
    %v13154 = vadd.f32 %v13153, %v13149
    %v13155 = vadd.f32 %v13154, %v13150
    %v13156 = vadd.f32 %v13155, %v13151
    %13157 = vadd.xlane.f32.xlu0 %v13156
    %v13158 = vpop.xlane.xlu0 %13157
    %v13159 = vrot.slane %v13158, 4
    %v13160 = vmax.f32 %v13158, %v13159
    %v13161 = vrot.slane %v13160, 2
    %v13162 = vmax.f32 %v13160, %v13161
    %v13163 = vrot.slane %v13162, 1
    %v13164 = vmax.f32 %v13162, %v13163
    %s13165 = vtos %v13164
    %v13166 = vstv %s13165
    %v13167 = vsub.f32 %v13158, %v13166
    %v13168 = vmul.f32 %v13167, 1.442695
    %v13169 = vpow.pop %v13168
    %v13170 = vrot.slane %v13169, 4
    %v13171 = vadd.f32 %v13169, %v13170
    %v13172 = vrot.slane %v13171, 2
    %v13173 = vadd.f32 %v13171, %v13172
    %v13174 = vrot.slane %v13173, 1
    %v13175 = vadd.f32 %v13173, %v13174
    %v13176 = vrcp.pop %v13175
    %v13177 = vmul.f32 %v13169, %v13176
    %v13178 = vmul.f32 %v13063, %v13177
    %v13179 = vmul.f32 %v13064, %v13177
    %v13180 = vmul.f32 %v13065, %v13177
    %v13181 = vmul.f32 %v13111, %v13177
    %v13182 = vmul.f32 %v13112, %v13177
    %v13183 = vmul.f32 %v13113, %v13177
    %v13184 = vpack.c.bf16 %v13178, %v13178
    %v13185 = vpack.c.bf16 %v13179, %v13179
    %v13186 = vpack.c.bf16 %v13180, %v13180
    %v13187 = vpack.c.bf16 %v13181, %v13181
    %v13188 = vpack.c.bf16 %v13182, %v13182
    %v13189 = vpack.c.bf16 %v13183, %v13183
    %v13190 = vld [vmem:[#allocation13] sm:$0xf]
    %v13191 = vld [vmem:[#allocation13 + $0x4] sm:$0xf]
    %v13192 = vld [vmem:[#allocation13 + $0x8] sm:$0xf]
    %v13193 = vld [vmem:[#allocation13 + $0xc] sm:$0xf]
    %v13194 = vld [vmem:[#allocation13 + $0x10] sm:$0xf]
    %v13195 = vld [vmem:[#allocation13 + $0x14] sm:$0xf]
    %v13196 = vld [vmem:[#allocation13 + $0x18] sm:$0xf]
    %v13197 = vld [vmem:[#allocation13 + $0x1c] sm:$0xf]
    %v13198 = vld [vmem:[#allocation13 + $0x20] sm:$0xf]
    %v13199 = vld [vmem:[#allocation13 + $0x24] sm:$0xf]
    %v13200 = vld [vmem:[#allocation13 + $0x28] sm:$0xf]
    %v13201 = vld [vmem:[#allocation13 + $0x2c] sm:$0xf]
    %v13202 = vld [vmem:[#allocation13 + $0x30] sm:$0xf]
    %v13203 = vld [vmem:[#allocation13 + $0x34] sm:$0xf]
    %v13204 = vld [vmem:[#allocation13 + $0x38] sm:$0xf]
    %v13205 = vld [vmem:[#allocation13 + $0x3c] sm:$0xf]
    %v13206 = vld [vmem:[#allocation13 + $0x40] sm:$0xf]
    %v13207 = vld [vmem:[#allocation13 + $0x44] sm:$0xf]
    %v13208 = vld [vmem:[#allocation13 + $0x48] sm:$0xf]
    %v13209 = vld [vmem:[#allocation13 + $0x4c] sm:$0xf]
    %v13210 = vld [vmem:[#allocation13 + $0x50] sm:$0xf]
    %v13211 = vld [vmem:[#allocation13 + $0x54] sm:$0xf]
    %v13212 = vld [vmem:[#allocation13 + $0x58] sm:$0xf]
    %v13213 = vld [vmem:[#allocation13 + $0x5c] sm:$0xf]
    %v13214 = vld [vmem:[#allocation13 + $0x60] sm:$0xf]
    %v13215 = vld [vmem:[#allocation13 + $0x64] sm:$0xf]
    %v13216 = vld [vmem:[#allocation13 + $0x68] sm:$0xf]
    %v13217 = vld [vmem:[#allocation13 + $0x6c] sm:$0xf]
    %v13218 = vld [vmem:[#allocation13 + $0x70] sm:$0xf]
    %v13219 = vld [vmem:[#allocation13 + $0x74] sm:$0xf]
    %v13220 = vld [vmem:[#allocation13 + $0x78] sm:$0xf]
    %v13221 = vld [vmem:[#allocation13 + $0x7c] sm:$0xf]
    %v13222 = vld [vmem:[#allocation13 + $0x80] sm:$0xf]
    %v13223 = vld [vmem:[#allocation13 + $0x84] sm:$0xf]
    %v13224 = vld [vmem:[#allocation13 + $0x88] sm:$0xf]
    %v13225 = vld [vmem:[#allocation13 + $0x8c] sm:$0xf]
    %v13226 = vld [vmem:[#allocation13 + $0x90] sm:$0xf]
    %v13227 = vld [vmem:[#allocation13 + $0x94] sm:$0xf]
    %v13228 = vld [vmem:[#allocation13 + $0x98] sm:$0xf]
    %v13229 = vld [vmem:[#allocation13 + $0x9c] sm:$0xf]
    %v13230 = vld [vmem:[#allocation13 + $0xa0] sm:$0xf]
    %v13231 = vld [vmem:[#allocation13 + $0xa4] sm:$0xf]
    %v13232 = vld [vmem:[#allocation13 + $0xa8] sm:$0xf]
    %v13233 = vld [vmem:[#allocation13 + $0xac] sm:$0xf]
    %v13234 = vld [vmem:[#allocation13 + $0xb0] sm:$0xf]
    %v13235 = vld [vmem:[#allocation13 + $0xb4] sm:$0xf]
    %v13236 = vld [vmem:[#allocation13 + $0xb8] sm:$0xf]
    %v13237 = vld [vmem:[#allocation13 + $0xbc] sm:$0xf]
    %v13238 = vld [vmem:[#allocation13 + $0xc0] sm:$0xf]
    %v13239 = vld [vmem:[#allocation13 + $0xc4] sm:$0xf]
    %v13240 = vld [vmem:[#allocation13 + $0xc8] sm:$0xf]
    %v13241 = vld [vmem:[#allocation13 + $0xcc] sm:$0xf]
    %v13242 = vld [vmem:[#allocation13 + $0xd0] sm:$0xf]
    %v13243 = vld [vmem:[#allocation13 + $0xd4] sm:$0xf]
    %v13244 = vld [vmem:[#allocation13 + $0xd8] sm:$0xf]
    %v13245 = vld [vmem:[#allocation13 + $0xdc] sm:$0xf]
    %v13246 = vld [vmem:[#allocation13 + $0xe0] sm:$0xf]
    %v13247 = vld [vmem:[#allocation13 + $0xe4] sm:$0xf]
    %v13248 = vld [vmem:[#allocation13 + $0xe8] sm:$0xf]
    %v13249 = vld [vmem:[#allocation13 + $0xec] sm:$0xf]
    %v13250 = vld [vmem:[#allocation13 + $0xf0] sm:$0xf]
    %v13251 = vld [vmem:[#allocation13 + $0xf4] sm:$0xf]
    %v13252 = vld [vmem:[#allocation13 + $0xf8] sm:$0xf]
    %v13253 = vld [vmem:[#allocation13 + $0xfc] sm:$0xf]
    %v13254 = vld [vmem:[#allocation13 + $0x100] sm:$0xf]
    %v13255 = vld [vmem:[#allocation13 + $0x104] sm:$0xf]
    %v13256 = vld [vmem:[#allocation13 + $0x108] sm:$0xf]
    %v13257 = vld [vmem:[#allocation13 + $0x10c] sm:$0xf]
    %v13258 = vld [vmem:[#allocation13 + $0x110] sm:$0xf]
    %v13259 = vld [vmem:[#allocation13 + $0x114] sm:$0xf]
    %v13260 = vld [vmem:[#allocation13 + $0x118] sm:$0xf]
    %v13261 = vld [vmem:[#allocation13 + $0x11c] sm:$0xf]
    %v13262 = vld [vmem:[#allocation13 + $0x120] sm:$0xf]
    %v13263 = vld [vmem:[#allocation13 + $0x124] sm:$0xf]
    %v13264 = vld [vmem:[#allocation13 + $0x128] sm:$0xf]
    %v13265 = vld [vmem:[#allocation13 + $0x12c] sm:$0xf]
    %v13266 = vld [vmem:[#allocation13 + $0x130] sm:$0xf]
    %v13267 = vld [vmem:[#allocation13 + $0x134] sm:$0xf]
    %v13268 = vld [vmem:[#allocation13 + $0x138] sm:$0xf]
    %v13269 = vld [vmem:[#allocation13 + $0x13c] sm:$0xf]
    %v13270 = vld [vmem:[#allocation13 + $0x140] sm:$0xf]
    %v13271 = vld [vmem:[#allocation13 + $0x144] sm:$0xf]
    %v13272 = vld [vmem:[#allocation13 + $0x148] sm:$0xf]
    %v13273 = vld [vmem:[#allocation13 + $0x14c] sm:$0xf]
    %v13274 = vld [vmem:[#allocation13 + $0x150] sm:$0xf]
    %v13275 = vld [vmem:[#allocation13 + $0x154] sm:$0xf]
    %v13276 = vld [vmem:[#allocation13 + $0x158] sm:$0xf]
    %v13277 = vld [vmem:[#allocation13 + $0x15c] sm:$0xf]
    %v13278 = vld [vmem:[#allocation13 + $0x160] sm:$0xf]
    %v13279 = vld [vmem:[#allocation13 + $0x164] sm:$0xf]
    %v13280 = vld [vmem:[#allocation13 + $0x168] sm:$0xf]
    %v13281 = vld [vmem:[#allocation13 + $0x16c] sm:$0xf]
    %v13282 = vld [vmem:[#allocation13 + $0x170] sm:$0xf]
    %v13283 = vld [vmem:[#allocation13 + $0x174] sm:$0xf]
    %v13284 = vld [vmem:[#allocation13 + $0x178] sm:$0xf]
    %v13285 = vld [vmem:[#allocation13 + $0x17c] sm:$0xf]
    %v13286 = vld [vmem:[#allocation14] sm:$0x1]
    %v13288 = vlaneseq
    %v13289 = vshrl.u32 %v13288, 7
    %v13290 = vsub.s32 0, %v13289
    %v13291 = vrot.slane %v13286, %v13290
    %v13389 = vunpack.c.l.b16 %v13190
    %v13390 = vunpack.c.l.b16 %v13191
    %v13391 = vunpack.c.l.b16 %v13192
    %v13392 = vunpack.c.l.b16 %v13193
    %v13393 = vunpack.c.l.b16 %v13194
    %v13394 = vunpack.c.l.b16 %v13195
    %v13395 = vunpack.c.l.b16 %v13196
    %v13396 = vunpack.c.l.b16 %v13197
    %v13397 = vunpack.c.l.b16 %v13198
    %v13398 = vunpack.c.l.b16 %v13199
    %v13399 = vunpack.c.l.b16 %v13200
    %v13400 = vunpack.c.l.b16 %v13201
    %v13401 = vunpack.c.l.b16 %v13202
    %v13402 = vunpack.c.l.b16 %v13203
    %v13403 = vunpack.c.l.b16 %v13204
    %v13404 = vunpack.c.l.b16 %v13205
    %v13405 = vunpack.c.l.b16 %v13206
    %v13406 = vunpack.c.l.b16 %v13207
    %v13407 = vunpack.c.l.b16 %v13208
    %v13408 = vunpack.c.l.b16 %v13209
    %v13409 = vunpack.c.l.b16 %v13210
    %v13410 = vunpack.c.l.b16 %v13211
    %v13411 = vunpack.c.l.b16 %v13212
    %v13412 = vunpack.c.l.b16 %v13213
    %v13413 = vunpack.c.l.b16 %v13214
    %v13414 = vunpack.c.l.b16 %v13215
    %v13415 = vunpack.c.l.b16 %v13216
    %v13416 = vunpack.c.l.b16 %v13217
    %v13417 = vunpack.c.l.b16 %v13218
    %v13418 = vunpack.c.l.b16 %v13219
    %v13419 = vunpack.c.l.b16 %v13220
    %v13420 = vunpack.c.l.b16 %v13221
    %v13421 = vunpack.c.l.b16 %v13222
    %v13422 = vunpack.c.l.b16 %v13223
    %v13423 = vunpack.c.l.b16 %v13224
    %v13424 = vunpack.c.l.b16 %v13225
    %v13425 = vunpack.c.l.b16 %v13226
    %v13426 = vunpack.c.l.b16 %v13227
    %v13427 = vunpack.c.l.b16 %v13228
    %v13428 = vunpack.c.l.b16 %v13229
    %v13429 = vunpack.c.l.b16 %v13230
    %v13430 = vunpack.c.l.b16 %v13231
    %v13431 = vunpack.c.l.b16 %v13232
    %v13432 = vunpack.c.l.b16 %v13233
    %v13433 = vunpack.c.l.b16 %v13234
    %v13434 = vunpack.c.l.b16 %v13235
    %v13435 = vunpack.c.l.b16 %v13236
    %v13436 = vunpack.c.l.b16 %v13237
    %v13437 = vunpack.c.l.b16 %v13238
    %v13438 = vunpack.c.l.b16 %v13239
    %v13439 = vunpack.c.l.b16 %v13240
    %v13440 = vunpack.c.l.b16 %v13241
    %v13441 = vunpack.c.l.b16 %v13242
    %v13442 = vunpack.c.l.b16 %v13243
    %v13443 = vunpack.c.l.b16 %v13244
    %v13444 = vunpack.c.l.b16 %v13245
    %v13445 = vunpack.c.l.b16 %v13246
    %v13446 = vunpack.c.l.b16 %v13247
    %v13447 = vunpack.c.l.b16 %v13248
    %v13448 = vunpack.c.l.b16 %v13249
    %v13449 = vunpack.c.l.b16 %v13250
    %v13450 = vunpack.c.l.b16 %v13251
    %v13451 = vunpack.c.l.b16 %v13252
    %v13452 = vunpack.c.l.b16 %v13253
    %v13453 = vunpack.c.l.b16 %v13254
    %v13454 = vunpack.c.l.b16 %v13255
    %v13455 = vunpack.c.l.b16 %v13256
    %v13456 = vunpack.c.l.b16 %v13257
    %v13457 = vunpack.c.l.b16 %v13258
    %v13458 = vunpack.c.l.b16 %v13259
    %v13459 = vunpack.c.l.b16 %v13260
    %v13460 = vunpack.c.l.b16 %v13261
    %v13461 = vunpack.c.l.b16 %v13262
    %v13462 = vunpack.c.l.b16 %v13263
    %v13463 = vunpack.c.l.b16 %v13264
    %v13464 = vunpack.c.l.b16 %v13265
    %v13465 = vunpack.c.l.b16 %v13266
    %v13466 = vunpack.c.l.b16 %v13267
    %v13467 = vunpack.c.l.b16 %v13268
    %v13468 = vunpack.c.l.b16 %v13269
    %v13469 = vunpack.c.l.b16 %v13270
    %v13470 = vunpack.c.l.b16 %v13271
    %v13471 = vunpack.c.l.b16 %v13272
    %v13472 = vunpack.c.l.b16 %v13273
    %v13473 = vunpack.c.l.b16 %v13274
    %v13474 = vunpack.c.l.b16 %v13275
    %v13475 = vunpack.c.l.b16 %v13276
    %v13476 = vunpack.c.l.b16 %v13277
    %v13477 = vunpack.c.l.b16 %v13278
    %v13478 = vunpack.c.l.b16 %v13279
    %v13479 = vunpack.c.l.b16 %v13280
    %v13480 = vunpack.c.l.b16 %v13281
    %v13481 = vunpack.c.l.b16 %v13282
    %v13482 = vunpack.c.l.b16 %v13283
    %v13483 = vunpack.c.l.b16 %v13284
    %v13484 = vunpack.c.l.b16 %v13285
    %v13485 = vpack.c.b16 %v13390, %v13389
    %v13486 = vpack.c.b16 %v13392, %v13391
    %v13487 = vpack.c.b16 %v13394, %v13393
    %v13488 = vpack.c.b16 %v13396, %v13395
    %v13489 = vpack.c.b16 %v13398, %v13397
    %v13490 = vpack.c.b16 %v13400, %v13399
    %v13491 = vpack.c.b16 %v13402, %v13401
    %v13492 = vpack.c.b16 %v13404, %v13403
    %v13493 = vpack.c.b16 %v13406, %v13405
    %v13494 = vpack.c.b16 %v13408, %v13407
    %v13495 = vpack.c.b16 %v13410, %v13409
    %v13496 = vpack.c.b16 %v13412, %v13411
    %v13497 = vpack.c.b16 %v13414, %v13413
    %v13498 = vpack.c.b16 %v13416, %v13415
    %v13499 = vpack.c.b16 %v13418, %v13417
    %v13500 = vpack.c.b16 %v13420, %v13419
    %v13501 = vpack.c.b16 %v13422, %v13421
    %v13502 = vpack.c.b16 %v13424, %v13423
    %v13503 = vpack.c.b16 %v13426, %v13425
    %v13504 = vpack.c.b16 %v13428, %v13427
    %v13505 = vpack.c.b16 %v13430, %v13429
    %v13506 = vpack.c.b16 %v13432, %v13431
    %v13507 = vpack.c.b16 %v13434, %v13433
    %v13508 = vpack.c.b16 %v13436, %v13435
    %v13509 = vpack.c.b16 %v13438, %v13437
    %v13510 = vpack.c.b16 %v13440, %v13439
    %v13511 = vpack.c.b16 %v13442, %v13441
    %v13512 = vpack.c.b16 %v13444, %v13443
    %v13513 = vpack.c.b16 %v13446, %v13445
    %v13514 = vpack.c.b16 %v13448, %v13447
    %v13515 = vpack.c.b16 %v13450, %v13449
    %v13516 = vpack.c.b16 %v13452, %v13451
    %v13517 = vpack.c.b16 %v13454, %v13453
    %v13518 = vpack.c.b16 %v13456, %v13455
    %v13519 = vpack.c.b16 %v13458, %v13457
    %v13520 = vpack.c.b16 %v13460, %v13459
    %v13521 = vpack.c.b16 %v13462, %v13461
    %v13522 = vpack.c.b16 %v13464, %v13463
    %v13523 = vpack.c.b16 %v13466, %v13465
    %v13524 = vpack.c.b16 %v13468, %v13467
    %v13525 = vpack.c.b16 %v13470, %v13469
    %v13526 = vpack.c.b16 %v13472, %v13471
    %v13527 = vpack.c.b16 %v13474, %v13473
    %v13528 = vpack.c.b16 %v13476, %v13475
    %v13529 = vpack.c.b16 %v13478, %v13477
    %v13530 = vpack.c.b16 %v13480, %v13479
    %v13531 = vpack.c.b16 %v13482, %v13481
    %v13532 = vpack.c.b16 %v13484, %v13483
    %13581 = vmatprep.subr.bf16.mxu0 0
    %13582 = vmatpush1.bf16.msra.mxu0 %v13485
    %13583 = vmatprep.subr.bf16.mxu0 0
    %13584 = vmatpush1.bf16.msra.mxu0 %v13486
    %13585 = vmatprep.subr.bf16.mxu0 0
    %13586 = vmatpush1.bf16.msra.mxu0 %v13487
    %13587 = vmatprep.subr.bf16.mxu0 0
    %13588 = vmatpush1.bf16.msra.mxu0 %v13488
    %13589 = vmatprep.subr.bf16.mxu0 0
    %13590 = vmatpush1.bf16.msra.mxu0 %v13489
    %13591 = vmatprep.subr.bf16.mxu0 0
    %13592 = vmatpush1.bf16.msra.mxu0 %v13490
    %13593 = vmatprep.subr.bf16.mxu0 0
    %13594 = vmatpush1.bf16.msra.mxu0 %v13491
    %13595 = vmatprep.subr.bf16.mxu0 0
    %13596 = vmatpush1.bf16.msra.mxu0 %v13492
    %13597 = vmatprep.subr.bf16.mxu0 0
    %13598 = vmatpush1.bf16.msra.mxu0 %v13493
    %13599 = vmatprep.subr.bf16.mxu0 0
    %13600 = vmatpush1.bf16.msra.mxu0 %v13494
    %13601 = vmatprep.subr.bf16.mxu0 0
    %13602 = vmatpush1.bf16.msra.mxu0 %v13495
    %13603 = vmatprep.subr.bf16.mxu0 0
    %13604 = vmatpush1.bf16.msra.mxu0 %v13496
    %13605 = vmatprep.subr.bf16.mxu0 0
    %13606 = vmatpush1.bf16.msra.mxu0 %v13497
    %13607 = vmatprep.subr.bf16.mxu0 0
    %13608 = vmatpush1.bf16.msra.mxu0 %v13498
    %13609 = vmatprep.subr.bf16.mxu0 0
    %13610 = vmatpush1.bf16.msra.mxu0 %v13499
    %13611 = vmatprep.subr.bf16.mxu0 0
    %13612 = vmatpush1.bf16.msra.mxu0 %v13500
    %13613 = vmatprep.mubr.bf16.mxu0 %v13185
    %13614 = vmatmul.mubr.bf16.gmra.mrb[0].mxu0 %v13184
    %v13615 = vpop.f32.mrb[0].mxu0
    %v13616 = vadd.f32 %v13291, %v13615
    %v13617 = vpop.f32.mrb[0].mxu0
    %v13618 = vpop.f32.mrb[0].mxu0
    %v13619 = vpop.f32.mrb[0].mxu0
    %13620 = vdwg.mxu0
    %13621 = vmatprep.subr.bf16.mxu0 0
    %13622 = vmatpush1.bf16.msra.mxu0 %v13501
    %13623 = vmatprep.subr.bf16.mxu0 0
    %13624 = vmatpush1.bf16.msra.mxu0 %v13502
    %13625 = vmatprep.subr.bf16.mxu0 0
    %13626 = vmatpush1.bf16.msra.mxu0 %v13503
    %13627 = vmatprep.subr.bf16.mxu0 0
    %13628 = vmatpush1.bf16.msra.mxu0 %v13504
    %13629 = vmatprep.subr.bf16.mxu0 0
    %13630 = vmatpush1.bf16.msra.mxu0 %v13505
    %13631 = vmatprep.subr.bf16.mxu0 0
    %13632 = vmatpush1.bf16.msra.mxu0 %v13506
    %13633 = vmatprep.subr.bf16.mxu0 0
    %13634 = vmatpush1.bf16.msra.mxu0 %v13507
    %13635 = vmatprep.subr.bf16.mxu0 0
    %13636 = vmatpush1.bf16.msra.mxu0 %v13508
    %13637 = vmatprep.subr.bf16.mxu0 0
    %13638 = vmatpush1.bf16.msra.mxu0 %v13509
    %13639 = vmatprep.subr.bf16.mxu0 0
    %13640 = vmatpush1.bf16.msra.mxu0 %v13510
    %13641 = vmatprep.subr.bf16.mxu0 0
    %13642 = vmatpush1.bf16.msra.mxu0 %v13511
    %13643 = vmatprep.subr.bf16.mxu0 0
    %13644 = vmatpush1.bf16.msra.mxu0 %v13512
    %13645 = vmatprep.subr.bf16.mxu0 0
    %13646 = vmatpush1.bf16.msra.mxu0 %v13513
    %13647 = vmatprep.subr.bf16.mxu0 0
    %13648 = vmatpush1.bf16.msra.mxu0 %v13514
    %13649 = vmatprep.subr.bf16.mxu0 0
    %13650 = vmatpush1.bf16.msra.mxu0 %v13515
    %13651 = vmatprep.subr.bf16.mxu0 0
    %13652 = vmatpush1.bf16.msra.mxu0 %v13516
    %13653 = vmatprep.mubr.bf16.mxu0 %v13187
    %13654 = vmatmul.mubr.bf16.gmra.mrb[0].mxu0 %v13186
    %v13655 = vpop.f32.mrb[0].mxu0
    %v13656 = vadd.f32 %v13616, %v13655
    %v13657 = vpop.f32.mrb[0].mxu0
    %v13658 = vpop.f32.mrb[0].mxu0
    %v13659 = vpop.f32.mrb[0].mxu0
    %13660 = vdwg.mxu0
    %13661 = vmatprep.subr.bf16.mxu0 0
    %13662 = vmatpush1.bf16.msra.mxu0 %v13517
    %13663 = vmatprep.subr.bf16.mxu0 0
    %13664 = vmatpush1.bf16.msra.mxu0 %v13518
    %13665 = vmatprep.subr.bf16.mxu0 0
    %13666 = vmatpush1.bf16.msra.mxu0 %v13519
    %13667 = vmatprep.subr.bf16.mxu0 0
    %13668 = vmatpush1.bf16.msra.mxu0 %v13520
    %13669 = vmatprep.subr.bf16.mxu0 0
    %13670 = vmatpush1.bf16.msra.mxu0 %v13521
    %13671 = vmatprep.subr.bf16.mxu0 0
    %13672 = vmatpush1.bf16.msra.mxu0 %v13522
    %13673 = vmatprep.subr.bf16.mxu0 0
    %13674 = vmatpush1.bf16.msra.mxu0 %v13523
    %13675 = vmatprep.subr.bf16.mxu0 0
    %13676 = vmatpush1.bf16.msra.mxu0 %v13524
    %13677 = vmatprep.subr.bf16.mxu0 0
    %13678 = vmatpush1.bf16.msra.mxu0 %v13525
    %13679 = vmatprep.subr.bf16.mxu0 0
    %13680 = vmatpush1.bf16.msra.mxu0 %v13526
    %13681 = vmatprep.subr.bf16.mxu0 0
    %13682 = vmatpush1.bf16.msra.mxu0 %v13527
    %13683 = vmatprep.subr.bf16.mxu0 0
    %13684 = vmatpush1.bf16.msra.mxu0 %v13528
    %13685 = vmatprep.subr.bf16.mxu0 0
    %13686 = vmatpush1.bf16.msra.mxu0 %v13529
    %13687 = vmatprep.subr.bf16.mxu0 0
    %13688 = vmatpush1.bf16.msra.mxu0 %v13530
    %13689 = vmatprep.subr.bf16.mxu0 0
    %13690 = vmatpush1.bf16.msra.mxu0 %v13531
    %13691 = vmatprep.subr.bf16.mxu0 0
    %13692 = vmatpush1.bf16.msra.mxu0 %v13532
    %13693 = vmatprep.mubr.bf16.mxu0 %v13189
    %13694 = vmatmul.mubr.bf16.gmra.mrb[0].mxu0 %v13188
    %v13695 = vpop.f32.mrb[0].mxu0
    %v13696 = vadd.f32 %v13656, %v13695
    %v13697 = vpop.f32.mrb[0].mxu0
    %v13698 = vpop.f32.mrb[0].mxu0
    %v13699 = vpop.f32.mrb[0].mxu0
    %13700 = vdwg.mxu0
    %13701 = vst [vmem:[#allocation16] sm:$0xff] %v13696
    // Predicated region
    $region66: #{tpu_custom_call.1} parent=1 // pred_check
      _
    $region67: #{tpu_custom_call.1} parent=1 // pred_check_branch
      %13703 = sbr.rel (0) target = $region69
    $region68: #{tpu_custom_call.1} parent=1 // pred_region
      %s13705 = ssub.s32 128, 128
      %13706 = vsyncadd [#allocation4], %s13705
      %s13708 = sshll.u32 [#allocation16], 4
      %s13709 = int_to_ptr.vmem [resolvable:$true] %s13708
      %13711 = dma.vmem_to_hbm [thread:$0]  %s13709, 128, %s8, [#allocation4]
    $region69: #{tpu_custom_call.1} parent=1 // pred_fallthru
      _
    // Predicated region
    $region70: #{tpu_custom_call.1} parent=1 // pred_check
      _
    $region71: #{tpu_custom_call.1} parent=1 // pred_check_branch
      %13713 = sbr.rel (0) target = $region73
    $region72: #{tpu_custom_call.1} parent=1 // pred_region
      %13714 = dma.done [#allocation4], 128
    $region73: #{tpu_custom_call.1} parent=1 // pred_fallthru
      _
    %13715 = vsyncpa [#allocation3], 1
    %13716 = vsyncpa [#allocation6], 1
    %13717 = vsyncpa [#allocation9], 1
    %13718 = vsyncpa [#allocation12], 1
    %13719 = vsyncpa [#allocation15], 1
    %13720 = vsyncpa [#allocation4], 1

</llo_original>
